<compile_context>
chip_gen: v7x
topology: tpu7x:2x2x1
jax: 0.10.0
libtpu: 0.0.40
codegen_flags: <defaults>
</compile_context>

<pallas_src>
import jax
import jax.numpy as jnp
from jax.experimental import pallas as pl
from jax.experimental.pallas import tpu as pltpu

EPS = 1e-5


# ---------------------------------------------------------------------------
# Fused Pallas kernel: all four branches of InceptionC for one image
# ---------------------------------------------------------------------------

def _inception_c_kernel(x_ref, *refs):
    o_ref = refs[-1]
    (w_b1, b_b1,
     w_b2_1, b_b2_1, w_b2_2, b_b2_2, w_b2_3, b_b2_3,
     w_b3_1, b_b3_1, w_b3_2, b_b3_2, w_b3_3, b_b3_3,
     w_b3_4, b_b3_4, w_b3_5, b_b3_5,
     w_b4, b_b4) = refs[:-1]

    H, W, _ = x_ref.shape
    x = x_ref[...]                                     # (H, W, Cin) bf16

    def conv1x1(inp, w_ref, b_ref):
        # 1x1 conv == channel matmul on the MXU, + folded BN bias + ReLU (f32).
        cin = inp.shape[-1]
        cout = w_ref.shape[-1]
        lhs = inp.reshape(H * W, cin).astype(jnp.bfloat16)
        acc = jnp.dot(lhs, w_ref[...], preferred_element_type=jnp.float32)
        acc = acc.reshape(H, W, cout) + b_ref[...]
        return jnp.maximum(acc, 0.0)                   # f32

    def conv7(inp, w_ref, b_ref, axis):
        # 7-tap "same" conv along `axis` (0 = H i.e. (7,1) kernel,
        # 1 = W i.e. (1,7) kernel), + folded BN bias + ReLU.
        inp = inp.astype(jnp.float32)
        cin = inp.shape[-1]
        cout = w_ref.shape[-1]
        zshape = list(inp.shape)
        zshape[axis] = 3
        z = jnp.zeros(zshape, jnp.float32)
        xp = jnp.concatenate([z, inp, z], axis=axis)   # zero 'same' padding
        acc = jnp.zeros((H * W, cout), jnp.float32)
        for k in range(7):                             # static unroll -> 7 MXU matmuls
            if axis == 0:
                xs = xp[k:k + H, :, :]
            else:
                xs = xp[:, k:k + W, :]
            lhs = xs.astype(jnp.bfloat16).reshape(H * W, cin)
            acc = acc + jnp.dot(lhs, w_ref[k], preferred_element_type=jnp.float32)
        acc = acc.reshape(H, W, cout) + b_ref[...]
        return jnp.maximum(acc, 0.0)                   # f32

    # ---- branch 1: 1x1 -----------------------------------------------------
    b1 = conv1x1(x, w_b1, b_b1)

    # ---- branch 2: 1x1 -> (1,7) -> (7,1) ------------------------------------
    t = conv1x1(x, w_b2_1, b_b2_1)
    t = conv7(t, w_b2_2, b_b2_2, axis=1)
    b2 = conv7(t, w_b2_3, b_b2_3, axis=0)

    # ---- branch 3: 1x1 -> (7,1) -> (1,7) -> (7,1) -> (1,7) -------------------
    t = conv1x1(x, w_b3_1, b_b3_1)
    t = conv7(t, w_b3_2, b_b3_2, axis=0)
    t = conv7(t, w_b3_3, b_b3_3, axis=1)
    t = conv7(t, w_b3_4, b_b3_4, axis=0)
    b3 = conv7(t, w_b3_5, b_b3_5, axis=1)

    # ---- branch 4: avg_pool 3x3 (stride 1, pad 1, /9) -> 1x1 -----------------
    # Separable pool: 3-tap sum along H, then along W, single scale (f32 VPU).
    xf = x.astype(jnp.float32)
    cin = xf.shape[-1]
    zh = jnp.zeros((1, W, cin), jnp.float32)
    xh = jnp.concatenate([zh, xf, zh], axis=0)                    # (H+2, W, Cin)
    s = xh[0:H] + xh[1:H + 1] + xh[2:H + 2]                       # (H, W, Cin)
    zw = jnp.zeros((H, 1, cin), jnp.float32)
    sw = jnp.concatenate([zw, s, zw], axis=1)                     # (H, W+2, Cin)
    pooled = (sw[:, 0:W] + sw[:, 1:W + 1] + sw[:, 2:W + 2]) * (1.0 / 9.0)
    b4 = conv1x1(pooled, w_b4, b_b4)

    # ---- concat in VMEM, single lane-dense 768-channel store -----------------
    o_ref[...] = jnp.concatenate([b1, b2, b3, b4], axis=-1).astype(o_ref.dtype)


# ---------------------------------------------------------------------------
# Parameters (deterministic synthetic init) + BN folding
# ---------------------------------------------------------------------------

def make_basic_conv_params(key, cin, cout, ksize):
    """Synthetic Conv(bias=False)+BN params with BN folded into (w, b).
    ksize == 1 -> w: (Cin, Cout);  ksize == K -> w: (K, Cin, Cout)."""
    k1, k2, k3, k4, k5 = jax.random.split(key, 5)
    if ksize == 1:
        w = 0.1 * jax.random.normal(k1, (cin, cout), jnp.float32)
    else:
        w = 0.1 * jax.random.normal(k1, (ksize, cin, cout), jnp.float32)
    gamma = 1.0 + 0.1 * jax.random.normal(k2, (cout,), jnp.float32)
    beta = 0.1 * jax.random.normal(k3, (cout,), jnp.float32)
    running_mean = 0.1 * jax.random.normal(k4, (cout,), jnp.float32)
    running_var = 1.0 + jnp.abs(jax.random.normal(k5, (cout,), jnp.float32))
    scale = gamma / jnp.sqrt(running_var + EPS)
    w_folded = w * scale                 # broadcasts over trailing Cout dim
    b_folded = beta - running_mean * scale
    return w_folded, b_folded


_PARAM_ORDER = ("b1", "b2_1", "b2_2", "b2_3",
                "b3_1", "b3_2", "b3_3", "b3_4", "b3_5", "b4")


def init_inception_c(key, in_channels, features):
    ks = jax.random.split(key, 10)
    return {
        "b1":   make_basic_conv_params(ks[0], in_channels, 192, 1),
        "b2_1": make_basic_conv_params(ks[1], in_channels, features, 1),
        "b2_2": make_basic_conv_params(ks[2], features, features, 7),  # (1,7)
        "b2_3": make_basic_conv_params(ks[3], features, 192, 7),       # (7,1)
        "b3_1": make_basic_conv_params(ks[4], in_channels, features, 1),
        "b3_2": make_basic_conv_params(ks[5], features, features, 7),  # (7,1)
        "b3_3": make_basic_conv_params(ks[6], features, features, 7),  # (1,7)
        "b3_4": make_basic_conv_params(ks[7], features, features, 7),  # (7,1)
        "b3_5": make_basic_conv_params(ks[8], features, 192, 7),       # (1,7)
        "b4":   make_basic_conv_params(ks[9], in_channels, 192, 1),
    }


# ---------------------------------------------------------------------------
# Public forward (NCHW in / NCHW out, like the PyTorch module)
# ---------------------------------------------------------------------------

def inception_c_forward(params, x_nchw):
    x = jnp.transpose(x_nchw, (0, 2, 3, 1))          # NCHW -> NHWC
    N, H, W, Cin = x.shape
    x = x.astype(jnp.bfloat16)                       # bf16 activations on the wire

    operands = []
    in_specs = [pl.BlockSpec((None, H, W, Cin), lambda n: (n, 0, 0, 0))]
    for name in _PARAM_ORDER:
        w, b = params[name]
        wb = w.astype(jnp.bfloat16)                  # bf16 MXU operands
        bb = b.reshape(1, 1, -1).astype(jnp.float32)  # f32 folded BN bias
        operands.append(wb)
        operands.append(bb)
        in_specs.append(pl.BlockSpec(wb.shape, lambda n, nd=wb.ndim: (0,) * nd))
        in_specs.append(pl.BlockSpec(bb.shape, lambda n: (0, 0, 0)))

    cout_total = 4 * 192
    out = pl.pallas_call(
        _inception_c_kernel,
        out_shape=jax.ShapeDtypeStruct((N, H, W, cout_total), jnp.float32),
        grid=(N,),
        in_specs=in_specs,
        out_specs=pl.BlockSpec((None, H, W, cout_total), lambda n: (n, 0, 0, 0)),
        compiler_params=pltpu.CompilerParams(
            dimension_semantics=("parallel",),
            vmem_limit_bytes=48 * 1024 * 1024),      # fits v7x's 64 MiB VMEM
    )(x, *operands)

    return jnp.transpose(out, (0, 3, 1, 2))          # NHWC -> NCHW


if __name__ == "__main__":
    N, C_IN, H, W = 2, 16, 8, 8
    FEATURES = 8

    key = jax.random.PRNGKey(0)
    k_param, k_x = jax.random.split(key)
    params = init_inception_c(k_param, C_IN, FEATURES)
    x = jax.random.normal(k_x, (N, C_IN, H, W), jnp.float32)

    fwd = jax.jit(inception_c_forward)
    out = fwd(params, x)
    jax.block_until_ready(out)

    assert out.shape == (N, 4 * 192, H, W), out.shape
    assert out.dtype == jnp.float32
    print("KERNEL_OK")
</pallas_src>

<mosaic_0001>
module attributes {stable_mosaic.version = 11 : i64} {
  func.func @_inception_c_kernel(%arg0: i32, %arg1: memref<1x8x8x16xbf16, #tpu.memory_space<vmem>>, %arg2: memref<16x192xbf16, #tpu.memory_space<vmem>>, %arg3: memref<1x1x192xf32, #tpu.memory_space<vmem>>, %arg4: memref<16x8xbf16, #tpu.memory_space<vmem>>, %arg5: memref<1x1x8xf32, #tpu.memory_space<vmem>>, %arg6: memref<7x8x8xbf16, #tpu.memory_space<vmem>>, %arg7: memref<1x1x8xf32, #tpu.memory_space<vmem>>, %arg8: memref<7x8x192xbf16, #tpu.memory_space<vmem>>, %arg9: memref<1x1x192xf32, #tpu.memory_space<vmem>>, %arg10: memref<16x8xbf16, #tpu.memory_space<vmem>>, %arg11: memref<1x1x8xf32, #tpu.memory_space<vmem>>, %arg12: memref<7x8x8xbf16, #tpu.memory_space<vmem>>, %arg13: memref<1x1x8xf32, #tpu.memory_space<vmem>>, %arg14: memref<7x8x8xbf16, #tpu.memory_space<vmem>>, %arg15: memref<1x1x8xf32, #tpu.memory_space<vmem>>, %arg16: memref<7x8x8xbf16, #tpu.memory_space<vmem>>, %arg17: memref<1x1x8xf32, #tpu.memory_space<vmem>>, %arg18: memref<7x8x192xbf16, #tpu.memory_space<vmem>>, %arg19: memref<1x1x192xf32, #tpu.memory_space<vmem>>, %arg20: memref<16x192xbf16, #tpu.memory_space<vmem>>, %arg21: memref<1x1x192xf32, #tpu.memory_space<vmem>>, %arg22: memref<1x8x8x768xf32, #tpu.memory_space<vmem>>) attributes {dimension_semantics = [#tpu.dimension_semantics<parallel>], iteration_bounds = array<i64: 2>, scalar_prefetch = 0 : i64, scratch_operands = 0 : i64, tpu.core_type = #tpu.core_type<tc>, window_params = [{transform_indices = @transform_0, window_bounds = array<i64: 1, 8, 8, 16>}, {pipeline_mode = #tpu.pipeline_mode<synchronous>, transform_indices = @transform_1, window_bounds = array<i64: 16, 192>}, {pipeline_mode = #tpu.pipeline_mode<synchronous>, transform_indices = @transform_2, window_bounds = array<i64: 1, 1, 192>}, {pipeline_mode = #tpu.pipeline_mode<synchronous>, transform_indices = @transform_3, window_bounds = array<i64: 16, 8>}, {pipeline_mode = #tpu.pipeline_mode<synchronous>, transform_indices = @transform_4, window_bounds = array<i64: 1, 1, 8>}, {pipeline_mode = #tpu.pipeline_mode<synchronous>, transform_indices = @transform_5, window_bounds = array<i64: 7, 8, 8>}, {pipeline_mode = #tpu.pipeline_mode<synchronous>, transform_indices = @transform_6, window_bounds = array<i64: 1, 1, 8>}, {pipeline_mode = #tpu.pipeline_mode<synchronous>, transform_indices = @transform_7, window_bounds = array<i64: 7, 8, 192>}, {pipeline_mode = #tpu.pipeline_mode<synchronous>, transform_indices = @transform_8, window_bounds = array<i64: 1, 1, 192>}, {pipeline_mode = #tpu.pipeline_mode<synchronous>, transform_indices = @transform_9, window_bounds = array<i64: 16, 8>}, {pipeline_mode = #tpu.pipeline_mode<synchronous>, transform_indices = @transform_10, window_bounds = array<i64: 1, 1, 8>}, {pipeline_mode = #tpu.pipeline_mode<synchronous>, transform_indices = @transform_11, window_bounds = array<i64: 7, 8, 8>}, {pipeline_mode = #tpu.pipeline_mode<synchronous>, transform_indices = @transform_12, window_bounds = array<i64: 1, 1, 8>}, {pipeline_mode = #tpu.pipeline_mode<synchronous>, transform_indices = @transform_13, window_bounds = array<i64: 7, 8, 8>}, {pipeline_mode = #tpu.pipeline_mode<synchronous>, transform_indices = @transform_14, window_bounds = array<i64: 1, 1, 8>}, {pipeline_mode = #tpu.pipeline_mode<synchronous>, transform_indices = @transform_15, window_bounds = array<i64: 7, 8, 8>}, {pipeline_mode = #tpu.pipeline_mode<synchronous>, transform_indices = @transform_16, window_bounds = array<i64: 1, 1, 8>}, {pipeline_mode = #tpu.pipeline_mode<synchronous>, transform_indices = @transform_17, window_bounds = array<i64: 7, 8, 192>}, {pipeline_mode = #tpu.pipeline_mode<synchronous>, transform_indices = @transform_18, window_bounds = array<i64: 1, 1, 192>}, {pipeline_mode = #tpu.pipeline_mode<synchronous>, transform_indices = @transform_19, window_bounds = array<i64: 16, 192>}, {pipeline_mode = #tpu.pipeline_mode<synchronous>, transform_indices = @transform_20, window_bounds = array<i64: 1, 1, 192>}, {transform_indices = @transform_21, window_bounds = array<i64: 1, 8, 8, 768>}]} {
    %c0 = arith.constant 0 : index
    %c0_0 = arith.constant 0 : index
    %c0_1 = arith.constant 0 : index
    %c0_2 = arith.constant 0 : index
    %0 = vector.load %arg1[%c0, %c0_0, %c0_1, %c0_2] : memref<1x8x8x16xbf16, #tpu.memory_space<vmem>>, vector<1x8x8x16xbf16>
    %1 = vector.shape_cast %0 : vector<1x8x8x16xbf16> to vector<8x8x16xbf16>
    %2 = vector.shape_cast %1 : vector<8x8x16xbf16> to vector<64x16xbf16>
    %c0_3 = arith.constant 0 : index
    %c0_4 = arith.constant 0 : index
    %3 = vector.load %arg2[%c0_3, %c0_4] : memref<16x192xbf16, #tpu.memory_space<vmem>>, vector<16x192xbf16>
    %cst = arith.constant dense<0.000000e+00> : vector<64x192xf32>
    %4 = tpu.matmul %2, %3, %cst {dimension_numbers = #tpu.dot_dimension_numbers<[1], [0], [0], [1], [0, 0, 1, 1], [], []>} : vector<64x16xbf16>, vector<16x192xbf16>, vector<64x192xf32> -> vector<64x192xf32>
    %5 = vector.shape_cast %4 : vector<64x192xf32> to vector<8x8x192xf32>
    %c0_5 = arith.constant 0 : index
    %c0_6 = arith.constant 0 : index
    %c0_7 = arith.constant 0 : index
    %6 = vector.load %arg3[%c0_5, %c0_6, %c0_7] : memref<1x1x192xf32, #tpu.memory_space<vmem>>, vector<1x1x192xf32>
    %7 = vector.broadcast %6 : vector<1x1x192xf32> to vector<8x8x192xf32>
    %8 = arith.addf %5, %7 : vector<8x8x192xf32>
    %cst_8 = arith.constant 0.000000e+00 : f32
    %9 = vector.broadcast %cst_8 : f32 to vector<8x8x192xf32>
    %10 = arith.maximumf %8, %9 : vector<8x8x192xf32>
    %11 = vector.shape_cast %1 : vector<8x8x16xbf16> to vector<64x16xbf16>
    %c0_9 = arith.constant 0 : index
    %c0_10 = arith.constant 0 : index
    %12 = vector.load %arg4[%c0_9, %c0_10] : memref<16x8xbf16, #tpu.memory_space<vmem>>, vector<16x8xbf16>
    %cst_11 = arith.constant dense<0.000000e+00> : vector<64x8xf32>
    %13 = tpu.matmul %11, %12, %cst_11 {dimension_numbers = #tpu.dot_dimension_numbers<[1], [0], [0], [1], [0, 0, 1, 1], [], []>} : vector<64x16xbf16>, vector<16x8xbf16>, vector<64x8xf32> -> vector<64x8xf32>
    %14 = vector.shape_cast %13 : vector<64x8xf32> to vector<8x8x8xf32>
    %c0_12 = arith.constant 0 : index
    %c0_13 = arith.constant 0 : index
    %c0_14 = arith.constant 0 : index
    %15 = vector.load %arg5[%c0_12, %c0_13, %c0_14] : memref<1x1x8xf32, #tpu.memory_space<vmem>>, vector<1x1x8xf32>
    %16 = vector.broadcast %15 : vector<1x1x8xf32> to vector<8x8x8xf32>
    %17 = arith.addf %14, %16 : vector<8x8x8xf32>
    %cst_15 = arith.constant 0.000000e+00 : f32
    %18 = vector.broadcast %cst_15 : f32 to vector<8x8x8xf32>
    %19 = arith.maximumf %17, %18 : vector<8x8x8xf32>
    %cst_16 = arith.constant 0.000000e+00 : f32
    %20 = vector.broadcast %cst_16 : f32 to vector<8x3x8xf32>
    %21 = tpu.concatenate %20, %19, %20 in 1 : vector<8x3x8xf32>, vector<8x8x8xf32>, vector<8x3x8xf32> -> vector<8x14x8xf32>
    %cst_17 = arith.constant 0.000000e+00 : f32
    %22 = vector.broadcast %cst_17 : f32 to vector<64x8xf32>
    %23 = vector.extract_strided_slice %21 {offsets = [0, 0, 0], sizes = [8, 8, 8], strides = [1, 1, 1]} : vector<8x14x8xf32> to vector<8x8x8xf32>
    %24 = arith.truncf %23 : vector<8x8x8xf32> to vector<8x8x8xbf16>
    %25 = vector.shape_cast %24 : vector<8x8x8xbf16> to vector<64x8xbf16>
    %c0_18 = arith.constant 0 : index
    %c0_19 = arith.constant 0 : index
    %c0_20 = arith.constant 0 : index
    %26 = vector.load %arg6[%c0_18, %c0_19, %c0_20] : memref<7x8x8xbf16, #tpu.memory_space<vmem>>, vector<1x8x8xbf16>
    %27 = vector.shape_cast %26 : vector<1x8x8xbf16> to vector<8x8xbf16>
    %cst_21 = arith.constant dense<0.000000e+00> : vector<64x8xf32>
    %28 = tpu.matmul %25, %27, %cst_21 {dimension_numbers = #tpu.dot_dimension_numbers<[1], [0], [0], [1], [0, 0, 1, 1], [], []>} : vector<64x8xbf16>, vector<8x8xbf16>, vector<64x8xf32> -> vector<64x8xf32>
    %29 = arith.addf %22, %28 : vector<64x8xf32>
    %30 = vector.extract_strided_slice %21 {offsets = [0, 1, 0], sizes = [8, 8, 8], strides = [1, 1, 1]} : vector<8x14x8xf32> to vector<8x8x8xf32>
    %31 = arith.truncf %30 : vector<8x8x8xf32> to vector<8x8x8xbf16>
    %32 = vector.shape_cast %31 : vector<8x8x8xbf16> to vector<64x8xbf16>
    %c1 = arith.constant 1 : index
    %c0_22 = arith.constant 0 : index
    %c0_23 = arith.constant 0 : index
    %33 = vector.load %arg6[%c1, %c0_22, %c0_23] : memref<7x8x8xbf16, #tpu.memory_space<vmem>>, vector<1x8x8xbf16>
    %34 = vector.shape_cast %33 : vector<1x8x8xbf16> to vector<8x8xbf16>
    %cst_24 = arith.constant dense<0.000000e+00> : vector<64x8xf32>
    %35 = tpu.matmul %32, %34, %cst_24 {dimension_numbers = #tpu.dot_dimension_numbers<[1], [0], [0], [1], [0, 0, 1, 1], [], []>} : vector<64x8xbf16>, vector<8x8xbf16>, vector<64x8xf32> -> vector<64x8xf32>
    %36 = arith.addf %29, %35 : vector<64x8xf32>
    %37 = vector.extract_strided_slice %21 {offsets = [0, 2, 0], sizes = [8, 8, 8], strides = [1, 1, 1]} : vector<8x14x8xf32> to vector<8x8x8xf32>
    %38 = arith.truncf %37 : vector<8x8x8xf32> to vector<8x8x8xbf16>
    %39 = vector.shape_cast %38 : vector<8x8x8xbf16> to vector<64x8xbf16>
    %c2 = arith.constant 2 : index
    %c0_25 = arith.constant 0 : index
    %c0_26 = arith.constant 0 : index
    %40 = vector.load %arg6[%c2, %c0_25, %c0_26] : memref<7x8x8xbf16, #tpu.memory_space<vmem>>, vector<1x8x8xbf16>
    %41 = vector.shape_cast %40 : vector<1x8x8xbf16> to vector<8x8xbf16>
    %cst_27 = arith.constant dense<0.000000e+00> : vector<64x8xf32>
    %42 = tpu.matmul %39, %41, %cst_27 {dimension_numbers = #tpu.dot_dimension_numbers<[1], [0], [0], [1], [0, 0, 1, 1], [], []>} : vector<64x8xbf16>, vector<8x8xbf16>, vector<64x8xf32> -> vector<64x8xf32>
    %43 = arith.addf %36, %42 : vector<64x8xf32>
    %44 = vector.extract_strided_slice %21 {offsets = [0, 3, 0], sizes = [8, 8, 8], strides = [1, 1, 1]} : vector<8x14x8xf32> to vector<8x8x8xf32>
    %45 = arith.truncf %44 : vector<8x8x8xf32> to vector<8x8x8xbf16>
    %46 = vector.shape_cast %45 : vector<8x8x8xbf16> to vector<64x8xbf16>
    %c3 = arith.constant 3 : index
    %c0_28 = arith.constant 0 : index
    %c0_29 = arith.constant 0 : index
    %47 = vector.load %arg6[%c3, %c0_28, %c0_29] : memref<7x8x8xbf16, #tpu.memory_space<vmem>>, vector<1x8x8xbf16>
    %48 = vector.shape_cast %47 : vector<1x8x8xbf16> to vector<8x8xbf16>
    %cst_30 = arith.constant dense<0.000000e+00> : vector<64x8xf32>
    %49 = tpu.matmul %46, %48, %cst_30 {dimension_numbers = #tpu.dot_dimension_numbers<[1], [0], [0], [1], [0, 0, 1, 1], [], []>} : vector<64x8xbf16>, vector<8x8xbf16>, vector<64x8xf32> -> vector<64x8xf32>
    %50 = arith.addf %43, %49 : vector<64x8xf32>
    %51 = vector.extract_strided_slice %21 {offsets = [0, 4, 0], sizes = [8, 8, 8], strides = [1, 1, 1]} : vector<8x14x8xf32> to vector<8x8x8xf32>
    %52 = arith.truncf %51 : vector<8x8x8xf32> to vector<8x8x8xbf16>
    %53 = vector.shape_cast %52 : vector<8x8x8xbf16> to vector<64x8xbf16>
    %c4 = arith.constant 4 : index
    %c0_31 = arith.constant 0 : index
    %c0_32 = arith.constant 0 : index
    %54 = vector.load %arg6[%c4, %c0_31, %c0_32] : memref<7x8x8xbf16, #tpu.memory_space<vmem>>, vector<1x8x8xbf16>
    %55 = vector.shape_cast %54 : vector<1x8x8xbf16> to vector<8x8xbf16>
    %cst_33 = arith.constant dense<0.000000e+00> : vector<64x8xf32>
    %56 = tpu.matmul %53, %55, %cst_33 {dimension_numbers = #tpu.dot_dimension_numbers<[1], [0], [0], [1], [0, 0, 1, 1], [], []>} : vector<64x8xbf16>, vector<8x8xbf16>, vector<64x8xf32> -> vector<64x8xf32>
    %57 = arith.addf %50, %56 : vector<64x8xf32>
    %58 = vector.extract_strided_slice %21 {offsets = [0, 5, 0], sizes = [8, 8, 8], strides = [1, 1, 1]} : vector<8x14x8xf32> to vector<8x8x8xf32>
    %59 = arith.truncf %58 : vector<8x8x8xf32> to vector<8x8x8xbf16>
    %60 = vector.shape_cast %59 : vector<8x8x8xbf16> to vector<64x8xbf16>
    %c5 = arith.constant 5 : index
    %c0_34 = arith.constant 0 : index
    %c0_35 = arith.constant 0 : index
    %61 = vector.load %arg6[%c5, %c0_34, %c0_35] : memref<7x8x8xbf16, #tpu.memory_space<vmem>>, vector<1x8x8xbf16>
    %62 = vector.shape_cast %61 : vector<1x8x8xbf16> to vector<8x8xbf16>
    %cst_36 = arith.constant dense<0.000000e+00> : vector<64x8xf32>
    %63 = tpu.matmul %60, %62, %cst_36 {dimension_numbers = #tpu.dot_dimension_numbers<[1], [0], [0], [1], [0, 0, 1, 1], [], []>} : vector<64x8xbf16>, vector<8x8xbf16>, vector<64x8xf32> -> vector<64x8xf32>
    %64 = arith.addf %57, %63 : vector<64x8xf32>
    %65 = vector.extract_strided_slice %21 {offsets = [0, 6, 0], sizes = [8, 8, 8], strides = [1, 1, 1]} : vector<8x14x8xf32> to vector<8x8x8xf32>
    %66 = arith.truncf %65 : vector<8x8x8xf32> to vector<8x8x8xbf16>
    %67 = vector.shape_cast %66 : vector<8x8x8xbf16> to vector<64x8xbf16>
    %c6 = arith.constant 6 : index
    %c0_37 = arith.constant 0 : index
    %c0_38 = arith.constant 0 : index
    %68 = vector.load %arg6[%c6, %c0_37, %c0_38] : memref<7x8x8xbf16, #tpu.memory_space<vmem>>, vector<1x8x8xbf16>
    %69 = vector.shape_cast %68 : vector<1x8x8xbf16> to vector<8x8xbf16>
    %cst_39 = arith.constant dense<0.000000e+00> : vector<64x8xf32>
    %70 = tpu.matmul %67, %69, %cst_39 {dimension_numbers = #tpu.dot_dimension_numbers<[1], [0], [0], [1], [0, 0, 1, 1], [], []>} : vector<64x8xbf16>, vector<8x8xbf16>, vector<64x8xf32> -> vector<64x8xf32>
    %71 = arith.addf %64, %70 : vector<64x8xf32>
    %72 = vector.shape_cast %71 : vector<64x8xf32> to vector<8x8x8xf32>
    %c0_40 = arith.constant 0 : index
    %c0_41 = arith.constant 0 : index
    %c0_42 = arith.constant 0 : index
    %73 = vector.load %arg7[%c0_40, %c0_41, %c0_42] : memref<1x1x8xf32, #tpu.memory_space<vmem>>, vector<1x1x8xf32>
    %74 = vector.broadcast %73 : vector<1x1x8xf32> to vector<8x8x8xf32>
    %75 = arith.addf %72, %74 : vector<8x8x8xf32>
    %cst_43 = arith.constant 0.000000e+00 : f32
    %76 = vector.broadcast %cst_43 : f32 to vector<8x8x8xf32>
    %77 = arith.maximumf %75, %76 : vector<8x8x8xf32>
    %cst_44 = arith.constant 0.000000e+00 : f32
    %78 = vector.broadcast %cst_44 : f32 to vector<3x8x8xf32>
    %79 = tpu.concatenate %78, %77, %78 in 0 : vector<3x8x8xf32>, vector<8x8x8xf32>, vector<3x8x8xf32> -> vector<14x8x8xf32>
    %cst_45 = arith.constant 0.000000e+00 : f32
    %80 = vector.broadcast %cst_45 : f32 to vector<64x192xf32>
    %81 = vector.extract_strided_slice %79 {offsets = [0, 0, 0], sizes = [8, 8, 8], strides = [1, 1, 1]} : vector<14x8x8xf32> to vector<8x8x8xf32>
    %82 = arith.truncf %81 : vector<8x8x8xf32> to vector<8x8x8xbf16>
    %83 = vector.shape_cast %82 : vector<8x8x8xbf16> to vector<64x8xbf16>
    %c0_46 = arith.constant 0 : index
    %c0_47 = arith.constant 0 : index
    %c0_48 = arith.constant 0 : index
    %84 = vector.load %arg8[%c0_46, %c0_47, %c0_48] : memref<7x8x192xbf16, #tpu.memory_space<vmem>>, vector<1x8x192xbf16>
    %85 = vector.shape_cast %84 : vector<1x8x192xbf16> to vector<8x192xbf16>
    %cst_49 = arith.constant dense<0.000000e+00> : vector<64x192xf32>
    %86 = tpu.matmul %83, %85, %cst_49 {dimension_numbers = #tpu.dot_dimension_numbers<[1], [0], [0], [1], [0, 0, 1, 1], [], []>} : vector<64x8xbf16>, vector<8x192xbf16>, vector<64x192xf32> -> vector<64x192xf32>
    %87 = arith.addf %80, %86 : vector<64x192xf32>
    %88 = vector.extract_strided_slice %79 {offsets = [1, 0, 0], sizes = [8, 8, 8], strides = [1, 1, 1]} : vector<14x8x8xf32> to vector<8x8x8xf32>
    %89 = arith.truncf %88 : vector<8x8x8xf32> to vector<8x8x8xbf16>
    %90 = vector.shape_cast %89 : vector<8x8x8xbf16> to vector<64x8xbf16>
    %c1_50 = arith.constant 1 : index
    %c0_51 = arith.constant 0 : index
    %c0_52 = arith.constant 0 : index
    %91 = vector.load %arg8[%c1_50, %c0_51, %c0_52] : memref<7x8x192xbf16, #tpu.memory_space<vmem>>, vector<1x8x192xbf16>
    %92 = vector.shape_cast %91 : vector<1x8x192xbf16> to vector<8x192xbf16>
    %cst_53 = arith.constant dense<0.000000e+00> : vector<64x192xf32>
    %93 = tpu.matmul %90, %92, %cst_53 {dimension_numbers = #tpu.dot_dimension_numbers<[1], [0], [0], [1], [0, 0, 1, 1], [], []>} : vector<64x8xbf16>, vector<8x192xbf16>, vector<64x192xf32> -> vector<64x192xf32>
    %94 = arith.addf %87, %93 : vector<64x192xf32>
    %95 = vector.extract_strided_slice %79 {offsets = [2, 0, 0], sizes = [8, 8, 8], strides = [1, 1, 1]} : vector<14x8x8xf32> to vector<8x8x8xf32>
    %96 = arith.truncf %95 : vector<8x8x8xf32> to vector<8x8x8xbf16>
    %97 = vector.shape_cast %96 : vector<8x8x8xbf16> to vector<64x8xbf16>
    %c2_54 = arith.constant 2 : index
    %c0_55 = arith.constant 0 : index
    %c0_56 = arith.constant 0 : index
    %98 = vector.load %arg8[%c2_54, %c0_55, %c0_56] : memref<7x8x192xbf16, #tpu.memory_space<vmem>>, vector<1x8x192xbf16>
    %99 = vector.shape_cast %98 : vector<1x8x192xbf16> to vector<8x192xbf16>
    %cst_57 = arith.constant dense<0.000000e+00> : vector<64x192xf32>
    %100 = tpu.matmul %97, %99, %cst_57 {dimension_numbers = #tpu.dot_dimension_numbers<[1], [0], [0], [1], [0, 0, 1, 1], [], []>} : vector<64x8xbf16>, vector<8x192xbf16>, vector<64x192xf32> -> vector<64x192xf32>
    %101 = arith.addf %94, %100 : vector<64x192xf32>
    %102 = vector.extract_strided_slice %79 {offsets = [3, 0, 0], sizes = [8, 8, 8], strides = [1, 1, 1]} : vector<14x8x8xf32> to vector<8x8x8xf32>
    %103 = arith.truncf %102 : vector<8x8x8xf32> to vector<8x8x8xbf16>
    %104 = vector.shape_cast %103 : vector<8x8x8xbf16> to vector<64x8xbf16>
    %c3_58 = arith.constant 3 : index
    %c0_59 = arith.constant 0 : index
    %c0_60 = arith.constant 0 : index
    %105 = vector.load %arg8[%c3_58, %c0_59, %c0_60] : memref<7x8x192xbf16, #tpu.memory_space<vmem>>, vector<1x8x192xbf16>
    %106 = vector.shape_cast %105 : vector<1x8x192xbf16> to vector<8x192xbf16>
    %cst_61 = arith.constant dense<0.000000e+00> : vector<64x192xf32>
    %107 = tpu.matmul %104, %106, %cst_61 {dimension_numbers = #tpu.dot_dimension_numbers<[1], [0], [0], [1], [0, 0, 1, 1], [], []>} : vector<64x8xbf16>, vector<8x192xbf16>, vector<64x192xf32> -> vector<64x192xf32>
    %108 = arith.addf %101, %107 : vector<64x192xf32>
    %109 = vector.extract_strided_slice %79 {offsets = [4, 0, 0], sizes = [8, 8, 8], strides = [1, 1, 1]} : vector<14x8x8xf32> to vector<8x8x8xf32>
    %110 = arith.truncf %109 : vector<8x8x8xf32> to vector<8x8x8xbf16>
    %111 = vector.shape_cast %110 : vector<8x8x8xbf16> to vector<64x8xbf16>
    %c4_62 = arith.constant 4 : index
    %c0_63 = arith.constant 0 : index
    %c0_64 = arith.constant 0 : index
    %112 = vector.load %arg8[%c4_62, %c0_63, %c0_64] : memref<7x8x192xbf16, #tpu.memory_space<vmem>>, vector<1x8x192xbf16>
    %113 = vector.shape_cast %112 : vector<1x8x192xbf16> to vector<8x192xbf16>
    %cst_65 = arith.constant dense<0.000000e+00> : vector<64x192xf32>
    %114 = tpu.matmul %111, %113, %cst_65 {dimension_numbers = #tpu.dot_dimension_numbers<[1], [0], [0], [1], [0, 0, 1, 1], [], []>} : vector<64x8xbf16>, vector<8x192xbf16>, vector<64x192xf32> -> vector<64x192xf32>
    %115 = arith.addf %108, %114 : vector<64x192xf32>
    %116 = vector.extract_strided_slice %79 {offsets = [5, 0, 0], sizes = [8, 8, 8], strides = [1, 1, 1]} : vector<14x8x8xf32> to vector<8x8x8xf32>
    %117 = arith.truncf %116 : vector<8x8x8xf32> to vector<8x8x8xbf16>
    %118 = vector.shape_cast %117 : vector<8x8x8xbf16> to vector<64x8xbf16>
    %c5_66 = arith.constant 5 : index
    %c0_67 = arith.constant 0 : index
    %c0_68 = arith.constant 0 : index
    %119 = vector.load %arg8[%c5_66, %c0_67, %c0_68] : memref<7x8x192xbf16, #tpu.memory_space<vmem>>, vector<1x8x192xbf16>
    %120 = vector.shape_cast %119 : vector<1x8x192xbf16> to vector<8x192xbf16>
    %cst_69 = arith.constant dense<0.000000e+00> : vector<64x192xf32>
    %121 = tpu.matmul %118, %120, %cst_69 {dimension_numbers = #tpu.dot_dimension_numbers<[1], [0], [0], [1], [0, 0, 1, 1], [], []>} : vector<64x8xbf16>, vector<8x192xbf16>, vector<64x192xf32> -> vector<64x192xf32>
    %122 = arith.addf %115, %121 : vector<64x192xf32>
    %123 = vector.extract_strided_slice %79 {offsets = [6, 0, 0], sizes = [8, 8, 8], strides = [1, 1, 1]} : vector<14x8x8xf32> to vector<8x8x8xf32>
    %124 = arith.truncf %123 : vector<8x8x8xf32> to vector<8x8x8xbf16>
    %125 = vector.shape_cast %124 : vector<8x8x8xbf16> to vector<64x8xbf16>
    %c6_70 = arith.constant 6 : index
    %c0_71 = arith.constant 0 : index
    %c0_72 = arith.constant 0 : index
    %126 = vector.load %arg8[%c6_70, %c0_71, %c0_72] : memref<7x8x192xbf16, #tpu.memory_space<vmem>>, vector<1x8x192xbf16>
    %127 = vector.shape_cast %126 : vector<1x8x192xbf16> to vector<8x192xbf16>
    %cst_73 = arith.constant dense<0.000000e+00> : vector<64x192xf32>
    %128 = tpu.matmul %125, %127, %cst_73 {dimension_numbers = #tpu.dot_dimension_numbers<[1], [0], [0], [1], [0, 0, 1, 1], [], []>} : vector<64x8xbf16>, vector<8x192xbf16>, vector<64x192xf32> -> vector<64x192xf32>
    %129 = arith.addf %122, %128 : vector<64x192xf32>
    %130 = vector.shape_cast %129 : vector<64x192xf32> to vector<8x8x192xf32>
    %c0_74 = arith.constant 0 : index
    %c0_75 = arith.constant 0 : index
    %c0_76 = arith.constant 0 : index
    %131 = vector.load %arg9[%c0_74, %c0_75, %c0_76] : memref<1x1x192xf32, #tpu.memory_space<vmem>>, vector<1x1x192xf32>
    %132 = vector.broadcast %131 : vector<1x1x192xf32> to vector<8x8x192xf32>
    %133 = arith.addf %130, %132 : vector<8x8x192xf32>
    %cst_77 = arith.constant 0.000000e+00 : f32
    %134 = vector.broadcast %cst_77 : f32 to vector<8x8x192xf32>
    %135 = arith.maximumf %133, %134 : vector<8x8x192xf32>
    %136 = vector.shape_cast %1 : vector<8x8x16xbf16> to vector<64x16xbf16>
    %c0_78 = arith.constant 0 : index
    %c0_79 = arith.constant 0 : index
    %137 = vector.load %arg10[%c0_78, %c0_79] : memref<16x8xbf16, #tpu.memory_space<vmem>>, vector<16x8xbf16>
    %cst_80 = arith.constant dense<0.000000e+00> : vector<64x8xf32>
    %138 = tpu.matmul %136, %137, %cst_80 {dimension_numbers = #tpu.dot_dimension_numbers<[1], [0], [0], [1], [0, 0, 1, 1], [], []>} : vector<64x16xbf16>, vector<16x8xbf16>, vector<64x8xf32> -> vector<64x8xf32>
    %139 = vector.shape_cast %138 : vector<64x8xf32> to vector<8x8x8xf32>
    %c0_81 = arith.constant 0 : index
    %c0_82 = arith.constant 0 : index
    %c0_83 = arith.constant 0 : index
    %140 = vector.load %arg11[%c0_81, %c0_82, %c0_83] : memref<1x1x8xf32, #tpu.memory_space<vmem>>, vector<1x1x8xf32>
    %141 = vector.broadcast %140 : vector<1x1x8xf32> to vector<8x8x8xf32>
    %142 = arith.addf %139, %141 : vector<8x8x8xf32>
    %cst_84 = arith.constant 0.000000e+00 : f32
    %143 = vector.broadcast %cst_84 : f32 to vector<8x8x8xf32>
    %144 = arith.maximumf %142, %143 : vector<8x8x8xf32>
    %cst_85 = arith.constant 0.000000e+00 : f32
    %145 = vector.broadcast %cst_85 : f32 to vector<3x8x8xf32>
    %146 = tpu.concatenate %145, %144, %145 in 0 : vector<3x8x8xf32>, vector<8x8x8xf32>, vector<3x8x8xf32> -> vector<14x8x8xf32>
    %cst_86 = arith.constant 0.000000e+00 : f32
    %147 = vector.broadcast %cst_86 : f32 to vector<64x8xf32>
    %148 = vector.extract_strided_slice %146 {offsets = [0, 0, 0], sizes = [8, 8, 8], strides = [1, 1, 1]} : vector<14x8x8xf32> to vector<8x8x8xf32>
    %149 = arith.truncf %148 : vector<8x8x8xf32> to vector<8x8x8xbf16>
    %150 = vector.shape_cast %149 : vector<8x8x8xbf16> to vector<64x8xbf16>
    %c0_87 = arith.constant 0 : index
    %c0_88 = arith.constant 0 : index
    %c0_89 = arith.constant 0 : index
    %151 = vector.load %arg12[%c0_87, %c0_88, %c0_89] : memref<7x8x8xbf16, #tpu.memory_space<vmem>>, vector<1x8x8xbf16>
    %152 = vector.shape_cast %151 : vector<1x8x8xbf16> to vector<8x8xbf16>
    %cst_90 = arith.constant dense<0.000000e+00> : vector<64x8xf32>
    %153 = tpu.matmul %150, %152, %cst_90 {dimension_numbers = #tpu.dot_dimension_numbers<[1], [0], [0], [1], [0, 0, 1, 1], [], []>} : vector<64x8xbf16>, vector<8x8xbf16>, vector<64x8xf32> -> vector<64x8xf32>
    %154 = arith.addf %147, %153 : vector<64x8xf32>
    %155 = vector.extract_strided_slice %146 {offsets = [1, 0, 0], sizes = [8, 8, 8], strides = [1, 1, 1]} : vector<14x8x8xf32> to vector<8x8x8xf32>
    %156 = arith.truncf %155 : vector<8x8x8xf32> to vector<8x8x8xbf16>
    %157 = vector.shape_cast %156 : vector<8x8x8xbf16> to vector<64x8xbf16>
    %c1_91 = arith.constant 1 : index
    %c0_92 = arith.constant 0 : index
    %c0_93 = arith.constant 0 : index
    %158 = vector.load %arg12[%c1_91, %c0_92, %c0_93] : memref<7x8x8xbf16, #tpu.memory_space<vmem>>, vector<1x8x8xbf16>
    %159 = vector.shape_cast %158 : vector<1x8x8xbf16> to vector<8x8xbf16>
    %cst_94 = arith.constant dense<0.000000e+00> : vector<64x8xf32>
    %160 = tpu.matmul %157, %159, %cst_94 {dimension_numbers = #tpu.dot_dimension_numbers<[1], [0], [0], [1], [0, 0, 1, 1], [], []>} : vector<64x8xbf16>, vector<8x8xbf16>, vector<64x8xf32> -> vector<64x8xf32>
    %161 = arith.addf %154, %160 : vector<64x8xf32>
    %162 = vector.extract_strided_slice %146 {offsets = [2, 0, 0], sizes = [8, 8, 8], strides = [1, 1, 1]} : vector<14x8x8xf32> to vector<8x8x8xf32>
    %163 = arith.truncf %162 : vector<8x8x8xf32> to vector<8x8x8xbf16>
    %164 = vector.shape_cast %163 : vector<8x8x8xbf16> to vector<64x8xbf16>
    %c2_95 = arith.constant 2 : index
    %c0_96 = arith.constant 0 : index
    %c0_97 = arith.constant 0 : index
    %165 = vector.load %arg12[%c2_95, %c0_96, %c0_97] : memref<7x8x8xbf16, #tpu.memory_space<vmem>>, vector<1x8x8xbf16>
    %166 = vector.shape_cast %165 : vector<1x8x8xbf16> to vector<8x8xbf16>
    %cst_98 = arith.constant dense<0.000000e+00> : vector<64x8xf32>
    %167 = tpu.matmul %164, %166, %cst_98 {dimension_numbers = #tpu.dot_dimension_numbers<[1], [0], [0], [1], [0, 0, 1, 1], [], []>} : vector<64x8xbf16>, vector<8x8xbf16>, vector<64x8xf32> -> vector<64x8xf32>
    %168 = arith.addf %161, %167 : vector<64x8xf32>
    %169 = vector.extract_strided_slice %146 {offsets = [3, 0, 0], sizes = [8, 8, 8], strides = [1, 1, 1]} : vector<14x8x8xf32> to vector<8x8x8xf32>
    %170 = arith.truncf %169 : vector<8x8x8xf32> to vector<8x8x8xbf16>
    %171 = vector.shape_cast %170 : vector<8x8x8xbf16> to vector<64x8xbf16>
    %c3_99 = arith.constant 3 : index
    %c0_100 = arith.constant 0 : index
    %c0_101 = arith.constant 0 : index
    %172 = vector.load %arg12[%c3_99, %c0_100, %c0_101] : memref<7x8x8xbf16, #tpu.memory_space<vmem>>, vector<1x8x8xbf16>
    %173 = vector.shape_cast %172 : vector<1x8x8xbf16> to vector<8x8xbf16>
    %cst_102 = arith.constant dense<0.000000e+00> : vector<64x8xf32>
    %174 = tpu.matmul %171, %173, %cst_102 {dimension_numbers = #tpu.dot_dimension_numbers<[1], [0], [0], [1], [0, 0, 1, 1], [], []>} : vector<64x8xbf16>, vector<8x8xbf16>, vector<64x8xf32> -> vector<64x8xf32>
    %175 = arith.addf %168, %174 : vector<64x8xf32>
    %176 = vector.extract_strided_slice %146 {offsets = [4, 0, 0], sizes = [8, 8, 8], strides = [1, 1, 1]} : vector<14x8x8xf32> to vector<8x8x8xf32>
    %177 = arith.truncf %176 : vector<8x8x8xf32> to vector<8x8x8xbf16>
    %178 = vector.shape_cast %177 : vector<8x8x8xbf16> to vector<64x8xbf16>
    %c4_103 = arith.constant 4 : index
    %c0_104 = arith.constant 0 : index
    %c0_105 = arith.constant 0 : index
    %179 = vector.load %arg12[%c4_103, %c0_104, %c0_105] : memref<7x8x8xbf16, #tpu.memory_space<vmem>>, vector<1x8x8xbf16>
    %180 = vector.shape_cast %179 : vector<1x8x8xbf16> to vector<8x8xbf16>
    %cst_106 = arith.constant dense<0.000000e+00> : vector<64x8xf32>
    %181 = tpu.matmul %178, %180, %cst_106 {dimension_numbers = #tpu.dot_dimension_numbers<[1], [0], [0], [1], [0, 0, 1, 1], [], []>} : vector<64x8xbf16>, vector<8x8xbf16>, vector<64x8xf32> -> vector<64x8xf32>
    %182 = arith.addf %175, %181 : vector<64x8xf32>
    %183 = vector.extract_strided_slice %146 {offsets = [5, 0, 0], sizes = [8, 8, 8], strides = [1, 1, 1]} : vector<14x8x8xf32> to vector<8x8x8xf32>
    %184 = arith.truncf %183 : vector<8x8x8xf32> to vector<8x8x8xbf16>
    %185 = vector.shape_cast %184 : vector<8x8x8xbf16> to vector<64x8xbf16>
    %c5_107 = arith.constant 5 : index
    %c0_108 = arith.constant 0 : index
    %c0_109 = arith.constant 0 : index
    %186 = vector.load %arg12[%c5_107, %c0_108, %c0_109] : memref<7x8x8xbf16, #tpu.memory_space<vmem>>, vector<1x8x8xbf16>
    %187 = vector.shape_cast %186 : vector<1x8x8xbf16> to vector<8x8xbf16>
    %cst_110 = arith.constant dense<0.000000e+00> : vector<64x8xf32>
    %188 = tpu.matmul %185, %187, %cst_110 {dimension_numbers = #tpu.dot_dimension_numbers<[1], [0], [0], [1], [0, 0, 1, 1], [], []>} : vector<64x8xbf16>, vector<8x8xbf16>, vector<64x8xf32> -> vector<64x8xf32>
    %189 = arith.addf %182, %188 : vector<64x8xf32>
    %190 = vector.extract_strided_slice %146 {offsets = [6, 0, 0], sizes = [8, 8, 8], strides = [1, 1, 1]} : vector<14x8x8xf32> to vector<8x8x8xf32>
    %191 = arith.truncf %190 : vector<8x8x8xf32> to vector<8x8x8xbf16>
    %192 = vector.shape_cast %191 : vector<8x8x8xbf16> to vector<64x8xbf16>
    %c6_111 = arith.constant 6 : index
    %c0_112 = arith.constant 0 : index
    %c0_113 = arith.constant 0 : index
    %193 = vector.load %arg12[%c6_111, %c0_112, %c0_113] : memref<7x8x8xbf16, #tpu.memory_space<vmem>>, vector<1x8x8xbf16>
    %194 = vector.shape_cast %193 : vector<1x8x8xbf16> to vector<8x8xbf16>
    %cst_114 = arith.constant dense<0.000000e+00> : vector<64x8xf32>
    %195 = tpu.matmul %192, %194, %cst_114 {dimension_numbers = #tpu.dot_dimension_numbers<[1], [0], [0], [1], [0, 0, 1, 1], [], []>} : vector<64x8xbf16>, vector<8x8xbf16>, vector<64x8xf32> -> vector<64x8xf32>
    %196 = arith.addf %189, %195 : vector<64x8xf32>
    %197 = vector.shape_cast %196 : vector<64x8xf32> to vector<8x8x8xf32>
    %c0_115 = arith.constant 0 : index
    %c0_116 = arith.constant 0 : index
    %c0_117 = arith.constant 0 : index
    %198 = vector.load %arg13[%c0_115, %c0_116, %c0_117] : memref<1x1x8xf32, #tpu.memory_space<vmem>>, vector<1x1x8xf32>
    %199 = vector.broadcast %198 : vector<1x1x8xf32> to vector<8x8x8xf32>
    %200 = arith.addf %197, %199 : vector<8x8x8xf32>
    %cst_118 = arith.constant 0.000000e+00 : f32
    %201 = vector.broadcast %cst_118 : f32 to vector<8x8x8xf32>
    %202 = arith.maximumf %200, %201 : vector<8x8x8xf32>
    %cst_119 = arith.constant 0.000000e+00 : f32
    %203 = vector.broadcast %cst_119 : f32 to vector<8x3x8xf32>
    %204 = tpu.concatenate %203, %202, %203 in 1 : vector<8x3x8xf32>, vector<8x8x8xf32>, vector<8x3x8xf32> -> vector<8x14x8xf32>
    %cst_120 = arith.constant 0.000000e+00 : f32
    %205 = vector.broadcast %cst_120 : f32 to vector<64x8xf32>
    %206 = vector.extract_strided_slice %204 {offsets = [0, 0, 0], sizes = [8, 8, 8], strides = [1, 1, 1]} : vector<8x14x8xf32> to vector<8x8x8xf32>
    %207 = arith.truncf %206 : vector<8x8x8xf32> to vector<8x8x8xbf16>
    %208 = vector.shape_cast %207 : vector<8x8x8xbf16> to vector<64x8xbf16>
    %c0_121 = arith.constant 0 : index
    %c0_122 = arith.constant 0 : index
    %c0_123 = arith.constant 0 : index
    %209 = vector.load %arg14[%c0_121, %c0_122, %c0_123] : memref<7x8x8xbf16, #tpu.memory_space<vmem>>, vector<1x8x8xbf16>
    %210 = vector.shape_cast %209 : vector<1x8x8xbf16> to vector<8x8xbf16>
    %cst_124 = arith.constant dense<0.000000e+00> : vector<64x8xf32>
    %211 = tpu.matmul %208, %210, %cst_124 {dimension_numbers = #tpu.dot_dimension_numbers<[1], [0], [0], [1], [0, 0, 1, 1], [], []>} : vector<64x8xbf16>, vector<8x8xbf16>, vector<64x8xf32> -> vector<64x8xf32>
    %212 = arith.addf %205, %211 : vector<64x8xf32>
    %213 = vector.extract_strided_slice %204 {offsets = [0, 1, 0], sizes = [8, 8, 8], strides = [1, 1, 1]} : vector<8x14x8xf32> to vector<8x8x8xf32>
    %214 = arith.truncf %213 : vector<8x8x8xf32> to vector<8x8x8xbf16>
    %215 = vector.shape_cast %214 : vector<8x8x8xbf16> to vector<64x8xbf16>
    %c1_125 = arith.constant 1 : index
    %c0_126 = arith.constant 0 : index
    %c0_127 = arith.constant 0 : index
    %216 = vector.load %arg14[%c1_125, %c0_126, %c0_127] : memref<7x8x8xbf16, #tpu.memory_space<vmem>>, vector<1x8x8xbf16>
    %217 = vector.shape_cast %216 : vector<1x8x8xbf16> to vector<8x8xbf16>
    %cst_128 = arith.constant dense<0.000000e+00> : vector<64x8xf32>
    %218 = tpu.matmul %215, %217, %cst_128 {dimension_numbers = #tpu.dot_dimension_numbers<[1], [0], [0], [1], [0, 0, 1, 1], [], []>} : vector<64x8xbf16>, vector<8x8xbf16>, vector<64x8xf32> -> vector<64x8xf32>
    %219 = arith.addf %212, %218 : vector<64x8xf32>
    %220 = vector.extract_strided_slice %204 {offsets = [0, 2, 0], sizes = [8, 8, 8], strides = [1, 1, 1]} : vector<8x14x8xf32> to vector<8x8x8xf32>
    %221 = arith.truncf %220 : vector<8x8x8xf32> to vector<8x8x8xbf16>
    %222 = vector.shape_cast %221 : vector<8x8x8xbf16> to vector<64x8xbf16>
    %c2_129 = arith.constant 2 : index
    %c0_130 = arith.constant 0 : index
    %c0_131 = arith.constant 0 : index
    %223 = vector.load %arg14[%c2_129, %c0_130, %c0_131] : memref<7x8x8xbf16, #tpu.memory_space<vmem>>, vector<1x8x8xbf16>
    %224 = vector.shape_cast %223 : vector<1x8x8xbf16> to vector<8x8xbf16>
    %cst_132 = arith.constant dense<0.000000e+00> : vector<64x8xf32>
    %225 = tpu.matmul %222, %224, %cst_132 {dimension_numbers = #tpu.dot_dimension_numbers<[1], [0], [0], [1], [0, 0, 1, 1], [], []>} : vector<64x8xbf16>, vector<8x8xbf16>, vector<64x8xf32> -> vector<64x8xf32>
    %226 = arith.addf %219, %225 : vector<64x8xf32>
    %227 = vector.extract_strided_slice %204 {offsets = [0, 3, 0], sizes = [8, 8, 8], strides = [1, 1, 1]} : vector<8x14x8xf32> to vector<8x8x8xf32>
    %228 = arith.truncf %227 : vector<8x8x8xf32> to vector<8x8x8xbf16>
    %229 = vector.shape_cast %228 : vector<8x8x8xbf16> to vector<64x8xbf16>
    %c3_133 = arith.constant 3 : index
    %c0_134 = arith.constant 0 : index
    %c0_135 = arith.constant 0 : index
    %230 = vector.load %arg14[%c3_133, %c0_134, %c0_135] : memref<7x8x8xbf16, #tpu.memory_space<vmem>>, vector<1x8x8xbf16>
    %231 = vector.shape_cast %230 : vector<1x8x8xbf16> to vector<8x8xbf16>
    %cst_136 = arith.constant dense<0.000000e+00> : vector<64x8xf32>
    %232 = tpu.matmul %229, %231, %cst_136 {dimension_numbers = #tpu.dot_dimension_numbers<[1], [0], [0], [1], [0, 0, 1, 1], [], []>} : vector<64x8xbf16>, vector<8x8xbf16>, vector<64x8xf32> -> vector<64x8xf32>
    %233 = arith.addf %226, %232 : vector<64x8xf32>
    %234 = vector.extract_strided_slice %204 {offsets = [0, 4, 0], sizes = [8, 8, 8], strides = [1, 1, 1]} : vector<8x14x8xf32> to vector<8x8x8xf32>
    %235 = arith.truncf %234 : vector<8x8x8xf32> to vector<8x8x8xbf16>
    %236 = vector.shape_cast %235 : vector<8x8x8xbf16> to vector<64x8xbf16>
    %c4_137 = arith.constant 4 : index
    %c0_138 = arith.constant 0 : index
    %c0_139 = arith.constant 0 : index
    %237 = vector.load %arg14[%c4_137, %c0_138, %c0_139] : memref<7x8x8xbf16, #tpu.memory_space<vmem>>, vector<1x8x8xbf16>
    %238 = vector.shape_cast %237 : vector<1x8x8xbf16> to vector<8x8xbf16>
    %cst_140 = arith.constant dense<0.000000e+00> : vector<64x8xf32>
    %239 = tpu.matmul %236, %238, %cst_140 {dimension_numbers = #tpu.dot_dimension_numbers<[1], [0], [0], [1], [0, 0, 1, 1], [], []>} : vector<64x8xbf16>, vector<8x8xbf16>, vector<64x8xf32> -> vector<64x8xf32>
    %240 = arith.addf %233, %239 : vector<64x8xf32>
    %241 = vector.extract_strided_slice %204 {offsets = [0, 5, 0], sizes = [8, 8, 8], strides = [1, 1, 1]} : vector<8x14x8xf32> to vector<8x8x8xf32>
    %242 = arith.truncf %241 : vector<8x8x8xf32> to vector<8x8x8xbf16>
    %243 = vector.shape_cast %242 : vector<8x8x8xbf16> to vector<64x8xbf16>
    %c5_141 = arith.constant 5 : index
    %c0_142 = arith.constant 0 : index
    %c0_143 = arith.constant 0 : index
    %244 = vector.load %arg14[%c5_141, %c0_142, %c0_143] : memref<7x8x8xbf16, #tpu.memory_space<vmem>>, vector<1x8x8xbf16>
    %245 = vector.shape_cast %244 : vector<1x8x8xbf16> to vector<8x8xbf16>
    %cst_144 = arith.constant dense<0.000000e+00> : vector<64x8xf32>
    %246 = tpu.matmul %243, %245, %cst_144 {dimension_numbers = #tpu.dot_dimension_numbers<[1], [0], [0], [1], [0, 0, 1, 1], [], []>} : vector<64x8xbf16>, vector<8x8xbf16>, vector<64x8xf32> -> vector<64x8xf32>
    %247 = arith.addf %240, %246 : vector<64x8xf32>
    %248 = vector.extract_strided_slice %204 {offsets = [0, 6, 0], sizes = [8, 8, 8], strides = [1, 1, 1]} : vector<8x14x8xf32> to vector<8x8x8xf32>
    %249 = arith.truncf %248 : vector<8x8x8xf32> to vector<8x8x8xbf16>
    %250 = vector.shape_cast %249 : vector<8x8x8xbf16> to vector<64x8xbf16>
    %c6_145 = arith.constant 6 : index
    %c0_146 = arith.constant 0 : index
    %c0_147 = arith.constant 0 : index
    %251 = vector.load %arg14[%c6_145, %c0_146, %c0_147] : memref<7x8x8xbf16, #tpu.memory_space<vmem>>, vector<1x8x8xbf16>
    %252 = vector.shape_cast %251 : vector<1x8x8xbf16> to vector<8x8xbf16>
    %cst_148 = arith.constant dense<0.000000e+00> : vector<64x8xf32>
    %253 = tpu.matmul %250, %252, %cst_148 {dimension_numbers = #tpu.dot_dimension_numbers<[1], [0], [0], [1], [0, 0, 1, 1], [], []>} : vector<64x8xbf16>, vector<8x8xbf16>, vector<64x8xf32> -> vector<64x8xf32>
    %254 = arith.addf %247, %253 : vector<64x8xf32>
    %255 = vector.shape_cast %254 : vector<64x8xf32> to vector<8x8x8xf32>
    %c0_149 = arith.constant 0 : index
    %c0_150 = arith.constant 0 : index
    %c0_151 = arith.constant 0 : index
    %256 = vector.load %arg15[%c0_149, %c0_150, %c0_151] : memref<1x1x8xf32, #tpu.memory_space<vmem>>, vector<1x1x8xf32>
    %257 = vector.broadcast %256 : vector<1x1x8xf32> to vector<8x8x8xf32>
    %258 = arith.addf %255, %257 : vector<8x8x8xf32>
    %cst_152 = arith.constant 0.000000e+00 : f32
    %259 = vector.broadcast %cst_152 : f32 to vector<8x8x8xf32>
    %260 = arith.maximumf %258, %259 : vector<8x8x8xf32>
    %cst_153 = arith.constant 0.000000e+00 : f32
    %261 = vector.broadcast %cst_153 : f32 to vector<3x8x8xf32>
    %262 = tpu.concatenate %261, %260, %261 in 0 : vector<3x8x8xf32>, vector<8x8x8xf32>, vector<3x8x8xf32> -> vector<14x8x8xf32>
    %cst_154 = arith.constant 0.000000e+00 : f32
    %263 = vector.broadcast %cst_154 : f32 to vector<64x8xf32>
    %264 = vector.extract_strided_slice %262 {offsets = [0, 0, 0], sizes = [8, 8, 8], strides = [1, 1, 1]} : vector<14x8x8xf32> to vector<8x8x8xf32>
    %265 = arith.truncf %264 : vector<8x8x8xf32> to vector<8x8x8xbf16>
    %266 = vector.shape_cast %265 : vector<8x8x8xbf16> to vector<64x8xbf16>
    %c0_155 = arith.constant 0 : index
    %c0_156 = arith.constant 0 : index
    %c0_157 = arith.constant 0 : index
    %267 = vector.load %arg16[%c0_155, %c0_156, %c0_157] : memref<7x8x8xbf16, #tpu.memory_space<vmem>>, vector<1x8x8xbf16>
    %268 = vector.shape_cast %267 : vector<1x8x8xbf16> to vector<8x8xbf16>
    %cst_158 = arith.constant dense<0.000000e+00> : vector<64x8xf32>
    %269 = tpu.matmul %266, %268, %cst_158 {dimension_numbers = #tpu.dot_dimension_numbers<[1], [0], [0], [1], [0, 0, 1, 1], [], []>} : vector<64x8xbf16>, vector<8x8xbf16>, vector<64x8xf32> -> vector<64x8xf32>
    %270 = arith.addf %263, %269 : vector<64x8xf32>
    %271 = vector.extract_strided_slice %262 {offsets = [1, 0, 0], sizes = [8, 8, 8], strides = [1, 1, 1]} : vector<14x8x8xf32> to vector<8x8x8xf32>
    %272 = arith.truncf %271 : vector<8x8x8xf32> to vector<8x8x8xbf16>
    %273 = vector.shape_cast %272 : vector<8x8x8xbf16> to vector<64x8xbf16>
    %c1_159 = arith.constant 1 : index
    %c0_160 = arith.constant 0 : index
    %c0_161 = arith.constant 0 : index
    %274 = vector.load %arg16[%c1_159, %c0_160, %c0_161] : memref<7x8x8xbf16, #tpu.memory_space<vmem>>, vector<1x8x8xbf16>
    %275 = vector.shape_cast %274 : vector<1x8x8xbf16> to vector<8x8xbf16>
    %cst_162 = arith.constant dense<0.000000e+00> : vector<64x8xf32>
    %276 = tpu.matmul %273, %275, %cst_162 {dimension_numbers = #tpu.dot_dimension_numbers<[1], [0], [0], [1], [0, 0, 1, 1], [], []>} : vector<64x8xbf16>, vector<8x8xbf16>, vector<64x8xf32> -> vector<64x8xf32>
    %277 = arith.addf %270, %276 : vector<64x8xf32>
    %278 = vector.extract_strided_slice %262 {offsets = [2, 0, 0], sizes = [8, 8, 8], strides = [1, 1, 1]} : vector<14x8x8xf32> to vector<8x8x8xf32>
    %279 = arith.truncf %278 : vector<8x8x8xf32> to vector<8x8x8xbf16>
    %280 = vector.shape_cast %279 : vector<8x8x8xbf16> to vector<64x8xbf16>
    %c2_163 = arith.constant 2 : index
    %c0_164 = arith.constant 0 : index
    %c0_165 = arith.constant 0 : index
    %281 = vector.load %arg16[%c2_163, %c0_164, %c0_165] : memref<7x8x8xbf16, #tpu.memory_space<vmem>>, vector<1x8x8xbf16>
    %282 = vector.shape_cast %281 : vector<1x8x8xbf16> to vector<8x8xbf16>
    %cst_166 = arith.constant dense<0.000000e+00> : vector<64x8xf32>
    %283 = tpu.matmul %280, %282, %cst_166 {dimension_numbers = #tpu.dot_dimension_numbers<[1], [0], [0], [1], [0, 0, 1, 1], [], []>} : vector<64x8xbf16>, vector<8x8xbf16>, vector<64x8xf32> -> vector<64x8xf32>
    %284 = arith.addf %277, %283 : vector<64x8xf32>
    %285 = vector.extract_strided_slice %262 {offsets = [3, 0, 0], sizes = [8, 8, 8], strides = [1, 1, 1]} : vector<14x8x8xf32> to vector<8x8x8xf32>
    %286 = arith.truncf %285 : vector<8x8x8xf32> to vector<8x8x8xbf16>
    %287 = vector.shape_cast %286 : vector<8x8x8xbf16> to vector<64x8xbf16>
    %c3_167 = arith.constant 3 : index
    %c0_168 = arith.constant 0 : index
    %c0_169 = arith.constant 0 : index
    %288 = vector.load %arg16[%c3_167, %c0_168, %c0_169] : memref<7x8x8xbf16, #tpu.memory_space<vmem>>, vector<1x8x8xbf16>
    %289 = vector.shape_cast %288 : vector<1x8x8xbf16> to vector<8x8xbf16>
    %cst_170 = arith.constant dense<0.000000e+00> : vector<64x8xf32>
    %290 = tpu.matmul %287, %289, %cst_170 {dimension_numbers = #tpu.dot_dimension_numbers<[1], [0], [0], [1], [0, 0, 1, 1], [], []>} : vector<64x8xbf16>, vector<8x8xbf16>, vector<64x8xf32> -> vector<64x8xf32>
    %291 = arith.addf %284, %290 : vector<64x8xf32>
    %292 = vector.extract_strided_slice %262 {offsets = [4, 0, 0], sizes = [8, 8, 8], strides = [1, 1, 1]} : vector<14x8x8xf32> to vector<8x8x8xf32>
    %293 = arith.truncf %292 : vector<8x8x8xf32> to vector<8x8x8xbf16>
    %294 = vector.shape_cast %293 : vector<8x8x8xbf16> to vector<64x8xbf16>
    %c4_171 = arith.constant 4 : index
    %c0_172 = arith.constant 0 : index
    %c0_173 = arith.constant 0 : index
    %295 = vector.load %arg16[%c4_171, %c0_172, %c0_173] : memref<7x8x8xbf16, #tpu.memory_space<vmem>>, vector<1x8x8xbf16>
    %296 = vector.shape_cast %295 : vector<1x8x8xbf16> to vector<8x8xbf16>
    %cst_174 = arith.constant dense<0.000000e+00> : vector<64x8xf32>
    %297 = tpu.matmul %294, %296, %cst_174 {dimension_numbers = #tpu.dot_dimension_numbers<[1], [0], [0], [1], [0, 0, 1, 1], [], []>} : vector<64x8xbf16>, vector<8x8xbf16>, vector<64x8xf32> -> vector<64x8xf32>
    %298 = arith.addf %291, %297 : vector<64x8xf32>
    %299 = vector.extract_strided_slice %262 {offsets = [5, 0, 0], sizes = [8, 8, 8], strides = [1, 1, 1]} : vector<14x8x8xf32> to vector<8x8x8xf32>
    %300 = arith.truncf %299 : vector<8x8x8xf32> to vector<8x8x8xbf16>
    %301 = vector.shape_cast %300 : vector<8x8x8xbf16> to vector<64x8xbf16>
    %c5_175 = arith.constant 5 : index
    %c0_176 = arith.constant 0 : index
    %c0_177 = arith.constant 0 : index
    %302 = vector.load %arg16[%c5_175, %c0_176, %c0_177] : memref<7x8x8xbf16, #tpu.memory_space<vmem>>, vector<1x8x8xbf16>
    %303 = vector.shape_cast %302 : vector<1x8x8xbf16> to vector<8x8xbf16>
    %cst_178 = arith.constant dense<0.000000e+00> : vector<64x8xf32>
    %304 = tpu.matmul %301, %303, %cst_178 {dimension_numbers = #tpu.dot_dimension_numbers<[1], [0], [0], [1], [0, 0, 1, 1], [], []>} : vector<64x8xbf16>, vector<8x8xbf16>, vector<64x8xf32> -> vector<64x8xf32>
    %305 = arith.addf %298, %304 : vector<64x8xf32>
    %306 = vector.extract_strided_slice %262 {offsets = [6, 0, 0], sizes = [8, 8, 8], strides = [1, 1, 1]} : vector<14x8x8xf32> to vector<8x8x8xf32>
    %307 = arith.truncf %306 : vector<8x8x8xf32> to vector<8x8x8xbf16>
    %308 = vector.shape_cast %307 : vector<8x8x8xbf16> to vector<64x8xbf16>
    %c6_179 = arith.constant 6 : index
    %c0_180 = arith.constant 0 : index
    %c0_181 = arith.constant 0 : index
    %309 = vector.load %arg16[%c6_179, %c0_180, %c0_181] : memref<7x8x8xbf16, #tpu.memory_space<vmem>>, vector<1x8x8xbf16>
    %310 = vector.shape_cast %309 : vector<1x8x8xbf16> to vector<8x8xbf16>
    %cst_182 = arith.constant dense<0.000000e+00> : vector<64x8xf32>
    %311 = tpu.matmul %308, %310, %cst_182 {dimension_numbers = #tpu.dot_dimension_numbers<[1], [0], [0], [1], [0, 0, 1, 1], [], []>} : vector<64x8xbf16>, vector<8x8xbf16>, vector<64x8xf32> -> vector<64x8xf32>
    %312 = arith.addf %305, %311 : vector<64x8xf32>
    %313 = vector.shape_cast %312 : vector<64x8xf32> to vector<8x8x8xf32>
    %c0_183 = arith.constant 0 : index
    %c0_184 = arith.constant 0 : index
    %c0_185 = arith.constant 0 : index
    %314 = vector.load %arg17[%c0_183, %c0_184, %c0_185] : memref<1x1x8xf32, #tpu.memory_space<vmem>>, vector<1x1x8xf32>
    %315 = vector.broadcast %314 : vector<1x1x8xf32> to vector<8x8x8xf32>
    %316 = arith.addf %313, %315 : vector<8x8x8xf32>
    %cst_186 = arith.constant 0.000000e+00 : f32
    %317 = vector.broadcast %cst_186 : f32 to vector<8x8x8xf32>
    %318 = arith.maximumf %316, %317 : vector<8x8x8xf32>
    %cst_187 = arith.constant 0.000000e+00 : f32
    %319 = vector.broadcast %cst_187 : f32 to vector<8x3x8xf32>
    %320 = tpu.concatenate %319, %318, %319 in 1 : vector<8x3x8xf32>, vector<8x8x8xf32>, vector<8x3x8xf32> -> vector<8x14x8xf32>
    %cst_188 = arith.constant 0.000000e+00 : f32
    %321 = vector.broadcast %cst_188 : f32 to vector<64x192xf32>
    %322 = vector.extract_strided_slice %320 {offsets = [0, 0, 0], sizes = [8, 8, 8], strides = [1, 1, 1]} : vector<8x14x8xf32> to vector<8x8x8xf32>
    %323 = arith.truncf %322 : vector<8x8x8xf32> to vector<8x8x8xbf16>
    %324 = vector.shape_cast %323 : vector<8x8x8xbf16> to vector<64x8xbf16>
    %c0_189 = arith.constant 0 : index
    %c0_190 = arith.constant 0 : index
    %c0_191 = arith.constant 0 : index
    %325 = vector.load %arg18[%c0_189, %c0_190, %c0_191] : memref<7x8x192xbf16, #tpu.memory_space<vmem>>, vector<1x8x192xbf16>
    %326 = vector.shape_cast %325 : vector<1x8x192xbf16> to vector<8x192xbf16>
    %cst_192 = arith.constant dense<0.000000e+00> : vector<64x192xf32>
    %327 = tpu.matmul %324, %326, %cst_192 {dimension_numbers = #tpu.dot_dimension_numbers<[1], [0], [0], [1], [0, 0, 1, 1], [], []>} : vector<64x8xbf16>, vector<8x192xbf16>, vector<64x192xf32> -> vector<64x192xf32>
    %328 = arith.addf %321, %327 : vector<64x192xf32>
    %329 = vector.extract_strided_slice %320 {offsets = [0, 1, 0], sizes = [8, 8, 8], strides = [1, 1, 1]} : vector<8x14x8xf32> to vector<8x8x8xf32>
    %330 = arith.truncf %329 : vector<8x8x8xf32> to vector<8x8x8xbf16>
    %331 = vector.shape_cast %330 : vector<8x8x8xbf16> to vector<64x8xbf16>
    %c1_193 = arith.constant 1 : index
    %c0_194 = arith.constant 0 : index
    %c0_195 = arith.constant 0 : index
    %332 = vector.load %arg18[%c1_193, %c0_194, %c0_195] : memref<7x8x192xbf16, #tpu.memory_space<vmem>>, vector<1x8x192xbf16>
    %333 = vector.shape_cast %332 : vector<1x8x192xbf16> to vector<8x192xbf16>
    %cst_196 = arith.constant dense<0.000000e+00> : vector<64x192xf32>
    %334 = tpu.matmul %331, %333, %cst_196 {dimension_numbers = #tpu.dot_dimension_numbers<[1], [0], [0], [1], [0, 0, 1, 1], [], []>} : vector<64x8xbf16>, vector<8x192xbf16>, vector<64x192xf32> -> vector<64x192xf32>
    %335 = arith.addf %328, %334 : vector<64x192xf32>
    %336 = vector.extract_strided_slice %320 {offsets = [0, 2, 0], sizes = [8, 8, 8], strides = [1, 1, 1]} : vector<8x14x8xf32> to vector<8x8x8xf32>
    %337 = arith.truncf %336 : vector<8x8x8xf32> to vector<8x8x8xbf16>
    %338 = vector.shape_cast %337 : vector<8x8x8xbf16> to vector<64x8xbf16>
    %c2_197 = arith.constant 2 : index
    %c0_198 = arith.constant 0 : index
    %c0_199 = arith.constant 0 : index
    %339 = vector.load %arg18[%c2_197, %c0_198, %c0_199] : memref<7x8x192xbf16, #tpu.memory_space<vmem>>, vector<1x8x192xbf16>
    %340 = vector.shape_cast %339 : vector<1x8x192xbf16> to vector<8x192xbf16>
    %cst_200 = arith.constant dense<0.000000e+00> : vector<64x192xf32>
    %341 = tpu.matmul %338, %340, %cst_200 {dimension_numbers = #tpu.dot_dimension_numbers<[1], [0], [0], [1], [0, 0, 1, 1], [], []>} : vector<64x8xbf16>, vector<8x192xbf16>, vector<64x192xf32> -> vector<64x192xf32>
    %342 = arith.addf %335, %341 : vector<64x192xf32>
    %343 = vector.extract_strided_slice %320 {offsets = [0, 3, 0], sizes = [8, 8, 8], strides = [1, 1, 1]} : vector<8x14x8xf32> to vector<8x8x8xf32>
    %344 = arith.truncf %343 : vector<8x8x8xf32> to vector<8x8x8xbf16>
    %345 = vector.shape_cast %344 : vector<8x8x8xbf16> to vector<64x8xbf16>
    %c3_201 = arith.constant 3 : index
    %c0_202 = arith.constant 0 : index
    %c0_203 = arith.constant 0 : index
    %346 = vector.load %arg18[%c3_201, %c0_202, %c0_203] : memref<7x8x192xbf16, #tpu.memory_space<vmem>>, vector<1x8x192xbf16>
    %347 = vector.shape_cast %346 : vector<1x8x192xbf16> to vector<8x192xbf16>
    %cst_204 = arith.constant dense<0.000000e+00> : vector<64x192xf32>
    %348 = tpu.matmul %345, %347, %cst_204 {dimension_numbers = #tpu.dot_dimension_numbers<[1], [0], [0], [1], [0, 0, 1, 1], [], []>} : vector<64x8xbf16>, vector<8x192xbf16>, vector<64x192xf32> -> vector<64x192xf32>
    %349 = arith.addf %342, %348 : vector<64x192xf32>
    %350 = vector.extract_strided_slice %320 {offsets = [0, 4, 0], sizes = [8, 8, 8], strides = [1, 1, 1]} : vector<8x14x8xf32> to vector<8x8x8xf32>
    %351 = arith.truncf %350 : vector<8x8x8xf32> to vector<8x8x8xbf16>
    %352 = vector.shape_cast %351 : vector<8x8x8xbf16> to vector<64x8xbf16>
    %c4_205 = arith.constant 4 : index
    %c0_206 = arith.constant 0 : index
    %c0_207 = arith.constant 0 : index
    %353 = vector.load %arg18[%c4_205, %c0_206, %c0_207] : memref<7x8x192xbf16, #tpu.memory_space<vmem>>, vector<1x8x192xbf16>
    %354 = vector.shape_cast %353 : vector<1x8x192xbf16> to vector<8x192xbf16>
    %cst_208 = arith.constant dense<0.000000e+00> : vector<64x192xf32>
    %355 = tpu.matmul %352, %354, %cst_208 {dimension_numbers = #tpu.dot_dimension_numbers<[1], [0], [0], [1], [0, 0, 1, 1], [], []>} : vector<64x8xbf16>, vector<8x192xbf16>, vector<64x192xf32> -> vector<64x192xf32>
    %356 = arith.addf %349, %355 : vector<64x192xf32>
    %357 = vector.extract_strided_slice %320 {offsets = [0, 5, 0], sizes = [8, 8, 8], strides = [1, 1, 1]} : vector<8x14x8xf32> to vector<8x8x8xf32>
    %358 = arith.truncf %357 : vector<8x8x8xf32> to vector<8x8x8xbf16>
    %359 = vector.shape_cast %358 : vector<8x8x8xbf16> to vector<64x8xbf16>
    %c5_209 = arith.constant 5 : index
    %c0_210 = arith.constant 0 : index
    %c0_211 = arith.constant 0 : index
    %360 = vector.load %arg18[%c5_209, %c0_210, %c0_211] : memref<7x8x192xbf16, #tpu.memory_space<vmem>>, vector<1x8x192xbf16>
    %361 = vector.shape_cast %360 : vector<1x8x192xbf16> to vector<8x192xbf16>
    %cst_212 = arith.constant dense<0.000000e+00> : vector<64x192xf32>
    %362 = tpu.matmul %359, %361, %cst_212 {dimension_numbers = #tpu.dot_dimension_numbers<[1], [0], [0], [1], [0, 0, 1, 1], [], []>} : vector<64x8xbf16>, vector<8x192xbf16>, vector<64x192xf32> -> vector<64x192xf32>
    %363 = arith.addf %356, %362 : vector<64x192xf32>
    %364 = vector.extract_strided_slice %320 {offsets = [0, 6, 0], sizes = [8, 8, 8], strides = [1, 1, 1]} : vector<8x14x8xf32> to vector<8x8x8xf32>
    %365 = arith.truncf %364 : vector<8x8x8xf32> to vector<8x8x8xbf16>
    %366 = vector.shape_cast %365 : vector<8x8x8xbf16> to vector<64x8xbf16>
    %c6_213 = arith.constant 6 : index
    %c0_214 = arith.constant 0 : index
    %c0_215 = arith.constant 0 : index
    %367 = vector.load %arg18[%c6_213, %c0_214, %c0_215] : memref<7x8x192xbf16, #tpu.memory_space<vmem>>, vector<1x8x192xbf16>
    %368 = vector.shape_cast %367 : vector<1x8x192xbf16> to vector<8x192xbf16>
    %cst_216 = arith.constant dense<0.000000e+00> : vector<64x192xf32>
    %369 = tpu.matmul %366, %368, %cst_216 {dimension_numbers = #tpu.dot_dimension_numbers<[1], [0], [0], [1], [0, 0, 1, 1], [], []>} : vector<64x8xbf16>, vector<8x192xbf16>, vector<64x192xf32> -> vector<64x192xf32>
    %370 = arith.addf %363, %369 : vector<64x192xf32>
    %371 = vector.shape_cast %370 : vector<64x192xf32> to vector<8x8x192xf32>
    %c0_217 = arith.constant 0 : index
    %c0_218 = arith.constant 0 : index
    %c0_219 = arith.constant 0 : index
    %372 = vector.load %arg19[%c0_217, %c0_218, %c0_219] : memref<1x1x192xf32, #tpu.memory_space<vmem>>, vector<1x1x192xf32>
    %373 = vector.broadcast %372 : vector<1x1x192xf32> to vector<8x8x192xf32>
    %374 = arith.addf %371, %373 : vector<8x8x192xf32>
    %cst_220 = arith.constant 0.000000e+00 : f32
    %375 = vector.broadcast %cst_220 : f32 to vector<8x8x192xf32>
    %376 = arith.maximumf %374, %375 : vector<8x8x192xf32>
    %377 = arith.extf %1 : vector<8x8x16xbf16> to vector<8x8x16xf32>
    %cst_221 = arith.constant 0.000000e+00 : f32
    %378 = vector.broadcast %cst_221 : f32 to vector<1x8x16xf32>
    %379 = tpu.concatenate %378, %377, %378 in 0 : vector<1x8x16xf32>, vector<8x8x16xf32>, vector<1x8x16xf32> -> vector<10x8x16xf32>
    %380 = vector.extract_strided_slice %379 {offsets = [0, 0, 0], sizes = [8, 8, 16], strides = [1, 1, 1]} : vector<10x8x16xf32> to vector<8x8x16xf32>
    %381 = vector.extract_strided_slice %379 {offsets = [1, 0, 0], sizes = [8, 8, 16], strides = [1, 1, 1]} : vector<10x8x16xf32> to vector<8x8x16xf32>
    %382 = arith.addf %380, %381 : vector<8x8x16xf32>
    %383 = vector.extract_strided_slice %379 {offsets = [2, 0, 0], sizes = [8, 8, 16], strides = [1, 1, 1]} : vector<10x8x16xf32> to vector<8x8x16xf32>
    %384 = arith.addf %382, %383 : vector<8x8x16xf32>
    %cst_222 = arith.constant 0.000000e+00 : f32
    %385 = vector.broadcast %cst_222 : f32 to vector<8x1x16xf32>
    %386 = tpu.concatenate %385, %384, %385 in 1 : vector<8x1x16xf32>, vector<8x8x16xf32>, vector<8x1x16xf32> -> vector<8x10x16xf32>
    %387 = vector.extract_strided_slice %386 {offsets = [0, 0, 0], sizes = [8, 8, 16], strides = [1, 1, 1]} : vector<8x10x16xf32> to vector<8x8x16xf32>
    %388 = vector.extract_strided_slice %386 {offsets = [0, 1, 0], sizes = [8, 8, 16], strides = [1, 1, 1]} : vector<8x10x16xf32> to vector<8x8x16xf32>
    %389 = arith.addf %387, %388 : vector<8x8x16xf32>
    %390 = vector.extract_strided_slice %386 {offsets = [0, 2, 0], sizes = [8, 8, 16], strides = [1, 1, 1]} : vector<8x10x16xf32> to vector<8x8x16xf32>
    %391 = arith.addf %389, %390 : vector<8x8x16xf32>
    %cst_223 = arith.constant 0.111111112 : f32
    %392 = vector.broadcast %cst_223 : f32 to vector<8x8x16xf32>
    %393 = arith.mulf %391, %392 : vector<8x8x16xf32>
    %394 = vector.shape_cast %393 : vector<8x8x16xf32> to vector<64x16xf32>
    %395 = arith.truncf %394 : vector<64x16xf32> to vector<64x16xbf16>
    %c0_224 = arith.constant 0 : index
    %c0_225 = arith.constant 0 : index
    %396 = vector.load %arg20[%c0_224, %c0_225] : memref<16x192xbf16, #tpu.memory_space<vmem>>, vector<16x192xbf16>
    %cst_226 = arith.constant dense<0.000000e+00> : vector<64x192xf32>
    %397 = tpu.matmul %395, %396, %cst_226 {dimension_numbers = #tpu.dot_dimension_numbers<[1], [0], [0], [1], [0, 0, 1, 1], [], []>} : vector<64x16xbf16>, vector<16x192xbf16>, vector<64x192xf32> -> vector<64x192xf32>
    %398 = vector.shape_cast %397 : vector<64x192xf32> to vector<8x8x192xf32>
    %c0_227 = arith.constant 0 : index
    %c0_228 = arith.constant 0 : index
    %c0_229 = arith.constant 0 : index
    %399 = vector.load %arg21[%c0_227, %c0_228, %c0_229] : memref<1x1x192xf32, #tpu.memory_space<vmem>>, vector<1x1x192xf32>
    %400 = vector.broadcast %399 : vector<1x1x192xf32> to vector<8x8x192xf32>
    %401 = arith.addf %398, %400 : vector<8x8x192xf32>
    %cst_230 = arith.constant 0.000000e+00 : f32
    %402 = vector.broadcast %cst_230 : f32 to vector<8x8x192xf32>
    %403 = arith.maximumf %401, %402 : vector<8x8x192xf32>
    %404 = tpu.concatenate %10, %135, %376, %403 in 2 : vector<8x8x192xf32>, vector<8x8x192xf32>, vector<8x8x192xf32>, vector<8x8x192xf32> -> vector<8x8x768xf32>
    %c0_231 = arith.constant 0 : index
    %c0_232 = arith.constant 0 : index
    %c0_233 = arith.constant 0 : index
    %c0_234 = arith.constant 0 : index
    %405 = vector.load %arg22[%c0_231, %c0_232, %c0_233, %c0_234] : memref<1x8x8x768xf32, #tpu.memory_space<vmem>>, vector<1x8x8x768xf32>
    %406 = vector.shape_cast %405 : vector<1x8x8x768xf32> to vector<8x8x768xf32>
    %407 = vector.shape_cast %404 : vector<8x8x768xf32> to vector<1x8x8x768xf32>
    tpu.vector_store %arg22[%c0_231, %c0_232, %c0_233, %c0_234], %407 {strides = array<i32>} : memref<1x8x8x768xf32, #tpu.memory_space<vmem>>, vector<1x8x8x768xf32>,
    return
  }
  func.func @transform_0(%arg0: i32) -> (i32, i32, i32, i32) {
    %c0_i32 = arith.constant 0 : i32
    %c0_i32_0 = arith.constant 0 : i32
    %c0_i32_1 = arith.constant 0 : i32
    %c0_i32_2 = arith.constant 0 : i32
    return %arg0, %c0_i32, %c0_i32_0, %c0_i32_1 : i32, i32, i32, i32
  }
  func.func @transform_1(%arg0: i32) -> (i32, i32) {
    %c0_i32 = arith.constant 0 : i32
    %c0_i32_0 = arith.constant 0 : i32
    %c0_i32_1 = arith.constant 0 : i32
    return %c0_i32, %c0_i32_0 : i32, i32
  }
  func.func @transform_2(%arg0: i32) -> (i32, i32, i32) {
    %c0_i32 = arith.constant 0 : i32
    %c0_i32_0 = arith.constant 0 : i32
    %c0_i32_1 = arith.constant 0 : i32
    %c0_i32_2 = arith.constant 0 : i32
    return %c0_i32, %c0_i32_0, %c0_i32_1 : i32, i32, i32
  }
  func.func @transform_3(%arg0: i32) -> (i32, i32) {
    %c0_i32 = arith.constant 0 : i32
    %c0_i32_0 = arith.constant 0 : i32
    %c0_i32_1 = arith.constant 0 : i32
    return %c0_i32, %c0_i32_0 : i32, i32
  }
  func.func @transform_4(%arg0: i32) -> (i32, i32, i32) {
    %c0_i32 = arith.constant 0 : i32
    %c0_i32_0 = arith.constant 0 : i32
    %c0_i32_1 = arith.constant 0 : i32
    %c0_i32_2 = arith.constant 0 : i32
    return %c0_i32, %c0_i32_0, %c0_i32_1 : i32, i32, i32
  }
  func.func @transform_5(%arg0: i32) -> (i32, i32, i32) {
    %c0_i32 = arith.constant 0 : i32
    %c0_i32_0 = arith.constant 0 : i32
    %c0_i32_1 = arith.constant 0 : i32
    %c0_i32_2 = arith.constant 0 : i32
    return %c0_i32, %c0_i32_0, %c0_i32_1 : i32, i32, i32
  }
  func.func @transform_6(%arg0: i32) -> (i32, i32, i32) {
    %c0_i32 = arith.constant 0 : i32
    %c0_i32_0 = arith.constant 0 : i32
    %c0_i32_1 = arith.constant 0 : i32
    %c0_i32_2 = arith.constant 0 : i32
    return %c0_i32, %c0_i32_0, %c0_i32_1 : i32, i32, i32
  }
  func.func @transform_7(%arg0: i32) -> (i32, i32, i32) {
    %c0_i32 = arith.constant 0 : i32
    %c0_i32_0 = arith.constant 0 : i32
    %c0_i32_1 = arith.constant 0 : i32
    %c0_i32_2 = arith.constant 0 : i32
    return %c0_i32, %c0_i32_0, %c0_i32_1 : i32, i32, i32
  }
  func.func @transform_8(%arg0: i32) -> (i32, i32, i32) {
    %c0_i32 = arith.constant 0 : i32
    %c0_i32_0 = arith.constant 0 : i32
    %c0_i32_1 = arith.constant 0 : i32
    %c0_i32_2 = arith.constant 0 : i32
    return %c0_i32, %c0_i32_0, %c0_i32_1 : i32, i32, i32
  }
  func.func @transform_9(%arg0: i32) -> (i32, i32) {
    %c0_i32 = arith.constant 0 : i32
    %c0_i32_0 = arith.constant 0 : i32
    %c0_i32_1 = arith.constant 0 : i32
    return %c0_i32, %c0_i32_0 : i32, i32
  }
  func.func @transform_10(%arg0: i32) -> (i32, i32, i32) {
    %c0_i32 = arith.constant 0 : i32
    %c0_i32_0 = arith.constant 0 : i32
    %c0_i32_1 = arith.constant 0 : i32
    %c0_i32_2 = arith.constant 0 : i32
    return %c0_i32, %c0_i32_0, %c0_i32_1 : i32, i32, i32
  }
  func.func @transform_11(%arg0: i32) -> (i32, i32, i32) {
    %c0_i32 = arith.constant 0 : i32
    %c0_i32_0 = arith.constant 0 : i32
    %c0_i32_1 = arith.constant 0 : i32
    %c0_i32_2 = arith.constant 0 : i32
    return %c0_i32, %c0_i32_0, %c0_i32_1 : i32, i32, i32
  }
  func.func @transform_12(%arg0: i32) -> (i32, i32, i32) {
    %c0_i32 = arith.constant 0 : i32
    %c0_i32_0 = arith.constant 0 : i32
    %c0_i32_1 = arith.constant 0 : i32
    %c0_i32_2 = arith.constant 0 : i32
    return %c0_i32, %c0_i32_0, %c0_i32_1 : i32, i32, i32
  }
  func.func @transform_13(%arg0: i32) -> (i32, i32, i32) {
    %c0_i32 = arith.constant 0 : i32
    %c0_i32_0 = arith.constant 0 : i32
    %c0_i32_1 = arith.constant 0 : i32
    %c0_i32_2 = arith.constant 0 : i32
    return %c0_i32, %c0_i32_0, %c0_i32_1 : i32, i32, i32
  }
  func.func @transform_14(%arg0: i32) -> (i32, i32, i32) {
    %c0_i32 = arith.constant 0 : i32
    %c0_i32_0 = arith.constant 0 : i32
    %c0_i32_1 = arith.constant 0 : i32
    %c0_i32_2 = arith.constant 0 : i32
    return %c0_i32, %c0_i32_0, %c0_i32_1 : i32, i32, i32
  }
  func.func @transform_15(%arg0: i32) -> (i32, i32, i32) {
    %c0_i32 = arith.constant 0 : i32
    %c0_i32_0 = arith.constant 0 : i32
    %c0_i32_1 = arith.constant 0 : i32
    %c0_i32_2 = arith.constant 0 : i32
    return %c0_i32, %c0_i32_0, %c0_i32_1 : i32, i32, i32
  }
  func.func @transform_16(%arg0: i32) -> (i32, i32, i32) {
    %c0_i32 = arith.constant 0 : i32
    %c0_i32_0 = arith.constant 0 : i32
    %c0_i32_1 = arith.constant 0 : i32
    %c0_i32_2 = arith.constant 0 : i32
    return %c0_i32, %c0_i32_0, %c0_i32_1 : i32, i32, i32
  }
  func.func @transform_17(%arg0: i32) -> (i32, i32, i32) {
    %c0_i32 = arith.constant 0 : i32
    %c0_i32_0 = arith.constant 0 : i32
    %c0_i32_1 = arith.constant 0 : i32
    %c0_i32_2 = arith.constant 0 : i32
    return %c0_i32, %c0_i32_0, %c0_i32_1 : i32, i32, i32
  }
  func.func @transform_18(%arg0: i32) -> (i32, i32, i32) {
    %c0_i32 = arith.constant 0 : i32
    %c0_i32_0 = arith.constant 0 : i32
    %c0_i32_1 = arith.constant 0 : i32
    %c0_i32_2 = arith.constant 0 : i32
    return %c0_i32, %c0_i32_0, %c0_i32_1 : i32, i32, i32
  }
  func.func @transform_19(%arg0: i32) -> (i32, i32) {
    %c0_i32 = arith.constant 0 : i32
    %c0_i32_0 = arith.constant 0 : i32
    %c0_i32_1 = arith.constant 0 : i32
    return %c0_i32, %c0_i32_0 : i32, i32
  }
  func.func @transform_20(%arg0: i32) -> (i32, i32, i32) {
    %c0_i32 = arith.constant 0 : i32
    %c0_i32_0 = arith.constant 0 : i32
    %c0_i32_1 = arith.constant 0 : i32
    %c0_i32_2 = arith.constant 0 : i32
    return %c0_i32, %c0_i32_0, %c0_i32_1 : i32, i32, i32
  }
  func.func @transform_21(%arg0: i32) -> (i32, i32, i32, i32) {
    %c0_i32 = arith.constant 0 : i32
    %c0_i32_0 = arith.constant 0 : i32
    %c0_i32_1 = arith.constant 0 : i32
    %c0_i32_2 = arith.constant 0 : i32
    return %arg0, %c0_i32, %c0_i32_0, %c0_i32_1 : i32, i32, i32, i32
  }
}

</mosaic_0001>

<llo_original>
// kernel: inception_c_forward.1
$region0: #{inception_c_forward.1}
  #allocation0 [shape = 'u32[]', space=smem, size = 0x4, offset = 0x4, fixed_abs, tag = 'smem constant byte address 0x4 - core index']
  #allocation1 [shape = 'u32[144,128]{1,0:T(1,128)}', space=vmem, size = 0x12000, scoped, tag = 'internal scratch']
  %s0 = inlined_call_operand.vmem [shape: bf16[2,8,8,16], index: 0, kind: input, shape index: {}]
  %s1 = inlined_call_operand.vmem [shape: bf16[16,192], index: 1, kind: input, shape index: {}]
  %s2 = inlined_call_operand.vmem [shape: f32[1,1,192], index: 2, kind: input, shape index: {}]
  %s3 = inlined_call_operand.vmem [shape: bf16[16,8], index: 3, kind: input, shape index: {}]
  %s4 = inlined_call_operand.vmem [shape: f32[1,1,8], index: 4, kind: input, shape index: {}]
  %s5 = inlined_call_operand.vmem [shape: bf16[7,8,8], index: 5, kind: input, shape index: {}]
  %s6 = inlined_call_operand.vmem [shape: f32[1,1,8], index: 6, kind: input, shape index: {}]
  %s7 = inlined_call_operand.vmem [shape: bf16[7,8,192], index: 7, kind: input, shape index: {}]
  %s8 = inlined_call_operand.vmem [shape: f32[1,1,192], index: 8, kind: input, shape index: {}]
  %s9 = inlined_call_operand.vmem [shape: bf16[16,8], index: 9, kind: input, shape index: {}]
  %s10 = inlined_call_operand.vmem [shape: f32[1,1,8], index: 10, kind: input, shape index: {}]
  %s11 = inlined_call_operand.vmem [shape: bf16[7,8,8], index: 11, kind: input, shape index: {}]
  %s12 = inlined_call_operand.vmem [shape: f32[1,1,8], index: 12, kind: input, shape index: {}]
  %s13 = inlined_call_operand.vmem [shape: bf16[7,8,8], index: 13, kind: input, shape index: {}]
  %s14 = inlined_call_operand.vmem [shape: f32[1,1,8], index: 14, kind: input, shape index: {}]
  %s15 = inlined_call_operand.vmem [shape: bf16[7,8,8], index: 15, kind: input, shape index: {}]
  %s16 = inlined_call_operand.vmem [shape: f32[1,1,8], index: 16, kind: input, shape index: {}]
  %s17 = inlined_call_operand.vmem [shape: bf16[7,8,192], index: 17, kind: input, shape index: {}]
  %s18 = inlined_call_operand.vmem [shape: f32[1,1,192], index: 18, kind: input, shape index: {}]
  %s19 = inlined_call_operand.vmem [shape: bf16[16,192], index: 19, kind: input, shape index: {}]
  %s20 = inlined_call_operand.vmem [shape: f32[1,1,192], index: 20, kind: input, shape index: {}]
  %s21 = inlined_call_operand.hbm [shape: f32[2,8,8,768], index: 21, kind: output, shape index: {}]
  %s22 = sld [smem:[#allocation0]]
  $region117: #{inception_c_forward.1} parent=0
    _
  %s24 = ssub.s32 1, %s22
  %s25 = scalar_select 0, %s24, %s22
  $region1: #{inception_c_forward.1} parent=0
    #allocation2 [shape = 'u8[393216]{0}', space=vmem, size = 0x60000, scoped, tag = 'output window, operand 0']
    #allocation3 [shape = 's32[2]{0}', space=sflag, size = 0x8, scoped, tag = 'scoped memory for inception_c_forward.1']
    %26 = vsyncpa [#allocation3], 0
    %s27 = scalar_lea.sflag [#allocation3], 1
    %28 = vsyncpa %s27, 0
    loop: start=0, step=1, limit=4
    $region2: #{inception_c_forward.1} parent=1 // loop_pre_header
      _
    $region3: #{inception_c_forward.1} parent=1 // loop_header
      %s30 = sphi 0, %s34
      %p31 = scmp.ge.s32.totalorder %s30, 4
      %s40 = sphi 0, %s42
      %s43 = sphi 0, %s40
      %s44 = sphi 0, %s43
      %s60 = sphi 0, %s44
      %s64 = sphi 0, %s64
      %s66 = sphi 0, %s64
      %s67 = sphi 0, %s66
      %s81 = sphi 0, %s67
      %s85 = sphi 0, %s85
      %s87 = sphi 0, %s85
      %s88 = sphi 0, %s87
      %s102 = sphi 0, %s88
      %s106 = sphi 0, %s106
      %s108 = sphi 0, %s106
      %s109 = sphi 0, %s108
      %s123 = sphi 0, %s109
      %s127 = sphi 0, %s127
      %s129 = sphi 0, %s127
      %s130 = sphi 0, %s129
      %s144 = sphi 0, %s130
      %s148 = sphi 0, %s148
      %s150 = sphi 0, %s148
      %s151 = sphi 0, %s150
      %s165 = sphi 0, %s151
      %s169 = sphi 0, %s169
      %s171 = sphi 0, %s169
      %s172 = sphi 0, %s171
      %s186 = sphi 0, %s172
      %s190 = sphi 0, %s190
      %s192 = sphi 0, %s190
      %s193 = sphi 0, %s192
      %s207 = sphi 0, %s193
      %s211 = sphi 0, %s211
      %s213 = sphi 0, %s211
      %s214 = sphi 0, %s213
      %s228 = sphi 0, %s214
      %s232 = sphi 0, %s232
      %s234 = sphi 0, %s232
      %s235 = sphi 0, %s234
      %s249 = sphi 0, %s235
      %s253 = sphi 0, %s253
      %s255 = sphi 0, %s253
      %s256 = sphi 0, %s255
      %s270 = sphi 0, %s256
      %s274 = sphi 0, %s274
      %s276 = sphi 0, %s274
      %s277 = sphi 0, %s276
      %s291 = sphi 0, %s277
      %s295 = sphi 0, %s295
      %s297 = sphi 0, %s295
      %s298 = sphi 0, %s297
      %s312 = sphi 0, %s298
      %s316 = sphi 0, %s316
      %s318 = sphi 0, %s316
      %s319 = sphi 0, %s318
      %s333 = sphi 0, %s319
      %s337 = sphi 0, %s337
      %s339 = sphi 0, %s337
      %s340 = sphi 0, %s339
      %s354 = sphi 0, %s340
      %s358 = sphi 0, %s358
      %s360 = sphi 0, %s358
      %s361 = sphi 0, %s360
      %s375 = sphi 0, %s361
      %s379 = sphi 0, %s379
      %s381 = sphi 0, %s379
      %s382 = sphi 0, %s381
      %s396 = sphi 0, %s382
      %s400 = sphi 0, %s400
      %s402 = sphi 0, %s400
      %s403 = sphi 0, %s402
      %s417 = sphi 0, %s403
      %s421 = sphi 0, %s421
      %s423 = sphi 0, %s421
      %s424 = sphi 0, %s423
      %s438 = sphi 0, %s424
      %s442 = sphi 0, %s442
      %s444 = sphi 0, %s442
      %s445 = sphi 0, %s444
      %s459 = sphi 0, %s445
      %s463 = sphi 0, %s463
      %s465 = sphi 0, %s463
      %s466 = sphi 0, %s465
      %s480 = sphi 0, %s466
      %s486 = sphi 0, %s488
      %s489 = sphi 0, %s486
      %s490 = sphi 0, %s489
      %s506 = sphi 0, %s490
    $region4: #{inception_c_forward.1} parent=1 // loop_header_branch
      %33 = sbr.rel (%p31) target = $region8
    $region5: #{inception_c_forward.1} parent=1 // loop_body
      %s35 = ssub.s32 %s30, 1
      %s36 = ssub.s32 %s30, 2
      %s37 = sadd.s32 %s30, 1
      %s38 = ssub.s32 %s30, %s37
      %p39 = scmp.eq.s32.totalorder %s38, 0
      %s41 = sadd.s32 %s40, 1
      %s42 = scalar_select %p39, %s40, %s41
      %p45 = pneg %p39
      %p46 = scmp.eq.s32.totalorder %s30, 1
      %p47 = por %p45, %p46
      %p48 = scmp.ne.s32.totalorder %s40, %s43
      %p49 = scmp.eq.s32.totalorder %s30, 0
      %p50 = por %p48, %p49
      %p51 = scmp.ne.s32.totalorder %s40, %s43
      %p52 = scmp.eq.s32.totalorder %s35, 1
      %p53 = por %p51, %p52
      %p54 = scmp.ne.s32.totalorder %s43, %s44
      %p55 = scmp.eq.s32.totalorder %s35, 0
      %p56 = por %p54, %p55
      %p57 = scmp.ne.s32.totalorder %s43, %s44
      %p58 = scmp.eq.s32.totalorder %s36, 1
      %p59 = por %p57, %p58
      %p61 = scmp.ne.s32.totalorder %s44, %s60
      %p62 = scmp.eq.s32.totalorder %s36, 0
      %p63 = por %p61, %p62
      %s65 = sadd.s32 %s64, 1
      %p68 = scmp.eq.s32.totalorder %s30, 1
      %p69 = scmp.ne.s32.totalorder %s64, %s66
      %p70 = scmp.eq.s32.totalorder %s30, 0
      %p71 = por %p69, %p70
      %p72 = scmp.ne.s32.totalorder %s64, %s66
      %p73 = scmp.eq.s32.totalorder %s35, 1
      %p74 = por %p72, %p73
      %p75 = scmp.ne.s32.totalorder %s66, %s67
      %p76 = scmp.eq.s32.totalorder %s35, 0
      %p77 = por %p75, %p76
      %p78 = scmp.ne.s32.totalorder %s66, %s67
      %p79 = scmp.eq.s32.totalorder %s36, 1
      %p80 = por %p78, %p79
      %p82 = scmp.ne.s32.totalorder %s67, %s81
      %p83 = scmp.eq.s32.totalorder %s36, 0
      %p84 = por %p82, %p83
      %s86 = sadd.s32 %s85, 1
      %p89 = scmp.eq.s32.totalorder %s30, 1
      %p90 = scmp.ne.s32.totalorder %s85, %s87
      %p91 = scmp.eq.s32.totalorder %s30, 0
      %p92 = por %p90, %p91
      %p93 = scmp.ne.s32.totalorder %s85, %s87
      %p94 = scmp.eq.s32.totalorder %s35, 1
      %p95 = por %p93, %p94
      %p96 = scmp.ne.s32.totalorder %s87, %s88
      %p97 = scmp.eq.s32.totalorder %s35, 0
      %p98 = por %p96, %p97
      %p99 = scmp.ne.s32.totalorder %s87, %s88
      %p100 = scmp.eq.s32.totalorder %s36, 1
      %p101 = por %p99, %p100
      %p103 = scmp.ne.s32.totalorder %s88, %s102
      %p104 = scmp.eq.s32.totalorder %s36, 0
      %p105 = por %p103, %p104
      %s107 = sadd.s32 %s106, 1
      %p110 = scmp.eq.s32.totalorder %s30, 1
      %p111 = scmp.ne.s32.totalorder %s106, %s108
      %p112 = scmp.eq.s32.totalorder %s30, 0
      %p113 = por %p111, %p112
      %p114 = scmp.ne.s32.totalorder %s106, %s108
      %p115 = scmp.eq.s32.totalorder %s35, 1
      %p116 = por %p114, %p115
      %p117 = scmp.ne.s32.totalorder %s108, %s109
      %p118 = scmp.eq.s32.totalorder %s35, 0
      %p119 = por %p117, %p118
      %p120 = scmp.ne.s32.totalorder %s108, %s109
      %p121 = scmp.eq.s32.totalorder %s36, 1
      %p122 = por %p120, %p121
      %p124 = scmp.ne.s32.totalorder %s109, %s123
      %p125 = scmp.eq.s32.totalorder %s36, 0
      %p126 = por %p124, %p125
      %s128 = sadd.s32 %s127, 1
      %p131 = scmp.eq.s32.totalorder %s30, 1
      %p132 = scmp.ne.s32.totalorder %s127, %s129
      %p133 = scmp.eq.s32.totalorder %s30, 0
      %p134 = por %p132, %p133
      %p135 = scmp.ne.s32.totalorder %s127, %s129
      %p136 = scmp.eq.s32.totalorder %s35, 1
      %p137 = por %p135, %p136
      %p138 = scmp.ne.s32.totalorder %s129, %s130
      %p139 = scmp.eq.s32.totalorder %s35, 0
      %p140 = por %p138, %p139
      %p141 = scmp.ne.s32.totalorder %s129, %s130
      %p142 = scmp.eq.s32.totalorder %s36, 1
      %p143 = por %p141, %p142
      %p145 = scmp.ne.s32.totalorder %s130, %s144
      %p146 = scmp.eq.s32.totalorder %s36, 0
      %p147 = por %p145, %p146
      %s149 = sadd.s32 %s148, 1
      %p152 = scmp.eq.s32.totalorder %s30, 1
      %p153 = scmp.ne.s32.totalorder %s148, %s150
      %p154 = scmp.eq.s32.totalorder %s30, 0
      %p155 = por %p153, %p154
      %p156 = scmp.ne.s32.totalorder %s148, %s150
      %p157 = scmp.eq.s32.totalorder %s35, 1
      %p158 = por %p156, %p157
      %p159 = scmp.ne.s32.totalorder %s150, %s151
      %p160 = scmp.eq.s32.totalorder %s35, 0
      %p161 = por %p159, %p160
      %p162 = scmp.ne.s32.totalorder %s150, %s151
      %p163 = scmp.eq.s32.totalorder %s36, 1
      %p164 = por %p162, %p163
      %p166 = scmp.ne.s32.totalorder %s151, %s165
      %p167 = scmp.eq.s32.totalorder %s36, 0
      %p168 = por %p166, %p167
      %s170 = sadd.s32 %s169, 1
      %p173 = scmp.eq.s32.totalorder %s30, 1
      %p174 = scmp.ne.s32.totalorder %s169, %s171
      %p175 = scmp.eq.s32.totalorder %s30, 0
      %p176 = por %p174, %p175
      %p177 = scmp.ne.s32.totalorder %s169, %s171
      %p178 = scmp.eq.s32.totalorder %s35, 1
      %p179 = por %p177, %p178
      %p180 = scmp.ne.s32.totalorder %s171, %s172
      %p181 = scmp.eq.s32.totalorder %s35, 0
      %p182 = por %p180, %p181
      %p183 = scmp.ne.s32.totalorder %s171, %s172
      %p184 = scmp.eq.s32.totalorder %s36, 1
      %p185 = por %p183, %p184
      %p187 = scmp.ne.s32.totalorder %s172, %s186
      %p188 = scmp.eq.s32.totalorder %s36, 0
      %p189 = por %p187, %p188
      %s191 = sadd.s32 %s190, 1
      %p194 = scmp.eq.s32.totalorder %s30, 1
      %p195 = scmp.ne.s32.totalorder %s190, %s192
      %p196 = scmp.eq.s32.totalorder %s30, 0
      %p197 = por %p195, %p196
      %p198 = scmp.ne.s32.totalorder %s190, %s192
      %p199 = scmp.eq.s32.totalorder %s35, 1
      %p200 = por %p198, %p199
      %p201 = scmp.ne.s32.totalorder %s192, %s193
      %p202 = scmp.eq.s32.totalorder %s35, 0
      %p203 = por %p201, %p202
      %p204 = scmp.ne.s32.totalorder %s192, %s193
      %p205 = scmp.eq.s32.totalorder %s36, 1
      %p206 = por %p204, %p205
      %p208 = scmp.ne.s32.totalorder %s193, %s207
      %p209 = scmp.eq.s32.totalorder %s36, 0
      %p210 = por %p208, %p209
      %s212 = sadd.s32 %s211, 1
      %p215 = scmp.eq.s32.totalorder %s30, 1
      %p216 = scmp.ne.s32.totalorder %s211, %s213
      %p217 = scmp.eq.s32.totalorder %s30, 0
      %p218 = por %p216, %p217
      %p219 = scmp.ne.s32.totalorder %s211, %s213
      %p220 = scmp.eq.s32.totalorder %s35, 1
      %p221 = por %p219, %p220
      %p222 = scmp.ne.s32.totalorder %s213, %s214
      %p223 = scmp.eq.s32.totalorder %s35, 0
      %p224 = por %p222, %p223
      %p225 = scmp.ne.s32.totalorder %s213, %s214
      %p226 = scmp.eq.s32.totalorder %s36, 1
      %p227 = por %p225, %p226
      %p229 = scmp.ne.s32.totalorder %s214, %s228
      %p230 = scmp.eq.s32.totalorder %s36, 0
      %p231 = por %p229, %p230
      %s233 = sadd.s32 %s232, 1
      %p236 = scmp.eq.s32.totalorder %s30, 1
      %p237 = scmp.ne.s32.totalorder %s232, %s234
      %p238 = scmp.eq.s32.totalorder %s30, 0
      %p239 = por %p237, %p238
      %p240 = scmp.ne.s32.totalorder %s232, %s234
      %p241 = scmp.eq.s32.totalorder %s35, 1
      %p242 = por %p240, %p241
      %p243 = scmp.ne.s32.totalorder %s234, %s235
      %p244 = scmp.eq.s32.totalorder %s35, 0
      %p245 = por %p243, %p244
      %p246 = scmp.ne.s32.totalorder %s234, %s235
      %p247 = scmp.eq.s32.totalorder %s36, 1
      %p248 = por %p246, %p247
      %p250 = scmp.ne.s32.totalorder %s235, %s249
      %p251 = scmp.eq.s32.totalorder %s36, 0
      %p252 = por %p250, %p251
      %s254 = sadd.s32 %s253, 1
      %p257 = scmp.eq.s32.totalorder %s30, 1
      %p258 = scmp.ne.s32.totalorder %s253, %s255
      %p259 = scmp.eq.s32.totalorder %s30, 0
      %p260 = por %p258, %p259
      %p261 = scmp.ne.s32.totalorder %s253, %s255
      %p262 = scmp.eq.s32.totalorder %s35, 1
      %p263 = por %p261, %p262
      %p264 = scmp.ne.s32.totalorder %s255, %s256
      %p265 = scmp.eq.s32.totalorder %s35, 0
      %p266 = por %p264, %p265
      %p267 = scmp.ne.s32.totalorder %s255, %s256
      %p268 = scmp.eq.s32.totalorder %s36, 1
      %p269 = por %p267, %p268
      %p271 = scmp.ne.s32.totalorder %s256, %s270
      %p272 = scmp.eq.s32.totalorder %s36, 0
      %p273 = por %p271, %p272
      %s275 = sadd.s32 %s274, 1
      %p278 = scmp.eq.s32.totalorder %s30, 1
      %p279 = scmp.ne.s32.totalorder %s274, %s276
      %p280 = scmp.eq.s32.totalorder %s30, 0
      %p281 = por %p279, %p280
      %p282 = scmp.ne.s32.totalorder %s274, %s276
      %p283 = scmp.eq.s32.totalorder %s35, 1
      %p284 = por %p282, %p283
      %p285 = scmp.ne.s32.totalorder %s276, %s277
      %p286 = scmp.eq.s32.totalorder %s35, 0
      %p287 = por %p285, %p286
      %p288 = scmp.ne.s32.totalorder %s276, %s277
      %p289 = scmp.eq.s32.totalorder %s36, 1
      %p290 = por %p288, %p289
      %p292 = scmp.ne.s32.totalorder %s277, %s291
      %p293 = scmp.eq.s32.totalorder %s36, 0
      %p294 = por %p292, %p293
      %s296 = sadd.s32 %s295, 1
      %p299 = scmp.eq.s32.totalorder %s30, 1
      %p300 = scmp.ne.s32.totalorder %s295, %s297
      %p301 = scmp.eq.s32.totalorder %s30, 0
      %p302 = por %p300, %p301
      %p303 = scmp.ne.s32.totalorder %s295, %s297
      %p304 = scmp.eq.s32.totalorder %s35, 1
      %p305 = por %p303, %p304
      %p306 = scmp.ne.s32.totalorder %s297, %s298
      %p307 = scmp.eq.s32.totalorder %s35, 0
      %p308 = por %p306, %p307
      %p309 = scmp.ne.s32.totalorder %s297, %s298
      %p310 = scmp.eq.s32.totalorder %s36, 1
      %p311 = por %p309, %p310
      %p313 = scmp.ne.s32.totalorder %s298, %s312
      %p314 = scmp.eq.s32.totalorder %s36, 0
      %p315 = por %p313, %p314
      %s317 = sadd.s32 %s316, 1
      %p320 = scmp.eq.s32.totalorder %s30, 1
      %p321 = scmp.ne.s32.totalorder %s316, %s318
      %p322 = scmp.eq.s32.totalorder %s30, 0
      %p323 = por %p321, %p322
      %p324 = scmp.ne.s32.totalorder %s316, %s318
      %p325 = scmp.eq.s32.totalorder %s35, 1
      %p326 = por %p324, %p325
      %p327 = scmp.ne.s32.totalorder %s318, %s319
      %p328 = scmp.eq.s32.totalorder %s35, 0
      %p329 = por %p327, %p328
      %p330 = scmp.ne.s32.totalorder %s318, %s319
      %p331 = scmp.eq.s32.totalorder %s36, 1
      %p332 = por %p330, %p331
      %p334 = scmp.ne.s32.totalorder %s319, %s333
      %p335 = scmp.eq.s32.totalorder %s36, 0
      %p336 = por %p334, %p335
      %s338 = sadd.s32 %s337, 1
      %p341 = scmp.eq.s32.totalorder %s30, 1
      %p342 = scmp.ne.s32.totalorder %s337, %s339
      %p343 = scmp.eq.s32.totalorder %s30, 0
      %p344 = por %p342, %p343
      %p345 = scmp.ne.s32.totalorder %s337, %s339
      %p346 = scmp.eq.s32.totalorder %s35, 1
      %p347 = por %p345, %p346
      %p348 = scmp.ne.s32.totalorder %s339, %s340
      %p349 = scmp.eq.s32.totalorder %s35, 0
      %p350 = por %p348, %p349
      %p351 = scmp.ne.s32.totalorder %s339, %s340
      %p352 = scmp.eq.s32.totalorder %s36, 1
      %p353 = por %p351, %p352
      %p355 = scmp.ne.s32.totalorder %s340, %s354
      %p356 = scmp.eq.s32.totalorder %s36, 0
      %p357 = por %p355, %p356
      %s359 = sadd.s32 %s358, 1
      %p362 = scmp.eq.s32.totalorder %s30, 1
      %p363 = scmp.ne.s32.totalorder %s358, %s360
      %p364 = scmp.eq.s32.totalorder %s30, 0
      %p365 = por %p363, %p364
      %p366 = scmp.ne.s32.totalorder %s358, %s360
      %p367 = scmp.eq.s32.totalorder %s35, 1
      %p368 = por %p366, %p367
      %p369 = scmp.ne.s32.totalorder %s360, %s361
      %p370 = scmp.eq.s32.totalorder %s35, 0
      %p371 = por %p369, %p370
      %p372 = scmp.ne.s32.totalorder %s360, %s361
      %p373 = scmp.eq.s32.totalorder %s36, 1
      %p374 = por %p372, %p373
      %p376 = scmp.ne.s32.totalorder %s361, %s375
      %p377 = scmp.eq.s32.totalorder %s36, 0
      %p378 = por %p376, %p377
      %s380 = sadd.s32 %s379, 1
      %p383 = scmp.eq.s32.totalorder %s30, 1
      %p384 = scmp.ne.s32.totalorder %s379, %s381
      %p385 = scmp.eq.s32.totalorder %s30, 0
      %p386 = por %p384, %p385
      %p387 = scmp.ne.s32.totalorder %s379, %s381
      %p388 = scmp.eq.s32.totalorder %s35, 1
      %p389 = por %p387, %p388
      %p390 = scmp.ne.s32.totalorder %s381, %s382
      %p391 = scmp.eq.s32.totalorder %s35, 0
      %p392 = por %p390, %p391
      %p393 = scmp.ne.s32.totalorder %s381, %s382
      %p394 = scmp.eq.s32.totalorder %s36, 1
      %p395 = por %p393, %p394
      %p397 = scmp.ne.s32.totalorder %s382, %s396
      %p398 = scmp.eq.s32.totalorder %s36, 0
      %p399 = por %p397, %p398
      %s401 = sadd.s32 %s400, 1
      %p404 = scmp.eq.s32.totalorder %s30, 1
      %p405 = scmp.ne.s32.totalorder %s400, %s402
      %p406 = scmp.eq.s32.totalorder %s30, 0
      %p407 = por %p405, %p406
      %p408 = scmp.ne.s32.totalorder %s400, %s402
      %p409 = scmp.eq.s32.totalorder %s35, 1
      %p410 = por %p408, %p409
      %p411 = scmp.ne.s32.totalorder %s402, %s403
      %p412 = scmp.eq.s32.totalorder %s35, 0
      %p413 = por %p411, %p412
      %p414 = scmp.ne.s32.totalorder %s402, %s403
      %p415 = scmp.eq.s32.totalorder %s36, 1
      %p416 = por %p414, %p415
      %p418 = scmp.ne.s32.totalorder %s403, %s417
      %p419 = scmp.eq.s32.totalorder %s36, 0
      %p420 = por %p418, %p419
      %s422 = sadd.s32 %s421, 1
      %p425 = scmp.eq.s32.totalorder %s30, 1
      %p426 = scmp.ne.s32.totalorder %s421, %s423
      %p427 = scmp.eq.s32.totalorder %s30, 0
      %p428 = por %p426, %p427
      %p429 = scmp.ne.s32.totalorder %s421, %s423
      %p430 = scmp.eq.s32.totalorder %s35, 1
      %p431 = por %p429, %p430
      %p432 = scmp.ne.s32.totalorder %s423, %s424
      %p433 = scmp.eq.s32.totalorder %s35, 0
      %p434 = por %p432, %p433
      %p435 = scmp.ne.s32.totalorder %s423, %s424
      %p436 = scmp.eq.s32.totalorder %s36, 1
      %p437 = por %p435, %p436
      %p439 = scmp.ne.s32.totalorder %s424, %s438
      %p440 = scmp.eq.s32.totalorder %s36, 0
      %p441 = por %p439, %p440
      %s443 = sadd.s32 %s442, 1
      %p446 = scmp.eq.s32.totalorder %s30, 1
      %p447 = scmp.ne.s32.totalorder %s442, %s444
      %p448 = scmp.eq.s32.totalorder %s30, 0
      %p449 = por %p447, %p448
      %p450 = scmp.ne.s32.totalorder %s442, %s444
      %p451 = scmp.eq.s32.totalorder %s35, 1
      %p452 = por %p450, %p451
      %p453 = scmp.ne.s32.totalorder %s444, %s445
      %p454 = scmp.eq.s32.totalorder %s35, 0
      %p455 = por %p453, %p454
      %p456 = scmp.ne.s32.totalorder %s444, %s445
      %p457 = scmp.eq.s32.totalorder %s36, 1
      %p458 = por %p456, %p457
      %p460 = scmp.ne.s32.totalorder %s445, %s459
      %p461 = scmp.eq.s32.totalorder %s36, 0
      %p462 = por %p460, %p461
      %s464 = sadd.s32 %s463, 1
      %p467 = scmp.eq.s32.totalorder %s30, 1
      %p468 = scmp.ne.s32.totalorder %s463, %s465
      %p469 = scmp.eq.s32.totalorder %s30, 0
      %p470 = por %p468, %p469
      %p471 = scmp.ne.s32.totalorder %s463, %s465
      %p472 = scmp.eq.s32.totalorder %s35, 1
      %p473 = por %p471, %p472
      %p474 = scmp.ne.s32.totalorder %s465, %s466
      %p475 = scmp.eq.s32.totalorder %s35, 0
      %p476 = por %p474, %p475
      %p477 = scmp.ne.s32.totalorder %s465, %s466
      %p478 = scmp.eq.s32.totalorder %s36, 1
      %p479 = por %p477, %p478
      %p481 = scmp.ne.s32.totalorder %s466, %s480
      %p482 = scmp.eq.s32.totalorder %s36, 0
      %p483 = por %p481, %p482
      %s484 = ssub.s32 %s30, %s37
      %p485 = scmp.eq.s32.totalorder %s484, 0
      %s487 = sadd.s32 %s486, 1
      %s488 = scalar_select %p485, %s486, %s487
      %p491 = pneg %p485
      %p492 = scmp.eq.s32.totalorder %s30, 1
      %p493 = por %p491, %p492
      %p494 = scmp.ne.s32.totalorder %s486, %s489
      %p495 = scmp.eq.s32.totalorder %s30, 0
      %p496 = por %p494, %p495
      %p497 = scmp.ne.s32.totalorder %s486, %s489
      %p498 = scmp.eq.s32.totalorder %s35, 1
      %p499 = por %p497, %p498
      %p500 = scmp.ne.s32.totalorder %s489, %s490
      %p501 = scmp.eq.s32.totalorder %s35, 0
      %p502 = por %p500, %p501
      %p503 = scmp.ne.s32.totalorder %s489, %s490
      %p504 = scmp.eq.s32.totalorder %s36, 1
      %p505 = por %p503, %p504
      %p507 = scmp.ne.s32.totalorder %s490, %s506
      %p508 = scmp.eq.s32.totalorder %s36, 0
      %p509 = por %p507, %p508
      %p510 = scmp.le.s32.totalorder 1, %s30
      %p511 = scmp.lt.s32.totalorder %s30, 3
      %p512 = pnand %p510, %p511
      %p513 = pneg %p512
      // Predicated region
      $region9: #{inception_c_forward.1} parent=5 // pred_check
        _
      $region10: #{inception_c_forward.1} parent=5 // pred_check_branch
        %515 = sbr.rel (%p512) target = $region12
      $region11: #{inception_c_forward.1} parent=5 // pred_region
        %s516 = ssub.s32 %s30, 1
        // Predicated region
        $region13: #{inception_c_forward.1} parent=11 // pred_check
          %p517 = pneg %p77
        $region14: #{inception_c_forward.1} parent=11 // pred_check_branch
          %519 = sbr.rel (%p517) target = $region16
        $region15: #{inception_c_forward.1} parent=11 // pred_region
          _
        $region16: #{inception_c_forward.1} parent=11 // pred_fallthru
          _
        // Predicated region
        $region17: #{inception_c_forward.1} parent=11 // pred_check
          %p520 = pneg %p98
        $region18: #{inception_c_forward.1} parent=11 // pred_check_branch
          %522 = sbr.rel (%p520) target = $region20
        $region19: #{inception_c_forward.1} parent=11 // pred_region
          _
        $region20: #{inception_c_forward.1} parent=11 // pred_fallthru
          _
        // Predicated region
        $region21: #{inception_c_forward.1} parent=11 // pred_check
          %p523 = pneg %p119
        $region22: #{inception_c_forward.1} parent=11 // pred_check_branch
          %525 = sbr.rel (%p523) target = $region24
        $region23: #{inception_c_forward.1} parent=11 // pred_region
          _
        $region24: #{inception_c_forward.1} parent=11 // pred_fallthru
          _
        // Predicated region
        $region25: #{inception_c_forward.1} parent=11 // pred_check
          %p526 = pneg %p140
        $region26: #{inception_c_forward.1} parent=11 // pred_check_branch
          %528 = sbr.rel (%p526) target = $region28
        $region27: #{inception_c_forward.1} parent=11 // pred_region
          _
        $region28: #{inception_c_forward.1} parent=11 // pred_fallthru
          _
        // Predicated region
        $region29: #{inception_c_forward.1} parent=11 // pred_check
          %p529 = pneg %p161
        $region30: #{inception_c_forward.1} parent=11 // pred_check_branch
          %531 = sbr.rel (%p529) target = $region32
        $region31: #{inception_c_forward.1} parent=11 // pred_region
          _
        $region32: #{inception_c_forward.1} parent=11 // pred_fallthru
          _
        // Predicated region
        $region33: #{inception_c_forward.1} parent=11 // pred_check
          %p532 = pneg %p182
        $region34: #{inception_c_forward.1} parent=11 // pred_check_branch
          %534 = sbr.rel (%p532) target = $region36
        $region35: #{inception_c_forward.1} parent=11 // pred_region
          _
        $region36: #{inception_c_forward.1} parent=11 // pred_fallthru
          _
        // Predicated region
        $region37: #{inception_c_forward.1} parent=11 // pred_check
          %p535 = pneg %p203
        $region38: #{inception_c_forward.1} parent=11 // pred_check_branch
          %537 = sbr.rel (%p535) target = $region40
        $region39: #{inception_c_forward.1} parent=11 // pred_region
          _
        $region40: #{inception_c_forward.1} parent=11 // pred_fallthru
          _
        // Predicated region
        $region41: #{inception_c_forward.1} parent=11 // pred_check
          %p538 = pneg %p224
        $region42: #{inception_c_forward.1} parent=11 // pred_check_branch
          %540 = sbr.rel (%p538) target = $region44
        $region43: #{inception_c_forward.1} parent=11 // pred_region
          _
        $region44: #{inception_c_forward.1} parent=11 // pred_fallthru
          _
        // Predicated region
        $region45: #{inception_c_forward.1} parent=11 // pred_check
          %p541 = pneg %p245
        $region46: #{inception_c_forward.1} parent=11 // pred_check_branch
          %543 = sbr.rel (%p541) target = $region48
        $region47: #{inception_c_forward.1} parent=11 // pred_region
          _
        $region48: #{inception_c_forward.1} parent=11 // pred_fallthru
          _
        // Predicated region
        $region49: #{inception_c_forward.1} parent=11 // pred_check
          %p544 = pneg %p266
        $region50: #{inception_c_forward.1} parent=11 // pred_check_branch
          %546 = sbr.rel (%p544) target = $region52
        $region51: #{inception_c_forward.1} parent=11 // pred_region
          _
        $region52: #{inception_c_forward.1} parent=11 // pred_fallthru
          _
        // Predicated region
        $region53: #{inception_c_forward.1} parent=11 // pred_check
          %p547 = pneg %p287
        $region54: #{inception_c_forward.1} parent=11 // pred_check_branch
          %549 = sbr.rel (%p547) target = $region56
        $region55: #{inception_c_forward.1} parent=11 // pred_region
          _
        $region56: #{inception_c_forward.1} parent=11 // pred_fallthru
          _
        // Predicated region
        $region57: #{inception_c_forward.1} parent=11 // pred_check
          %p550 = pneg %p308
        $region58: #{inception_c_forward.1} parent=11 // pred_check_branch
          %552 = sbr.rel (%p550) target = $region60
        $region59: #{inception_c_forward.1} parent=11 // pred_region
          _
        $region60: #{inception_c_forward.1} parent=11 // pred_fallthru
          _
        // Predicated region
        $region61: #{inception_c_forward.1} parent=11 // pred_check
          %p553 = pneg %p329
        $region62: #{inception_c_forward.1} parent=11 // pred_check_branch
          %555 = sbr.rel (%p553) target = $region64
        $region63: #{inception_c_forward.1} parent=11 // pred_region
          _
        $region64: #{inception_c_forward.1} parent=11 // pred_fallthru
          _
        // Predicated region
        $region65: #{inception_c_forward.1} parent=11 // pred_check
          %p556 = pneg %p350
        $region66: #{inception_c_forward.1} parent=11 // pred_check_branch
          %558 = sbr.rel (%p556) target = $region68
        $region67: #{inception_c_forward.1} parent=11 // pred_region
          _
        $region68: #{inception_c_forward.1} parent=11 // pred_fallthru
          _
        // Predicated region
        $region69: #{inception_c_forward.1} parent=11 // pred_check
          %p559 = pneg %p371
        $region70: #{inception_c_forward.1} parent=11 // pred_check_branch
          %561 = sbr.rel (%p559) target = $region72
        $region71: #{inception_c_forward.1} parent=11 // pred_region
          _
        $region72: #{inception_c_forward.1} parent=11 // pred_fallthru
          _
        // Predicated region
        $region73: #{inception_c_forward.1} parent=11 // pred_check
          %p562 = pneg %p392
        $region74: #{inception_c_forward.1} parent=11 // pred_check_branch
          %564 = sbr.rel (%p562) target = $region76
        $region75: #{inception_c_forward.1} parent=11 // pred_region
          _
        $region76: #{inception_c_forward.1} parent=11 // pred_fallthru
          _
        // Predicated region
        $region77: #{inception_c_forward.1} parent=11 // pred_check
          %p565 = pneg %p413
        $region78: #{inception_c_forward.1} parent=11 // pred_check_branch
          %567 = sbr.rel (%p565) target = $region80
        $region79: #{inception_c_forward.1} parent=11 // pred_region
          _
        $region80: #{inception_c_forward.1} parent=11 // pred_fallthru
          _
        // Predicated region
        $region81: #{inception_c_forward.1} parent=11 // pred_check
          %p568 = pneg %p434
        $region82: #{inception_c_forward.1} parent=11 // pred_check_branch
          %570 = sbr.rel (%p568) target = $region84
        $region83: #{inception_c_forward.1} parent=11 // pred_region
          _
        $region84: #{inception_c_forward.1} parent=11 // pred_fallthru
          _
        // Predicated region
        $region85: #{inception_c_forward.1} parent=11 // pred_check
          %p571 = pneg %p455
        $region86: #{inception_c_forward.1} parent=11 // pred_check_branch
          %573 = sbr.rel (%p571) target = $region88
        $region87: #{inception_c_forward.1} parent=11 // pred_region
          _
        $region88: #{inception_c_forward.1} parent=11 // pred_fallthru
          _
        // Predicated region
        $region89: #{inception_c_forward.1} parent=11 // pred_check
          %p574 = pneg %p476
        $region90: #{inception_c_forward.1} parent=11 // pred_check_branch
          %576 = sbr.rel (%p574) target = $region92
        $region91: #{inception_c_forward.1} parent=11 // pred_region
          _
        $region92: #{inception_c_forward.1} parent=11 // pred_fallthru
          _
      $region12: #{inception_c_forward.1} parent=5 // pred_fallthru
        _
      %p577 = scmp.lt.s32.totalorder %s30, 2
      // Predicated region
      $region93: #{inception_c_forward.1} parent=5 // pred_check
        %p578 = pneg %p577
      $region94: #{inception_c_forward.1} parent=5 // pred_check_branch
        %580 = sbr.rel (%p578) target = $region96
      $region95: #{inception_c_forward.1} parent=5 // pred_region
        // Predicated region
        $region97: #{inception_c_forward.1} parent=95 // pred_check
          %p581 = pneg %p50
        $region98: #{inception_c_forward.1} parent=95 // pred_check_branch
          %583 = sbr.rel (%p581) target = $region100
        $region99: #{inception_c_forward.1} parent=95 // pred_region
          %p584 = scmp.lt.s32.totalorder %s30, 1
          %s585 = scalar_select %p584, %s30, 1
          %s586 = smul.addr %s585, 8
          %s587 = smul.addr %s586, 4
          %s588 = scalar_lea.vmem %s0, %s587
        $region100: #{inception_c_forward.1} parent=95 // pred_fallthru
          _
      $region96: #{inception_c_forward.1} parent=5 // pred_fallthru
        _
      %p589 = scmp.le.s32.totalorder 1, %s30
      %p590 = scmp.lt.s32.totalorder %s30, 3
      %p591 = pnand %p589, %p590
      %p592 = pneg %p591
      // Predicated region
      $region101: #{inception_c_forward.1} parent=5 // pred_check
        _
      $region102: #{inception_c_forward.1} parent=5 // pred_check_branch
        %594 = sbr.rel (%p591) target = $region104
      $region103: #{inception_c_forward.1} parent=5 // pred_region
        %s595 = ssub.s32 %s30, 1
        %p596 = scmp.lt.s32.totalorder %s35, 1
        %s597 = scalar_select %p596, %s35, 1
        %s598 = smul.addr %s597, 8
        %s599 = smul.addr %s598, 4
        %s600 = scalar_lea.vmem %s0, %s599
        %p601 = pneg %p56
        %p602 = pneg %p53
        %p603 = pneg %p77
        %p604 = pneg %p74
        %p605 = pneg %p98
        %p606 = pneg %p95
        %p607 = pneg %p119
        %p608 = pneg %p116
        %p609 = pneg %p140
        %p610 = pneg %p137
        %p611 = pneg %p161
        %p612 = pneg %p158
        %p613 = pneg %p182
        %p614 = pneg %p179
        %p615 = pneg %p203
        %p616 = pneg %p200
        %p617 = pneg %p224
        %p618 = pneg %p221
        %p619 = pneg %p245
        %p620 = pneg %p242
        %p621 = pneg %p266
        %p622 = pneg %p263
        %p623 = pneg %p287
        %p624 = pneg %p284
        %p625 = pneg %p308
        %p626 = pneg %p305
        %p627 = pneg %p329
        %p628 = pneg %p326
        %p629 = pneg %p350
        %p630 = pneg %p347
        %p631 = pneg %p371
        %p632 = pneg %p368
        %p633 = pneg %p392
        %p634 = pneg %p389
        %p635 = pneg %p413
        %p636 = pneg %p410
        %p637 = pneg %p434
        %p638 = pneg %p431
        %p639 = pneg %p455
        %p640 = pneg %p452
        %p641 = pneg %p476
        %p642 = pneg %p473
        %p643 = pneg %p502
        %p644 = pneg %p499
        %s645 = sand.u32 %s489, 1
        %s646 = scalar_lea.sflag [#allocation3], %s645
        %s647 = sand.u32 %s489, 1
        %s648 = smul.addr %s647, 384
        %s649 = scalar_lea.vmem [#allocation2], %s648
        %p650 = scmp.lt.s32.totalorder %s35, 1
        %s651 = scalar_select %p650, %s35, 1
        %s652 = smul.addr %s651, 8
        %s653 = smul.addr %s652, 4
        %s654 = scalar_lea.vmem %s0, %s653
        %v656 = vld [vmem:[%s654] sm:$0xf]
        %v657 = vld [vmem:[%s654 + $0x4] sm:$0xf]
        %v658 = vld [vmem:[%s654 + $0x8] sm:$0xf]
        %v659 = vld [vmem:[%s654 + $0xc] sm:$0xf]
        %v660 = vld [vmem:[%s654 + $0x10] sm:$0xf]
        %v661 = vld [vmem:[%s654 + $0x14] sm:$0xf]
        %v662 = vld [vmem:[%s654 + $0x18] sm:$0xf]
        %v663 = vld [vmem:[%s654 + $0x1c] sm:$0xf]
        %v664 = vld [vmem:[%s1] sm:$0xff]
        %v665 = vld [vmem:[%s1 + $0x8] sm:$0xff]
        %v674 = vunpack.c.l.b16 %v656
        %v675 = vunpack.c.l.b16 %v657
        %v676 = vunpack.c.l.b16 %v658
        %v677 = vunpack.c.l.b16 %v659
        %v678 = vunpack.c.l.b16 %v660
        %v679 = vunpack.c.l.b16 %v661
        %v680 = vunpack.c.l.b16 %v662
        %v681 = vunpack.c.l.b16 %v663
        %v682 = vpack.c.b16 %v675, %v674
        %v683 = vpack.c.b16 %v677, %v676
        %v684 = vpack.c.b16 %v679, %v678
        %v685 = vpack.c.b16 %v681, %v680
        %v688 = vunpack.c.l.b16 %v664
        %v689 = vunpack.c.h.b16 %v664
        %v690 = vunpack.c.l.b16 %v665
        %v691 = vunpack.c.h.b16 %v665
        %v692 = vpack.c.b16 %v690, %v688
        %v693 = vpack.c.b16 %v691, %v689
        %vm696 = vcmask 130048
        %v698 = vsel %vm696, %v682, 0
        %v701 = vsel %vm696, %v683, 0
        %v704 = vsel %vm696, %v684, 0
        %v707 = vsel %vm696, %v685, 0
        %709 = vmatprep.subr.bf16.mxu0 %v693
        %710 = vmatpush1.bf16.msra.mxu0 %v692
        %711 = vmatprep.subr.bf16.mxu0 0
        %712 = vmatpush1.bf16.msra.mxu0 0
        %713 = vmatprep.subr.bf16.mxu0 0
        %714 = vmatpush1.bf16.msra.mxu0 0
        %715 = vmatprep.subr.bf16.mxu0 0
        %716 = vmatpush1.bf16.msra.mxu0 0
        %717 = vmatprep.subr.bf16.mxu0 0
        %718 = vmatpush1.bf16.msra.mxu0 0
        %719 = vmatprep.subr.bf16.mxu0 0
        %720 = vmatpush1.bf16.msra.mxu0 0
        %721 = vmatprep.subr.bf16.mxu0 0
        %722 = vmatpush1.bf16.msra.mxu0 0
        %723 = vmatprep.subr.bf16.mxu0 0
        %724 = vmatpush1.bf16.msra.mxu0 0
        %725 = vmatprep.subr.bf16.mxu0 0
        %726 = vmatpush1.bf16.msra.mxu0 0
        %727 = vmatprep.subr.bf16.mxu0 0
        %728 = vmatpush1.bf16.msra.mxu0 0
        %729 = vmatprep.subr.bf16.mxu0 0
        %730 = vmatpush1.bf16.msra.mxu0 0
        %731 = vmatprep.subr.bf16.mxu0 0
        %732 = vmatpush1.bf16.msra.mxu0 0
        %733 = vmatprep.subr.bf16.mxu0 0
        %734 = vmatpush1.bf16.msra.mxu0 0
        %735 = vmatprep.subr.bf16.mxu0 0
        %736 = vmatpush1.bf16.msra.mxu0 0
        %737 = vmatprep.subr.bf16.mxu0 0
        %738 = vmatpush1.bf16.msra.mxu0 0
        %739 = vmatprep.subr.bf16.mxu0 0
        %740 = vmatpush1.bf16.msra.mxu0 0
        %741 = vmatprep.mubr.bf16.mxu0 0
        %742 = vmatmul.mubr.bf16.gmra.mrb[0].mxu0 %v698
        %v743 = vpop.f32.mrb[0].mxu0
        %v744 = vadd.f32 0.0, %v743
        %v745 = vpop.f32.mrb[0].mxu0
        %v746 = vadd.f32 0.0, %v745
        %v747 = vpop.f32.mrb[0].mxu0
        %v748 = vadd.f32 0.0, %v747
        %v749 = vpop.f32.mrb[0].mxu0
        %v750 = vadd.f32 0.0, %v749
        %751 = vmatprep.mubr.bf16.mxu0 0
        %752 = vmatmul.mubr.bf16.gmra.mrb[0].mxu0 %v701
        %v753 = vpop.f32.mrb[0].mxu0
        %v754 = vadd.f32 0.0, %v753
        %v755 = vpop.f32.mrb[0].mxu0
        %v756 = vadd.f32 0.0, %v755
        %v757 = vpop.f32.mrb[0].mxu0
        %v758 = vadd.f32 0.0, %v757
        %v759 = vpop.f32.mrb[0].mxu0
        %v760 = vadd.f32 0.0, %v759
        %761 = vmatprep.mubr.bf16.mxu0 0
        %762 = vmatmul.mubr.bf16.gmra.mrb[0].mxu0 %v704
        %v763 = vpop.f32.mrb[0].mxu0
        %v764 = vadd.f32 0.0, %v763
        %v765 = vpop.f32.mrb[0].mxu0
        %v766 = vadd.f32 0.0, %v765
        %v767 = vpop.f32.mrb[0].mxu0
        %v768 = vadd.f32 0.0, %v767
        %v769 = vpop.f32.mrb[0].mxu0
        %v770 = vadd.f32 0.0, %v769
        %771 = vmatprep.mubr.bf16.mxu0 0
        %772 = vmatmul.mubr.bf16.gmra.mrb[0].mxu0 %v707
        %v773 = vpop.f32.mrb[0].mxu0
        %v774 = vadd.f32 0.0, %v773
        %v775 = vpop.f32.mrb[0].mxu0
        %v776 = vadd.f32 0.0, %v775
        %v777 = vpop.f32.mrb[0].mxu0
        %v778 = vadd.f32 0.0, %v777
        %v779 = vpop.f32.mrb[0].mxu0
        %v780 = vadd.f32 0.0, %v779
        %781 = vdwg.mxu0
        %v782 = vld [vmem:[%s2] sm:$0x3]
        %v784 = vlaneseq
        %v785 = vshrl.u32 %v784, 7
        %v786 = vsub.s32 0, %v785
        %v787 = vrot.slane %v782, %v786
        %v788 = vlaneseq
        %v789 = vshrl.u32 %v788, 7
        %v790 = vsub.s32 1, %v789
        %v791 = vrot.slane %v782, %v790
        %v794 = vadd.f32 %v744, %v787
        %v795 = vadd.f32 %v746, %v791
        %v796 = vadd.f32 %v748, %v787
        %v797 = vadd.f32 %v750, %v791
        %v798 = vadd.f32 %v754, %v787
        %v799 = vadd.f32 %v756, %v791
        %v800 = vadd.f32 %v758, %v787
        %v801 = vadd.f32 %v760, %v791
        %v802 = vadd.f32 %v764, %v787
        %v803 = vadd.f32 %v766, %v791
        %v804 = vadd.f32 %v768, %v787
        %v805 = vadd.f32 %v770, %v791
        %v806 = vadd.f32 %v774, %v787
        %v807 = vadd.f32 %v776, %v791
        %v808 = vadd.f32 %v778, %v787
        %v809 = vadd.f32 %v780, %v791
        %v810 = vmax.f32 %v794, 0.0
        %v811 = vmax.f32 %v795, 0.0
        %v812 = vmax.f32 %v796, 0.0
        %v813 = vmax.f32 %v797, 0.0
        %v814 = vmax.f32 %v798, 0.0
        %v815 = vmax.f32 %v799, 0.0
        %v816 = vmax.f32 %v800, 0.0
        %v817 = vmax.f32 %v801, 0.0
        %v818 = vmax.f32 %v802, 0.0
        %v819 = vmax.f32 %v803, 0.0
        %v820 = vmax.f32 %v804, 0.0
        %v821 = vmax.f32 %v805, 0.0
        %v822 = vmax.f32 %v806, 0.0
        %v823 = vmax.f32 %v807, 0.0
        %v824 = vmax.f32 %v808, 0.0
        %v825 = vmax.f32 %v809, 0.0
        %v826 = vld [vmem:[%s3] sm:$0xf]
        %v827 = vld [vmem:[%s3 + $0x4] sm:$0xf]
        %v830 = vunpack.c.l.b16 %v826
        %v831 = vunpack.c.l.b16 %v827
        %v832 = vpack.c.b16 %v831, %v830
        %834 = vmatprep.subr.bf16.mxu0 0
        %835 = vmatpush1.bf16.msra.mxu0 %v832
        %836 = vmatprep.subr.bf16.mxu0 0
        %837 = vmatpush1.bf16.msra.mxu0 0
        %838 = vmatprep.subr.bf16.mxu0 0
        %839 = vmatpush1.bf16.msra.mxu0 0
        %840 = vmatprep.subr.bf16.mxu0 0
        %841 = vmatpush1.bf16.msra.mxu0 0
        %842 = vmatprep.subr.bf16.mxu0 0
        %843 = vmatpush1.bf16.msra.mxu0 0
        %844 = vmatprep.subr.bf16.mxu0 0
        %845 = vmatpush1.bf16.msra.mxu0 0
        %846 = vmatprep.subr.bf16.mxu0 0
        %847 = vmatpush1.bf16.msra.mxu0 0
        %848 = vmatprep.subr.bf16.mxu0 0
        %849 = vmatpush1.bf16.msra.mxu0 0
        %850 = vmatprep.subr.bf16.mxu0 0
        %851 = vmatpush1.bf16.msra.mxu0 0
        %852 = vmatprep.subr.bf16.mxu0 0
        %853 = vmatpush1.bf16.msra.mxu0 0
        %854 = vmatprep.subr.bf16.mxu0 0
        %855 = vmatpush1.bf16.msra.mxu0 0
        %856 = vmatprep.subr.bf16.mxu0 0
        %857 = vmatpush1.bf16.msra.mxu0 0
        %858 = vmatprep.subr.bf16.mxu0 0
        %859 = vmatpush1.bf16.msra.mxu0 0
        %860 = vmatprep.subr.bf16.mxu0 0
        %861 = vmatpush1.bf16.msra.mxu0 0
        %862 = vmatprep.subr.bf16.mxu0 0
        %863 = vmatpush1.bf16.msra.mxu0 0
        %864 = vmatprep.subr.bf16.mxu0 0
        %865 = vmatpush1.bf16.msra.mxu0 0
        %866 = vmatprep.mubr.bf16.mxu0 0
        %867 = vmatmul.mubr.bf16.gmra.mrb[0].mxu0 %v698
        %v868 = vpop.f32.mrb[0].mxu0
        %v869 = vadd.f32 0.0, %v868
        %v870 = vpop.f32.mrb[0].mxu0
        %v871 = vpop.f32.mrb[0].mxu0
        %v872 = vadd.f32 0.0, %v871
        %v873 = vpop.f32.mrb[0].mxu0
        %874 = vmatprep.mubr.bf16.mxu0 0
        %875 = vmatmul.mubr.bf16.gmra.mrb[0].mxu0 %v701
        %v876 = vpop.f32.mrb[0].mxu0
        %v877 = vadd.f32 0.0, %v876
        %v878 = vpop.f32.mrb[0].mxu0
        %v879 = vpop.f32.mrb[0].mxu0
        %v880 = vadd.f32 0.0, %v879
        %v881 = vpop.f32.mrb[0].mxu0
        %882 = vmatprep.mubr.bf16.mxu0 0
        %883 = vmatmul.mubr.bf16.gmra.mrb[0].mxu0 %v704
        %v884 = vpop.f32.mrb[0].mxu0
        %v885 = vadd.f32 0.0, %v884
        %v886 = vpop.f32.mrb[0].mxu0
        %v887 = vpop.f32.mrb[0].mxu0
        %v888 = vadd.f32 0.0, %v887
        %v889 = vpop.f32.mrb[0].mxu0
        %890 = vmatprep.mubr.bf16.mxu0 0
        %891 = vmatmul.mubr.bf16.gmra.mrb[0].mxu0 %v707
        %v892 = vpop.f32.mrb[0].mxu0
        %v893 = vadd.f32 0.0, %v892
        %v894 = vpop.f32.mrb[0].mxu0
        %v895 = vpop.f32.mrb[0].mxu0
        %v896 = vadd.f32 0.0, %v895
        %v897 = vpop.f32.mrb[0].mxu0
        %898 = vdwg.mxu0
        %v899 = vld [vmem:[%s4] sm:$0x1]
        %v901 = vlaneseq
        %v902 = vshrl.u32 %v901, 7
        %v903 = vsub.s32 0, %v902
        %v904 = vrot.slane %v899, %v903
        %v906 = vadd.f32 %v869, %v904
        %v907 = vadd.f32 %v872, %v904
        %v908 = vadd.f32 %v877, %v904
        %v909 = vadd.f32 %v880, %v904
        %v910 = vadd.f32 %v885, %v904
        %v911 = vadd.f32 %v888, %v904
        %v912 = vadd.f32 %v893, %v904
        %v913 = vadd.f32 %v896, %v904
        %v914 = vmax.f32 %v906, 0.0
        %v915 = vmax.f32 %v907, 0.0
        %v916 = vmax.f32 %v908, 0.0
        %v917 = vmax.f32 %v909, 0.0
        %v918 = vmax.f32 %v910, 0.0
        %v919 = vmax.f32 %v911, 0.0
        %v920 = vmax.f32 %v912, 0.0
        %v921 = vmax.f32 %v913, 0.0
        %v930 = vrot.slane %v914, 5
        %v931 = vrot.slane %v915, 5
        %v932 = vrot.slane %v916, 5
        %v933 = vrot.slane %v917, 5
        %v934 = vrot.slane %v918, 5
        %v935 = vrot.slane %v919, 5
        %v936 = vrot.slane %v920, 5
        %v937 = vrot.slane %v921, 5
        %vm946 = vcmask 1042432
        %v947 = vsel %vm946, 0.0, %v930
        %v948 = vsel %vm946, 0.0, %v931
        %v949 = vsel %vm946, 0.0, %v932
        %v950 = vsel %vm946, 0.0, %v933
        %v951 = vsel %vm946, 0.0, %v934
        %v952 = vsel %vm946, 0.0, %v935
        %v953 = vsel %vm946, 0.0, %v936
        %v954 = vsel %vm946, 0.0, %v937
        %v955 = vsel %vm946, %v930, 0.0
        %v956 = vsel %vm946, %v931, 0.0
        %v957 = vsel %vm946, %v932, 0.0
        %v958 = vsel %vm946, %v933, 0.0
        %v959 = vsel %vm946, %v934, 0.0
        %v960 = vsel %vm946, %v935, 0.0
        %v961 = vsel %vm946, %v936, 0.0
        %v962 = vsel %vm946, %v937, 0.0
        %v963 = vpack.c.bf16 %v947, %v947
        %v964 = vpack.c.bf16 %v948, %v948
        %v965 = vpack.c.bf16 %v949, %v949
        %v966 = vpack.c.bf16 %v950, %v950
        %v967 = vpack.c.bf16 %v951, %v951
        %v968 = vpack.c.bf16 %v952, %v952
        %v969 = vpack.c.bf16 %v953, %v953
        %v970 = vpack.c.bf16 %v954, %v954
        %v971 = vld [vmem:[%s5] sm:$0xf]
        %v972 = vpack.c.bf16 %v955, %v947
        %v973 = vpack.c.bf16 %v956, %v948
        %v974 = vpack.c.bf16 %v957, %v949
        %v975 = vpack.c.bf16 %v958, %v950
        %v976 = vpack.c.bf16 %v959, %v951
        %v977 = vpack.c.bf16 %v960, %v952
        %v978 = vpack.c.bf16 %v961, %v953
        %v979 = vpack.c.bf16 %v962, %v954
        %v988 = vunpack.c.l.b16 %v972
        %v989 = vunpack.c.h.b16 %v972
        %v990 = vunpack.c.l.b16 %v973
        %v991 = vunpack.c.h.b16 %v973
        %v992 = vunpack.c.l.b16 %v974
        %v993 = vunpack.c.h.b16 %v974
        %v994 = vunpack.c.l.b16 %v975
        %v995 = vunpack.c.h.b16 %v975
        %v996 = vunpack.c.l.b16 %v976
        %v997 = vunpack.c.h.b16 %v976
        %v998 = vunpack.c.l.b16 %v977
        %v999 = vunpack.c.h.b16 %v977
        %v1000 = vunpack.c.l.b16 %v978
        %v1001 = vunpack.c.h.b16 %v978
        %v1002 = vunpack.c.l.b16 %v979
        %v1003 = vunpack.c.h.b16 %v979
        %v1004 = vpack.c.b16 %v988, %v988
        %v1005 = vpack.c.b16 %v989, %v989
        %v1006 = vpack.c.b16 %v990, %v990
        %v1007 = vpack.c.b16 %v991, %v991
        %v1008 = vpack.c.b16 %v992, %v992
        %v1009 = vpack.c.b16 %v993, %v993
        %v1010 = vpack.c.b16 %v994, %v994
        %v1011 = vpack.c.b16 %v995, %v995
        %v1012 = vpack.c.b16 %v996, %v996
        %v1013 = vpack.c.b16 %v997, %v997
        %v1014 = vpack.c.b16 %v998, %v998
        %v1015 = vpack.c.b16 %v999, %v999
        %v1016 = vpack.c.b16 %v1000, %v1000
        %v1017 = vpack.c.b16 %v1001, %v1001
        %v1018 = vpack.c.b16 %v1002, %v1002
        %v1019 = vpack.c.b16 %v1003, %v1003
        %vm1020 = vsmask.f32 3328
        %vm1021 = vsmask.f32 7440
        %vm1022 = vmor %vm1020, %vm1021
        %v1024 = vshrl.u32 %v1004, 16
        %v1026 = vrot.slane %v1024, 4
        %v1027 = vshll.u32 %v1004, 16
        %v1029 = vrot.slane %v1027, 5
        %v1030 = vor.u32 %v1026, %v1029
        %v1031 = vrot.slane %v1030, 4
        %v1033 = vshll.u32 %v1005, 16
        %v1035 = vrot.slane %v1033, 5
        %v1036 = vsel %vm1022, %v1031, %v1035
        %v1038 = vshrl.u32 %v1006, 16
        %v1040 = vrot.slane %v1038, 4
        %v1041 = vshll.u32 %v1006, 16
        %v1043 = vrot.slane %v1041, 5
        %v1044 = vor.u32 %v1040, %v1043
        %v1045 = vrot.slane %v1044, 4
        %v1047 = vshll.u32 %v1007, 16
        %v1049 = vrot.slane %v1047, 5
        %v1050 = vsel %vm1022, %v1045, %v1049
        %v1052 = vshrl.u32 %v1008, 16
        %v1054 = vrot.slane %v1052, 4
        %v1055 = vshll.u32 %v1008, 16
        %v1057 = vrot.slane %v1055, 5
        %v1058 = vor.u32 %v1054, %v1057
        %v1059 = vrot.slane %v1058, 4
        %v1061 = vshll.u32 %v1009, 16
        %v1063 = vrot.slane %v1061, 5
        %v1064 = vsel %vm1022, %v1059, %v1063
        %v1066 = vshrl.u32 %v1010, 16
        %v1068 = vrot.slane %v1066, 4
        %v1069 = vshll.u32 %v1010, 16
        %v1071 = vrot.slane %v1069, 5
        %v1072 = vor.u32 %v1068, %v1071
        %v1073 = vrot.slane %v1072, 4
        %v1075 = vshll.u32 %v1011, 16
        %v1077 = vrot.slane %v1075, 5
        %v1078 = vsel %vm1022, %v1073, %v1077
        %v1080 = vshrl.u32 %v1012, 16
        %v1082 = vrot.slane %v1080, 4
        %v1083 = vshll.u32 %v1012, 16
        %v1085 = vrot.slane %v1083, 5
        %v1086 = vor.u32 %v1082, %v1085
        %v1087 = vrot.slane %v1086, 4
        %v1089 = vshll.u32 %v1013, 16
        %v1091 = vrot.slane %v1089, 5
        %v1092 = vsel %vm1022, %v1087, %v1091
        %v1094 = vshrl.u32 %v1014, 16
        %v1096 = vrot.slane %v1094, 4
        %v1097 = vshll.u32 %v1014, 16
        %v1099 = vrot.slane %v1097, 5
        %v1100 = vor.u32 %v1096, %v1099
        %v1101 = vrot.slane %v1100, 4
        %v1103 = vshll.u32 %v1015, 16
        %v1105 = vrot.slane %v1103, 5
        %v1106 = vsel %vm1022, %v1101, %v1105
        %v1108 = vshrl.u32 %v1016, 16
        %v1110 = vrot.slane %v1108, 4
        %v1111 = vshll.u32 %v1016, 16
        %v1113 = vrot.slane %v1111, 5
        %v1114 = vor.u32 %v1110, %v1113
        %v1115 = vrot.slane %v1114, 4
        %v1117 = vshll.u32 %v1017, 16
        %v1119 = vrot.slane %v1117, 5
        %v1120 = vsel %vm1022, %v1115, %v1119
        %v1122 = vshrl.u32 %v1018, 16
        %v1124 = vrot.slane %v1122, 4
        %v1125 = vshll.u32 %v1018, 16
        %v1127 = vrot.slane %v1125, 5
        %v1128 = vor.u32 %v1124, %v1127
        %v1129 = vrot.slane %v1128, 4
        %v1131 = vshll.u32 %v1019, 16
        %v1133 = vrot.slane %v1131, 5
        %v1134 = vsel %vm1022, %v1129, %v1133
        %s1135 = scalar_lea.vmem %s5, 4
        %v1136 = vld [vmem:[%s1135] sm:$0xf]
        %v1137 = vunpack.c.l.b16 %v1036
        %v1138 = vunpack.c.l.b16 %v1050
        %v1139 = vunpack.c.l.b16 %v1064
        %v1140 = vunpack.c.l.b16 %v1078
        %v1141 = vunpack.c.l.b16 %v1092
        %v1142 = vunpack.c.l.b16 %v1106
        %v1143 = vunpack.c.l.b16 %v1120
        %v1144 = vunpack.c.l.b16 %v1134
        %v1145 = vpack.c.b16 %v1138, %v1137
        %v1146 = vpack.c.b16 %v1140, %v1139
        %v1147 = vpack.c.b16 %v1142, %v1141
        %v1148 = vpack.c.b16 %v1144, %v1143
        %vm1149 = vcmask 64512
        %v1151 = vsel %vm1149, %v1145, 0
        %v1154 = vsel %vm1149, %v1146, 0
        %v1157 = vsel %vm1149, %v1147, 0
        %v1160 = vsel %vm1149, %v1148, 0
        %vm1162 = vcmask 1043456
        %v1164 = vsel %vm1162, %v1136, 0
        %1166 = vmatprep.subr.bf16.mxu0 0
        %1167 = vmatpush1.bf16.msra.mxu0 %v1164
        %1168 = vmatprep.subr.bf16.mxu0 0
        %1169 = vmatpush1.bf16.msra.mxu0 0
        %1170 = vmatprep.subr.bf16.mxu0 0
        %1171 = vmatpush1.bf16.msra.mxu0 0
        %1172 = vmatprep.subr.bf16.mxu0 0
        %1173 = vmatpush1.bf16.msra.mxu0 0
        %1174 = vmatprep.subr.bf16.mxu0 0
        %1175 = vmatpush1.bf16.msra.mxu0 0
        %1176 = vmatprep.subr.bf16.mxu0 0
        %1177 = vmatpush1.bf16.msra.mxu0 0
        %1178 = vmatprep.subr.bf16.mxu0 0
        %1179 = vmatpush1.bf16.msra.mxu0 0
        %1180 = vmatprep.subr.bf16.mxu0 0
        %1181 = vmatpush1.bf16.msra.mxu0 0
        %1182 = vmatprep.subr.bf16.mxu0 0
        %1183 = vmatpush1.bf16.msra.mxu0 0
        %1184 = vmatprep.subr.bf16.mxu0 0
        %1185 = vmatpush1.bf16.msra.mxu0 0
        %1186 = vmatprep.subr.bf16.mxu0 0
        %1187 = vmatpush1.bf16.msra.mxu0 0
        %1188 = vmatprep.subr.bf16.mxu0 0
        %1189 = vmatpush1.bf16.msra.mxu0 0
        %1190 = vmatprep.subr.bf16.mxu0 0
        %1191 = vmatpush1.bf16.msra.mxu0 0
        %1192 = vmatprep.subr.bf16.mxu0 0
        %1193 = vmatpush1.bf16.msra.mxu0 0
        %1194 = vmatprep.subr.bf16.mxu0 0
        %1195 = vmatpush1.bf16.msra.mxu0 0
        %1196 = vmatprep.subr.bf16.mxu0 0
        %1197 = vmatpush1.bf16.msra.mxu0 0
        %1198 = vmatprep.mubr.bf16.mxu0 0
        %1199 = vmatmul.mubr.bf16.gmra.mrb[0].mxu0 %v1151
        %v1200 = vpop.f32.mrb[0].mxu0
        %v1201 = vadd.f32 0.0, %v1200
        %v1202 = vpop.f32.mrb[0].mxu0
        %v1203 = vpop.f32.mrb[0].mxu0
        %v1204 = vadd.f32 0.0, %v1203
        %v1205 = vpop.f32.mrb[0].mxu0
        %1206 = vmatprep.mubr.bf16.mxu0 0
        %1207 = vmatmul.mubr.bf16.gmra.mrb[0].mxu0 %v1154
        %v1208 = vpop.f32.mrb[0].mxu0
        %v1209 = vadd.f32 0.0, %v1208
        %v1210 = vpop.f32.mrb[0].mxu0
        %v1211 = vpop.f32.mrb[0].mxu0
        %v1212 = vadd.f32 0.0, %v1211
        %v1213 = vpop.f32.mrb[0].mxu0
        %1214 = vmatprep.mubr.bf16.mxu0 0
        %1215 = vmatmul.mubr.bf16.gmra.mrb[0].mxu0 %v1157
        %v1216 = vpop.f32.mrb[0].mxu0
        %v1217 = vadd.f32 0.0, %v1216
        %v1218 = vpop.f32.mrb[0].mxu0
        %v1219 = vpop.f32.mrb[0].mxu0
        %v1220 = vadd.f32 0.0, %v1219
        %v1221 = vpop.f32.mrb[0].mxu0
        %1222 = vmatprep.mubr.bf16.mxu0 0
        %1223 = vmatmul.mubr.bf16.gmra.mrb[0].mxu0 %v1160
        %v1224 = vpop.f32.mrb[0].mxu0
        %v1225 = vadd.f32 0.0, %v1224
        %v1226 = vpop.f32.mrb[0].mxu0
        %v1227 = vpop.f32.mrb[0].mxu0
        %v1228 = vadd.f32 0.0, %v1227
        %v1229 = vpop.f32.mrb[0].mxu0
        %1230 = vdwg.mxu0
        %v1239 = vunpack.c.l.b16 %v963
        %v1240 = vunpack.c.l.b16 %v964
        %v1241 = vunpack.c.l.b16 %v965
        %v1242 = vunpack.c.l.b16 %v966
        %v1243 = vunpack.c.l.b16 %v967
        %v1244 = vunpack.c.l.b16 %v968
        %v1245 = vunpack.c.l.b16 %v969
        %v1246 = vunpack.c.l.b16 %v970
        %v1247 = vpack.c.b16 %v1240, %v1239
        %v1248 = vpack.c.b16 %v1242, %v1241
        %v1249 = vpack.c.b16 %v1244, %v1243
        %v1250 = vpack.c.b16 %v1246, %v1245
        %v1252 = vsel %vm1149, %v1247, 0
        %v1255 = vsel %vm1149, %v1248, 0
        %v1258 = vsel %vm1149, %v1249, 0
        %v1261 = vsel %vm1149, %v1250, 0
        %v1264 = vsel %vm1162, %v971, 0
        %1266 = vmatprep.subr.bf16.mxu0 0
        %1267 = vmatpush1.bf16.msra.mxu0 %v1264
        %1268 = vmatprep.subr.bf16.mxu0 0
        %1269 = vmatpush1.bf16.msra.mxu0 0
        %1270 = vmatprep.subr.bf16.mxu0 0
        %1271 = vmatpush1.bf16.msra.mxu0 0
        %1272 = vmatprep.subr.bf16.mxu0 0
        %1273 = vmatpush1.bf16.msra.mxu0 0
        %1274 = vmatprep.subr.bf16.mxu0 0
        %1275 = vmatpush1.bf16.msra.mxu0 0
        %1276 = vmatprep.subr.bf16.mxu0 0
        %1277 = vmatpush1.bf16.msra.mxu0 0
        %1278 = vmatprep.subr.bf16.mxu0 0
        %1279 = vmatpush1.bf16.msra.mxu0 0
        %1280 = vmatprep.subr.bf16.mxu0 0
        %1281 = vmatpush1.bf16.msra.mxu0 0
        %1282 = vmatprep.subr.bf16.mxu0 0
        %1283 = vmatpush1.bf16.msra.mxu0 0
        %1284 = vmatprep.subr.bf16.mxu0 0
        %1285 = vmatpush1.bf16.msra.mxu0 0
        %1286 = vmatprep.subr.bf16.mxu0 0
        %1287 = vmatpush1.bf16.msra.mxu0 0
        %1288 = vmatprep.subr.bf16.mxu0 0
        %1289 = vmatpush1.bf16.msra.mxu0 0
        %1290 = vmatprep.subr.bf16.mxu0 0
        %1291 = vmatpush1.bf16.msra.mxu0 0
        %1292 = vmatprep.subr.bf16.mxu0 0
        %1293 = vmatpush1.bf16.msra.mxu0 0
        %1294 = vmatprep.subr.bf16.mxu0 0
        %1295 = vmatpush1.bf16.msra.mxu0 0
        %1296 = vmatprep.subr.bf16.mxu0 0
        %1297 = vmatpush1.bf16.msra.mxu0 0
        %1298 = vmatprep.mubr.bf16.mxu0 0
        %1299 = vmatmul.mubr.bf16.gmra.mrb[0].mxu0 %v1252
        %v1300 = vpop.f32.mrb[0].mxu0
        %v1301 = vadd.f32 %v1201, %v1300
        %v1302 = vpop.f32.mrb[0].mxu0
        %v1303 = vpop.f32.mrb[0].mxu0
        %v1304 = vadd.f32 %v1204, %v1303
        %v1305 = vpop.f32.mrb[0].mxu0
        %1306 = vmatprep.mubr.bf16.mxu0 0
        %1307 = vmatmul.mubr.bf16.gmra.mrb[0].mxu0 %v1255
        %v1308 = vpop.f32.mrb[0].mxu0
        %v1309 = vadd.f32 %v1209, %v1308
        %v1310 = vpop.f32.mrb[0].mxu0
        %v1311 = vpop.f32.mrb[0].mxu0
        %v1312 = vadd.f32 %v1212, %v1311
        %v1313 = vpop.f32.mrb[0].mxu0
        %1314 = vmatprep.mubr.bf16.mxu0 0
        %1315 = vmatmul.mubr.bf16.gmra.mrb[0].mxu0 %v1258
        %v1316 = vpop.f32.mrb[0].mxu0
        %v1317 = vadd.f32 %v1217, %v1316
        %v1318 = vpop.f32.mrb[0].mxu0
        %v1319 = vpop.f32.mrb[0].mxu0
        %v1320 = vadd.f32 %v1220, %v1319
        %v1321 = vpop.f32.mrb[0].mxu0
        %1322 = vmatprep.mubr.bf16.mxu0 0
        %1323 = vmatmul.mubr.bf16.gmra.mrb[0].mxu0 %v1261
        %v1324 = vpop.f32.mrb[0].mxu0
        %v1325 = vadd.f32 %v1225, %v1324
        %v1326 = vpop.f32.mrb[0].mxu0
        %v1327 = vpop.f32.mrb[0].mxu0
        %v1328 = vadd.f32 %v1228, %v1327
        %v1329 = vpop.f32.mrb[0].mxu0
        %1330 = vdwg.mxu0
        %vm1331 = vcmask 1042432
        %vm1332 = vcmask 1046532
        %vm1333 = vmor %vm1331, %vm1332
        %v1334 = vrot.slane %v1004, 5
        %v1335 = vrot.slane %v1334, 4
        %v1336 = vrot.slane %v1005, 5
        %v1337 = vsel %vm1333, %v1335, %v1336
        %v1338 = vrot.slane %v1006, 5
        %v1339 = vrot.slane %v1338, 4
        %v1340 = vrot.slane %v1007, 5
        %v1341 = vsel %vm1333, %v1339, %v1340
        %v1342 = vrot.slane %v1008, 5
        %v1343 = vrot.slane %v1342, 4
        %v1344 = vrot.slane %v1009, 5
        %v1345 = vsel %vm1333, %v1343, %v1344
        %v1346 = vrot.slane %v1010, 5
        %v1347 = vrot.slane %v1346, 4
        %v1348 = vrot.slane %v1011, 5
        %v1349 = vsel %vm1333, %v1347, %v1348
        %v1350 = vrot.slane %v1012, 5
        %v1351 = vrot.slane %v1350, 4
        %v1352 = vrot.slane %v1013, 5
        %v1353 = vsel %vm1333, %v1351, %v1352
        %v1354 = vrot.slane %v1014, 5
        %v1355 = vrot.slane %v1354, 4
        %v1356 = vrot.slane %v1015, 5
        %v1357 = vsel %vm1333, %v1355, %v1356
        %v1358 = vrot.slane %v1016, 5
        %v1359 = vrot.slane %v1358, 4
        %v1360 = vrot.slane %v1017, 5
        %v1361 = vsel %vm1333, %v1359, %v1360
        %v1362 = vrot.slane %v1018, 5
        %v1363 = vrot.slane %v1362, 4
        %v1364 = vrot.slane %v1019, 5
        %v1365 = vsel %vm1333, %v1363, %v1364
        %s1366 = scalar_lea.vmem %s5, 8
        %v1367 = vld [vmem:[%s1366] sm:$0xf]
        %v1368 = vunpack.c.l.b16 %v1337
        %v1369 = vunpack.c.l.b16 %v1341
        %v1370 = vunpack.c.l.b16 %v1345
        %v1371 = vunpack.c.l.b16 %v1349
        %v1372 = vunpack.c.l.b16 %v1353
        %v1373 = vunpack.c.l.b16 %v1357
        %v1374 = vunpack.c.l.b16 %v1361
        %v1375 = vunpack.c.l.b16 %v1365
        %v1376 = vpack.c.b16 %v1369, %v1368
        %v1377 = vpack.c.b16 %v1371, %v1370
        %v1378 = vpack.c.b16 %v1373, %v1372
        %v1379 = vpack.c.b16 %v1375, %v1374
        %v1381 = vsel %vm1149, %v1376, 0
        %v1384 = vsel %vm1149, %v1377, 0
        %v1387 = vsel %vm1149, %v1378, 0
        %v1390 = vsel %vm1149, %v1379, 0
        %v1393 = vsel %vm1162, %v1367, 0
        %1395 = vmatprep.subr.bf16.mxu0 0
        %1396 = vmatpush1.bf16.msra.mxu0 %v1393
        %1397 = vmatprep.subr.bf16.mxu0 0
        %1398 = vmatpush1.bf16.msra.mxu0 0
        %1399 = vmatprep.subr.bf16.mxu0 0
        %1400 = vmatpush1.bf16.msra.mxu0 0
        %1401 = vmatprep.subr.bf16.mxu0 0
        %1402 = vmatpush1.bf16.msra.mxu0 0
        %1403 = vmatprep.subr.bf16.mxu0 0
        %1404 = vmatpush1.bf16.msra.mxu0 0
        %1405 = vmatprep.subr.bf16.mxu0 0
        %1406 = vmatpush1.bf16.msra.mxu0 0
        %1407 = vmatprep.subr.bf16.mxu0 0
        %1408 = vmatpush1.bf16.msra.mxu0 0
        %1409 = vmatprep.subr.bf16.mxu0 0
        %1410 = vmatpush1.bf16.msra.mxu0 0
        %1411 = vmatprep.subr.bf16.mxu0 0
        %1412 = vmatpush1.bf16.msra.mxu0 0
        %1413 = vmatprep.subr.bf16.mxu0 0
        %1414 = vmatpush1.bf16.msra.mxu0 0
        %1415 = vmatprep.subr.bf16.mxu0 0
        %1416 = vmatpush1.bf16.msra.mxu0 0
        %1417 = vmatprep.subr.bf16.mxu0 0
        %1418 = vmatpush1.bf16.msra.mxu0 0
        %1419 = vmatprep.subr.bf16.mxu0 0
        %1420 = vmatpush1.bf16.msra.mxu0 0
        %1421 = vmatprep.subr.bf16.mxu0 0
        %1422 = vmatpush1.bf16.msra.mxu0 0
        %1423 = vmatprep.subr.bf16.mxu0 0
        %1424 = vmatpush1.bf16.msra.mxu0 0
        %1425 = vmatprep.subr.bf16.mxu0 0
        %1426 = vmatpush1.bf16.msra.mxu0 0
        %1427 = vmatprep.mubr.bf16.mxu0 0
        %1428 = vmatmul.mubr.bf16.gmra.mrb[0].mxu0 %v1381
        %v1429 = vpop.f32.mrb[0].mxu0
        %v1430 = vadd.f32 0.0, %v1429
        %v1431 = vpop.f32.mrb[0].mxu0
        %v1432 = vpop.f32.mrb[0].mxu0
        %v1433 = vadd.f32 0.0, %v1432
        %v1434 = vpop.f32.mrb[0].mxu0
        %1435 = vmatprep.mubr.bf16.mxu0 0
        %1436 = vmatmul.mubr.bf16.gmra.mrb[0].mxu0 %v1384
        %v1437 = vpop.f32.mrb[0].mxu0
        %v1438 = vadd.f32 0.0, %v1437
        %v1439 = vpop.f32.mrb[0].mxu0
        %v1440 = vpop.f32.mrb[0].mxu0
        %v1441 = vadd.f32 0.0, %v1440
        %v1442 = vpop.f32.mrb[0].mxu0
        %1443 = vmatprep.mubr.bf16.mxu0 0
        %1444 = vmatmul.mubr.bf16.gmra.mrb[0].mxu0 %v1387
        %v1445 = vpop.f32.mrb[0].mxu0
        %v1446 = vadd.f32 0.0, %v1445
        %v1447 = vpop.f32.mrb[0].mxu0
        %v1448 = vpop.f32.mrb[0].mxu0
        %v1449 = vadd.f32 0.0, %v1448
        %v1450 = vpop.f32.mrb[0].mxu0
        %1451 = vmatprep.mubr.bf16.mxu0 0
        %1452 = vmatmul.mubr.bf16.gmra.mrb[0].mxu0 %v1390
        %v1453 = vpop.f32.mrb[0].mxu0
        %v1454 = vadd.f32 0.0, %v1453
        %v1455 = vpop.f32.mrb[0].mxu0
        %v1456 = vpop.f32.mrb[0].mxu0
        %v1457 = vadd.f32 0.0, %v1456
        %v1458 = vpop.f32.mrb[0].mxu0
        %1459 = vdwg.mxu0
        %v1460 = vadd.f32 %v1301, %v1430
        %v1461 = vadd.f32 %v1304, %v1433
        %v1462 = vadd.f32 %v1309, %v1438
        %v1463 = vadd.f32 %v1312, %v1441
        %v1464 = vadd.f32 %v1317, %v1446
        %v1465 = vadd.f32 %v1320, %v1449
        %v1466 = vadd.f32 %v1325, %v1454
        %v1467 = vadd.f32 %v1328, %v1457
        %vm1468 = vsmask.f32 2304
        %vm1469 = vsmask.f32 6416
        %vm1470 = vmor %vm1468, %vm1469
        %v1471 = vrot.slane %v1024, 5
        %v1472 = vrot.slane %v1027, 6
        %v1473 = vor.u32 %v1471, %v1472
        %v1474 = vrot.slane %v1473, 4
        %v1475 = vshrl.u32 %v1005, 16
        %v1477 = vrot.slane %v1475, 5
        %v1478 = vrot.slane %v1033, 6
        %v1479 = vor.u32 %v1477, %v1478
        %v1480 = vsel %vm1470, %v1474, %v1479
        %v1481 = vrot.slane %v1038, 5
        %v1482 = vrot.slane %v1041, 6
        %v1483 = vor.u32 %v1481, %v1482
        %v1484 = vrot.slane %v1483, 4
        %v1485 = vshrl.u32 %v1007, 16
        %v1487 = vrot.slane %v1485, 5
        %v1488 = vrot.slane %v1047, 6
        %v1489 = vor.u32 %v1487, %v1488
        %v1490 = vsel %vm1470, %v1484, %v1489
        %v1491 = vrot.slane %v1052, 5
        %v1492 = vrot.slane %v1055, 6
        %v1493 = vor.u32 %v1491, %v1492
        %v1494 = vrot.slane %v1493, 4
        %v1495 = vshrl.u32 %v1009, 16
        %v1497 = vrot.slane %v1495, 5
        %v1498 = vrot.slane %v1061, 6
        %v1499 = vor.u32 %v1497, %v1498
        %v1500 = vsel %vm1470, %v1494, %v1499
        %v1501 = vrot.slane %v1066, 5
        %v1502 = vrot.slane %v1069, 6
        %v1503 = vor.u32 %v1501, %v1502
        %v1504 = vrot.slane %v1503, 4
        %v1505 = vshrl.u32 %v1011, 16
        %v1507 = vrot.slane %v1505, 5
        %v1508 = vrot.slane %v1075, 6
        %v1509 = vor.u32 %v1507, %v1508
        %v1510 = vsel %vm1470, %v1504, %v1509
        %v1511 = vrot.slane %v1080, 5
        %v1512 = vrot.slane %v1083, 6
        %v1513 = vor.u32 %v1511, %v1512
        %v1514 = vrot.slane %v1513, 4
        %v1515 = vshrl.u32 %v1013, 16
        %v1517 = vrot.slane %v1515, 5
        %v1518 = vrot.slane %v1089, 6
        %v1519 = vor.u32 %v1517, %v1518
        %v1520 = vsel %vm1470, %v1514, %v1519
        %v1521 = vrot.slane %v1094, 5
        %v1522 = vrot.slane %v1097, 6
        %v1523 = vor.u32 %v1521, %v1522
        %v1524 = vrot.slane %v1523, 4
        %v1525 = vshrl.u32 %v1015, 16
        %v1527 = vrot.slane %v1525, 5
        %v1528 = vrot.slane %v1103, 6
        %v1529 = vor.u32 %v1527, %v1528
        %v1530 = vsel %vm1470, %v1524, %v1529
        %v1531 = vrot.slane %v1108, 5
        %v1532 = vrot.slane %v1111, 6
        %v1533 = vor.u32 %v1531, %v1532
        %v1534 = vrot.slane %v1533, 4
        %v1535 = vshrl.u32 %v1017, 16
        %v1537 = vrot.slane %v1535, 5
        %v1538 = vrot.slane %v1117, 6
        %v1539 = vor.u32 %v1537, %v1538
        %v1540 = vsel %vm1470, %v1534, %v1539
        %v1541 = vrot.slane %v1122, 5
        %v1542 = vrot.slane %v1125, 6
        %v1543 = vor.u32 %v1541, %v1542
        %v1544 = vrot.slane %v1543, 4
        %v1545 = vshrl.u32 %v1019, 16
        %v1547 = vrot.slane %v1545, 5
        %v1548 = vrot.slane %v1131, 6
        %v1549 = vor.u32 %v1547, %v1548
        %v1550 = vsel %vm1470, %v1544, %v1549
        %s1551 = scalar_lea.vmem %s5, 12
        %v1552 = vld [vmem:[%s1551] sm:$0xf]
        %v1553 = vunpack.c.l.b16 %v1480
        %v1554 = vunpack.c.l.b16 %v1490
        %v1555 = vunpack.c.l.b16 %v1500
        %v1556 = vunpack.c.l.b16 %v1510
        %v1557 = vunpack.c.l.b16 %v1520
        %v1558 = vunpack.c.l.b16 %v1530
        %v1559 = vunpack.c.l.b16 %v1540
        %v1560 = vunpack.c.l.b16 %v1550
        %v1561 = vpack.c.b16 %v1554, %v1553
        %v1562 = vpack.c.b16 %v1556, %v1555
        %v1563 = vpack.c.b16 %v1558, %v1557
        %v1564 = vpack.c.b16 %v1560, %v1559
        %v1566 = vsel %vm1149, %v1561, 0
        %v1569 = vsel %vm1149, %v1562, 0
        %v1572 = vsel %vm1149, %v1563, 0
        %v1575 = vsel %vm1149, %v1564, 0
        %v1578 = vsel %vm1162, %v1552, 0
        %1580 = vmatprep.subr.bf16.mxu0 0
        %1581 = vmatpush1.bf16.msra.mxu0 %v1578
        %1582 = vmatprep.subr.bf16.mxu0 0
        %1583 = vmatpush1.bf16.msra.mxu0 0
        %1584 = vmatprep.subr.bf16.mxu0 0
        %1585 = vmatpush1.bf16.msra.mxu0 0
        %1586 = vmatprep.subr.bf16.mxu0 0
        %1587 = vmatpush1.bf16.msra.mxu0 0
        %1588 = vmatprep.subr.bf16.mxu0 0
        %1589 = vmatpush1.bf16.msra.mxu0 0
        %1590 = vmatprep.subr.bf16.mxu0 0
        %1591 = vmatpush1.bf16.msra.mxu0 0
        %1592 = vmatprep.subr.bf16.mxu0 0
        %1593 = vmatpush1.bf16.msra.mxu0 0
        %1594 = vmatprep.subr.bf16.mxu0 0
        %1595 = vmatpush1.bf16.msra.mxu0 0
        %1596 = vmatprep.subr.bf16.mxu0 0
        %1597 = vmatpush1.bf16.msra.mxu0 0
        %1598 = vmatprep.subr.bf16.mxu0 0
        %1599 = vmatpush1.bf16.msra.mxu0 0
        %1600 = vmatprep.subr.bf16.mxu0 0
        %1601 = vmatpush1.bf16.msra.mxu0 0
        %1602 = vmatprep.subr.bf16.mxu0 0
        %1603 = vmatpush1.bf16.msra.mxu0 0
        %1604 = vmatprep.subr.bf16.mxu0 0
        %1605 = vmatpush1.bf16.msra.mxu0 0
        %1606 = vmatprep.subr.bf16.mxu0 0
        %1607 = vmatpush1.bf16.msra.mxu0 0
        %1608 = vmatprep.subr.bf16.mxu0 0
        %1609 = vmatpush1.bf16.msra.mxu0 0
        %1610 = vmatprep.subr.bf16.mxu0 0
        %1611 = vmatpush1.bf16.msra.mxu0 0
        %1612 = vmatprep.mubr.bf16.mxu0 0
        %1613 = vmatmul.mubr.bf16.gmra.mrb[0].mxu0 %v1566
        %v1614 = vpop.f32.mrb[0].mxu0
        %v1615 = vadd.f32 0.0, %v1614
        %v1616 = vpop.f32.mrb[0].mxu0
        %v1617 = vpop.f32.mrb[0].mxu0
        %v1618 = vadd.f32 0.0, %v1617
        %v1619 = vpop.f32.mrb[0].mxu0
        %1620 = vmatprep.mubr.bf16.mxu0 0
        %1621 = vmatmul.mubr.bf16.gmra.mrb[0].mxu0 %v1569
        %v1622 = vpop.f32.mrb[0].mxu0
        %v1623 = vadd.f32 0.0, %v1622
        %v1624 = vpop.f32.mrb[0].mxu0
        %v1625 = vpop.f32.mrb[0].mxu0
        %v1626 = vadd.f32 0.0, %v1625
        %v1627 = vpop.f32.mrb[0].mxu0
        %1628 = vmatprep.mubr.bf16.mxu0 0
        %1629 = vmatmul.mubr.bf16.gmra.mrb[0].mxu0 %v1572
        %v1630 = vpop.f32.mrb[0].mxu0
        %v1631 = vadd.f32 0.0, %v1630
        %v1632 = vpop.f32.mrb[0].mxu0
        %v1633 = vpop.f32.mrb[0].mxu0
        %v1634 = vadd.f32 0.0, %v1633
        %v1635 = vpop.f32.mrb[0].mxu0
        %1636 = vmatprep.mubr.bf16.mxu0 0
        %1637 = vmatmul.mubr.bf16.gmra.mrb[0].mxu0 %v1575
        %v1638 = vpop.f32.mrb[0].mxu0
        %v1639 = vadd.f32 0.0, %v1638
        %v1640 = vpop.f32.mrb[0].mxu0
        %v1641 = vpop.f32.mrb[0].mxu0
        %v1642 = vadd.f32 0.0, %v1641
        %v1643 = vpop.f32.mrb[0].mxu0
        %1644 = vdwg.mxu0
        %v1645 = vadd.f32 %v1460, %v1615
        %v1646 = vadd.f32 %v1461, %v1618
        %v1647 = vadd.f32 %v1462, %v1623
        %v1648 = vadd.f32 %v1463, %v1626
        %v1649 = vadd.f32 %v1464, %v1631
        %v1650 = vadd.f32 %v1465, %v1634
        %v1651 = vadd.f32 %v1466, %v1639
        %v1652 = vadd.f32 %v1467, %v1642
        %vm1653 = vcmask 1041408
        %vm1654 = vcmask 1045508
        %vm1655 = vmor %vm1653, %vm1654
        %v1656 = vrot.slane %v1004, 6
        %v1657 = vrot.slane %v1656, 4
        %v1658 = vrot.slane %v1005, 6
        %v1659 = vsel %vm1655, %v1657, %v1658
        %v1660 = vrot.slane %v1006, 6
        %v1661 = vrot.slane %v1660, 4
        %v1662 = vrot.slane %v1007, 6
        %v1663 = vsel %vm1655, %v1661, %v1662
        %v1664 = vrot.slane %v1008, 6
        %v1665 = vrot.slane %v1664, 4
        %v1666 = vrot.slane %v1009, 6
        %v1667 = vsel %vm1655, %v1665, %v1666
        %v1668 = vrot.slane %v1010, 6
        %v1669 = vrot.slane %v1668, 4
        %v1670 = vrot.slane %v1011, 6
        %v1671 = vsel %vm1655, %v1669, %v1670
        %v1672 = vrot.slane %v1012, 6
        %v1673 = vrot.slane %v1672, 4
        %v1674 = vrot.slane %v1013, 6
        %v1675 = vsel %vm1655, %v1673, %v1674
        %v1676 = vrot.slane %v1014, 6
        %v1677 = vrot.slane %v1676, 4
        %v1678 = vrot.slane %v1015, 6
        %v1679 = vsel %vm1655, %v1677, %v1678
        %v1680 = vrot.slane %v1016, 6
        %v1681 = vrot.slane %v1680, 4
        %v1682 = vrot.slane %v1017, 6
        %v1683 = vsel %vm1655, %v1681, %v1682
        %v1684 = vrot.slane %v1018, 6
        %v1685 = vrot.slane %v1684, 4
        %v1686 = vrot.slane %v1019, 6
        %v1687 = vsel %vm1655, %v1685, %v1686
        %s1688 = scalar_lea.vmem %s5, 16
        %v1689 = vld [vmem:[%s1688] sm:$0xf]
        %v1690 = vunpack.c.l.b16 %v1659
        %v1691 = vunpack.c.l.b16 %v1663
        %v1692 = vunpack.c.l.b16 %v1667
        %v1693 = vunpack.c.l.b16 %v1671
        %v1694 = vunpack.c.l.b16 %v1675
        %v1695 = vunpack.c.l.b16 %v1679
        %v1696 = vunpack.c.l.b16 %v1683
        %v1697 = vunpack.c.l.b16 %v1687
        %v1698 = vpack.c.b16 %v1691, %v1690
        %v1699 = vpack.c.b16 %v1693, %v1692
        %v1700 = vpack.c.b16 %v1695, %v1694
        %v1701 = vpack.c.b16 %v1697, %v1696
        %v1703 = vsel %vm1149, %v1698, 0
        %v1706 = vsel %vm1149, %v1699, 0
        %v1709 = vsel %vm1149, %v1700, 0
        %v1712 = vsel %vm1149, %v1701, 0
        %v1715 = vsel %vm1162, %v1689, 0
        %1717 = vmatprep.subr.bf16.mxu0 0
        %1718 = vmatpush1.bf16.msra.mxu0 %v1715
        %1719 = vmatprep.subr.bf16.mxu0 0
        %1720 = vmatpush1.bf16.msra.mxu0 0
        %1721 = vmatprep.subr.bf16.mxu0 0
        %1722 = vmatpush1.bf16.msra.mxu0 0
        %1723 = vmatprep.subr.bf16.mxu0 0
        %1724 = vmatpush1.bf16.msra.mxu0 0
        %1725 = vmatprep.subr.bf16.mxu0 0
        %1726 = vmatpush1.bf16.msra.mxu0 0
        %1727 = vmatprep.subr.bf16.mxu0 0
        %1728 = vmatpush1.bf16.msra.mxu0 0
        %1729 = vmatprep.subr.bf16.mxu0 0
        %1730 = vmatpush1.bf16.msra.mxu0 0
        %1731 = vmatprep.subr.bf16.mxu0 0
        %1732 = vmatpush1.bf16.msra.mxu0 0
        %1733 = vmatprep.subr.bf16.mxu0 0
        %1734 = vmatpush1.bf16.msra.mxu0 0
        %1735 = vmatprep.subr.bf16.mxu0 0
        %1736 = vmatpush1.bf16.msra.mxu0 0
        %1737 = vmatprep.subr.bf16.mxu0 0
        %1738 = vmatpush1.bf16.msra.mxu0 0
        %1739 = vmatprep.subr.bf16.mxu0 0
        %1740 = vmatpush1.bf16.msra.mxu0 0
        %1741 = vmatprep.subr.bf16.mxu0 0
        %1742 = vmatpush1.bf16.msra.mxu0 0
        %1743 = vmatprep.subr.bf16.mxu0 0
        %1744 = vmatpush1.bf16.msra.mxu0 0
        %1745 = vmatprep.subr.bf16.mxu0 0
        %1746 = vmatpush1.bf16.msra.mxu0 0
        %1747 = vmatprep.subr.bf16.mxu0 0
        %1748 = vmatpush1.bf16.msra.mxu0 0
        %1749 = vmatprep.mubr.bf16.mxu0 0
        %1750 = vmatmul.mubr.bf16.gmra.mrb[0].mxu0 %v1703
        %v1751 = vpop.f32.mrb[0].mxu0
        %v1752 = vadd.f32 0.0, %v1751
        %v1753 = vpop.f32.mrb[0].mxu0
        %v1754 = vpop.f32.mrb[0].mxu0
        %v1755 = vadd.f32 0.0, %v1754
        %v1756 = vpop.f32.mrb[0].mxu0
        %1757 = vmatprep.mubr.bf16.mxu0 0
        %1758 = vmatmul.mubr.bf16.gmra.mrb[0].mxu0 %v1706
        %v1759 = vpop.f32.mrb[0].mxu0
        %v1760 = vadd.f32 0.0, %v1759
        %v1761 = vpop.f32.mrb[0].mxu0
        %v1762 = vpop.f32.mrb[0].mxu0
        %v1763 = vadd.f32 0.0, %v1762
        %v1764 = vpop.f32.mrb[0].mxu0
        %1765 = vmatprep.mubr.bf16.mxu0 0
        %1766 = vmatmul.mubr.bf16.gmra.mrb[0].mxu0 %v1709
        %v1767 = vpop.f32.mrb[0].mxu0
        %v1768 = vadd.f32 0.0, %v1767
        %v1769 = vpop.f32.mrb[0].mxu0
        %v1770 = vpop.f32.mrb[0].mxu0
        %v1771 = vadd.f32 0.0, %v1770
        %v1772 = vpop.f32.mrb[0].mxu0
        %1773 = vmatprep.mubr.bf16.mxu0 0
        %1774 = vmatmul.mubr.bf16.gmra.mrb[0].mxu0 %v1712
        %v1775 = vpop.f32.mrb[0].mxu0
        %v1776 = vadd.f32 0.0, %v1775
        %v1777 = vpop.f32.mrb[0].mxu0
        %v1778 = vpop.f32.mrb[0].mxu0
        %v1779 = vadd.f32 0.0, %v1778
        %v1780 = vpop.f32.mrb[0].mxu0
        %1781 = vdwg.mxu0
        %v1782 = vadd.f32 %v1645, %v1752
        %v1783 = vadd.f32 %v1646, %v1755
        %v1784 = vadd.f32 %v1647, %v1760
        %v1785 = vadd.f32 %v1648, %v1763
        %v1786 = vadd.f32 %v1649, %v1768
        %v1787 = vadd.f32 %v1650, %v1771
        %v1788 = vadd.f32 %v1651, %v1776
        %v1789 = vadd.f32 %v1652, %v1779
        %vm1790 = vsmask.f32 1280
        %vm1791 = vsmask.f32 5392
        %vm1792 = vmor %vm1790, %vm1791
        %v1793 = vrot.slane %v1024, 6
        %v1794 = vrot.slane %v1027, 7
        %v1795 = vor.u32 %v1793, %v1794
        %v1796 = vrot.slane %v1795, 4
        %v1797 = vrot.slane %v1475, 6
        %v1798 = vrot.slane %v1033, 7
        %v1799 = vor.u32 %v1797, %v1798
        %v1800 = vsel %vm1792, %v1796, %v1799
        %v1801 = vrot.slane %v1038, 6
        %v1802 = vrot.slane %v1041, 7
        %v1803 = vor.u32 %v1801, %v1802
        %v1804 = vrot.slane %v1803, 4
        %v1805 = vrot.slane %v1485, 6
        %v1806 = vrot.slane %v1047, 7
        %v1807 = vor.u32 %v1805, %v1806
        %v1808 = vsel %vm1792, %v1804, %v1807
        %v1809 = vrot.slane %v1052, 6
        %v1810 = vrot.slane %v1055, 7
        %v1811 = vor.u32 %v1809, %v1810
        %v1812 = vrot.slane %v1811, 4
        %v1813 = vrot.slane %v1495, 6
        %v1814 = vrot.slane %v1061, 7
        %v1815 = vor.u32 %v1813, %v1814
        %v1816 = vsel %vm1792, %v1812, %v1815
        %v1817 = vrot.slane %v1066, 6
        %v1818 = vrot.slane %v1069, 7
        %v1819 = vor.u32 %v1817, %v1818
        %v1820 = vrot.slane %v1819, 4
        %v1821 = vrot.slane %v1505, 6
        %v1822 = vrot.slane %v1075, 7
        %v1823 = vor.u32 %v1821, %v1822
        %v1824 = vsel %vm1792, %v1820, %v1823
        %v1825 = vrot.slane %v1080, 6
        %v1826 = vrot.slane %v1083, 7
        %v1827 = vor.u32 %v1825, %v1826
        %v1828 = vrot.slane %v1827, 4
        %v1829 = vrot.slane %v1515, 6
        %v1830 = vrot.slane %v1089, 7
        %v1831 = vor.u32 %v1829, %v1830
        %v1832 = vsel %vm1792, %v1828, %v1831
        %v1833 = vrot.slane %v1094, 6
        %v1834 = vrot.slane %v1097, 7
        %v1835 = vor.u32 %v1833, %v1834
        %v1836 = vrot.slane %v1835, 4
        %v1837 = vrot.slane %v1525, 6
        %v1838 = vrot.slane %v1103, 7
        %v1839 = vor.u32 %v1837, %v1838
        %v1840 = vsel %vm1792, %v1836, %v1839
        %v1841 = vrot.slane %v1108, 6
        %v1842 = vrot.slane %v1111, 7
        %v1843 = vor.u32 %v1841, %v1842
        %v1844 = vrot.slane %v1843, 4
        %v1845 = vrot.slane %v1535, 6
        %v1846 = vrot.slane %v1117, 7
        %v1847 = vor.u32 %v1845, %v1846
        %v1848 = vsel %vm1792, %v1844, %v1847
        %v1849 = vrot.slane %v1122, 6
        %v1850 = vrot.slane %v1125, 7
        %v1851 = vor.u32 %v1849, %v1850
        %v1852 = vrot.slane %v1851, 4
        %v1853 = vrot.slane %v1545, 6
        %v1854 = vrot.slane %v1131, 7
        %v1855 = vor.u32 %v1853, %v1854
        %v1856 = vsel %vm1792, %v1852, %v1855
        %s1857 = scalar_lea.vmem %s5, 20
        %v1858 = vld [vmem:[%s1857] sm:$0xf]
        %v1859 = vunpack.c.l.b16 %v1800
        %v1860 = vunpack.c.l.b16 %v1808
        %v1861 = vunpack.c.l.b16 %v1816
        %v1862 = vunpack.c.l.b16 %v1824
        %v1863 = vunpack.c.l.b16 %v1832
        %v1864 = vunpack.c.l.b16 %v1840
        %v1865 = vunpack.c.l.b16 %v1848
        %v1866 = vunpack.c.l.b16 %v1856
        %v1867 = vpack.c.b16 %v1860, %v1859
        %v1868 = vpack.c.b16 %v1862, %v1861
        %v1869 = vpack.c.b16 %v1864, %v1863
        %v1870 = vpack.c.b16 %v1866, %v1865
        %v1872 = vsel %vm1149, %v1867, 0
        %v1875 = vsel %vm1149, %v1868, 0
        %v1878 = vsel %vm1149, %v1869, 0
        %v1881 = vsel %vm1149, %v1870, 0
        %v1884 = vsel %vm1162, %v1858, 0
        %1886 = vmatprep.subr.bf16.mxu0 0
        %1887 = vmatpush1.bf16.msra.mxu0 %v1884
        %1888 = vmatprep.subr.bf16.mxu0 0
        %1889 = vmatpush1.bf16.msra.mxu0 0
        %1890 = vmatprep.subr.bf16.mxu0 0
        %1891 = vmatpush1.bf16.msra.mxu0 0
        %1892 = vmatprep.subr.bf16.mxu0 0
        %1893 = vmatpush1.bf16.msra.mxu0 0
        %1894 = vmatprep.subr.bf16.mxu0 0
        %1895 = vmatpush1.bf16.msra.mxu0 0
        %1896 = vmatprep.subr.bf16.mxu0 0
        %1897 = vmatpush1.bf16.msra.mxu0 0
        %1898 = vmatprep.subr.bf16.mxu0 0
        %1899 = vmatpush1.bf16.msra.mxu0 0
        %1900 = vmatprep.subr.bf16.mxu0 0
        %1901 = vmatpush1.bf16.msra.mxu0 0
        %1902 = vmatprep.subr.bf16.mxu0 0
        %1903 = vmatpush1.bf16.msra.mxu0 0
        %1904 = vmatprep.subr.bf16.mxu0 0
        %1905 = vmatpush1.bf16.msra.mxu0 0
        %1906 = vmatprep.subr.bf16.mxu0 0
        %1907 = vmatpush1.bf16.msra.mxu0 0
        %1908 = vmatprep.subr.bf16.mxu0 0
        %1909 = vmatpush1.bf16.msra.mxu0 0
        %1910 = vmatprep.subr.bf16.mxu0 0
        %1911 = vmatpush1.bf16.msra.mxu0 0
        %1912 = vmatprep.subr.bf16.mxu0 0
        %1913 = vmatpush1.bf16.msra.mxu0 0
        %1914 = vmatprep.subr.bf16.mxu0 0
        %1915 = vmatpush1.bf16.msra.mxu0 0
        %1916 = vmatprep.subr.bf16.mxu0 0
        %1917 = vmatpush1.bf16.msra.mxu0 0
        %1918 = vmatprep.mubr.bf16.mxu0 0
        %1919 = vmatmul.mubr.bf16.gmra.mrb[0].mxu0 %v1872
        %v1920 = vpop.f32.mrb[0].mxu0
        %v1921 = vadd.f32 0.0, %v1920
        %v1922 = vpop.f32.mrb[0].mxu0
        %v1923 = vpop.f32.mrb[0].mxu0
        %v1924 = vadd.f32 0.0, %v1923
        %v1925 = vpop.f32.mrb[0].mxu0
        %1926 = vmatprep.mubr.bf16.mxu0 0
        %1927 = vmatmul.mubr.bf16.gmra.mrb[0].mxu0 %v1875
        %v1928 = vpop.f32.mrb[0].mxu0
        %v1929 = vadd.f32 0.0, %v1928
        %v1930 = vpop.f32.mrb[0].mxu0
        %v1931 = vpop.f32.mrb[0].mxu0
        %v1932 = vadd.f32 0.0, %v1931
        %v1933 = vpop.f32.mrb[0].mxu0
        %1934 = vmatprep.mubr.bf16.mxu0 0
        %1935 = vmatmul.mubr.bf16.gmra.mrb[0].mxu0 %v1878
        %v1936 = vpop.f32.mrb[0].mxu0
        %v1937 = vadd.f32 0.0, %v1936
        %v1938 = vpop.f32.mrb[0].mxu0
        %v1939 = vpop.f32.mrb[0].mxu0
        %v1940 = vadd.f32 0.0, %v1939
        %v1941 = vpop.f32.mrb[0].mxu0
        %1942 = vmatprep.mubr.bf16.mxu0 0
        %1943 = vmatmul.mubr.bf16.gmra.mrb[0].mxu0 %v1881
        %v1944 = vpop.f32.mrb[0].mxu0
        %v1945 = vadd.f32 0.0, %v1944
        %v1946 = vpop.f32.mrb[0].mxu0
        %v1947 = vpop.f32.mrb[0].mxu0
        %v1948 = vadd.f32 0.0, %v1947
        %v1949 = vpop.f32.mrb[0].mxu0
        %1950 = vdwg.mxu0
        %v1951 = vadd.f32 %v1782, %v1921
        %v1952 = vadd.f32 %v1783, %v1924
        %v1953 = vadd.f32 %v1784, %v1929
        %v1954 = vadd.f32 %v1785, %v1932
        %v1955 = vadd.f32 %v1786, %v1937
        %v1956 = vadd.f32 %v1787, %v1940
        %v1957 = vadd.f32 %v1788, %v1945
        %v1958 = vadd.f32 %v1789, %v1948
        %vm1959 = vcmask 1040384
        %vm1960 = vcmask 1044484
        %vm1961 = vmor %vm1959, %vm1960
        %v1962 = vrot.slane %v1004, 7
        %v1963 = vrot.slane %v1962, 4
        %v1964 = vrot.slane %v1005, 7
        %v1965 = vsel %vm1961, %v1963, %v1964
        %v1966 = vrot.slane %v1006, 7
        %v1967 = vrot.slane %v1966, 4
        %v1968 = vrot.slane %v1007, 7
        %v1969 = vsel %vm1961, %v1967, %v1968
        %v1970 = vrot.slane %v1008, 7
        %v1971 = vrot.slane %v1970, 4
        %v1972 = vrot.slane %v1009, 7
        %v1973 = vsel %vm1961, %v1971, %v1972
        %v1974 = vrot.slane %v1010, 7
        %v1975 = vrot.slane %v1974, 4
        %v1976 = vrot.slane %v1011, 7
        %v1977 = vsel %vm1961, %v1975, %v1976
        %v1978 = vrot.slane %v1012, 7
        %v1979 = vrot.slane %v1978, 4
        %v1980 = vrot.slane %v1013, 7
        %v1981 = vsel %vm1961, %v1979, %v1980
        %v1982 = vrot.slane %v1014, 7
        %v1983 = vrot.slane %v1982, 4
        %v1984 = vrot.slane %v1015, 7
        %v1985 = vsel %vm1961, %v1983, %v1984
        %v1986 = vrot.slane %v1016, 7
        %v1987 = vrot.slane %v1986, 4
        %v1988 = vrot.slane %v1017, 7
        %v1989 = vsel %vm1961, %v1987, %v1988
        %v1990 = vrot.slane %v1018, 7
        %v1991 = vrot.slane %v1990, 4
        %v1992 = vrot.slane %v1019, 7
        %v1993 = vsel %vm1961, %v1991, %v1992
        %s1994 = scalar_lea.vmem %s5, 24
        %v1995 = vld [vmem:[%s1994] sm:$0xf]
        %v1996 = vunpack.c.l.b16 %v1965
        %v1997 = vunpack.c.l.b16 %v1969
        %v1998 = vunpack.c.l.b16 %v1973
        %v1999 = vunpack.c.l.b16 %v1977
        %v2000 = vunpack.c.l.b16 %v1981
        %v2001 = vunpack.c.l.b16 %v1985
        %v2002 = vunpack.c.l.b16 %v1989
        %v2003 = vunpack.c.l.b16 %v1993
        %v2004 = vpack.c.b16 %v1997, %v1996
        %v2005 = vpack.c.b16 %v1999, %v1998
        %v2006 = vpack.c.b16 %v2001, %v2000
        %v2007 = vpack.c.b16 %v2003, %v2002
        %v2009 = vsel %vm1149, %v2004, 0
        %v2012 = vsel %vm1149, %v2005, 0
        %v2015 = vsel %vm1149, %v2006, 0
        %v2018 = vsel %vm1149, %v2007, 0
        %v2021 = vsel %vm1162, %v1995, 0
        %2023 = vmatprep.subr.bf16.mxu0 0
        %2024 = vmatpush1.bf16.msra.mxu0 %v2021
        %2025 = vmatprep.subr.bf16.mxu0 0
        %2026 = vmatpush1.bf16.msra.mxu0 0
        %2027 = vmatprep.subr.bf16.mxu0 0
        %2028 = vmatpush1.bf16.msra.mxu0 0
        %2029 = vmatprep.subr.bf16.mxu0 0
        %2030 = vmatpush1.bf16.msra.mxu0 0
        %2031 = vmatprep.subr.bf16.mxu0 0
        %2032 = vmatpush1.bf16.msra.mxu0 0
        %2033 = vmatprep.subr.bf16.mxu0 0
        %2034 = vmatpush1.bf16.msra.mxu0 0
        %2035 = vmatprep.subr.bf16.mxu0 0
        %2036 = vmatpush1.bf16.msra.mxu0 0
        %2037 = vmatprep.subr.bf16.mxu0 0
        %2038 = vmatpush1.bf16.msra.mxu0 0
        %2039 = vmatprep.subr.bf16.mxu0 0
        %2040 = vmatpush1.bf16.msra.mxu0 0
        %2041 = vmatprep.subr.bf16.mxu0 0
        %2042 = vmatpush1.bf16.msra.mxu0 0
        %2043 = vmatprep.subr.bf16.mxu0 0
        %2044 = vmatpush1.bf16.msra.mxu0 0
        %2045 = vmatprep.subr.bf16.mxu0 0
        %2046 = vmatpush1.bf16.msra.mxu0 0
        %2047 = vmatprep.subr.bf16.mxu0 0
        %2048 = vmatpush1.bf16.msra.mxu0 0
        %2049 = vmatprep.subr.bf16.mxu0 0
        %2050 = vmatpush1.bf16.msra.mxu0 0
        %2051 = vmatprep.subr.bf16.mxu0 0
        %2052 = vmatpush1.bf16.msra.mxu0 0
        %2053 = vmatprep.subr.bf16.mxu0 0
        %2054 = vmatpush1.bf16.msra.mxu0 0
        %2055 = vmatprep.mubr.bf16.mxu0 0
        %2056 = vmatmul.mubr.bf16.gmra.mrb[0].mxu0 %v2009
        %v2057 = vpop.f32.mrb[0].mxu0
        %v2058 = vadd.f32 0.0, %v2057
        %v2059 = vpop.f32.mrb[0].mxu0
        %v2060 = vpop.f32.mrb[0].mxu0
        %v2061 = vadd.f32 0.0, %v2060
        %v2062 = vpop.f32.mrb[0].mxu0
        %2063 = vmatprep.mubr.bf16.mxu0 0
        %2064 = vmatmul.mubr.bf16.gmra.mrb[0].mxu0 %v2012
        %v2065 = vpop.f32.mrb[0].mxu0
        %v2066 = vadd.f32 0.0, %v2065
        %v2067 = vpop.f32.mrb[0].mxu0
        %v2068 = vpop.f32.mrb[0].mxu0
        %v2069 = vadd.f32 0.0, %v2068
        %v2070 = vpop.f32.mrb[0].mxu0
        %2071 = vmatprep.mubr.bf16.mxu0 0
        %2072 = vmatmul.mubr.bf16.gmra.mrb[0].mxu0 %v2015
        %v2073 = vpop.f32.mrb[0].mxu0
        %v2074 = vadd.f32 0.0, %v2073
        %v2075 = vpop.f32.mrb[0].mxu0
        %v2076 = vpop.f32.mrb[0].mxu0
        %v2077 = vadd.f32 0.0, %v2076
        %v2078 = vpop.f32.mrb[0].mxu0
        %2079 = vmatprep.mubr.bf16.mxu0 0
        %2080 = vmatmul.mubr.bf16.gmra.mrb[0].mxu0 %v2018
        %v2081 = vpop.f32.mrb[0].mxu0
        %v2082 = vadd.f32 0.0, %v2081
        %v2083 = vpop.f32.mrb[0].mxu0
        %v2084 = vpop.f32.mrb[0].mxu0
        %v2085 = vadd.f32 0.0, %v2084
        %v2086 = vpop.f32.mrb[0].mxu0
        %2087 = vdwg.mxu0
        %v2088 = vadd.f32 %v1951, %v2058
        %v2089 = vadd.f32 %v1952, %v2061
        %v2090 = vadd.f32 %v1953, %v2066
        %v2091 = vadd.f32 %v1954, %v2069
        %v2092 = vadd.f32 %v1955, %v2074
        %v2093 = vadd.f32 %v1956, %v2077
        %v2094 = vadd.f32 %v1957, %v2082
        %v2095 = vadd.f32 %v1958, %v2085
        %v2096 = vld [vmem:[%s6] sm:$0x1]
        %v2098 = vlaneseq
        %v2099 = vshrl.u32 %v2098, 7
        %v2100 = vsub.s32 0, %v2099
        %v2101 = vrot.slane %v2096, %v2100
        %v2103 = vadd.f32 %v2088, %v2101
        %v2104 = vadd.f32 %v2089, %v2101
        %v2105 = vadd.f32 %v2090, %v2101
        %v2106 = vadd.f32 %v2091, %v2101
        %v2107 = vadd.f32 %v2092, %v2101
        %v2108 = vadd.f32 %v2093, %v2101
        %v2109 = vadd.f32 %v2094, %v2101
        %v2110 = vadd.f32 %v2095, %v2101
        %v2111 = vmax.f32 %v2103, 0.0
        %v2112 = vmax.f32 %v2104, 0.0
        %v2113 = vmax.f32 %v2105, 0.0
        %v2114 = vmax.f32 %v2106, 0.0
        %v2115 = vmax.f32 %v2107, 0.0
        %v2116 = vmax.f32 %v2108, 0.0
        %v2117 = vmax.f32 %v2109, 0.0
        %v2118 = vmax.f32 %v2110, 0.0
        %v2119 = vpack.c.bf16 0.0, 0.0
        %v2120 = vpack.c.bf16 %v2111, %v2111
        %v2121 = vpack.c.bf16 %v2112, %v2112
        %v2122 = vpack.c.bf16 %v2113, %v2113
        %v2123 = vpack.c.bf16 %v2114, %v2114
        %v2124 = vpack.c.bf16 %v2115, %v2115
        %v2125 = vld [vmem:[%s7] sm:$0xff]
        %v2126 = vpack.c.bf16 %v2116, %v2116
        %s2127 = scalar_lea.vmem %s7, 8
        %v2128 = vld [vmem:[%s2127] sm:$0xff]
        %v2136 = vunpack.c.l.b16 %v2119
        %v2137 = vunpack.c.l.b16 %v2120
        %v2138 = vunpack.c.l.b16 %v2121
        %v2139 = vunpack.c.l.b16 %v2122
        %v2140 = vunpack.c.l.b16 %v2123
        %v2141 = vunpack.c.l.b16 %v2124
        %v2142 = vunpack.c.l.b16 %v2126
        %v2143 = vpack.c.b16 %v2136, %v2136
        %v2144 = vpack.c.b16 %v2138, %v2137
        %v2145 = vpack.c.b16 %v2140, %v2139
        %v2146 = vpack.c.b16 %v2142, %v2141
        %v2148 = vunpack.c.l.b16 %v2128
        %v2149 = vunpack.c.h.b16 %v2128
        %v2150 = vpack.c.b16 %v2148, %v2148
        %v2151 = vpack.c.b16 %v2149, %v2149
        %v2153 = vsel %vm1149, %v2143, 0
        %v2156 = vsel %vm1149, %v2144, 0
        %v2159 = vsel %vm1149, %v2145, 0
        %v2162 = vsel %vm1149, %v2146, 0
        %v2165 = vsel %vm1162, %v2150, 0
        %v2168 = vsel %vm1162, %v2151, 0
        %2170 = vmatprep.subr.bf16.mxu0 %v2168
        %2171 = vmatpush1.bf16.msra.mxu0 %v2165
        %2172 = vmatprep.subr.bf16.mxu0 0
        %2173 = vmatpush1.bf16.msra.mxu0 0
        %2174 = vmatprep.subr.bf16.mxu0 0
        %2175 = vmatpush1.bf16.msra.mxu0 0
        %2176 = vmatprep.subr.bf16.mxu0 0
        %2177 = vmatpush1.bf16.msra.mxu0 0
        %2178 = vmatprep.subr.bf16.mxu0 0
        %2179 = vmatpush1.bf16.msra.mxu0 0
        %2180 = vmatprep.subr.bf16.mxu0 0
        %2181 = vmatpush1.bf16.msra.mxu0 0
        %2182 = vmatprep.subr.bf16.mxu0 0
        %2183 = vmatpush1.bf16.msra.mxu0 0
        %2184 = vmatprep.subr.bf16.mxu0 0
        %2185 = vmatpush1.bf16.msra.mxu0 0
        %2186 = vmatprep.subr.bf16.mxu0 0
        %2187 = vmatpush1.bf16.msra.mxu0 0
        %2188 = vmatprep.subr.bf16.mxu0 0
        %2189 = vmatpush1.bf16.msra.mxu0 0
        %2190 = vmatprep.subr.bf16.mxu0 0
        %2191 = vmatpush1.bf16.msra.mxu0 0
        %2192 = vmatprep.subr.bf16.mxu0 0
        %2193 = vmatpush1.bf16.msra.mxu0 0
        %2194 = vmatprep.subr.bf16.mxu0 0
        %2195 = vmatpush1.bf16.msra.mxu0 0
        %2196 = vmatprep.subr.bf16.mxu0 0
        %2197 = vmatpush1.bf16.msra.mxu0 0
        %2198 = vmatprep.subr.bf16.mxu0 0
        %2199 = vmatpush1.bf16.msra.mxu0 0
        %2200 = vmatprep.subr.bf16.mxu0 0
        %2201 = vmatpush1.bf16.msra.mxu0 0
        %2202 = vmatprep.mubr.bf16.mxu0 0
        %2203 = vmatmul.mubr.bf16.gmra.mrb[0].mxu0 %v2153
        %v2204 = vpop.f32.mrb[0].mxu0
        %v2205 = vadd.f32 0.0, %v2204
        %v2206 = vpop.f32.mrb[0].mxu0
        %v2207 = vadd.f32 0.0, %v2206
        %v2208 = vpop.f32.mrb[0].mxu0
        %v2209 = vadd.f32 0.0, %v2208
        %v2210 = vpop.f32.mrb[0].mxu0
        %v2211 = vadd.f32 0.0, %v2210
        %2212 = vmatprep.mubr.bf16.mxu0 0
        %2213 = vmatmul.mubr.bf16.gmra.mrb[0].mxu0 %v2156
        %v2214 = vpop.f32.mrb[0].mxu0
        %v2215 = vadd.f32 0.0, %v2214
        %v2216 = vpop.f32.mrb[0].mxu0
        %v2217 = vadd.f32 0.0, %v2216
        %v2218 = vpop.f32.mrb[0].mxu0
        %v2219 = vadd.f32 0.0, %v2218
        %v2220 = vpop.f32.mrb[0].mxu0
        %v2221 = vadd.f32 0.0, %v2220
        %2222 = vmatprep.mubr.bf16.mxu0 0
        %2223 = vmatmul.mubr.bf16.gmra.mrb[0].mxu0 %v2159
        %v2224 = vpop.f32.mrb[0].mxu0
        %v2225 = vadd.f32 0.0, %v2224
        %v2226 = vpop.f32.mrb[0].mxu0
        %v2227 = vadd.f32 0.0, %v2226
        %v2228 = vpop.f32.mrb[0].mxu0
        %v2229 = vadd.f32 0.0, %v2228
        %v2230 = vpop.f32.mrb[0].mxu0
        %v2231 = vadd.f32 0.0, %v2230
        %2232 = vmatprep.mubr.bf16.mxu0 0
        %2233 = vmatmul.mubr.bf16.gmra.mrb[0].mxu0 %v2162
        %v2234 = vpop.f32.mrb[0].mxu0
        %v2235 = vadd.f32 0.0, %v2234
        %v2236 = vpop.f32.mrb[0].mxu0
        %v2237 = vadd.f32 0.0, %v2236
        %v2238 = vpop.f32.mrb[0].mxu0
        %v2239 = vadd.f32 0.0, %v2238
        %v2240 = vpop.f32.mrb[0].mxu0
        %v2241 = vadd.f32 0.0, %v2240
        %2242 = vdwg.mxu0
        %v2243 = vpack.c.b16 %v2137, %v2136
        %v2244 = vpack.c.b16 %v2139, %v2138
        %v2245 = vpack.c.b16 %v2141, %v2140
        %v2247 = vunpack.c.l.b16 %v2125
        %v2248 = vunpack.c.h.b16 %v2125
        %v2249 = vpack.c.b16 %v2247, %v2247
        %v2250 = vpack.c.b16 %v2248, %v2248
        %v2252 = vsel %vm1149, %v2243, 0
        %v2255 = vsel %vm1149, %v2244, 0
        %v2258 = vsel %vm1149, %v2245, 0
        %v2261 = vsel %vm1162, %v2249, 0
        %v2264 = vsel %vm1162, %v2250, 0
        %2266 = vmatprep.subr.bf16.mxu0 %v2264
        %2267 = vmatpush1.bf16.msra.mxu0 %v2261
        %2268 = vmatprep.subr.bf16.mxu0 0
        %2269 = vmatpush1.bf16.msra.mxu0 0
        %2270 = vmatprep.subr.bf16.mxu0 0
        %2271 = vmatpush1.bf16.msra.mxu0 0
        %2272 = vmatprep.subr.bf16.mxu0 0
        %2273 = vmatpush1.bf16.msra.mxu0 0
        %2274 = vmatprep.subr.bf16.mxu0 0
        %2275 = vmatpush1.bf16.msra.mxu0 0
        %2276 = vmatprep.subr.bf16.mxu0 0
        %2277 = vmatpush1.bf16.msra.mxu0 0
        %2278 = vmatprep.subr.bf16.mxu0 0
        %2279 = vmatpush1.bf16.msra.mxu0 0
        %2280 = vmatprep.subr.bf16.mxu0 0
        %2281 = vmatpush1.bf16.msra.mxu0 0
        %2282 = vmatprep.subr.bf16.mxu0 0
        %2283 = vmatpush1.bf16.msra.mxu0 0
        %2284 = vmatprep.subr.bf16.mxu0 0
        %2285 = vmatpush1.bf16.msra.mxu0 0
        %2286 = vmatprep.subr.bf16.mxu0 0
        %2287 = vmatpush1.bf16.msra.mxu0 0
        %2288 = vmatprep.subr.bf16.mxu0 0
        %2289 = vmatpush1.bf16.msra.mxu0 0
        %2290 = vmatprep.subr.bf16.mxu0 0
        %2291 = vmatpush1.bf16.msra.mxu0 0
        %2292 = vmatprep.subr.bf16.mxu0 0
        %2293 = vmatpush1.bf16.msra.mxu0 0
        %2294 = vmatprep.subr.bf16.mxu0 0
        %2295 = vmatpush1.bf16.msra.mxu0 0
        %2296 = vmatprep.subr.bf16.mxu0 0
        %2297 = vmatpush1.bf16.msra.mxu0 0
        %2298 = vmatprep.mubr.bf16.mxu0 0
        %2299 = vmatmul.mubr.bf16.gmra.mrb[0].mxu0 %v2153
        %v2300 = vpop.f32.mrb[0].mxu0
        %v2301 = vadd.f32 %v2205, %v2300
        %v2302 = vpop.f32.mrb[0].mxu0
        %v2303 = vadd.f32 %v2207, %v2302
        %v2304 = vpop.f32.mrb[0].mxu0
        %v2305 = vadd.f32 %v2209, %v2304
        %v2306 = vpop.f32.mrb[0].mxu0
        %v2307 = vadd.f32 %v2211, %v2306
        %2308 = vmatprep.mubr.bf16.mxu0 0
        %2309 = vmatmul.mubr.bf16.gmra.mrb[0].mxu0 %v2252
        %v2310 = vpop.f32.mrb[0].mxu0
        %v2311 = vadd.f32 %v2215, %v2310
        %v2312 = vpop.f32.mrb[0].mxu0
        %v2313 = vadd.f32 %v2217, %v2312
        %v2314 = vpop.f32.mrb[0].mxu0
        %v2315 = vadd.f32 %v2219, %v2314
        %v2316 = vpop.f32.mrb[0].mxu0
        %v2317 = vadd.f32 %v2221, %v2316
        %2318 = vmatprep.mubr.bf16.mxu0 0
        %2319 = vmatmul.mubr.bf16.gmra.mrb[0].mxu0 %v2255
        %v2320 = vpop.f32.mrb[0].mxu0
        %v2321 = vadd.f32 %v2225, %v2320
        %v2322 = vpop.f32.mrb[0].mxu0
        %v2323 = vadd.f32 %v2227, %v2322
        %v2324 = vpop.f32.mrb[0].mxu0
        %v2325 = vadd.f32 %v2229, %v2324
        %v2326 = vpop.f32.mrb[0].mxu0
        %v2327 = vadd.f32 %v2231, %v2326
        %2328 = vmatprep.mubr.bf16.mxu0 0
        %2329 = vmatmul.mubr.bf16.gmra.mrb[0].mxu0 %v2258
        %v2330 = vpop.f32.mrb[0].mxu0
        %v2331 = vadd.f32 %v2235, %v2330
        %v2332 = vpop.f32.mrb[0].mxu0
        %v2333 = vadd.f32 %v2237, %v2332
        %v2334 = vpop.f32.mrb[0].mxu0
        %v2335 = vadd.f32 %v2239, %v2334
        %v2336 = vpop.f32.mrb[0].mxu0
        %v2337 = vadd.f32 %v2241, %v2336
        %2338 = vdwg.mxu0
        %v2339 = vpack.c.bf16 %v2117, %v2117
        %s2340 = scalar_lea.vmem %s7, 16
        %v2341 = vld [vmem:[%s2340] sm:$0xff]
        %v2343 = vunpack.c.l.b16 %v2339
        %v2344 = vpack.c.b16 %v2343, %v2142
        %v2346 = vunpack.c.l.b16 %v2341
        %v2347 = vunpack.c.h.b16 %v2341
        %v2348 = vpack.c.b16 %v2346, %v2346
        %v2349 = vpack.c.b16 %v2347, %v2347
        %v2351 = vsel %vm1149, %v2344, 0
        %v2354 = vsel %vm1162, %v2348, 0
        %v2357 = vsel %vm1162, %v2349, 0
        %2359 = vmatprep.subr.bf16.mxu0 %v2357
        %2360 = vmatpush1.bf16.msra.mxu0 %v2354
        %2361 = vmatprep.subr.bf16.mxu0 0
        %2362 = vmatpush1.bf16.msra.mxu0 0
        %2363 = vmatprep.subr.bf16.mxu0 0
        %2364 = vmatpush1.bf16.msra.mxu0 0
        %2365 = vmatprep.subr.bf16.mxu0 0
        %2366 = vmatpush1.bf16.msra.mxu0 0
        %2367 = vmatprep.subr.bf16.mxu0 0
        %2368 = vmatpush1.bf16.msra.mxu0 0
        %2369 = vmatprep.subr.bf16.mxu0 0
        %2370 = vmatpush1.bf16.msra.mxu0 0
        %2371 = vmatprep.subr.bf16.mxu0 0
        %2372 = vmatpush1.bf16.msra.mxu0 0
        %2373 = vmatprep.subr.bf16.mxu0 0
        %2374 = vmatpush1.bf16.msra.mxu0 0
        %2375 = vmatprep.subr.bf16.mxu0 0
        %2376 = vmatpush1.bf16.msra.mxu0 0
        %2377 = vmatprep.subr.bf16.mxu0 0
        %2378 = vmatpush1.bf16.msra.mxu0 0
        %2379 = vmatprep.subr.bf16.mxu0 0
        %2380 = vmatpush1.bf16.msra.mxu0 0
        %2381 = vmatprep.subr.bf16.mxu0 0
        %2382 = vmatpush1.bf16.msra.mxu0 0
        %2383 = vmatprep.subr.bf16.mxu0 0
        %2384 = vmatpush1.bf16.msra.mxu0 0
        %2385 = vmatprep.subr.bf16.mxu0 0
        %2386 = vmatpush1.bf16.msra.mxu0 0
        %2387 = vmatprep.subr.bf16.mxu0 0
        %2388 = vmatpush1.bf16.msra.mxu0 0
        %2389 = vmatprep.subr.bf16.mxu0 0
        %2390 = vmatpush1.bf16.msra.mxu0 0
        %2391 = vmatprep.mubr.bf16.mxu0 0
        %2392 = vmatmul.mubr.bf16.gmra.mrb[0].mxu0 %v2252
        %v2393 = vpop.f32.mrb[0].mxu0
        %v2394 = vadd.f32 0.0, %v2393
        %v2395 = vpop.f32.mrb[0].mxu0
        %v2396 = vadd.f32 0.0, %v2395
        %v2397 = vpop.f32.mrb[0].mxu0
        %v2398 = vadd.f32 0.0, %v2397
        %v2399 = vpop.f32.mrb[0].mxu0
        %v2400 = vadd.f32 0.0, %v2399
        %2401 = vmatprep.mubr.bf16.mxu0 0
        %2402 = vmatmul.mubr.bf16.gmra.mrb[0].mxu0 %v2255
        %v2403 = vpop.f32.mrb[0].mxu0
        %v2404 = vadd.f32 0.0, %v2403
        %v2405 = vpop.f32.mrb[0].mxu0
        %v2406 = vadd.f32 0.0, %v2405
        %v2407 = vpop.f32.mrb[0].mxu0
        %v2408 = vadd.f32 0.0, %v2407
        %v2409 = vpop.f32.mrb[0].mxu0
        %v2410 = vadd.f32 0.0, %v2409
        %2411 = vmatprep.mubr.bf16.mxu0 0
        %2412 = vmatmul.mubr.bf16.gmra.mrb[0].mxu0 %v2258
        %v2413 = vpop.f32.mrb[0].mxu0
        %v2414 = vadd.f32 0.0, %v2413
        %v2415 = vpop.f32.mrb[0].mxu0
        %v2416 = vadd.f32 0.0, %v2415
        %v2417 = vpop.f32.mrb[0].mxu0
        %v2418 = vadd.f32 0.0, %v2417
        %v2419 = vpop.f32.mrb[0].mxu0
        %v2420 = vadd.f32 0.0, %v2419
        %2421 = vmatprep.mubr.bf16.mxu0 0
        %2422 = vmatmul.mubr.bf16.gmra.mrb[0].mxu0 %v2351
        %v2423 = vpop.f32.mrb[0].mxu0
        %v2424 = vadd.f32 0.0, %v2423
        %v2425 = vpop.f32.mrb[0].mxu0
        %v2426 = vadd.f32 0.0, %v2425
        %v2427 = vpop.f32.mrb[0].mxu0
        %v2428 = vadd.f32 0.0, %v2427
        %v2429 = vpop.f32.mrb[0].mxu0
        %v2430 = vadd.f32 0.0, %v2429
        %2431 = vdwg.mxu0
        %v2432 = vadd.f32 %v2301, %v2394
        %v2433 = vadd.f32 %v2303, %v2396
        %v2434 = vadd.f32 %v2305, %v2398
        %v2435 = vadd.f32 %v2307, %v2400
        %v2436 = vadd.f32 %v2311, %v2404
        %v2437 = vadd.f32 %v2313, %v2406
        %v2438 = vadd.f32 %v2315, %v2408
        %v2439 = vadd.f32 %v2317, %v2410
        %v2440 = vadd.f32 %v2321, %v2414
        %v2441 = vadd.f32 %v2323, %v2416
        %v2442 = vadd.f32 %v2325, %v2418
        %v2443 = vadd.f32 %v2327, %v2420
        %v2444 = vadd.f32 %v2331, %v2424
        %v2445 = vadd.f32 %v2333, %v2426
        %v2446 = vadd.f32 %v2335, %v2428
        %v2447 = vadd.f32 %v2337, %v2430
        %v2448 = vpack.c.bf16 %v2118, %v2118
        %s2449 = scalar_lea.vmem %s7, 24
        %v2450 = vld [vmem:[%s2449] sm:$0xff]
        %v2452 = vunpack.c.l.b16 %v2448
        %v2453 = vpack.c.b16 %v2452, %v2343
        %v2455 = vunpack.c.l.b16 %v2450
        %v2456 = vunpack.c.h.b16 %v2450
        %v2457 = vpack.c.b16 %v2455, %v2455
        %v2458 = vpack.c.b16 %v2456, %v2456
        %v2460 = vsel %vm1149, %v2453, 0
        %v2463 = vsel %vm1162, %v2457, 0
        %v2466 = vsel %vm1162, %v2458, 0
        %2468 = vmatprep.subr.bf16.mxu0 %v2466
        %2469 = vmatpush1.bf16.msra.mxu0 %v2463
        %2470 = vmatprep.subr.bf16.mxu0 0
        %2471 = vmatpush1.bf16.msra.mxu0 0
        %2472 = vmatprep.subr.bf16.mxu0 0
        %2473 = vmatpush1.bf16.msra.mxu0 0
        %2474 = vmatprep.subr.bf16.mxu0 0
        %2475 = vmatpush1.bf16.msra.mxu0 0
        %2476 = vmatprep.subr.bf16.mxu0 0
        %2477 = vmatpush1.bf16.msra.mxu0 0
        %2478 = vmatprep.subr.bf16.mxu0 0
        %2479 = vmatpush1.bf16.msra.mxu0 0
        %2480 = vmatprep.subr.bf16.mxu0 0
        %2481 = vmatpush1.bf16.msra.mxu0 0
        %2482 = vmatprep.subr.bf16.mxu0 0
        %2483 = vmatpush1.bf16.msra.mxu0 0
        %2484 = vmatprep.subr.bf16.mxu0 0
        %2485 = vmatpush1.bf16.msra.mxu0 0
        %2486 = vmatprep.subr.bf16.mxu0 0
        %2487 = vmatpush1.bf16.msra.mxu0 0
        %2488 = vmatprep.subr.bf16.mxu0 0
        %2489 = vmatpush1.bf16.msra.mxu0 0
        %2490 = vmatprep.subr.bf16.mxu0 0
        %2491 = vmatpush1.bf16.msra.mxu0 0
        %2492 = vmatprep.subr.bf16.mxu0 0
        %2493 = vmatpush1.bf16.msra.mxu0 0
        %2494 = vmatprep.subr.bf16.mxu0 0
        %2495 = vmatpush1.bf16.msra.mxu0 0
        %2496 = vmatprep.subr.bf16.mxu0 0
        %2497 = vmatpush1.bf16.msra.mxu0 0
        %2498 = vmatprep.subr.bf16.mxu0 0
        %2499 = vmatpush1.bf16.msra.mxu0 0
        %2500 = vmatprep.mubr.bf16.mxu0 0
        %2501 = vmatmul.mubr.bf16.gmra.mrb[0].mxu0 %v2156
        %v2502 = vpop.f32.mrb[0].mxu0
        %v2503 = vadd.f32 0.0, %v2502
        %v2504 = vpop.f32.mrb[0].mxu0
        %v2505 = vadd.f32 0.0, %v2504
        %v2506 = vpop.f32.mrb[0].mxu0
        %v2507 = vadd.f32 0.0, %v2506
        %v2508 = vpop.f32.mrb[0].mxu0
        %v2509 = vadd.f32 0.0, %v2508
        %2510 = vmatprep.mubr.bf16.mxu0 0
        %2511 = vmatmul.mubr.bf16.gmra.mrb[0].mxu0 %v2159
        %v2512 = vpop.f32.mrb[0].mxu0
        %v2513 = vadd.f32 0.0, %v2512
        %v2514 = vpop.f32.mrb[0].mxu0
        %v2515 = vadd.f32 0.0, %v2514
        %v2516 = vpop.f32.mrb[0].mxu0
        %v2517 = vadd.f32 0.0, %v2516
        %v2518 = vpop.f32.mrb[0].mxu0
        %v2519 = vadd.f32 0.0, %v2518
        %2520 = vmatprep.mubr.bf16.mxu0 0
        %2521 = vmatmul.mubr.bf16.gmra.mrb[0].mxu0 %v2162
        %v2522 = vpop.f32.mrb[0].mxu0
        %v2523 = vadd.f32 0.0, %v2522
        %v2524 = vpop.f32.mrb[0].mxu0
        %v2525 = vadd.f32 0.0, %v2524
        %v2526 = vpop.f32.mrb[0].mxu0
        %v2527 = vadd.f32 0.0, %v2526
        %v2528 = vpop.f32.mrb[0].mxu0
        %v2529 = vadd.f32 0.0, %v2528
        %2530 = vmatprep.mubr.bf16.mxu0 0
        %2531 = vmatmul.mubr.bf16.gmra.mrb[0].mxu0 %v2460
        %v2532 = vpop.f32.mrb[0].mxu0
        %v2533 = vadd.f32 0.0, %v2532
        %v2534 = vpop.f32.mrb[0].mxu0
        %v2535 = vadd.f32 0.0, %v2534
        %v2536 = vpop.f32.mrb[0].mxu0
        %v2537 = vadd.f32 0.0, %v2536
        %v2538 = vpop.f32.mrb[0].mxu0
        %v2539 = vadd.f32 0.0, %v2538
        %2540 = vdwg.mxu0
        %v2541 = vadd.f32 %v2432, %v2503
        %v2542 = vadd.f32 %v2433, %v2505
        %v2543 = vadd.f32 %v2434, %v2507
        %v2544 = vadd.f32 %v2435, %v2509
        %v2545 = vadd.f32 %v2436, %v2513
        %v2546 = vadd.f32 %v2437, %v2515
        %v2547 = vadd.f32 %v2438, %v2517
        %v2548 = vadd.f32 %v2439, %v2519
        %v2549 = vadd.f32 %v2440, %v2523
        %v2550 = vadd.f32 %v2441, %v2525
        %v2551 = vadd.f32 %v2442, %v2527
        %v2552 = vadd.f32 %v2443, %v2529
        %v2553 = vadd.f32 %v2444, %v2533
        %v2554 = vadd.f32 %v2445, %v2535
        %v2555 = vadd.f32 %v2446, %v2537
        %v2556 = vadd.f32 %v2447, %v2539
        %s2557 = scalar_lea.vmem %s7, 32
        %v2558 = vld [vmem:[%s2557] sm:$0xff]
        %v2559 = vpack.c.b16 %v2136, %v2452
        %v2561 = vunpack.c.l.b16 %v2558
        %v2562 = vunpack.c.h.b16 %v2558
        %v2563 = vpack.c.b16 %v2561, %v2561
        %v2564 = vpack.c.b16 %v2562, %v2562
        %v2566 = vsel %vm1149, %v2559, 0
        %v2569 = vsel %vm1162, %v2563, 0
        %v2572 = vsel %vm1162, %v2564, 0
        %2574 = vmatprep.subr.bf16.mxu0 %v2572
        %2575 = vmatpush1.bf16.msra.mxu0 %v2569
        %2576 = vmatprep.subr.bf16.mxu0 0
        %2577 = vmatpush1.bf16.msra.mxu0 0
        %2578 = vmatprep.subr.bf16.mxu0 0
        %2579 = vmatpush1.bf16.msra.mxu0 0
        %2580 = vmatprep.subr.bf16.mxu0 0
        %2581 = vmatpush1.bf16.msra.mxu0 0
        %2582 = vmatprep.subr.bf16.mxu0 0
        %2583 = vmatpush1.bf16.msra.mxu0 0
        %2584 = vmatprep.subr.bf16.mxu0 0
        %2585 = vmatpush1.bf16.msra.mxu0 0
        %2586 = vmatprep.subr.bf16.mxu0 0
        %2587 = vmatpush1.bf16.msra.mxu0 0
        %2588 = vmatprep.subr.bf16.mxu0 0
        %2589 = vmatpush1.bf16.msra.mxu0 0
        %2590 = vmatprep.subr.bf16.mxu0 0
        %2591 = vmatpush1.bf16.msra.mxu0 0
        %2592 = vmatprep.subr.bf16.mxu0 0
        %2593 = vmatpush1.bf16.msra.mxu0 0
        %2594 = vmatprep.subr.bf16.mxu0 0
        %2595 = vmatpush1.bf16.msra.mxu0 0
        %2596 = vmatprep.subr.bf16.mxu0 0
        %2597 = vmatpush1.bf16.msra.mxu0 0
        %2598 = vmatprep.subr.bf16.mxu0 0
        %2599 = vmatpush1.bf16.msra.mxu0 0
        %2600 = vmatprep.subr.bf16.mxu0 0
        %2601 = vmatpush1.bf16.msra.mxu0 0
        %2602 = vmatprep.subr.bf16.mxu0 0
        %2603 = vmatpush1.bf16.msra.mxu0 0
        %2604 = vmatprep.subr.bf16.mxu0 0
        %2605 = vmatpush1.bf16.msra.mxu0 0
        %2606 = vmatprep.mubr.bf16.mxu0 0
        %2607 = vmatmul.mubr.bf16.gmra.mrb[0].mxu0 %v2255
        %v2608 = vpop.f32.mrb[0].mxu0
        %v2609 = vadd.f32 0.0, %v2608
        %v2610 = vpop.f32.mrb[0].mxu0
        %v2611 = vadd.f32 0.0, %v2610
        %v2612 = vpop.f32.mrb[0].mxu0
        %v2613 = vadd.f32 0.0, %v2612
        %v2614 = vpop.f32.mrb[0].mxu0
        %v2615 = vadd.f32 0.0, %v2614
        %2616 = vmatprep.mubr.bf16.mxu0 0
        %2617 = vmatmul.mubr.bf16.gmra.mrb[0].mxu0 %v2258
        %v2618 = vpop.f32.mrb[0].mxu0
        %v2619 = vadd.f32 0.0, %v2618
        %v2620 = vpop.f32.mrb[0].mxu0
        %v2621 = vadd.f32 0.0, %v2620
        %v2622 = vpop.f32.mrb[0].mxu0
        %v2623 = vadd.f32 0.0, %v2622
        %v2624 = vpop.f32.mrb[0].mxu0
        %v2625 = vadd.f32 0.0, %v2624
        %2626 = vmatprep.mubr.bf16.mxu0 0
        %2627 = vmatmul.mubr.bf16.gmra.mrb[0].mxu0 %v2351
        %v2628 = vpop.f32.mrb[0].mxu0
        %v2629 = vadd.f32 0.0, %v2628
        %v2630 = vpop.f32.mrb[0].mxu0
        %v2631 = vadd.f32 0.0, %v2630
        %v2632 = vpop.f32.mrb[0].mxu0
        %v2633 = vadd.f32 0.0, %v2632
        %v2634 = vpop.f32.mrb[0].mxu0
        %v2635 = vadd.f32 0.0, %v2634
        %2636 = vmatprep.mubr.bf16.mxu0 0
        %2637 = vmatmul.mubr.bf16.gmra.mrb[0].mxu0 %v2566
        %v2638 = vpop.f32.mrb[0].mxu0
        %v2639 = vadd.f32 0.0, %v2638
        %v2640 = vpop.f32.mrb[0].mxu0
        %v2641 = vadd.f32 0.0, %v2640
        %v2642 = vpop.f32.mrb[0].mxu0
        %v2643 = vadd.f32 0.0, %v2642
        %v2644 = vpop.f32.mrb[0].mxu0
        %v2645 = vadd.f32 0.0, %v2644
        %2646 = vdwg.mxu0
        %v2647 = vadd.f32 %v2541, %v2609
        %v2648 = vadd.f32 %v2542, %v2611
        %v2649 = vadd.f32 %v2543, %v2613
        %v2650 = vadd.f32 %v2544, %v2615
        %v2651 = vadd.f32 %v2545, %v2619
        %v2652 = vadd.f32 %v2546, %v2621
        %v2653 = vadd.f32 %v2547, %v2623
        %v2654 = vadd.f32 %v2548, %v2625
        %v2655 = vadd.f32 %v2549, %v2629
        %v2656 = vadd.f32 %v2550, %v2631
        %v2657 = vadd.f32 %v2551, %v2633
        %v2658 = vadd.f32 %v2552, %v2635
        %v2659 = vadd.f32 %v2553, %v2639
        %v2660 = vadd.f32 %v2554, %v2641
        %v2661 = vadd.f32 %v2555, %v2643
        %v2662 = vadd.f32 %v2556, %v2645
        %s2663 = scalar_lea.vmem %s7, 40
        %v2664 = vld [vmem:[%s2663] sm:$0xff]
        %v2666 = vunpack.c.l.b16 %v2664
        %v2667 = vunpack.c.h.b16 %v2664
        %v2668 = vpack.c.b16 %v2666, %v2666
        %v2669 = vpack.c.b16 %v2667, %v2667
        %v2671 = vsel %vm1162, %v2668, 0
        %v2674 = vsel %vm1162, %v2669, 0
        %2676 = vmatprep.subr.bf16.mxu0 %v2674
        %2677 = vmatpush1.bf16.msra.mxu0 %v2671
        %2678 = vmatprep.subr.bf16.mxu0 0
        %2679 = vmatpush1.bf16.msra.mxu0 0
        %2680 = vmatprep.subr.bf16.mxu0 0
        %2681 = vmatpush1.bf16.msra.mxu0 0
        %2682 = vmatprep.subr.bf16.mxu0 0
        %2683 = vmatpush1.bf16.msra.mxu0 0
        %2684 = vmatprep.subr.bf16.mxu0 0
        %2685 = vmatpush1.bf16.msra.mxu0 0
        %2686 = vmatprep.subr.bf16.mxu0 0
        %2687 = vmatpush1.bf16.msra.mxu0 0
        %2688 = vmatprep.subr.bf16.mxu0 0
        %2689 = vmatpush1.bf16.msra.mxu0 0
        %2690 = vmatprep.subr.bf16.mxu0 0
        %2691 = vmatpush1.bf16.msra.mxu0 0
        %2692 = vmatprep.subr.bf16.mxu0 0
        %2693 = vmatpush1.bf16.msra.mxu0 0
        %2694 = vmatprep.subr.bf16.mxu0 0
        %2695 = vmatpush1.bf16.msra.mxu0 0
        %2696 = vmatprep.subr.bf16.mxu0 0
        %2697 = vmatpush1.bf16.msra.mxu0 0
        %2698 = vmatprep.subr.bf16.mxu0 0
        %2699 = vmatpush1.bf16.msra.mxu0 0
        %2700 = vmatprep.subr.bf16.mxu0 0
        %2701 = vmatpush1.bf16.msra.mxu0 0
        %2702 = vmatprep.subr.bf16.mxu0 0
        %2703 = vmatpush1.bf16.msra.mxu0 0
        %2704 = vmatprep.subr.bf16.mxu0 0
        %2705 = vmatpush1.bf16.msra.mxu0 0
        %2706 = vmatprep.subr.bf16.mxu0 0
        %2707 = vmatpush1.bf16.msra.mxu0 0
        %2708 = vmatprep.mubr.bf16.mxu0 0
        %2709 = vmatmul.mubr.bf16.gmra.mrb[0].mxu0 %v2159
        %v2710 = vpop.f32.mrb[0].mxu0
        %v2711 = vadd.f32 0.0, %v2710
        %v2712 = vpop.f32.mrb[0].mxu0
        %v2713 = vadd.f32 0.0, %v2712
        %v2714 = vpop.f32.mrb[0].mxu0
        %v2715 = vadd.f32 0.0, %v2714
        %v2716 = vpop.f32.mrb[0].mxu0
        %v2717 = vadd.f32 0.0, %v2716
        %2718 = vmatprep.mubr.bf16.mxu0 0
        %2719 = vmatmul.mubr.bf16.gmra.mrb[0].mxu0 %v2162
        %v2720 = vpop.f32.mrb[0].mxu0
        %v2721 = vadd.f32 0.0, %v2720
        %v2722 = vpop.f32.mrb[0].mxu0
        %v2723 = vadd.f32 0.0, %v2722
        %v2724 = vpop.f32.mrb[0].mxu0
        %v2725 = vadd.f32 0.0, %v2724
        %v2726 = vpop.f32.mrb[0].mxu0
        %v2727 = vadd.f32 0.0, %v2726
        %2728 = vmatprep.mubr.bf16.mxu0 0
        %2729 = vmatmul.mubr.bf16.gmra.mrb[0].mxu0 %v2460
        %v2730 = vpop.f32.mrb[0].mxu0
        %v2731 = vadd.f32 0.0, %v2730
        %v2732 = vpop.f32.mrb[0].mxu0
        %v2733 = vadd.f32 0.0, %v2732
        %v2734 = vpop.f32.mrb[0].mxu0
        %v2735 = vadd.f32 0.0, %v2734
        %v2736 = vpop.f32.mrb[0].mxu0
        %v2737 = vadd.f32 0.0, %v2736
        %2738 = vmatprep.mubr.bf16.mxu0 0
        %2739 = vmatmul.mubr.bf16.gmra.mrb[0].mxu0 %v2153
        %v2740 = vpop.f32.mrb[0].mxu0
        %v2741 = vadd.f32 0.0, %v2740
        %v2742 = vpop.f32.mrb[0].mxu0
        %v2743 = vadd.f32 0.0, %v2742
        %v2744 = vpop.f32.mrb[0].mxu0
        %v2745 = vadd.f32 0.0, %v2744
        %v2746 = vpop.f32.mrb[0].mxu0
        %v2747 = vadd.f32 0.0, %v2746
        %2748 = vdwg.mxu0
        %v2749 = vadd.f32 %v2647, %v2711
        %v2750 = vadd.f32 %v2648, %v2713
        %v2751 = vadd.f32 %v2649, %v2715
        %v2752 = vadd.f32 %v2650, %v2717
        %v2753 = vadd.f32 %v2651, %v2721
        %v2754 = vadd.f32 %v2652, %v2723
        %v2755 = vadd.f32 %v2653, %v2725
        %v2756 = vadd.f32 %v2654, %v2727
        %v2757 = vadd.f32 %v2655, %v2731
        %v2758 = vadd.f32 %v2656, %v2733
        %v2759 = vadd.f32 %v2657, %v2735
        %v2760 = vadd.f32 %v2658, %v2737
        %v2761 = vadd.f32 %v2659, %v2741
        %v2762 = vadd.f32 %v2660, %v2743
        %v2763 = vadd.f32 %v2661, %v2745
        %v2764 = vadd.f32 %v2662, %v2747
        %s2765 = scalar_lea.vmem %s7, 48
        %v2766 = vld [vmem:[%s2765] sm:$0xff]
        %v2768 = vunpack.c.l.b16 %v2766
        %v2769 = vunpack.c.h.b16 %v2766
        %v2770 = vpack.c.b16 %v2768, %v2768
        %v2771 = vpack.c.b16 %v2769, %v2769
        %v2773 = vsel %vm1162, %v2770, 0
        %v2776 = vsel %vm1162, %v2771, 0
        %2778 = vmatprep.subr.bf16.mxu0 %v2776
        %2779 = vmatpush1.bf16.msra.mxu0 %v2773
        %2780 = vmatprep.subr.bf16.mxu0 0
        %2781 = vmatpush1.bf16.msra.mxu0 0
        %2782 = vmatprep.subr.bf16.mxu0 0
        %2783 = vmatpush1.bf16.msra.mxu0 0
        %2784 = vmatprep.subr.bf16.mxu0 0
        %2785 = vmatpush1.bf16.msra.mxu0 0
        %2786 = vmatprep.subr.bf16.mxu0 0
        %2787 = vmatpush1.bf16.msra.mxu0 0
        %2788 = vmatprep.subr.bf16.mxu0 0
        %2789 = vmatpush1.bf16.msra.mxu0 0
        %2790 = vmatprep.subr.bf16.mxu0 0
        %2791 = vmatpush1.bf16.msra.mxu0 0
        %2792 = vmatprep.subr.bf16.mxu0 0
        %2793 = vmatpush1.bf16.msra.mxu0 0
        %2794 = vmatprep.subr.bf16.mxu0 0
        %2795 = vmatpush1.bf16.msra.mxu0 0
        %2796 = vmatprep.subr.bf16.mxu0 0
        %2797 = vmatpush1.bf16.msra.mxu0 0
        %2798 = vmatprep.subr.bf16.mxu0 0
        %2799 = vmatpush1.bf16.msra.mxu0 0
        %2800 = vmatprep.subr.bf16.mxu0 0
        %2801 = vmatpush1.bf16.msra.mxu0 0
        %2802 = vmatprep.subr.bf16.mxu0 0
        %2803 = vmatpush1.bf16.msra.mxu0 0
        %2804 = vmatprep.subr.bf16.mxu0 0
        %2805 = vmatpush1.bf16.msra.mxu0 0
        %2806 = vmatprep.subr.bf16.mxu0 0
        %2807 = vmatpush1.bf16.msra.mxu0 0
        %2808 = vmatprep.subr.bf16.mxu0 0
        %2809 = vmatpush1.bf16.msra.mxu0 0
        %2810 = vmatprep.mubr.bf16.mxu0 0
        %2811 = vmatmul.mubr.bf16.gmra.mrb[0].mxu0 %v2258
        %v2812 = vpop.f32.mrb[0].mxu0
        %v2813 = vadd.f32 0.0, %v2812
        %v2814 = vpop.f32.mrb[0].mxu0
        %v2815 = vadd.f32 0.0, %v2814
        %v2816 = vpop.f32.mrb[0].mxu0
        %v2817 = vadd.f32 0.0, %v2816
        %v2818 = vpop.f32.mrb[0].mxu0
        %v2819 = vadd.f32 0.0, %v2818
        %2820 = vmatprep.mubr.bf16.mxu0 0
        %2821 = vmatmul.mubr.bf16.gmra.mrb[0].mxu0 %v2351
        %v2822 = vpop.f32.mrb[0].mxu0
        %v2823 = vadd.f32 0.0, %v2822
        %v2824 = vpop.f32.mrb[0].mxu0
        %v2825 = vadd.f32 0.0, %v2824
        %v2826 = vpop.f32.mrb[0].mxu0
        %v2827 = vadd.f32 0.0, %v2826
        %v2828 = vpop.f32.mrb[0].mxu0
        %v2829 = vadd.f32 0.0, %v2828
        %2830 = vmatprep.mubr.bf16.mxu0 0
        %2831 = vmatmul.mubr.bf16.gmra.mrb[0].mxu0 %v2566
        %v2832 = vpop.f32.mrb[0].mxu0
        %v2833 = vadd.f32 0.0, %v2832
        %v2834 = vpop.f32.mrb[0].mxu0
        %v2835 = vadd.f32 0.0, %v2834
        %v2836 = vpop.f32.mrb[0].mxu0
        %v2837 = vadd.f32 0.0, %v2836
        %v2838 = vpop.f32.mrb[0].mxu0
        %v2839 = vadd.f32 0.0, %v2838
        %2840 = vmatprep.mubr.bf16.mxu0 0
        %2841 = vmatmul.mubr.bf16.gmra.mrb[0].mxu0 %v2153
        %v2842 = vpop.f32.mrb[0].mxu0
        %v2843 = vadd.f32 0.0, %v2842
        %v2844 = vpop.f32.mrb[0].mxu0
        %v2845 = vadd.f32 0.0, %v2844
        %v2846 = vpop.f32.mrb[0].mxu0
        %v2847 = vadd.f32 0.0, %v2846
        %v2848 = vpop.f32.mrb[0].mxu0
        %v2849 = vadd.f32 0.0, %v2848
        %2850 = vdwg.mxu0
        %v2851 = vadd.f32 %v2749, %v2813
        %v2852 = vadd.f32 %v2750, %v2815
        %v2853 = vadd.f32 %v2751, %v2817
        %v2854 = vadd.f32 %v2752, %v2819
        %v2855 = vadd.f32 %v2753, %v2823
        %v2856 = vadd.f32 %v2754, %v2825
        %v2857 = vadd.f32 %v2755, %v2827
        %v2858 = vadd.f32 %v2756, %v2829
        %v2859 = vadd.f32 %v2757, %v2833
        %v2860 = vadd.f32 %v2758, %v2835
        %v2861 = vadd.f32 %v2759, %v2837
        %v2862 = vadd.f32 %v2760, %v2839
        %v2863 = vadd.f32 %v2761, %v2843
        %v2864 = vadd.f32 %v2762, %v2845
        %v2865 = vadd.f32 %v2763, %v2847
        %v2866 = vadd.f32 %v2764, %v2849
        %v2867 = vld [vmem:[%s8] sm:$0x3]
        %v2869 = vlaneseq
        %v2870 = vshrl.u32 %v2869, 7
        %v2871 = vsub.s32 0, %v2870
        %v2872 = vrot.slane %v2867, %v2871
        %v2873 = vlaneseq
        %v2874 = vshrl.u32 %v2873, 7
        %v2875 = vsub.s32 1, %v2874
        %v2876 = vrot.slane %v2867, %v2875
        %v2879 = vadd.f32 %v2851, %v2872
        %v2880 = vadd.f32 %v2852, %v2876
        %v2881 = vadd.f32 %v2853, %v2872
        %v2882 = vadd.f32 %v2854, %v2876
        %v2883 = vadd.f32 %v2855, %v2872
        %v2884 = vadd.f32 %v2856, %v2876
        %v2885 = vadd.f32 %v2857, %v2872
        %v2886 = vadd.f32 %v2858, %v2876
        %v2887 = vadd.f32 %v2859, %v2872
        %v2888 = vadd.f32 %v2860, %v2876
        %v2889 = vadd.f32 %v2861, %v2872
        %v2890 = vadd.f32 %v2862, %v2876
        %v2891 = vadd.f32 %v2863, %v2872
        %v2892 = vadd.f32 %v2864, %v2876
        %v2893 = vadd.f32 %v2865, %v2872
        %v2894 = vadd.f32 %v2866, %v2876
        %v2895 = vmax.f32 %v2879, 0.0
        %v2896 = vmax.f32 %v2880, 0.0
        %v2897 = vmax.f32 %v2881, 0.0
        %v2898 = vmax.f32 %v2882, 0.0
        %v2899 = vmax.f32 %v2883, 0.0
        %v2900 = vmax.f32 %v2884, 0.0
        %v2901 = vmax.f32 %v2885, 0.0
        %v2902 = vmax.f32 %v2886, 0.0
        %v2903 = vmax.f32 %v2887, 0.0
        %v2904 = vmax.f32 %v2888, 0.0
        %v2905 = vmax.f32 %v2889, 0.0
        %v2906 = vmax.f32 %v2890, 0.0
        %v2907 = vmax.f32 %v2891, 0.0
        %v2908 = vmax.f32 %v2892, 0.0
        %v2909 = vmax.f32 %v2893, 0.0
        %v2910 = vmax.f32 %v2894, 0.0
        %v2911 = vld [vmem:[%s9] sm:$0xf]
        %v2912 = vld [vmem:[%s9 + $0x4] sm:$0xf]
        %v2915 = vunpack.c.l.b16 %v2911
        %v2916 = vunpack.c.l.b16 %v2912
        %v2917 = vpack.c.b16 %v2916, %v2915
        %2919 = vmatprep.subr.bf16.mxu0 0
        %2920 = vmatpush1.bf16.msra.mxu0 %v2917
        %2921 = vmatprep.subr.bf16.mxu0 0
        %2922 = vmatpush1.bf16.msra.mxu0 0
        %2923 = vmatprep.subr.bf16.mxu0 0
        %2924 = vmatpush1.bf16.msra.mxu0 0
        %2925 = vmatprep.subr.bf16.mxu0 0
        %2926 = vmatpush1.bf16.msra.mxu0 0
        %2927 = vmatprep.subr.bf16.mxu0 0
        %2928 = vmatpush1.bf16.msra.mxu0 0
        %2929 = vmatprep.subr.bf16.mxu0 0
        %2930 = vmatpush1.bf16.msra.mxu0 0
        %2931 = vmatprep.subr.bf16.mxu0 0
        %2932 = vmatpush1.bf16.msra.mxu0 0
        %2933 = vmatprep.subr.bf16.mxu0 0
        %2934 = vmatpush1.bf16.msra.mxu0 0
        %2935 = vmatprep.subr.bf16.mxu0 0
        %2936 = vmatpush1.bf16.msra.mxu0 0
        %2937 = vmatprep.subr.bf16.mxu0 0
        %2938 = vmatpush1.bf16.msra.mxu0 0
        %2939 = vmatprep.subr.bf16.mxu0 0
        %2940 = vmatpush1.bf16.msra.mxu0 0
        %2941 = vmatprep.subr.bf16.mxu0 0
        %2942 = vmatpush1.bf16.msra.mxu0 0
        %2943 = vmatprep.subr.bf16.mxu0 0
        %2944 = vmatpush1.bf16.msra.mxu0 0
        %2945 = vmatprep.subr.bf16.mxu0 0
        %2946 = vmatpush1.bf16.msra.mxu0 0
        %2947 = vmatprep.subr.bf16.mxu0 0
        %2948 = vmatpush1.bf16.msra.mxu0 0
        %2949 = vmatprep.subr.bf16.mxu0 0
        %2950 = vmatpush1.bf16.msra.mxu0 0
        %2951 = vmatprep.mubr.bf16.mxu0 0
        %2952 = vmatmul.mubr.bf16.gmra.mrb[0].mxu0 %v698
        %v2953 = vpop.f32.mrb[0].mxu0
        %v2954 = vadd.f32 0.0, %v2953
        %v2955 = vpop.f32.mrb[0].mxu0
        %v2956 = vpop.f32.mrb[0].mxu0
        %v2957 = vadd.f32 0.0, %v2956
        %v2958 = vpop.f32.mrb[0].mxu0
        %2959 = vmatprep.mubr.bf16.mxu0 0
        %2960 = vmatmul.mubr.bf16.gmra.mrb[0].mxu0 %v701
        %v2961 = vpop.f32.mrb[0].mxu0
        %v2962 = vadd.f32 0.0, %v2961
        %v2963 = vpop.f32.mrb[0].mxu0
        %v2964 = vpop.f32.mrb[0].mxu0
        %v2965 = vadd.f32 0.0, %v2964
        %v2966 = vpop.f32.mrb[0].mxu0
        %2967 = vmatprep.mubr.bf16.mxu0 0
        %2968 = vmatmul.mubr.bf16.gmra.mrb[0].mxu0 %v704
        %v2969 = vpop.f32.mrb[0].mxu0
        %v2970 = vadd.f32 0.0, %v2969
        %v2971 = vpop.f32.mrb[0].mxu0
        %v2972 = vpop.f32.mrb[0].mxu0
        %v2973 = vadd.f32 0.0, %v2972
        %v2974 = vpop.f32.mrb[0].mxu0
        %2975 = vmatprep.mubr.bf16.mxu0 0
        %2976 = vmatmul.mubr.bf16.gmra.mrb[0].mxu0 %v707
        %v2977 = vpop.f32.mrb[0].mxu0
        %v2978 = vadd.f32 0.0, %v2977
        %v2979 = vpop.f32.mrb[0].mxu0
        %v2980 = vpop.f32.mrb[0].mxu0
        %v2981 = vadd.f32 0.0, %v2980
        %v2982 = vpop.f32.mrb[0].mxu0
        %2983 = vdwg.mxu0
        %v2984 = vld [vmem:[%s10] sm:$0x1]
        %v2986 = vlaneseq
        %v2987 = vshrl.u32 %v2986, 7
        %v2988 = vsub.s32 0, %v2987
        %v2989 = vrot.slane %v2984, %v2988
        %v2991 = vadd.f32 %v2954, %v2989
        %v2992 = vadd.f32 %v2957, %v2989
        %v2993 = vadd.f32 %v2962, %v2989
        %v2994 = vadd.f32 %v2965, %v2989
        %v2995 = vadd.f32 %v2970, %v2989
        %v2996 = vadd.f32 %v2973, %v2989
        %v2997 = vadd.f32 %v2978, %v2989
        %v2998 = vadd.f32 %v2981, %v2989
        %v2999 = vmax.f32 %v2991, 0.0
        %v3000 = vmax.f32 %v2992, 0.0
        %v3001 = vmax.f32 %v2993, 0.0
        %v3002 = vmax.f32 %v2994, 0.0
        %v3003 = vmax.f32 %v2995, 0.0
        %v3004 = vmax.f32 %v2996, 0.0
        %v3005 = vmax.f32 %v2997, 0.0
        %v3006 = vmax.f32 %v2998, 0.0
        %v3007 = vpack.c.bf16 %v2999, %v2999
        %v3008 = vpack.c.bf16 %v3000, %v3000
        %v3009 = vpack.c.bf16 %v3001, %v3001
        %v3010 = vpack.c.bf16 %v3002, %v3002
        %v3011 = vpack.c.bf16 %v3003, %v3003
        %v3012 = vld [vmem:[%s11] sm:$0xf]
        %v3013 = vpack.c.bf16 %v3004, %v3004
        %s3014 = scalar_lea.vmem %s11, 4
        %v3015 = vld [vmem:[%s3014] sm:$0xf]
        %v3022 = vunpack.c.l.b16 %v3007
        %v3023 = vunpack.c.l.b16 %v3008
        %v3024 = vunpack.c.l.b16 %v3009
        %v3025 = vunpack.c.l.b16 %v3010
        %v3026 = vunpack.c.l.b16 %v3011
        %v3027 = vunpack.c.l.b16 %v3013
        %v3028 = vpack.c.b16 %v3023, %v3022
        %v3029 = vpack.c.b16 %v3025, %v3024
        %v3030 = vpack.c.b16 %v3027, %v3026
        %v3032 = vsel %vm1149, %v3028, 0
        %v3035 = vsel %vm1149, %v3029, 0
        %v3038 = vsel %vm1149, %v3030, 0
        %v3041 = vsel %vm1162, %v3015, 0
        %3043 = vmatprep.subr.bf16.mxu0 0
        %3044 = vmatpush1.bf16.msra.mxu0 %v3041
        %3045 = vmatprep.subr.bf16.mxu0 0
        %3046 = vmatpush1.bf16.msra.mxu0 0
        %3047 = vmatprep.subr.bf16.mxu0 0
        %3048 = vmatpush1.bf16.msra.mxu0 0
        %3049 = vmatprep.subr.bf16.mxu0 0
        %3050 = vmatpush1.bf16.msra.mxu0 0
        %3051 = vmatprep.subr.bf16.mxu0 0
        %3052 = vmatpush1.bf16.msra.mxu0 0
        %3053 = vmatprep.subr.bf16.mxu0 0
        %3054 = vmatpush1.bf16.msra.mxu0 0
        %3055 = vmatprep.subr.bf16.mxu0 0
        %3056 = vmatpush1.bf16.msra.mxu0 0
        %3057 = vmatprep.subr.bf16.mxu0 0
        %3058 = vmatpush1.bf16.msra.mxu0 0
        %3059 = vmatprep.subr.bf16.mxu0 0
        %3060 = vmatpush1.bf16.msra.mxu0 0
        %3061 = vmatprep.subr.bf16.mxu0 0
        %3062 = vmatpush1.bf16.msra.mxu0 0
        %3063 = vmatprep.subr.bf16.mxu0 0
        %3064 = vmatpush1.bf16.msra.mxu0 0
        %3065 = vmatprep.subr.bf16.mxu0 0
        %3066 = vmatpush1.bf16.msra.mxu0 0
        %3067 = vmatprep.subr.bf16.mxu0 0
        %3068 = vmatpush1.bf16.msra.mxu0 0
        %3069 = vmatprep.subr.bf16.mxu0 0
        %3070 = vmatpush1.bf16.msra.mxu0 0
        %3071 = vmatprep.subr.bf16.mxu0 0
        %3072 = vmatpush1.bf16.msra.mxu0 0
        %3073 = vmatprep.subr.bf16.mxu0 0
        %3074 = vmatpush1.bf16.msra.mxu0 0
        %3075 = vmatprep.mubr.bf16.mxu0 0
        %3076 = vmatmul.mubr.bf16.gmra.mrb[0].mxu0 %v2153
        %v3077 = vpop.f32.mrb[0].mxu0
        %v3078 = vadd.f32 0.0, %v3077
        %v3079 = vpop.f32.mrb[0].mxu0
        %v3080 = vpop.f32.mrb[0].mxu0
        %v3081 = vadd.f32 0.0, %v3080
        %v3082 = vpop.f32.mrb[0].mxu0
        %3083 = vmatprep.mubr.bf16.mxu0 0
        %3084 = vmatmul.mubr.bf16.gmra.mrb[0].mxu0 %v3032
        %v3085 = vpop.f32.mrb[0].mxu0
        %v3086 = vadd.f32 0.0, %v3085
        %v3087 = vpop.f32.mrb[0].mxu0
        %v3088 = vpop.f32.mrb[0].mxu0
        %v3089 = vadd.f32 0.0, %v3088
        %v3090 = vpop.f32.mrb[0].mxu0
        %3091 = vmatprep.mubr.bf16.mxu0 0
        %3092 = vmatmul.mubr.bf16.gmra.mrb[0].mxu0 %v3035
        %v3093 = vpop.f32.mrb[0].mxu0
        %v3094 = vadd.f32 0.0, %v3093
        %v3095 = vpop.f32.mrb[0].mxu0
        %v3096 = vpop.f32.mrb[0].mxu0
        %v3097 = vadd.f32 0.0, %v3096
        %v3098 = vpop.f32.mrb[0].mxu0
        %3099 = vmatprep.mubr.bf16.mxu0 0
        %3100 = vmatmul.mubr.bf16.gmra.mrb[0].mxu0 %v3038
        %v3101 = vpop.f32.mrb[0].mxu0
        %v3102 = vadd.f32 0.0, %v3101
        %v3103 = vpop.f32.mrb[0].mxu0
        %v3104 = vpop.f32.mrb[0].mxu0
        %v3105 = vadd.f32 0.0, %v3104
        %v3106 = vpop.f32.mrb[0].mxu0
        %3107 = vdwg.mxu0
        %v3108 = vpack.c.b16 %v3022, %v2136
        %v3109 = vpack.c.b16 %v3024, %v3023
        %v3110 = vpack.c.b16 %v3026, %v3025
        %v3112 = vsel %vm1149, %v3108, 0
        %v3115 = vsel %vm1149, %v3109, 0
        %v3118 = vsel %vm1149, %v3110, 0
        %v3121 = vsel %vm1162, %v3012, 0
        %3123 = vmatprep.subr.bf16.mxu0 0
        %3124 = vmatpush1.bf16.msra.mxu0 %v3121
        %3125 = vmatprep.subr.bf16.mxu0 0
        %3126 = vmatpush1.bf16.msra.mxu0 0
        %3127 = vmatprep.subr.bf16.mxu0 0
        %3128 = vmatpush1.bf16.msra.mxu0 0
        %3129 = vmatprep.subr.bf16.mxu0 0
        %3130 = vmatpush1.bf16.msra.mxu0 0
        %3131 = vmatprep.subr.bf16.mxu0 0
        %3132 = vmatpush1.bf16.msra.mxu0 0
        %3133 = vmatprep.subr.bf16.mxu0 0
        %3134 = vmatpush1.bf16.msra.mxu0 0
        %3135 = vmatprep.subr.bf16.mxu0 0
        %3136 = vmatpush1.bf16.msra.mxu0 0
        %3137 = vmatprep.subr.bf16.mxu0 0
        %3138 = vmatpush1.bf16.msra.mxu0 0
        %3139 = vmatprep.subr.bf16.mxu0 0
        %3140 = vmatpush1.bf16.msra.mxu0 0
        %3141 = vmatprep.subr.bf16.mxu0 0
        %3142 = vmatpush1.bf16.msra.mxu0 0
        %3143 = vmatprep.subr.bf16.mxu0 0
        %3144 = vmatpush1.bf16.msra.mxu0 0
        %3145 = vmatprep.subr.bf16.mxu0 0
        %3146 = vmatpush1.bf16.msra.mxu0 0
        %3147 = vmatprep.subr.bf16.mxu0 0
        %3148 = vmatpush1.bf16.msra.mxu0 0
        %3149 = vmatprep.subr.bf16.mxu0 0
        %3150 = vmatpush1.bf16.msra.mxu0 0
        %3151 = vmatprep.subr.bf16.mxu0 0
        %3152 = vmatpush1.bf16.msra.mxu0 0
        %3153 = vmatprep.subr.bf16.mxu0 0
        %3154 = vmatpush1.bf16.msra.mxu0 0
        %3155 = vmatprep.mubr.bf16.mxu0 0
        %3156 = vmatmul.mubr.bf16.gmra.mrb[0].mxu0 %v2153
        %v3157 = vpop.f32.mrb[0].mxu0
        %v3158 = vadd.f32 %v3078, %v3157
        %v3159 = vpop.f32.mrb[0].mxu0
        %v3160 = vpop.f32.mrb[0].mxu0
        %v3161 = vadd.f32 %v3081, %v3160
        %v3162 = vpop.f32.mrb[0].mxu0
        %3163 = vmatprep.mubr.bf16.mxu0 0
        %3164 = vmatmul.mubr.bf16.gmra.mrb[0].mxu0 %v3112
        %v3165 = vpop.f32.mrb[0].mxu0
        %v3166 = vadd.f32 %v3086, %v3165
        %v3167 = vpop.f32.mrb[0].mxu0
        %v3168 = vpop.f32.mrb[0].mxu0
        %v3169 = vadd.f32 %v3089, %v3168
        %v3170 = vpop.f32.mrb[0].mxu0
        %3171 = vmatprep.mubr.bf16.mxu0 0
        %3172 = vmatmul.mubr.bf16.gmra.mrb[0].mxu0 %v3115
        %v3173 = vpop.f32.mrb[0].mxu0
        %v3174 = vadd.f32 %v3094, %v3173
        %v3175 = vpop.f32.mrb[0].mxu0
        %v3176 = vpop.f32.mrb[0].mxu0
        %v3177 = vadd.f32 %v3097, %v3176
        %v3178 = vpop.f32.mrb[0].mxu0
        %3179 = vmatprep.mubr.bf16.mxu0 0
        %3180 = vmatmul.mubr.bf16.gmra.mrb[0].mxu0 %v3118
        %v3181 = vpop.f32.mrb[0].mxu0
        %v3182 = vadd.f32 %v3102, %v3181
        %v3183 = vpop.f32.mrb[0].mxu0
        %v3184 = vpop.f32.mrb[0].mxu0
        %v3185 = vadd.f32 %v3105, %v3184
        %v3186 = vpop.f32.mrb[0].mxu0
        %3187 = vdwg.mxu0
        %v3188 = vpack.c.bf16 %v3005, %v3005
        %s3189 = scalar_lea.vmem %s11, 8
        %v3190 = vld [vmem:[%s3189] sm:$0xf]
        %v3192 = vunpack.c.l.b16 %v3188
        %v3193 = vpack.c.b16 %v3192, %v3027
        %v3195 = vsel %vm1149, %v3193, 0
        %v3198 = vsel %vm1162, %v3190, 0
        %3200 = vmatprep.subr.bf16.mxu0 0
        %3201 = vmatpush1.bf16.msra.mxu0 %v3198
        %3202 = vmatprep.subr.bf16.mxu0 0
        %3203 = vmatpush1.bf16.msra.mxu0 0
        %3204 = vmatprep.subr.bf16.mxu0 0
        %3205 = vmatpush1.bf16.msra.mxu0 0
        %3206 = vmatprep.subr.bf16.mxu0 0
        %3207 = vmatpush1.bf16.msra.mxu0 0
        %3208 = vmatprep.subr.bf16.mxu0 0
        %3209 = vmatpush1.bf16.msra.mxu0 0
        %3210 = vmatprep.subr.bf16.mxu0 0
        %3211 = vmatpush1.bf16.msra.mxu0 0
        %3212 = vmatprep.subr.bf16.mxu0 0
        %3213 = vmatpush1.bf16.msra.mxu0 0
        %3214 = vmatprep.subr.bf16.mxu0 0
        %3215 = vmatpush1.bf16.msra.mxu0 0
        %3216 = vmatprep.subr.bf16.mxu0 0
        %3217 = vmatpush1.bf16.msra.mxu0 0
        %3218 = vmatprep.subr.bf16.mxu0 0
        %3219 = vmatpush1.bf16.msra.mxu0 0
        %3220 = vmatprep.subr.bf16.mxu0 0
        %3221 = vmatpush1.bf16.msra.mxu0 0
        %3222 = vmatprep.subr.bf16.mxu0 0
        %3223 = vmatpush1.bf16.msra.mxu0 0
        %3224 = vmatprep.subr.bf16.mxu0 0
        %3225 = vmatpush1.bf16.msra.mxu0 0
        %3226 = vmatprep.subr.bf16.mxu0 0
        %3227 = vmatpush1.bf16.msra.mxu0 0
        %3228 = vmatprep.subr.bf16.mxu0 0
        %3229 = vmatpush1.bf16.msra.mxu0 0
        %3230 = vmatprep.subr.bf16.mxu0 0
        %3231 = vmatpush1.bf16.msra.mxu0 0
        %3232 = vmatprep.mubr.bf16.mxu0 0
        %3233 = vmatmul.mubr.bf16.gmra.mrb[0].mxu0 %v3112
        %v3234 = vpop.f32.mrb[0].mxu0
        %v3235 = vadd.f32 0.0, %v3234
        %v3236 = vpop.f32.mrb[0].mxu0
        %v3237 = vpop.f32.mrb[0].mxu0
        %v3238 = vadd.f32 0.0, %v3237
        %v3239 = vpop.f32.mrb[0].mxu0
        %3240 = vmatprep.mubr.bf16.mxu0 0
        %3241 = vmatmul.mubr.bf16.gmra.mrb[0].mxu0 %v3115
        %v3242 = vpop.f32.mrb[0].mxu0
        %v3243 = vadd.f32 0.0, %v3242
        %v3244 = vpop.f32.mrb[0].mxu0
        %v3245 = vpop.f32.mrb[0].mxu0
        %v3246 = vadd.f32 0.0, %v3245
        %v3247 = vpop.f32.mrb[0].mxu0
        %3248 = vmatprep.mubr.bf16.mxu0 0
        %3249 = vmatmul.mubr.bf16.gmra.mrb[0].mxu0 %v3118
        %v3250 = vpop.f32.mrb[0].mxu0
        %v3251 = vadd.f32 0.0, %v3250
        %v3252 = vpop.f32.mrb[0].mxu0
        %v3253 = vpop.f32.mrb[0].mxu0
        %v3254 = vadd.f32 0.0, %v3253
        %v3255 = vpop.f32.mrb[0].mxu0
        %3256 = vmatprep.mubr.bf16.mxu0 0
        %3257 = vmatmul.mubr.bf16.gmra.mrb[0].mxu0 %v3195
        %v3258 = vpop.f32.mrb[0].mxu0
        %v3259 = vadd.f32 0.0, %v3258
        %v3260 = vpop.f32.mrb[0].mxu0
        %v3261 = vpop.f32.mrb[0].mxu0
        %v3262 = vadd.f32 0.0, %v3261
        %v3263 = vpop.f32.mrb[0].mxu0
        %3264 = vdwg.mxu0
        %v3265 = vadd.f32 %v3158, %v3235
        %v3266 = vadd.f32 %v3161, %v3238
        %v3267 = vadd.f32 %v3166, %v3243
        %v3268 = vadd.f32 %v3169, %v3246
        %v3269 = vadd.f32 %v3174, %v3251
        %v3270 = vadd.f32 %v3177, %v3254
        %v3271 = vadd.f32 %v3182, %v3259
        %v3272 = vadd.f32 %v3185, %v3262
        %v3273 = vpack.c.bf16 %v3006, %v3006
        %s3274 = scalar_lea.vmem %s11, 12
        %v3275 = vld [vmem:[%s3274] sm:$0xf]
        %v3277 = vunpack.c.l.b16 %v3273
        %v3278 = vpack.c.b16 %v3277, %v3192
        %v3280 = vsel %vm1149, %v3278, 0
        %v3283 = vsel %vm1162, %v3275, 0
        %3285 = vmatprep.subr.bf16.mxu0 0
        %3286 = vmatpush1.bf16.msra.mxu0 %v3283
        %3287 = vmatprep.subr.bf16.mxu0 0
        %3288 = vmatpush1.bf16.msra.mxu0 0
        %3289 = vmatprep.subr.bf16.mxu0 0
        %3290 = vmatpush1.bf16.msra.mxu0 0
        %3291 = vmatprep.subr.bf16.mxu0 0
        %3292 = vmatpush1.bf16.msra.mxu0 0
        %3293 = vmatprep.subr.bf16.mxu0 0
        %3294 = vmatpush1.bf16.msra.mxu0 0
        %3295 = vmatprep.subr.bf16.mxu0 0
        %3296 = vmatpush1.bf16.msra.mxu0 0
        %3297 = vmatprep.subr.bf16.mxu0 0
        %3298 = vmatpush1.bf16.msra.mxu0 0
        %3299 = vmatprep.subr.bf16.mxu0 0
        %3300 = vmatpush1.bf16.msra.mxu0 0
        %3301 = vmatprep.subr.bf16.mxu0 0
        %3302 = vmatpush1.bf16.msra.mxu0 0
        %3303 = vmatprep.subr.bf16.mxu0 0
        %3304 = vmatpush1.bf16.msra.mxu0 0
        %3305 = vmatprep.subr.bf16.mxu0 0
        %3306 = vmatpush1.bf16.msra.mxu0 0
        %3307 = vmatprep.subr.bf16.mxu0 0
        %3308 = vmatpush1.bf16.msra.mxu0 0
        %3309 = vmatprep.subr.bf16.mxu0 0
        %3310 = vmatpush1.bf16.msra.mxu0 0
        %3311 = vmatprep.subr.bf16.mxu0 0
        %3312 = vmatpush1.bf16.msra.mxu0 0
        %3313 = vmatprep.subr.bf16.mxu0 0
        %3314 = vmatpush1.bf16.msra.mxu0 0
        %3315 = vmatprep.subr.bf16.mxu0 0
        %3316 = vmatpush1.bf16.msra.mxu0 0
        %3317 = vmatprep.mubr.bf16.mxu0 0
        %3318 = vmatmul.mubr.bf16.gmra.mrb[0].mxu0 %v3032
        %v3319 = vpop.f32.mrb[0].mxu0
        %v3320 = vadd.f32 0.0, %v3319
        %v3321 = vpop.f32.mrb[0].mxu0
        %v3322 = vpop.f32.mrb[0].mxu0
        %v3323 = vadd.f32 0.0, %v3322
        %v3324 = vpop.f32.mrb[0].mxu0
        %3325 = vmatprep.mubr.bf16.mxu0 0
        %3326 = vmatmul.mubr.bf16.gmra.mrb[0].mxu0 %v3035
        %v3327 = vpop.f32.mrb[0].mxu0
        %v3328 = vadd.f32 0.0, %v3327
        %v3329 = vpop.f32.mrb[0].mxu0
        %v3330 = vpop.f32.mrb[0].mxu0
        %v3331 = vadd.f32 0.0, %v3330
        %v3332 = vpop.f32.mrb[0].mxu0
        %3333 = vmatprep.mubr.bf16.mxu0 0
        %3334 = vmatmul.mubr.bf16.gmra.mrb[0].mxu0 %v3038
        %v3335 = vpop.f32.mrb[0].mxu0
        %v3336 = vadd.f32 0.0, %v3335
        %v3337 = vpop.f32.mrb[0].mxu0
        %v3338 = vpop.f32.mrb[0].mxu0
        %v3339 = vadd.f32 0.0, %v3338
        %v3340 = vpop.f32.mrb[0].mxu0
        %3341 = vmatprep.mubr.bf16.mxu0 0
        %3342 = vmatmul.mubr.bf16.gmra.mrb[0].mxu0 %v3280
        %v3343 = vpop.f32.mrb[0].mxu0
        %v3344 = vadd.f32 0.0, %v3343
        %v3345 = vpop.f32.mrb[0].mxu0
        %v3346 = vpop.f32.mrb[0].mxu0
        %v3347 = vadd.f32 0.0, %v3346
        %v3348 = vpop.f32.mrb[0].mxu0
        %3349 = vdwg.mxu0
        %v3350 = vadd.f32 %v3265, %v3320
        %v3351 = vadd.f32 %v3266, %v3323
        %v3352 = vadd.f32 %v3267, %v3328
        %v3353 = vadd.f32 %v3268, %v3331
        %v3354 = vadd.f32 %v3269, %v3336
        %v3355 = vadd.f32 %v3270, %v3339
        %v3356 = vadd.f32 %v3271, %v3344
        %v3357 = vadd.f32 %v3272, %v3347
        %s3358 = scalar_lea.vmem %s11, 16
        %v3359 = vld [vmem:[%s3358] sm:$0xf]
        %v3360 = vpack.c.b16 %v2136, %v3277
        %v3362 = vsel %vm1149, %v3360, 0
        %v3365 = vsel %vm1162, %v3359, 0
        %3367 = vmatprep.subr.bf16.mxu0 0
        %3368 = vmatpush1.bf16.msra.mxu0 %v3365
        %3369 = vmatprep.subr.bf16.mxu0 0
        %3370 = vmatpush1.bf16.msra.mxu0 0
        %3371 = vmatprep.subr.bf16.mxu0 0
        %3372 = vmatpush1.bf16.msra.mxu0 0
        %3373 = vmatprep.subr.bf16.mxu0 0
        %3374 = vmatpush1.bf16.msra.mxu0 0
        %3375 = vmatprep.subr.bf16.mxu0 0
        %3376 = vmatpush1.bf16.msra.mxu0 0
        %3377 = vmatprep.subr.bf16.mxu0 0
        %3378 = vmatpush1.bf16.msra.mxu0 0
        %3379 = vmatprep.subr.bf16.mxu0 0
        %3380 = vmatpush1.bf16.msra.mxu0 0
        %3381 = vmatprep.subr.bf16.mxu0 0
        %3382 = vmatpush1.bf16.msra.mxu0 0
        %3383 = vmatprep.subr.bf16.mxu0 0
        %3384 = vmatpush1.bf16.msra.mxu0 0
        %3385 = vmatprep.subr.bf16.mxu0 0
        %3386 = vmatpush1.bf16.msra.mxu0 0
        %3387 = vmatprep.subr.bf16.mxu0 0
        %3388 = vmatpush1.bf16.msra.mxu0 0
        %3389 = vmatprep.subr.bf16.mxu0 0
        %3390 = vmatpush1.bf16.msra.mxu0 0
        %3391 = vmatprep.subr.bf16.mxu0 0
        %3392 = vmatpush1.bf16.msra.mxu0 0
        %3393 = vmatprep.subr.bf16.mxu0 0
        %3394 = vmatpush1.bf16.msra.mxu0 0
        %3395 = vmatprep.subr.bf16.mxu0 0
        %3396 = vmatpush1.bf16.msra.mxu0 0
        %3397 = vmatprep.subr.bf16.mxu0 0
        %3398 = vmatpush1.bf16.msra.mxu0 0
        %3399 = vmatprep.mubr.bf16.mxu0 0
        %3400 = vmatmul.mubr.bf16.gmra.mrb[0].mxu0 %v3115
        %v3401 = vpop.f32.mrb[0].mxu0
        %v3402 = vadd.f32 0.0, %v3401
        %v3403 = vpop.f32.mrb[0].mxu0
        %v3404 = vpop.f32.mrb[0].mxu0
        %v3405 = vadd.f32 0.0, %v3404
        %v3406 = vpop.f32.mrb[0].mxu0
        %3407 = vmatprep.mubr.bf16.mxu0 0
        %3408 = vmatmul.mubr.bf16.gmra.mrb[0].mxu0 %v3118
        %v3409 = vpop.f32.mrb[0].mxu0
        %v3410 = vadd.f32 0.0, %v3409
        %v3411 = vpop.f32.mrb[0].mxu0
        %v3412 = vpop.f32.mrb[0].mxu0
        %v3413 = vadd.f32 0.0, %v3412
        %v3414 = vpop.f32.mrb[0].mxu0
        %3415 = vmatprep.mubr.bf16.mxu0 0
        %3416 = vmatmul.mubr.bf16.gmra.mrb[0].mxu0 %v3195
        %v3417 = vpop.f32.mrb[0].mxu0
        %v3418 = vadd.f32 0.0, %v3417
        %v3419 = vpop.f32.mrb[0].mxu0
        %v3420 = vpop.f32.mrb[0].mxu0
        %v3421 = vadd.f32 0.0, %v3420
        %v3422 = vpop.f32.mrb[0].mxu0
        %3423 = vmatprep.mubr.bf16.mxu0 0
        %3424 = vmatmul.mubr.bf16.gmra.mrb[0].mxu0 %v3362
        %v3425 = vpop.f32.mrb[0].mxu0
        %v3426 = vadd.f32 0.0, %v3425
        %v3427 = vpop.f32.mrb[0].mxu0
        %v3428 = vpop.f32.mrb[0].mxu0
        %v3429 = vadd.f32 0.0, %v3428
        %v3430 = vpop.f32.mrb[0].mxu0
        %3431 = vdwg.mxu0
        %v3432 = vadd.f32 %v3350, %v3402
        %v3433 = vadd.f32 %v3351, %v3405
        %v3434 = vadd.f32 %v3352, %v3410
        %v3435 = vadd.f32 %v3353, %v3413
        %v3436 = vadd.f32 %v3354, %v3418
        %v3437 = vadd.f32 %v3355, %v3421
        %v3438 = vadd.f32 %v3356, %v3426
        %v3439 = vadd.f32 %v3357, %v3429
        %s3440 = scalar_lea.vmem %s11, 20
        %v3441 = vld [vmem:[%s3440] sm:$0xf]
        %v3443 = vsel %vm1162, %v3441, 0
        %3445 = vmatprep.subr.bf16.mxu0 0
        %3446 = vmatpush1.bf16.msra.mxu0 %v3443
        %3447 = vmatprep.subr.bf16.mxu0 0
        %3448 = vmatpush1.bf16.msra.mxu0 0
        %3449 = vmatprep.subr.bf16.mxu0 0
        %3450 = vmatpush1.bf16.msra.mxu0 0
        %3451 = vmatprep.subr.bf16.mxu0 0
        %3452 = vmatpush1.bf16.msra.mxu0 0
        %3453 = vmatprep.subr.bf16.mxu0 0
        %3454 = vmatpush1.bf16.msra.mxu0 0
        %3455 = vmatprep.subr.bf16.mxu0 0
        %3456 = vmatpush1.bf16.msra.mxu0 0
        %3457 = vmatprep.subr.bf16.mxu0 0
        %3458 = vmatpush1.bf16.msra.mxu0 0
        %3459 = vmatprep.subr.bf16.mxu0 0
        %3460 = vmatpush1.bf16.msra.mxu0 0
        %3461 = vmatprep.subr.bf16.mxu0 0
        %3462 = vmatpush1.bf16.msra.mxu0 0
        %3463 = vmatprep.subr.bf16.mxu0 0
        %3464 = vmatpush1.bf16.msra.mxu0 0
        %3465 = vmatprep.subr.bf16.mxu0 0
        %3466 = vmatpush1.bf16.msra.mxu0 0
        %3467 = vmatprep.subr.bf16.mxu0 0
        %3468 = vmatpush1.bf16.msra.mxu0 0
        %3469 = vmatprep.subr.bf16.mxu0 0
        %3470 = vmatpush1.bf16.msra.mxu0 0
        %3471 = vmatprep.subr.bf16.mxu0 0
        %3472 = vmatpush1.bf16.msra.mxu0 0
        %3473 = vmatprep.subr.bf16.mxu0 0
        %3474 = vmatpush1.bf16.msra.mxu0 0
        %3475 = vmatprep.subr.bf16.mxu0 0
        %3476 = vmatpush1.bf16.msra.mxu0 0
        %3477 = vmatprep.mubr.bf16.mxu0 0
        %3478 = vmatmul.mubr.bf16.gmra.mrb[0].mxu0 %v3035
        %v3479 = vpop.f32.mrb[0].mxu0
        %v3480 = vadd.f32 0.0, %v3479
        %v3481 = vpop.f32.mrb[0].mxu0
        %v3482 = vpop.f32.mrb[0].mxu0
        %v3483 = vadd.f32 0.0, %v3482
        %v3484 = vpop.f32.mrb[0].mxu0
        %3485 = vmatprep.mubr.bf16.mxu0 0
        %3486 = vmatmul.mubr.bf16.gmra.mrb[0].mxu0 %v3038
        %v3487 = vpop.f32.mrb[0].mxu0
        %v3488 = vadd.f32 0.0, %v3487
        %v3489 = vpop.f32.mrb[0].mxu0
        %v3490 = vpop.f32.mrb[0].mxu0
        %v3491 = vadd.f32 0.0, %v3490
        %v3492 = vpop.f32.mrb[0].mxu0
        %3493 = vmatprep.mubr.bf16.mxu0 0
        %3494 = vmatmul.mubr.bf16.gmra.mrb[0].mxu0 %v3280
        %v3495 = vpop.f32.mrb[0].mxu0
        %v3496 = vadd.f32 0.0, %v3495
        %v3497 = vpop.f32.mrb[0].mxu0
        %v3498 = vpop.f32.mrb[0].mxu0
        %v3499 = vadd.f32 0.0, %v3498
        %v3500 = vpop.f32.mrb[0].mxu0
        %3501 = vmatprep.mubr.bf16.mxu0 0
        %3502 = vmatmul.mubr.bf16.gmra.mrb[0].mxu0 %v2153
        %v3503 = vpop.f32.mrb[0].mxu0
        %v3504 = vadd.f32 0.0, %v3503
        %v3505 = vpop.f32.mrb[0].mxu0
        %v3506 = vpop.f32.mrb[0].mxu0
        %v3507 = vadd.f32 0.0, %v3506
        %v3508 = vpop.f32.mrb[0].mxu0
        %3509 = vdwg.mxu0
        %v3510 = vadd.f32 %v3432, %v3480
        %v3511 = vadd.f32 %v3433, %v3483
        %v3512 = vadd.f32 %v3434, %v3488
        %v3513 = vadd.f32 %v3435, %v3491
        %v3514 = vadd.f32 %v3436, %v3496
        %v3515 = vadd.f32 %v3437, %v3499
        %v3516 = vadd.f32 %v3438, %v3504
        %v3517 = vadd.f32 %v3439, %v3507
        %s3518 = scalar_lea.vmem %s11, 24
        %v3519 = vld [vmem:[%s3518] sm:$0xf]
        %v3521 = vsel %vm1162, %v3519, 0
        %3523 = vmatprep.subr.bf16.mxu0 0
        %3524 = vmatpush1.bf16.msra.mxu0 %v3521
        %3525 = vmatprep.subr.bf16.mxu0 0
        %3526 = vmatpush1.bf16.msra.mxu0 0
        %3527 = vmatprep.subr.bf16.mxu0 0
        %3528 = vmatpush1.bf16.msra.mxu0 0
        %3529 = vmatprep.subr.bf16.mxu0 0
        %3530 = vmatpush1.bf16.msra.mxu0 0
        %3531 = vmatprep.subr.bf16.mxu0 0
        %3532 = vmatpush1.bf16.msra.mxu0 0
        %3533 = vmatprep.subr.bf16.mxu0 0
        %3534 = vmatpush1.bf16.msra.mxu0 0
        %3535 = vmatprep.subr.bf16.mxu0 0
        %3536 = vmatpush1.bf16.msra.mxu0 0
        %3537 = vmatprep.subr.bf16.mxu0 0
        %3538 = vmatpush1.bf16.msra.mxu0 0
        %3539 = vmatprep.subr.bf16.mxu0 0
        %3540 = vmatpush1.bf16.msra.mxu0 0
        %3541 = vmatprep.subr.bf16.mxu0 0
        %3542 = vmatpush1.bf16.msra.mxu0 0
        %3543 = vmatprep.subr.bf16.mxu0 0
        %3544 = vmatpush1.bf16.msra.mxu0 0
        %3545 = vmatprep.subr.bf16.mxu0 0
        %3546 = vmatpush1.bf16.msra.mxu0 0
        %3547 = vmatprep.subr.bf16.mxu0 0
        %3548 = vmatpush1.bf16.msra.mxu0 0
        %3549 = vmatprep.subr.bf16.mxu0 0
        %3550 = vmatpush1.bf16.msra.mxu0 0
        %3551 = vmatprep.subr.bf16.mxu0 0
        %3552 = vmatpush1.bf16.msra.mxu0 0
        %3553 = vmatprep.subr.bf16.mxu0 0
        %3554 = vmatpush1.bf16.msra.mxu0 0
        %3555 = vmatprep.mubr.bf16.mxu0 0
        %3556 = vmatmul.mubr.bf16.gmra.mrb[0].mxu0 %v3118
        %v3557 = vpop.f32.mrb[0].mxu0
        %v3558 = vadd.f32 0.0, %v3557
        %v3559 = vpop.f32.mrb[0].mxu0
        %v3560 = vpop.f32.mrb[0].mxu0
        %v3561 = vadd.f32 0.0, %v3560
        %v3562 = vpop.f32.mrb[0].mxu0
        %3563 = vmatprep.mubr.bf16.mxu0 0
        %3564 = vmatmul.mubr.bf16.gmra.mrb[0].mxu0 %v3195
        %v3565 = vpop.f32.mrb[0].mxu0
        %v3566 = vadd.f32 0.0, %v3565
        %v3567 = vpop.f32.mrb[0].mxu0
        %v3568 = vpop.f32.mrb[0].mxu0
        %v3569 = vadd.f32 0.0, %v3568
        %v3570 = vpop.f32.mrb[0].mxu0
        %3571 = vmatprep.mubr.bf16.mxu0 0
        %3572 = vmatmul.mubr.bf16.gmra.mrb[0].mxu0 %v3362
        %v3573 = vpop.f32.mrb[0].mxu0
        %v3574 = vadd.f32 0.0, %v3573
        %v3575 = vpop.f32.mrb[0].mxu0
        %v3576 = vpop.f32.mrb[0].mxu0
        %v3577 = vadd.f32 0.0, %v3576
        %v3578 = vpop.f32.mrb[0].mxu0
        %3579 = vmatprep.mubr.bf16.mxu0 0
        %3580 = vmatmul.mubr.bf16.gmra.mrb[0].mxu0 %v2153
        %v3581 = vpop.f32.mrb[0].mxu0
        %v3582 = vadd.f32 0.0, %v3581
        %v3583 = vpop.f32.mrb[0].mxu0
        %v3584 = vpop.f32.mrb[0].mxu0
        %v3585 = vadd.f32 0.0, %v3584
        %v3586 = vpop.f32.mrb[0].mxu0
        %3587 = vdwg.mxu0
        %v3588 = vadd.f32 %v3510, %v3558
        %v3589 = vadd.f32 %v3511, %v3561
        %v3590 = vadd.f32 %v3512, %v3566
        %v3591 = vadd.f32 %v3513, %v3569
        %v3592 = vadd.f32 %v3514, %v3574
        %v3593 = vadd.f32 %v3515, %v3577
        %v3594 = vadd.f32 %v3516, %v3582
        %v3595 = vadd.f32 %v3517, %v3585
        %v3596 = vld [vmem:[%s12] sm:$0x1]
        %v3598 = vlaneseq
        %v3599 = vshrl.u32 %v3598, 7
        %v3600 = vsub.s32 0, %v3599
        %v3601 = vrot.slane %v3596, %v3600
        %v3603 = vadd.f32 %v3588, %v3601
        %v3604 = vadd.f32 %v3589, %v3601
        %v3605 = vadd.f32 %v3590, %v3601
        %v3606 = vadd.f32 %v3591, %v3601
        %v3607 = vadd.f32 %v3592, %v3601
        %v3608 = vadd.f32 %v3593, %v3601
        %v3609 = vadd.f32 %v3594, %v3601
        %v3610 = vadd.f32 %v3595, %v3601
        %v3611 = vmax.f32 %v3603, 0.0
        %v3612 = vmax.f32 %v3604, 0.0
        %v3613 = vmax.f32 %v3605, 0.0
        %v3614 = vmax.f32 %v3606, 0.0
        %v3615 = vmax.f32 %v3607, 0.0
        %v3616 = vmax.f32 %v3608, 0.0
        %v3617 = vmax.f32 %v3609, 0.0
        %v3618 = vmax.f32 %v3610, 0.0
        %v3627 = vrot.slane %v3611, 5
        %v3628 = vrot.slane %v3612, 5
        %v3629 = vrot.slane %v3613, 5
        %v3630 = vrot.slane %v3614, 5
        %v3631 = vrot.slane %v3615, 5
        %v3632 = vrot.slane %v3616, 5
        %v3633 = vrot.slane %v3617, 5
        %v3634 = vrot.slane %v3618, 5
        %v3643 = vsel %vm946, 0.0, %v3627
        %v3644 = vsel %vm946, 0.0, %v3628
        %v3645 = vsel %vm946, 0.0, %v3629
        %v3646 = vsel %vm946, 0.0, %v3630
        %v3647 = vsel %vm946, 0.0, %v3631
        %v3648 = vsel %vm946, 0.0, %v3632
        %v3649 = vsel %vm946, 0.0, %v3633
        %v3650 = vsel %vm946, 0.0, %v3634
        %v3651 = vsel %vm946, %v3627, 0.0
        %v3652 = vsel %vm946, %v3628, 0.0
        %v3653 = vsel %vm946, %v3629, 0.0
        %v3654 = vsel %vm946, %v3630, 0.0
        %v3655 = vsel %vm946, %v3631, 0.0
        %v3656 = vsel %vm946, %v3632, 0.0
        %v3657 = vsel %vm946, %v3633, 0.0
        %v3658 = vsel %vm946, %v3634, 0.0
        %v3659 = vpack.c.bf16 %v3643, %v3643
        %v3660 = vpack.c.bf16 %v3644, %v3644
        %v3661 = vpack.c.bf16 %v3645, %v3645
        %v3662 = vpack.c.bf16 %v3646, %v3646
        %v3663 = vpack.c.bf16 %v3647, %v3647
        %v3664 = vpack.c.bf16 %v3648, %v3648
        %v3665 = vpack.c.bf16 %v3649, %v3649
        %v3666 = vpack.c.bf16 %v3650, %v3650
        %v3667 = vld [vmem:[%s13] sm:$0xf]
        %v3668 = vpack.c.bf16 %v3651, %v3643
        %v3669 = vpack.c.bf16 %v3652, %v3644
        %v3670 = vpack.c.bf16 %v3653, %v3645
        %v3671 = vpack.c.bf16 %v3654, %v3646
        %v3672 = vpack.c.bf16 %v3655, %v3647
        %v3673 = vpack.c.bf16 %v3656, %v3648
        %v3674 = vpack.c.bf16 %v3657, %v3649
        %v3675 = vpack.c.bf16 %v3658, %v3650
        %v3684 = vunpack.c.l.b16 %v3668
        %v3685 = vunpack.c.h.b16 %v3668
        %v3686 = vunpack.c.l.b16 %v3669
        %v3687 = vunpack.c.h.b16 %v3669
        %v3688 = vunpack.c.l.b16 %v3670
        %v3689 = vunpack.c.h.b16 %v3670
        %v3690 = vunpack.c.l.b16 %v3671
        %v3691 = vunpack.c.h.b16 %v3671
        %v3692 = vunpack.c.l.b16 %v3672
        %v3693 = vunpack.c.h.b16 %v3672
        %v3694 = vunpack.c.l.b16 %v3673
        %v3695 = vunpack.c.h.b16 %v3673
        %v3696 = vunpack.c.l.b16 %v3674
        %v3697 = vunpack.c.h.b16 %v3674
        %v3698 = vunpack.c.l.b16 %v3675
        %v3699 = vunpack.c.h.b16 %v3675
        %v3700 = vpack.c.b16 %v3684, %v3684
        %v3701 = vpack.c.b16 %v3685, %v3685
        %v3702 = vpack.c.b16 %v3686, %v3686
        %v3703 = vpack.c.b16 %v3687, %v3687
        %v3704 = vpack.c.b16 %v3688, %v3688
        %v3705 = vpack.c.b16 %v3689, %v3689
        %v3706 = vpack.c.b16 %v3690, %v3690
        %v3707 = vpack.c.b16 %v3691, %v3691
        %v3708 = vpack.c.b16 %v3692, %v3692
        %v3709 = vpack.c.b16 %v3693, %v3693
        %v3710 = vpack.c.b16 %v3694, %v3694
        %v3711 = vpack.c.b16 %v3695, %v3695
        %v3712 = vpack.c.b16 %v3696, %v3696
        %v3713 = vpack.c.b16 %v3697, %v3697
        %v3714 = vpack.c.b16 %v3698, %v3698
        %v3715 = vpack.c.b16 %v3699, %v3699
        %v3717 = vshrl.u32 %v3700, 16
        %v3719 = vrot.slane %v3717, 4
        %v3720 = vshll.u32 %v3700, 16
        %v3722 = vrot.slane %v3720, 5
        %v3723 = vor.u32 %v3719, %v3722
        %v3724 = vrot.slane %v3723, 4
        %v3726 = vshll.u32 %v3701, 16
        %v3728 = vrot.slane %v3726, 5
        %v3729 = vsel %vm1022, %v3724, %v3728
        %v3731 = vshrl.u32 %v3702, 16
        %v3733 = vrot.slane %v3731, 4
        %v3734 = vshll.u32 %v3702, 16
        %v3736 = vrot.slane %v3734, 5
        %v3737 = vor.u32 %v3733, %v3736
        %v3738 = vrot.slane %v3737, 4
        %v3740 = vshll.u32 %v3703, 16
        %v3742 = vrot.slane %v3740, 5
        %v3743 = vsel %vm1022, %v3738, %v3742
        %v3745 = vshrl.u32 %v3704, 16
        %v3747 = vrot.slane %v3745, 4
        %v3748 = vshll.u32 %v3704, 16
        %v3750 = vrot.slane %v3748, 5
        %v3751 = vor.u32 %v3747, %v3750
        %v3752 = vrot.slane %v3751, 4
        %v3754 = vshll.u32 %v3705, 16
        %v3756 = vrot.slane %v3754, 5
        %v3757 = vsel %vm1022, %v3752, %v3756
        %v3759 = vshrl.u32 %v3706, 16
        %v3761 = vrot.slane %v3759, 4
        %v3762 = vshll.u32 %v3706, 16
        %v3764 = vrot.slane %v3762, 5
        %v3765 = vor.u32 %v3761, %v3764
        %v3766 = vrot.slane %v3765, 4
        %v3768 = vshll.u32 %v3707, 16
        %v3770 = vrot.slane %v3768, 5
        %v3771 = vsel %vm1022, %v3766, %v3770
        %v3773 = vshrl.u32 %v3708, 16
        %v3775 = vrot.slane %v3773, 4
        %v3776 = vshll.u32 %v3708, 16
        %v3778 = vrot.slane %v3776, 5
        %v3779 = vor.u32 %v3775, %v3778
        %v3780 = vrot.slane %v3779, 4
        %v3782 = vshll.u32 %v3709, 16
        %v3784 = vrot.slane %v3782, 5
        %v3785 = vsel %vm1022, %v3780, %v3784
        %v3787 = vshrl.u32 %v3710, 16
        %v3789 = vrot.slane %v3787, 4
        %v3790 = vshll.u32 %v3710, 16
        %v3792 = vrot.slane %v3790, 5
        %v3793 = vor.u32 %v3789, %v3792
        %v3794 = vrot.slane %v3793, 4
        %v3796 = vshll.u32 %v3711, 16
        %v3798 = vrot.slane %v3796, 5
        %v3799 = vsel %vm1022, %v3794, %v3798
        %v3801 = vshrl.u32 %v3712, 16
        %v3803 = vrot.slane %v3801, 4
        %v3804 = vshll.u32 %v3712, 16
        %v3806 = vrot.slane %v3804, 5
        %v3807 = vor.u32 %v3803, %v3806
        %v3808 = vrot.slane %v3807, 4
        %v3810 = vshll.u32 %v3713, 16
        %v3812 = vrot.slane %v3810, 5
        %v3813 = vsel %vm1022, %v3808, %v3812
        %v3815 = vshrl.u32 %v3714, 16
        %v3817 = vrot.slane %v3815, 4
        %v3818 = vshll.u32 %v3714, 16
        %v3820 = vrot.slane %v3818, 5
        %v3821 = vor.u32 %v3817, %v3820
        %v3822 = vrot.slane %v3821, 4
        %v3824 = vshll.u32 %v3715, 16
        %v3826 = vrot.slane %v3824, 5
        %v3827 = vsel %vm1022, %v3822, %v3826
        %s3828 = scalar_lea.vmem %s13, 4
        %v3829 = vld [vmem:[%s3828] sm:$0xf]
        %v3830 = vunpack.c.l.b16 %v3729
        %v3831 = vunpack.c.l.b16 %v3743
        %v3832 = vunpack.c.l.b16 %v3757
        %v3833 = vunpack.c.l.b16 %v3771
        %v3834 = vunpack.c.l.b16 %v3785
        %v3835 = vunpack.c.l.b16 %v3799
        %v3836 = vunpack.c.l.b16 %v3813
        %v3837 = vunpack.c.l.b16 %v3827
        %v3838 = vpack.c.b16 %v3831, %v3830
        %v3839 = vpack.c.b16 %v3833, %v3832
        %v3840 = vpack.c.b16 %v3835, %v3834
        %v3841 = vpack.c.b16 %v3837, %v3836
        %v3843 = vsel %vm1149, %v3838, 0
        %v3846 = vsel %vm1149, %v3839, 0
        %v3849 = vsel %vm1149, %v3840, 0
        %v3852 = vsel %vm1149, %v3841, 0
        %v3855 = vsel %vm1162, %v3829, 0
        %3857 = vmatprep.subr.bf16.mxu0 0
        %3858 = vmatpush1.bf16.msra.mxu0 %v3855
        %3859 = vmatprep.subr.bf16.mxu0 0
        %3860 = vmatpush1.bf16.msra.mxu0 0
        %3861 = vmatprep.subr.bf16.mxu0 0
        %3862 = vmatpush1.bf16.msra.mxu0 0
        %3863 = vmatprep.subr.bf16.mxu0 0
        %3864 = vmatpush1.bf16.msra.mxu0 0
        %3865 = vmatprep.subr.bf16.mxu0 0
        %3866 = vmatpush1.bf16.msra.mxu0 0
        %3867 = vmatprep.subr.bf16.mxu0 0
        %3868 = vmatpush1.bf16.msra.mxu0 0
        %3869 = vmatprep.subr.bf16.mxu0 0
        %3870 = vmatpush1.bf16.msra.mxu0 0
        %3871 = vmatprep.subr.bf16.mxu0 0
        %3872 = vmatpush1.bf16.msra.mxu0 0
        %3873 = vmatprep.subr.bf16.mxu0 0
        %3874 = vmatpush1.bf16.msra.mxu0 0
        %3875 = vmatprep.subr.bf16.mxu0 0
        %3876 = vmatpush1.bf16.msra.mxu0 0
        %3877 = vmatprep.subr.bf16.mxu0 0
        %3878 = vmatpush1.bf16.msra.mxu0 0
        %3879 = vmatprep.subr.bf16.mxu0 0
        %3880 = vmatpush1.bf16.msra.mxu0 0
        %3881 = vmatprep.subr.bf16.mxu0 0
        %3882 = vmatpush1.bf16.msra.mxu0 0
        %3883 = vmatprep.subr.bf16.mxu0 0
        %3884 = vmatpush1.bf16.msra.mxu0 0
        %3885 = vmatprep.subr.bf16.mxu0 0
        %3886 = vmatpush1.bf16.msra.mxu0 0
        %3887 = vmatprep.subr.bf16.mxu0 0
        %3888 = vmatpush1.bf16.msra.mxu0 0
        %3889 = vmatprep.mubr.bf16.mxu0 0
        %3890 = vmatmul.mubr.bf16.gmra.mrb[0].mxu0 %v3843
        %v3891 = vpop.f32.mrb[0].mxu0
        %v3892 = vadd.f32 0.0, %v3891
        %v3893 = vpop.f32.mrb[0].mxu0
        %v3894 = vpop.f32.mrb[0].mxu0
        %v3895 = vadd.f32 0.0, %v3894
        %v3896 = vpop.f32.mrb[0].mxu0
        %3897 = vmatprep.mubr.bf16.mxu0 0
        %3898 = vmatmul.mubr.bf16.gmra.mrb[0].mxu0 %v3846
        %v3899 = vpop.f32.mrb[0].mxu0
        %v3900 = vadd.f32 0.0, %v3899
        %v3901 = vpop.f32.mrb[0].mxu0
        %v3902 = vpop.f32.mrb[0].mxu0
        %v3903 = vadd.f32 0.0, %v3902
        %v3904 = vpop.f32.mrb[0].mxu0
        %3905 = vmatprep.mubr.bf16.mxu0 0
        %3906 = vmatmul.mubr.bf16.gmra.mrb[0].mxu0 %v3849
        %v3907 = vpop.f32.mrb[0].mxu0
        %v3908 = vadd.f32 0.0, %v3907
        %v3909 = vpop.f32.mrb[0].mxu0
        %v3910 = vpop.f32.mrb[0].mxu0
        %v3911 = vadd.f32 0.0, %v3910
        %v3912 = vpop.f32.mrb[0].mxu0
        %3913 = vmatprep.mubr.bf16.mxu0 0
        %3914 = vmatmul.mubr.bf16.gmra.mrb[0].mxu0 %v3852
        %v3915 = vpop.f32.mrb[0].mxu0
        %v3916 = vadd.f32 0.0, %v3915
        %v3917 = vpop.f32.mrb[0].mxu0
        %v3918 = vpop.f32.mrb[0].mxu0
        %v3919 = vadd.f32 0.0, %v3918
        %v3920 = vpop.f32.mrb[0].mxu0
        %3921 = vdwg.mxu0
        %v3930 = vunpack.c.l.b16 %v3659
        %v3931 = vunpack.c.l.b16 %v3660
        %v3932 = vunpack.c.l.b16 %v3661
        %v3933 = vunpack.c.l.b16 %v3662
        %v3934 = vunpack.c.l.b16 %v3663
        %v3935 = vunpack.c.l.b16 %v3664
        %v3936 = vunpack.c.l.b16 %v3665
        %v3937 = vunpack.c.l.b16 %v3666
        %v3938 = vpack.c.b16 %v3931, %v3930
        %v3939 = vpack.c.b16 %v3933, %v3932
        %v3940 = vpack.c.b16 %v3935, %v3934
        %v3941 = vpack.c.b16 %v3937, %v3936
        %v3943 = vsel %vm1149, %v3938, 0
        %v3946 = vsel %vm1149, %v3939, 0
        %v3949 = vsel %vm1149, %v3940, 0
        %v3952 = vsel %vm1149, %v3941, 0
        %v3955 = vsel %vm1162, %v3667, 0
        %3957 = vmatprep.subr.bf16.mxu0 0
        %3958 = vmatpush1.bf16.msra.mxu0 %v3955
        %3959 = vmatprep.subr.bf16.mxu0 0
        %3960 = vmatpush1.bf16.msra.mxu0 0
        %3961 = vmatprep.subr.bf16.mxu0 0
        %3962 = vmatpush1.bf16.msra.mxu0 0
        %3963 = vmatprep.subr.bf16.mxu0 0
        %3964 = vmatpush1.bf16.msra.mxu0 0
        %3965 = vmatprep.subr.bf16.mxu0 0
        %3966 = vmatpush1.bf16.msra.mxu0 0
        %3967 = vmatprep.subr.bf16.mxu0 0
        %3968 = vmatpush1.bf16.msra.mxu0 0
        %3969 = vmatprep.subr.bf16.mxu0 0
        %3970 = vmatpush1.bf16.msra.mxu0 0
        %3971 = vmatprep.subr.bf16.mxu0 0
        %3972 = vmatpush1.bf16.msra.mxu0 0
        %3973 = vmatprep.subr.bf16.mxu0 0
        %3974 = vmatpush1.bf16.msra.mxu0 0
        %3975 = vmatprep.subr.bf16.mxu0 0
        %3976 = vmatpush1.bf16.msra.mxu0 0
        %3977 = vmatprep.subr.bf16.mxu0 0
        %3978 = vmatpush1.bf16.msra.mxu0 0
        %3979 = vmatprep.subr.bf16.mxu0 0
        %3980 = vmatpush1.bf16.msra.mxu0 0
        %3981 = vmatprep.subr.bf16.mxu0 0
        %3982 = vmatpush1.bf16.msra.mxu0 0
        %3983 = vmatprep.subr.bf16.mxu0 0
        %3984 = vmatpush1.bf16.msra.mxu0 0
        %3985 = vmatprep.subr.bf16.mxu0 0
        %3986 = vmatpush1.bf16.msra.mxu0 0
        %3987 = vmatprep.subr.bf16.mxu0 0
        %3988 = vmatpush1.bf16.msra.mxu0 0
        %3989 = vmatprep.mubr.bf16.mxu0 0
        %3990 = vmatmul.mubr.bf16.gmra.mrb[0].mxu0 %v3943
        %v3991 = vpop.f32.mrb[0].mxu0
        %v3992 = vadd.f32 %v3892, %v3991
        %v3993 = vpop.f32.mrb[0].mxu0
        %v3994 = vpop.f32.mrb[0].mxu0
        %v3995 = vadd.f32 %v3895, %v3994
        %v3996 = vpop.f32.mrb[0].mxu0
        %3997 = vmatprep.mubr.bf16.mxu0 0
        %3998 = vmatmul.mubr.bf16.gmra.mrb[0].mxu0 %v3946
        %v3999 = vpop.f32.mrb[0].mxu0
        %v4000 = vadd.f32 %v3900, %v3999
        %v4001 = vpop.f32.mrb[0].mxu0
        %v4002 = vpop.f32.mrb[0].mxu0
        %v4003 = vadd.f32 %v3903, %v4002
        %v4004 = vpop.f32.mrb[0].mxu0
        %4005 = vmatprep.mubr.bf16.mxu0 0
        %4006 = vmatmul.mubr.bf16.gmra.mrb[0].mxu0 %v3949
        %v4007 = vpop.f32.mrb[0].mxu0
        %v4008 = vadd.f32 %v3908, %v4007
        %v4009 = vpop.f32.mrb[0].mxu0
        %v4010 = vpop.f32.mrb[0].mxu0
        %v4011 = vadd.f32 %v3911, %v4010
        %v4012 = vpop.f32.mrb[0].mxu0
        %4013 = vmatprep.mubr.bf16.mxu0 0
        %4014 = vmatmul.mubr.bf16.gmra.mrb[0].mxu0 %v3952
        %v4015 = vpop.f32.mrb[0].mxu0
        %v4016 = vadd.f32 %v3916, %v4015
        %v4017 = vpop.f32.mrb[0].mxu0
        %v4018 = vpop.f32.mrb[0].mxu0
        %v4019 = vadd.f32 %v3919, %v4018
        %v4020 = vpop.f32.mrb[0].mxu0
        %4021 = vdwg.mxu0
        %v4022 = vrot.slane %v3700, 5
        %v4023 = vrot.slane %v4022, 4
        %v4024 = vrot.slane %v3701, 5
        %v4025 = vsel %vm1333, %v4023, %v4024
        %v4026 = vrot.slane %v3702, 5
        %v4027 = vrot.slane %v4026, 4
        %v4028 = vrot.slane %v3703, 5
        %v4029 = vsel %vm1333, %v4027, %v4028
        %v4030 = vrot.slane %v3704, 5
        %v4031 = vrot.slane %v4030, 4
        %v4032 = vrot.slane %v3705, 5
        %v4033 = vsel %vm1333, %v4031, %v4032
        %v4034 = vrot.slane %v3706, 5
        %v4035 = vrot.slane %v4034, 4
        %v4036 = vrot.slane %v3707, 5
        %v4037 = vsel %vm1333, %v4035, %v4036
        %v4038 = vrot.slane %v3708, 5
        %v4039 = vrot.slane %v4038, 4
        %v4040 = vrot.slane %v3709, 5
        %v4041 = vsel %vm1333, %v4039, %v4040
        %v4042 = vrot.slane %v3710, 5
        %v4043 = vrot.slane %v4042, 4
        %v4044 = vrot.slane %v3711, 5
        %v4045 = vsel %vm1333, %v4043, %v4044
        %v4046 = vrot.slane %v3712, 5
        %v4047 = vrot.slane %v4046, 4
        %v4048 = vrot.slane %v3713, 5
        %v4049 = vsel %vm1333, %v4047, %v4048
        %v4050 = vrot.slane %v3714, 5
        %v4051 = vrot.slane %v4050, 4
        %v4052 = vrot.slane %v3715, 5
        %v4053 = vsel %vm1333, %v4051, %v4052
        %s4054 = scalar_lea.vmem %s13, 8
        %v4055 = vld [vmem:[%s4054] sm:$0xf]
        %v4056 = vunpack.c.l.b16 %v4025
        %v4057 = vunpack.c.l.b16 %v4029
        %v4058 = vunpack.c.l.b16 %v4033
        %v4059 = vunpack.c.l.b16 %v4037
        %v4060 = vunpack.c.l.b16 %v4041
        %v4061 = vunpack.c.l.b16 %v4045
        %v4062 = vunpack.c.l.b16 %v4049
        %v4063 = vunpack.c.l.b16 %v4053
        %v4064 = vpack.c.b16 %v4057, %v4056
        %v4065 = vpack.c.b16 %v4059, %v4058
        %v4066 = vpack.c.b16 %v4061, %v4060
        %v4067 = vpack.c.b16 %v4063, %v4062
        %v4069 = vsel %vm1149, %v4064, 0
        %v4072 = vsel %vm1149, %v4065, 0
        %v4075 = vsel %vm1149, %v4066, 0
        %v4078 = vsel %vm1149, %v4067, 0
        %v4081 = vsel %vm1162, %v4055, 0
        %4083 = vmatprep.subr.bf16.mxu0 0
        %4084 = vmatpush1.bf16.msra.mxu0 %v4081
        %4085 = vmatprep.subr.bf16.mxu0 0
        %4086 = vmatpush1.bf16.msra.mxu0 0
        %4087 = vmatprep.subr.bf16.mxu0 0
        %4088 = vmatpush1.bf16.msra.mxu0 0
        %4089 = vmatprep.subr.bf16.mxu0 0
        %4090 = vmatpush1.bf16.msra.mxu0 0
        %4091 = vmatprep.subr.bf16.mxu0 0
        %4092 = vmatpush1.bf16.msra.mxu0 0
        %4093 = vmatprep.subr.bf16.mxu0 0
        %4094 = vmatpush1.bf16.msra.mxu0 0
        %4095 = vmatprep.subr.bf16.mxu0 0
        %4096 = vmatpush1.bf16.msra.mxu0 0
        %4097 = vmatprep.subr.bf16.mxu0 0
        %4098 = vmatpush1.bf16.msra.mxu0 0
        %4099 = vmatprep.subr.bf16.mxu0 0
        %4100 = vmatpush1.bf16.msra.mxu0 0
        %4101 = vmatprep.subr.bf16.mxu0 0
        %4102 = vmatpush1.bf16.msra.mxu0 0
        %4103 = vmatprep.subr.bf16.mxu0 0
        %4104 = vmatpush1.bf16.msra.mxu0 0
        %4105 = vmatprep.subr.bf16.mxu0 0
        %4106 = vmatpush1.bf16.msra.mxu0 0
        %4107 = vmatprep.subr.bf16.mxu0 0
        %4108 = vmatpush1.bf16.msra.mxu0 0
        %4109 = vmatprep.subr.bf16.mxu0 0
        %4110 = vmatpush1.bf16.msra.mxu0 0
        %4111 = vmatprep.subr.bf16.mxu0 0
        %4112 = vmatpush1.bf16.msra.mxu0 0
        %4113 = vmatprep.subr.bf16.mxu0 0
        %4114 = vmatpush1.bf16.msra.mxu0 0
        %4115 = vmatprep.mubr.bf16.mxu0 0
        %4116 = vmatmul.mubr.bf16.gmra.mrb[0].mxu0 %v4069
        %v4117 = vpop.f32.mrb[0].mxu0
        %v4118 = vadd.f32 0.0, %v4117
        %v4119 = vpop.f32.mrb[0].mxu0
        %v4120 = vpop.f32.mrb[0].mxu0
        %v4121 = vadd.f32 0.0, %v4120
        %v4122 = vpop.f32.mrb[0].mxu0
        %4123 = vmatprep.mubr.bf16.mxu0 0
        %4124 = vmatmul.mubr.bf16.gmra.mrb[0].mxu0 %v4072
        %v4125 = vpop.f32.mrb[0].mxu0
        %v4126 = vadd.f32 0.0, %v4125
        %v4127 = vpop.f32.mrb[0].mxu0
        %v4128 = vpop.f32.mrb[0].mxu0
        %v4129 = vadd.f32 0.0, %v4128
        %v4130 = vpop.f32.mrb[0].mxu0
        %4131 = vmatprep.mubr.bf16.mxu0 0
        %4132 = vmatmul.mubr.bf16.gmra.mrb[0].mxu0 %v4075
        %v4133 = vpop.f32.mrb[0].mxu0
        %v4134 = vadd.f32 0.0, %v4133
        %v4135 = vpop.f32.mrb[0].mxu0
        %v4136 = vpop.f32.mrb[0].mxu0
        %v4137 = vadd.f32 0.0, %v4136
        %v4138 = vpop.f32.mrb[0].mxu0
        %4139 = vmatprep.mubr.bf16.mxu0 0
        %4140 = vmatmul.mubr.bf16.gmra.mrb[0].mxu0 %v4078
        %v4141 = vpop.f32.mrb[0].mxu0
        %v4142 = vadd.f32 0.0, %v4141
        %v4143 = vpop.f32.mrb[0].mxu0
        %v4144 = vpop.f32.mrb[0].mxu0
        %v4145 = vadd.f32 0.0, %v4144
        %v4146 = vpop.f32.mrb[0].mxu0
        %4147 = vdwg.mxu0
        %v4148 = vadd.f32 %v3992, %v4118
        %v4149 = vadd.f32 %v3995, %v4121
        %v4150 = vadd.f32 %v4000, %v4126
        %v4151 = vadd.f32 %v4003, %v4129
        %v4152 = vadd.f32 %v4008, %v4134
        %v4153 = vadd.f32 %v4011, %v4137
        %v4154 = vadd.f32 %v4016, %v4142
        %v4155 = vadd.f32 %v4019, %v4145
        %v4156 = vrot.slane %v3717, 5
        %v4157 = vrot.slane %v3720, 6
        %v4158 = vor.u32 %v4156, %v4157
        %v4159 = vrot.slane %v4158, 4
        %v4160 = vshrl.u32 %v3701, 16
        %v4162 = vrot.slane %v4160, 5
        %v4163 = vrot.slane %v3726, 6
        %v4164 = vor.u32 %v4162, %v4163
        %v4165 = vsel %vm1470, %v4159, %v4164
        %v4166 = vrot.slane %v3731, 5
        %v4167 = vrot.slane %v3734, 6
        %v4168 = vor.u32 %v4166, %v4167
        %v4169 = vrot.slane %v4168, 4
        %v4170 = vshrl.u32 %v3703, 16
        %v4172 = vrot.slane %v4170, 5
        %v4173 = vrot.slane %v3740, 6
        %v4174 = vor.u32 %v4172, %v4173
        %v4175 = vsel %vm1470, %v4169, %v4174
        %v4176 = vrot.slane %v3745, 5
        %v4177 = vrot.slane %v3748, 6
        %v4178 = vor.u32 %v4176, %v4177
        %v4179 = vrot.slane %v4178, 4
        %v4180 = vshrl.u32 %v3705, 16
        %v4182 = vrot.slane %v4180, 5
        %v4183 = vrot.slane %v3754, 6
        %v4184 = vor.u32 %v4182, %v4183
        %v4185 = vsel %vm1470, %v4179, %v4184
        %v4186 = vrot.slane %v3759, 5
        %v4187 = vrot.slane %v3762, 6
        %v4188 = vor.u32 %v4186, %v4187
        %v4189 = vrot.slane %v4188, 4
        %v4190 = vshrl.u32 %v3707, 16
        %v4192 = vrot.slane %v4190, 5
        %v4193 = vrot.slane %v3768, 6
        %v4194 = vor.u32 %v4192, %v4193
        %v4195 = vsel %vm1470, %v4189, %v4194
        %v4196 = vrot.slane %v3773, 5
        %v4197 = vrot.slane %v3776, 6
        %v4198 = vor.u32 %v4196, %v4197
        %v4199 = vrot.slane %v4198, 4
        %v4200 = vshrl.u32 %v3709, 16
        %v4202 = vrot.slane %v4200, 5
        %v4203 = vrot.slane %v3782, 6
        %v4204 = vor.u32 %v4202, %v4203
        %v4205 = vsel %vm1470, %v4199, %v4204
        %v4206 = vrot.slane %v3787, 5
        %v4207 = vrot.slane %v3790, 6
        %v4208 = vor.u32 %v4206, %v4207
        %v4209 = vrot.slane %v4208, 4
        %v4210 = vshrl.u32 %v3711, 16
        %v4212 = vrot.slane %v4210, 5
        %v4213 = vrot.slane %v3796, 6
        %v4214 = vor.u32 %v4212, %v4213
        %v4215 = vsel %vm1470, %v4209, %v4214
        %v4216 = vrot.slane %v3801, 5
        %v4217 = vrot.slane %v3804, 6
        %v4218 = vor.u32 %v4216, %v4217
        %v4219 = vrot.slane %v4218, 4
        %v4220 = vshrl.u32 %v3713, 16
        %v4222 = vrot.slane %v4220, 5
        %v4223 = vrot.slane %v3810, 6
        %v4224 = vor.u32 %v4222, %v4223
        %v4225 = vsel %vm1470, %v4219, %v4224
        %v4226 = vrot.slane %v3815, 5
        %v4227 = vrot.slane %v3818, 6
        %v4228 = vor.u32 %v4226, %v4227
        %v4229 = vrot.slane %v4228, 4
        %v4230 = vshrl.u32 %v3715, 16
        %v4232 = vrot.slane %v4230, 5
        %v4233 = vrot.slane %v3824, 6
        %v4234 = vor.u32 %v4232, %v4233
        %v4235 = vsel %vm1470, %v4229, %v4234
        %s4236 = scalar_lea.vmem %s13, 12
        %v4237 = vld [vmem:[%s4236] sm:$0xf]
        %v4238 = vunpack.c.l.b16 %v4165
        %v4239 = vunpack.c.l.b16 %v4175
        %v4240 = vunpack.c.l.b16 %v4185
        %v4241 = vunpack.c.l.b16 %v4195
        %v4242 = vunpack.c.l.b16 %v4205
        %v4243 = vunpack.c.l.b16 %v4215
        %v4244 = vunpack.c.l.b16 %v4225
        %v4245 = vunpack.c.l.b16 %v4235
        %v4246 = vpack.c.b16 %v4239, %v4238
        %v4247 = vpack.c.b16 %v4241, %v4240
        %v4248 = vpack.c.b16 %v4243, %v4242
        %v4249 = vpack.c.b16 %v4245, %v4244
        %v4251 = vsel %vm1149, %v4246, 0
        %v4254 = vsel %vm1149, %v4247, 0
        %v4257 = vsel %vm1149, %v4248, 0
        %v4260 = vsel %vm1149, %v4249, 0
        %v4263 = vsel %vm1162, %v4237, 0
        %4265 = vmatprep.subr.bf16.mxu0 0
        %4266 = vmatpush1.bf16.msra.mxu0 %v4263
        %4267 = vmatprep.subr.bf16.mxu0 0
        %4268 = vmatpush1.bf16.msra.mxu0 0
        %4269 = vmatprep.subr.bf16.mxu0 0
        %4270 = vmatpush1.bf16.msra.mxu0 0
        %4271 = vmatprep.subr.bf16.mxu0 0
        %4272 = vmatpush1.bf16.msra.mxu0 0
        %4273 = vmatprep.subr.bf16.mxu0 0
        %4274 = vmatpush1.bf16.msra.mxu0 0
        %4275 = vmatprep.subr.bf16.mxu0 0
        %4276 = vmatpush1.bf16.msra.mxu0 0
        %4277 = vmatprep.subr.bf16.mxu0 0
        %4278 = vmatpush1.bf16.msra.mxu0 0
        %4279 = vmatprep.subr.bf16.mxu0 0
        %4280 = vmatpush1.bf16.msra.mxu0 0
        %4281 = vmatprep.subr.bf16.mxu0 0
        %4282 = vmatpush1.bf16.msra.mxu0 0
        %4283 = vmatprep.subr.bf16.mxu0 0
        %4284 = vmatpush1.bf16.msra.mxu0 0
        %4285 = vmatprep.subr.bf16.mxu0 0
        %4286 = vmatpush1.bf16.msra.mxu0 0
        %4287 = vmatprep.subr.bf16.mxu0 0
        %4288 = vmatpush1.bf16.msra.mxu0 0
        %4289 = vmatprep.subr.bf16.mxu0 0
        %4290 = vmatpush1.bf16.msra.mxu0 0
        %4291 = vmatprep.subr.bf16.mxu0 0
        %4292 = vmatpush1.bf16.msra.mxu0 0
        %4293 = vmatprep.subr.bf16.mxu0 0
        %4294 = vmatpush1.bf16.msra.mxu0 0
        %4295 = vmatprep.subr.bf16.mxu0 0
        %4296 = vmatpush1.bf16.msra.mxu0 0
        %4297 = vmatprep.mubr.bf16.mxu0 0
        %4298 = vmatmul.mubr.bf16.gmra.mrb[0].mxu0 %v4251
        %v4299 = vpop.f32.mrb[0].mxu0
        %v4300 = vadd.f32 0.0, %v4299
        %v4301 = vpop.f32.mrb[0].mxu0
        %v4302 = vpop.f32.mrb[0].mxu0
        %v4303 = vadd.f32 0.0, %v4302
        %v4304 = vpop.f32.mrb[0].mxu0
        %4305 = vmatprep.mubr.bf16.mxu0 0
        %4306 = vmatmul.mubr.bf16.gmra.mrb[0].mxu0 %v4254
        %v4307 = vpop.f32.mrb[0].mxu0
        %v4308 = vadd.f32 0.0, %v4307
        %v4309 = vpop.f32.mrb[0].mxu0
        %v4310 = vpop.f32.mrb[0].mxu0
        %v4311 = vadd.f32 0.0, %v4310
        %v4312 = vpop.f32.mrb[0].mxu0
        %4313 = vmatprep.mubr.bf16.mxu0 0
        %4314 = vmatmul.mubr.bf16.gmra.mrb[0].mxu0 %v4257
        %v4315 = vpop.f32.mrb[0].mxu0
        %v4316 = vadd.f32 0.0, %v4315
        %v4317 = vpop.f32.mrb[0].mxu0
        %v4318 = vpop.f32.mrb[0].mxu0
        %v4319 = vadd.f32 0.0, %v4318
        %v4320 = vpop.f32.mrb[0].mxu0
        %4321 = vmatprep.mubr.bf16.mxu0 0
        %4322 = vmatmul.mubr.bf16.gmra.mrb[0].mxu0 %v4260
        %v4323 = vpop.f32.mrb[0].mxu0
        %v4324 = vadd.f32 0.0, %v4323
        %v4325 = vpop.f32.mrb[0].mxu0
        %v4326 = vpop.f32.mrb[0].mxu0
        %v4327 = vadd.f32 0.0, %v4326
        %v4328 = vpop.f32.mrb[0].mxu0
        %4329 = vdwg.mxu0
        %v4330 = vadd.f32 %v4148, %v4300
        %v4331 = vadd.f32 %v4149, %v4303
        %v4332 = vadd.f32 %v4150, %v4308
        %v4333 = vadd.f32 %v4151, %v4311
        %v4334 = vadd.f32 %v4152, %v4316
        %v4335 = vadd.f32 %v4153, %v4319
        %v4336 = vadd.f32 %v4154, %v4324
        %v4337 = vadd.f32 %v4155, %v4327
        %v4338 = vrot.slane %v3700, 6
        %v4339 = vrot.slane %v4338, 4
        %v4340 = vrot.slane %v3701, 6
        %v4341 = vsel %vm1655, %v4339, %v4340
        %v4342 = vrot.slane %v3702, 6
        %v4343 = vrot.slane %v4342, 4
        %v4344 = vrot.slane %v3703, 6
        %v4345 = vsel %vm1655, %v4343, %v4344
        %v4346 = vrot.slane %v3704, 6
        %v4347 = vrot.slane %v4346, 4
        %v4348 = vrot.slane %v3705, 6
        %v4349 = vsel %vm1655, %v4347, %v4348
        %v4350 = vrot.slane %v3706, 6
        %v4351 = vrot.slane %v4350, 4
        %v4352 = vrot.slane %v3707, 6
        %v4353 = vsel %vm1655, %v4351, %v4352
        %v4354 = vrot.slane %v3708, 6
        %v4355 = vrot.slane %v4354, 4
        %v4356 = vrot.slane %v3709, 6
        %v4357 = vsel %vm1655, %v4355, %v4356
        %v4358 = vrot.slane %v3710, 6
        %v4359 = vrot.slane %v4358, 4
        %v4360 = vrot.slane %v3711, 6
        %v4361 = vsel %vm1655, %v4359, %v4360
        %v4362 = vrot.slane %v3712, 6
        %v4363 = vrot.slane %v4362, 4
        %v4364 = vrot.slane %v3713, 6
        %v4365 = vsel %vm1655, %v4363, %v4364
        %v4366 = vrot.slane %v3714, 6
        %v4367 = vrot.slane %v4366, 4
        %v4368 = vrot.slane %v3715, 6
        %v4369 = vsel %vm1655, %v4367, %v4368
        %s4370 = scalar_lea.vmem %s13, 16
        %v4371 = vld [vmem:[%s4370] sm:$0xf]
        %v4372 = vunpack.c.l.b16 %v4341
        %v4373 = vunpack.c.l.b16 %v4345
        %v4374 = vunpack.c.l.b16 %v4349
        %v4375 = vunpack.c.l.b16 %v4353
        %v4376 = vunpack.c.l.b16 %v4357
        %v4377 = vunpack.c.l.b16 %v4361
        %v4378 = vunpack.c.l.b16 %v4365
        %v4379 = vunpack.c.l.b16 %v4369
        %v4380 = vpack.c.b16 %v4373, %v4372
        %v4381 = vpack.c.b16 %v4375, %v4374
        %v4382 = vpack.c.b16 %v4377, %v4376
        %v4383 = vpack.c.b16 %v4379, %v4378
        %v4385 = vsel %vm1149, %v4380, 0
        %v4388 = vsel %vm1149, %v4381, 0
        %v4391 = vsel %vm1149, %v4382, 0
        %v4394 = vsel %vm1149, %v4383, 0
        %v4397 = vsel %vm1162, %v4371, 0
        %4399 = vmatprep.subr.bf16.mxu0 0
        %4400 = vmatpush1.bf16.msra.mxu0 %v4397
        %4401 = vmatprep.subr.bf16.mxu0 0
        %4402 = vmatpush1.bf16.msra.mxu0 0
        %4403 = vmatprep.subr.bf16.mxu0 0
        %4404 = vmatpush1.bf16.msra.mxu0 0
        %4405 = vmatprep.subr.bf16.mxu0 0
        %4406 = vmatpush1.bf16.msra.mxu0 0
        %4407 = vmatprep.subr.bf16.mxu0 0
        %4408 = vmatpush1.bf16.msra.mxu0 0
        %4409 = vmatprep.subr.bf16.mxu0 0
        %4410 = vmatpush1.bf16.msra.mxu0 0
        %4411 = vmatprep.subr.bf16.mxu0 0
        %4412 = vmatpush1.bf16.msra.mxu0 0
        %4413 = vmatprep.subr.bf16.mxu0 0
        %4414 = vmatpush1.bf16.msra.mxu0 0
        %4415 = vmatprep.subr.bf16.mxu0 0
        %4416 = vmatpush1.bf16.msra.mxu0 0
        %4417 = vmatprep.subr.bf16.mxu0 0
        %4418 = vmatpush1.bf16.msra.mxu0 0
        %4419 = vmatprep.subr.bf16.mxu0 0
        %4420 = vmatpush1.bf16.msra.mxu0 0
        %4421 = vmatprep.subr.bf16.mxu0 0
        %4422 = vmatpush1.bf16.msra.mxu0 0
        %4423 = vmatprep.subr.bf16.mxu0 0
        %4424 = vmatpush1.bf16.msra.mxu0 0
        %4425 = vmatprep.subr.bf16.mxu0 0
        %4426 = vmatpush1.bf16.msra.mxu0 0
        %4427 = vmatprep.subr.bf16.mxu0 0
        %4428 = vmatpush1.bf16.msra.mxu0 0
        %4429 = vmatprep.subr.bf16.mxu0 0
        %4430 = vmatpush1.bf16.msra.mxu0 0
        %4431 = vmatprep.mubr.bf16.mxu0 0
        %4432 = vmatmul.mubr.bf16.gmra.mrb[0].mxu0 %v4385
        %v4433 = vpop.f32.mrb[0].mxu0
        %v4434 = vadd.f32 0.0, %v4433
        %v4435 = vpop.f32.mrb[0].mxu0
        %v4436 = vpop.f32.mrb[0].mxu0
        %v4437 = vadd.f32 0.0, %v4436
        %v4438 = vpop.f32.mrb[0].mxu0
        %4439 = vmatprep.mubr.bf16.mxu0 0
        %4440 = vmatmul.mubr.bf16.gmra.mrb[0].mxu0 %v4388
        %v4441 = vpop.f32.mrb[0].mxu0
        %v4442 = vadd.f32 0.0, %v4441
        %v4443 = vpop.f32.mrb[0].mxu0
        %v4444 = vpop.f32.mrb[0].mxu0
        %v4445 = vadd.f32 0.0, %v4444
        %v4446 = vpop.f32.mrb[0].mxu0
        %4447 = vmatprep.mubr.bf16.mxu0 0
        %4448 = vmatmul.mubr.bf16.gmra.mrb[0].mxu0 %v4391
        %v4449 = vpop.f32.mrb[0].mxu0
        %v4450 = vadd.f32 0.0, %v4449
        %v4451 = vpop.f32.mrb[0].mxu0
        %v4452 = vpop.f32.mrb[0].mxu0
        %v4453 = vadd.f32 0.0, %v4452
        %v4454 = vpop.f32.mrb[0].mxu0
        %4455 = vmatprep.mubr.bf16.mxu0 0
        %4456 = vmatmul.mubr.bf16.gmra.mrb[0].mxu0 %v4394
        %v4457 = vpop.f32.mrb[0].mxu0
        %v4458 = vadd.f32 0.0, %v4457
        %v4459 = vpop.f32.mrb[0].mxu0
        %v4460 = vpop.f32.mrb[0].mxu0
        %v4461 = vadd.f32 0.0, %v4460
        %v4462 = vpop.f32.mrb[0].mxu0
        %4463 = vdwg.mxu0
        %v4464 = vadd.f32 %v4330, %v4434
        %v4465 = vadd.f32 %v4331, %v4437
        %v4466 = vadd.f32 %v4332, %v4442
        %v4467 = vadd.f32 %v4333, %v4445
        %v4468 = vadd.f32 %v4334, %v4450
        %v4469 = vadd.f32 %v4335, %v4453
        %v4470 = vadd.f32 %v4336, %v4458
        %v4471 = vadd.f32 %v4337, %v4461
        %v4472 = vrot.slane %v3717, 6
        %v4473 = vrot.slane %v3720, 7
        %v4474 = vor.u32 %v4472, %v4473
        %v4475 = vrot.slane %v4474, 4
        %v4476 = vrot.slane %v4160, 6
        %v4477 = vrot.slane %v3726, 7
        %v4478 = vor.u32 %v4476, %v4477
        %v4479 = vsel %vm1792, %v4475, %v4478
        %v4480 = vrot.slane %v3731, 6
        %v4481 = vrot.slane %v3734, 7
        %v4482 = vor.u32 %v4480, %v4481
        %v4483 = vrot.slane %v4482, 4
        %v4484 = vrot.slane %v4170, 6
        %v4485 = vrot.slane %v3740, 7
        %v4486 = vor.u32 %v4484, %v4485
        %v4487 = vsel %vm1792, %v4483, %v4486
        %v4488 = vrot.slane %v3745, 6
        %v4489 = vrot.slane %v3748, 7
        %v4490 = vor.u32 %v4488, %v4489
        %v4491 = vrot.slane %v4490, 4
        %v4492 = vrot.slane %v4180, 6
        %v4493 = vrot.slane %v3754, 7
        %v4494 = vor.u32 %v4492, %v4493
        %v4495 = vsel %vm1792, %v4491, %v4494
        %v4496 = vrot.slane %v3759, 6
        %v4497 = vrot.slane %v3762, 7
        %v4498 = vor.u32 %v4496, %v4497
        %v4499 = vrot.slane %v4498, 4
        %v4500 = vrot.slane %v4190, 6
        %v4501 = vrot.slane %v3768, 7
        %v4502 = vor.u32 %v4500, %v4501
        %v4503 = vsel %vm1792, %v4499, %v4502
        %v4504 = vrot.slane %v3773, 6
        %v4505 = vrot.slane %v3776, 7
        %v4506 = vor.u32 %v4504, %v4505
        %v4507 = vrot.slane %v4506, 4
        %v4508 = vrot.slane %v4200, 6
        %v4509 = vrot.slane %v3782, 7
        %v4510 = vor.u32 %v4508, %v4509
        %v4511 = vsel %vm1792, %v4507, %v4510
        %v4512 = vrot.slane %v3787, 6
        %v4513 = vrot.slane %v3790, 7
        %v4514 = vor.u32 %v4512, %v4513
        %v4515 = vrot.slane %v4514, 4
        %v4516 = vrot.slane %v4210, 6
        %v4517 = vrot.slane %v3796, 7
        %v4518 = vor.u32 %v4516, %v4517
        %v4519 = vsel %vm1792, %v4515, %v4518
        %v4520 = vrot.slane %v3801, 6
        %v4521 = vrot.slane %v3804, 7
        %v4522 = vor.u32 %v4520, %v4521
        %v4523 = vrot.slane %v4522, 4
        %v4524 = vrot.slane %v4220, 6
        %v4525 = vrot.slane %v3810, 7
        %v4526 = vor.u32 %v4524, %v4525
        %v4527 = vsel %vm1792, %v4523, %v4526
        %v4528 = vrot.slane %v3815, 6
        %v4529 = vrot.slane %v3818, 7
        %v4530 = vor.u32 %v4528, %v4529
        %v4531 = vrot.slane %v4530, 4
        %v4532 = vrot.slane %v4230, 6
        %v4533 = vrot.slane %v3824, 7
        %v4534 = vor.u32 %v4532, %v4533
        %v4535 = vsel %vm1792, %v4531, %v4534
        %s4536 = scalar_lea.vmem %s13, 20
        %v4537 = vld [vmem:[%s4536] sm:$0xf]
        %v4538 = vunpack.c.l.b16 %v4479
        %v4539 = vunpack.c.l.b16 %v4487
        %v4540 = vunpack.c.l.b16 %v4495
        %v4541 = vunpack.c.l.b16 %v4503
        %v4542 = vunpack.c.l.b16 %v4511
        %v4543 = vunpack.c.l.b16 %v4519
        %v4544 = vunpack.c.l.b16 %v4527
        %v4545 = vunpack.c.l.b16 %v4535
        %v4546 = vpack.c.b16 %v4539, %v4538
        %v4547 = vpack.c.b16 %v4541, %v4540
        %v4548 = vpack.c.b16 %v4543, %v4542
        %v4549 = vpack.c.b16 %v4545, %v4544
        %v4551 = vsel %vm1149, %v4546, 0
        %v4554 = vsel %vm1149, %v4547, 0
        %v4557 = vsel %vm1149, %v4548, 0
        %v4560 = vsel %vm1149, %v4549, 0
        %v4563 = vsel %vm1162, %v4537, 0
        %4565 = vmatprep.subr.bf16.mxu0 0
        %4566 = vmatpush1.bf16.msra.mxu0 %v4563
        %4567 = vmatprep.subr.bf16.mxu0 0
        %4568 = vmatpush1.bf16.msra.mxu0 0
        %4569 = vmatprep.subr.bf16.mxu0 0
        %4570 = vmatpush1.bf16.msra.mxu0 0
        %4571 = vmatprep.subr.bf16.mxu0 0
        %4572 = vmatpush1.bf16.msra.mxu0 0
        %4573 = vmatprep.subr.bf16.mxu0 0
        %4574 = vmatpush1.bf16.msra.mxu0 0
        %4575 = vmatprep.subr.bf16.mxu0 0
        %4576 = vmatpush1.bf16.msra.mxu0 0
        %4577 = vmatprep.subr.bf16.mxu0 0
        %4578 = vmatpush1.bf16.msra.mxu0 0
        %4579 = vmatprep.subr.bf16.mxu0 0
        %4580 = vmatpush1.bf16.msra.mxu0 0
        %4581 = vmatprep.subr.bf16.mxu0 0
        %4582 = vmatpush1.bf16.msra.mxu0 0
        %4583 = vmatprep.subr.bf16.mxu0 0
        %4584 = vmatpush1.bf16.msra.mxu0 0
        %4585 = vmatprep.subr.bf16.mxu0 0
        %4586 = vmatpush1.bf16.msra.mxu0 0
        %4587 = vmatprep.subr.bf16.mxu0 0
        %4588 = vmatpush1.bf16.msra.mxu0 0
        %4589 = vmatprep.subr.bf16.mxu0 0
        %4590 = vmatpush1.bf16.msra.mxu0 0
        %4591 = vmatprep.subr.bf16.mxu0 0
        %4592 = vmatpush1.bf16.msra.mxu0 0
        %4593 = vmatprep.subr.bf16.mxu0 0
        %4594 = vmatpush1.bf16.msra.mxu0 0
        %4595 = vmatprep.subr.bf16.mxu0 0
        %4596 = vmatpush1.bf16.msra.mxu0 0
        %4597 = vmatprep.mubr.bf16.mxu0 0
        %4598 = vmatmul.mubr.bf16.gmra.mrb[0].mxu0 %v4551
        %v4599 = vpop.f32.mrb[0].mxu0
        %v4600 = vadd.f32 0.0, %v4599
        %v4601 = vpop.f32.mrb[0].mxu0
        %v4602 = vpop.f32.mrb[0].mxu0
        %v4603 = vadd.f32 0.0, %v4602
        %v4604 = vpop.f32.mrb[0].mxu0
        %4605 = vmatprep.mubr.bf16.mxu0 0
        %4606 = vmatmul.mubr.bf16.gmra.mrb[0].mxu0 %v4554
        %v4607 = vpop.f32.mrb[0].mxu0
        %v4608 = vadd.f32 0.0, %v4607
        %v4609 = vpop.f32.mrb[0].mxu0
        %v4610 = vpop.f32.mrb[0].mxu0
        %v4611 = vadd.f32 0.0, %v4610
        %v4612 = vpop.f32.mrb[0].mxu0
        %4613 = vmatprep.mubr.bf16.mxu0 0
        %4614 = vmatmul.mubr.bf16.gmra.mrb[0].mxu0 %v4557
        %v4615 = vpop.f32.mrb[0].mxu0
        %v4616 = vadd.f32 0.0, %v4615
        %v4617 = vpop.f32.mrb[0].mxu0
        %v4618 = vpop.f32.mrb[0].mxu0
        %v4619 = vadd.f32 0.0, %v4618
        %v4620 = vpop.f32.mrb[0].mxu0
        %4621 = vmatprep.mubr.bf16.mxu0 0
        %4622 = vmatmul.mubr.bf16.gmra.mrb[0].mxu0 %v4560
        %v4623 = vpop.f32.mrb[0].mxu0
        %v4624 = vadd.f32 0.0, %v4623
        %v4625 = vpop.f32.mrb[0].mxu0
        %v4626 = vpop.f32.mrb[0].mxu0
        %v4627 = vadd.f32 0.0, %v4626
        %v4628 = vpop.f32.mrb[0].mxu0
        %4629 = vdwg.mxu0
        %v4630 = vadd.f32 %v4464, %v4600
        %v4631 = vadd.f32 %v4465, %v4603
        %v4632 = vadd.f32 %v4466, %v4608
        %v4633 = vadd.f32 %v4467, %v4611
        %v4634 = vadd.f32 %v4468, %v4616
        %v4635 = vadd.f32 %v4469, %v4619
        %v4636 = vadd.f32 %v4470, %v4624
        %v4637 = vadd.f32 %v4471, %v4627
        %v4638 = vrot.slane %v3700, 7
        %v4639 = vrot.slane %v4638, 4
        %v4640 = vrot.slane %v3701, 7
        %v4641 = vsel %vm1961, %v4639, %v4640
        %v4642 = vrot.slane %v3702, 7
        %v4643 = vrot.slane %v4642, 4
        %v4644 = vrot.slane %v3703, 7
        %v4645 = vsel %vm1961, %v4643, %v4644
        %v4646 = vrot.slane %v3704, 7
        %v4647 = vrot.slane %v4646, 4
        %v4648 = vrot.slane %v3705, 7
        %v4649 = vsel %vm1961, %v4647, %v4648
        %v4650 = vrot.slane %v3706, 7
        %v4651 = vrot.slane %v4650, 4
        %v4652 = vrot.slane %v3707, 7
        %v4653 = vsel %vm1961, %v4651, %v4652
        %v4654 = vrot.slane %v3708, 7
        %v4655 = vrot.slane %v4654, 4
        %v4656 = vrot.slane %v3709, 7
        %v4657 = vsel %vm1961, %v4655, %v4656
        %v4658 = vrot.slane %v3710, 7
        %v4659 = vrot.slane %v4658, 4
        %v4660 = vrot.slane %v3711, 7
        %v4661 = vsel %vm1961, %v4659, %v4660
        %v4662 = vrot.slane %v3712, 7
        %v4663 = vrot.slane %v4662, 4
        %v4664 = vrot.slane %v3713, 7
        %v4665 = vsel %vm1961, %v4663, %v4664
        %v4666 = vrot.slane %v3714, 7
        %v4667 = vrot.slane %v4666, 4
        %v4668 = vrot.slane %v3715, 7
        %v4669 = vsel %vm1961, %v4667, %v4668
        %s4670 = scalar_lea.vmem %s13, 24
        %v4671 = vld [vmem:[%s4670] sm:$0xf]
        %v4672 = vunpack.c.l.b16 %v4641
        %v4673 = vunpack.c.l.b16 %v4645
        %v4674 = vunpack.c.l.b16 %v4649
        %v4675 = vunpack.c.l.b16 %v4653
        %v4676 = vunpack.c.l.b16 %v4657
        %v4677 = vunpack.c.l.b16 %v4661
        %v4678 = vunpack.c.l.b16 %v4665
        %v4679 = vunpack.c.l.b16 %v4669
        %v4680 = vpack.c.b16 %v4673, %v4672
        %v4681 = vpack.c.b16 %v4675, %v4674
        %v4682 = vpack.c.b16 %v4677, %v4676
        %v4683 = vpack.c.b16 %v4679, %v4678
        %v4685 = vsel %vm1149, %v4680, 0
        %v4688 = vsel %vm1149, %v4681, 0
        %v4691 = vsel %vm1149, %v4682, 0
        %v4694 = vsel %vm1149, %v4683, 0
        %v4697 = vsel %vm1162, %v4671, 0
        %4699 = vmatprep.subr.bf16.mxu0 0
        %4700 = vmatpush1.bf16.msra.mxu0 %v4697
        %4701 = vmatprep.subr.bf16.mxu0 0
        %4702 = vmatpush1.bf16.msra.mxu0 0
        %4703 = vmatprep.subr.bf16.mxu0 0
        %4704 = vmatpush1.bf16.msra.mxu0 0
        %4705 = vmatprep.subr.bf16.mxu0 0
        %4706 = vmatpush1.bf16.msra.mxu0 0
        %4707 = vmatprep.subr.bf16.mxu0 0
        %4708 = vmatpush1.bf16.msra.mxu0 0
        %4709 = vmatprep.subr.bf16.mxu0 0
        %4710 = vmatpush1.bf16.msra.mxu0 0
        %4711 = vmatprep.subr.bf16.mxu0 0
        %4712 = vmatpush1.bf16.msra.mxu0 0
        %4713 = vmatprep.subr.bf16.mxu0 0
        %4714 = vmatpush1.bf16.msra.mxu0 0
        %4715 = vmatprep.subr.bf16.mxu0 0
        %4716 = vmatpush1.bf16.msra.mxu0 0
        %4717 = vmatprep.subr.bf16.mxu0 0
        %4718 = vmatpush1.bf16.msra.mxu0 0
        %4719 = vmatprep.subr.bf16.mxu0 0
        %4720 = vmatpush1.bf16.msra.mxu0 0
        %4721 = vmatprep.subr.bf16.mxu0 0
        %4722 = vmatpush1.bf16.msra.mxu0 0
        %4723 = vmatprep.subr.bf16.mxu0 0
        %4724 = vmatpush1.bf16.msra.mxu0 0
        %4725 = vmatprep.subr.bf16.mxu0 0
        %4726 = vmatpush1.bf16.msra.mxu0 0
        %4727 = vmatprep.subr.bf16.mxu0 0
        %4728 = vmatpush1.bf16.msra.mxu0 0
        %4729 = vmatprep.subr.bf16.mxu0 0
        %4730 = vmatpush1.bf16.msra.mxu0 0
        %4731 = vmatprep.mubr.bf16.mxu0 0
        %4732 = vmatmul.mubr.bf16.gmra.mrb[0].mxu0 %v4685
        %v4733 = vpop.f32.mrb[0].mxu0
        %v4734 = vadd.f32 0.0, %v4733
        %v4735 = vpop.f32.mrb[0].mxu0
        %v4736 = vpop.f32.mrb[0].mxu0
        %v4737 = vadd.f32 0.0, %v4736
        %v4738 = vpop.f32.mrb[0].mxu0
        %4739 = vmatprep.mubr.bf16.mxu0 0
        %4740 = vmatmul.mubr.bf16.gmra.mrb[0].mxu0 %v4688
        %v4741 = vpop.f32.mrb[0].mxu0
        %v4742 = vadd.f32 0.0, %v4741
        %v4743 = vpop.f32.mrb[0].mxu0
        %v4744 = vpop.f32.mrb[0].mxu0
        %v4745 = vadd.f32 0.0, %v4744
        %v4746 = vpop.f32.mrb[0].mxu0
        %4747 = vmatprep.mubr.bf16.mxu0 0
        %4748 = vmatmul.mubr.bf16.gmra.mrb[0].mxu0 %v4691
        %v4749 = vpop.f32.mrb[0].mxu0
        %v4750 = vadd.f32 0.0, %v4749
        %v4751 = vpop.f32.mrb[0].mxu0
        %v4752 = vpop.f32.mrb[0].mxu0
        %v4753 = vadd.f32 0.0, %v4752
        %v4754 = vpop.f32.mrb[0].mxu0
        %4755 = vmatprep.mubr.bf16.mxu0 0
        %4756 = vmatmul.mubr.bf16.gmra.mrb[0].mxu0 %v4694
        %v4757 = vpop.f32.mrb[0].mxu0
        %v4758 = vadd.f32 0.0, %v4757
        %v4759 = vpop.f32.mrb[0].mxu0
        %v4760 = vpop.f32.mrb[0].mxu0
        %v4761 = vadd.f32 0.0, %v4760
        %v4762 = vpop.f32.mrb[0].mxu0
        %4763 = vdwg.mxu0
        %v4764 = vadd.f32 %v4630, %v4734
        %v4765 = vadd.f32 %v4631, %v4737
        %v4766 = vadd.f32 %v4632, %v4742
        %v4767 = vadd.f32 %v4633, %v4745
        %v4768 = vadd.f32 %v4634, %v4750
        %v4769 = vadd.f32 %v4635, %v4753
        %v4770 = vadd.f32 %v4636, %v4758
        %v4771 = vadd.f32 %v4637, %v4761
        %v4772 = vld [vmem:[%s14] sm:$0x1]
        %v4774 = vlaneseq
        %v4775 = vshrl.u32 %v4774, 7
        %v4776 = vsub.s32 0, %v4775
        %v4777 = vrot.slane %v4772, %v4776
        %v4779 = vadd.f32 %v4764, %v4777
        %v4780 = vadd.f32 %v4765, %v4777
        %v4781 = vadd.f32 %v4766, %v4777
        %v4782 = vadd.f32 %v4767, %v4777
        %v4783 = vadd.f32 %v4768, %v4777
        %v4784 = vadd.f32 %v4769, %v4777
        %v4785 = vadd.f32 %v4770, %v4777
        %v4786 = vadd.f32 %v4771, %v4777
        %v4787 = vmax.f32 %v4779, 0.0
        %v4788 = vmax.f32 %v4780, 0.0
        %v4789 = vmax.f32 %v4781, 0.0
        %v4790 = vmax.f32 %v4782, 0.0
        %v4791 = vmax.f32 %v4783, 0.0
        %v4792 = vmax.f32 %v4784, 0.0
        %v4793 = vmax.f32 %v4785, 0.0
        %v4794 = vmax.f32 %v4786, 0.0
        %v4795 = vpack.c.bf16 %v4787, %v4787
        %v4796 = vpack.c.bf16 %v4788, %v4788
        %v4797 = vpack.c.bf16 %v4789, %v4789
        %v4798 = vpack.c.bf16 %v4790, %v4790
        %v4799 = vpack.c.bf16 %v4791, %v4791
        %v4800 = vld [vmem:[%s15] sm:$0xf]
        %v4801 = vpack.c.bf16 %v4792, %v4792
        %s4802 = scalar_lea.vmem %s15, 4
        %v4803 = vld [vmem:[%s4802] sm:$0xf]
        %v4810 = vunpack.c.l.b16 %v4795
        %v4811 = vunpack.c.l.b16 %v4796
        %v4812 = vunpack.c.l.b16 %v4797
        %v4813 = vunpack.c.l.b16 %v4798
        %v4814 = vunpack.c.l.b16 %v4799
        %v4815 = vunpack.c.l.b16 %v4801
        %v4816 = vpack.c.b16 %v4811, %v4810
        %v4817 = vpack.c.b16 %v4813, %v4812
        %v4818 = vpack.c.b16 %v4815, %v4814
        %v4820 = vsel %vm1149, %v4816, 0
        %v4823 = vsel %vm1149, %v4817, 0
        %v4826 = vsel %vm1149, %v4818, 0
        %v4829 = vsel %vm1162, %v4803, 0
        %4831 = vmatprep.subr.bf16.mxu0 0
        %4832 = vmatpush1.bf16.msra.mxu0 %v4829
        %4833 = vmatprep.subr.bf16.mxu0 0
        %4834 = vmatpush1.bf16.msra.mxu0 0
        %4835 = vmatprep.subr.bf16.mxu0 0
        %4836 = vmatpush1.bf16.msra.mxu0 0
        %4837 = vmatprep.subr.bf16.mxu0 0
        %4838 = vmatpush1.bf16.msra.mxu0 0
        %4839 = vmatprep.subr.bf16.mxu0 0
        %4840 = vmatpush1.bf16.msra.mxu0 0
        %4841 = vmatprep.subr.bf16.mxu0 0
        %4842 = vmatpush1.bf16.msra.mxu0 0
        %4843 = vmatprep.subr.bf16.mxu0 0
        %4844 = vmatpush1.bf16.msra.mxu0 0
        %4845 = vmatprep.subr.bf16.mxu0 0
        %4846 = vmatpush1.bf16.msra.mxu0 0
        %4847 = vmatprep.subr.bf16.mxu0 0
        %4848 = vmatpush1.bf16.msra.mxu0 0
        %4849 = vmatprep.subr.bf16.mxu0 0
        %4850 = vmatpush1.bf16.msra.mxu0 0
        %4851 = vmatprep.subr.bf16.mxu0 0
        %4852 = vmatpush1.bf16.msra.mxu0 0
        %4853 = vmatprep.subr.bf16.mxu0 0
        %4854 = vmatpush1.bf16.msra.mxu0 0
        %4855 = vmatprep.subr.bf16.mxu0 0
        %4856 = vmatpush1.bf16.msra.mxu0 0
        %4857 = vmatprep.subr.bf16.mxu0 0
        %4858 = vmatpush1.bf16.msra.mxu0 0
        %4859 = vmatprep.subr.bf16.mxu0 0
        %4860 = vmatpush1.bf16.msra.mxu0 0
        %4861 = vmatprep.subr.bf16.mxu0 0
        %4862 = vmatpush1.bf16.msra.mxu0 0
        %4863 = vmatprep.mubr.bf16.mxu0 0
        %4864 = vmatmul.mubr.bf16.gmra.mrb[0].mxu0 %v2153
        %v4865 = vpop.f32.mrb[0].mxu0
        %v4866 = vadd.f32 0.0, %v4865
        %v4867 = vpop.f32.mrb[0].mxu0
        %v4868 = vpop.f32.mrb[0].mxu0
        %v4869 = vadd.f32 0.0, %v4868
        %v4870 = vpop.f32.mrb[0].mxu0
        %4871 = vmatprep.mubr.bf16.mxu0 0
        %4872 = vmatmul.mubr.bf16.gmra.mrb[0].mxu0 %v4820
        %v4873 = vpop.f32.mrb[0].mxu0
        %v4874 = vadd.f32 0.0, %v4873
        %v4875 = vpop.f32.mrb[0].mxu0
        %v4876 = vpop.f32.mrb[0].mxu0
        %v4877 = vadd.f32 0.0, %v4876
        %v4878 = vpop.f32.mrb[0].mxu0
        %4879 = vmatprep.mubr.bf16.mxu0 0
        %4880 = vmatmul.mubr.bf16.gmra.mrb[0].mxu0 %v4823
        %v4881 = vpop.f32.mrb[0].mxu0
        %v4882 = vadd.f32 0.0, %v4881
        %v4883 = vpop.f32.mrb[0].mxu0
        %v4884 = vpop.f32.mrb[0].mxu0
        %v4885 = vadd.f32 0.0, %v4884
        %v4886 = vpop.f32.mrb[0].mxu0
        %4887 = vmatprep.mubr.bf16.mxu0 0
        %4888 = vmatmul.mubr.bf16.gmra.mrb[0].mxu0 %v4826
        %v4889 = vpop.f32.mrb[0].mxu0
        %v4890 = vadd.f32 0.0, %v4889
        %v4891 = vpop.f32.mrb[0].mxu0
        %v4892 = vpop.f32.mrb[0].mxu0
        %v4893 = vadd.f32 0.0, %v4892
        %v4894 = vpop.f32.mrb[0].mxu0
        %4895 = vdwg.mxu0
        %v4896 = vpack.c.b16 %v4810, %v2136
        %v4897 = vpack.c.b16 %v4812, %v4811
        %v4898 = vpack.c.b16 %v4814, %v4813
        %v4900 = vsel %vm1149, %v4896, 0
        %v4903 = vsel %vm1149, %v4897, 0
        %v4906 = vsel %vm1149, %v4898, 0
        %v4909 = vsel %vm1162, %v4800, 0
        %4911 = vmatprep.subr.bf16.mxu0 0
        %4912 = vmatpush1.bf16.msra.mxu0 %v4909
        %4913 = vmatprep.subr.bf16.mxu0 0
        %4914 = vmatpush1.bf16.msra.mxu0 0
        %4915 = vmatprep.subr.bf16.mxu0 0
        %4916 = vmatpush1.bf16.msra.mxu0 0
        %4917 = vmatprep.subr.bf16.mxu0 0
        %4918 = vmatpush1.bf16.msra.mxu0 0
        %4919 = vmatprep.subr.bf16.mxu0 0
        %4920 = vmatpush1.bf16.msra.mxu0 0
        %4921 = vmatprep.subr.bf16.mxu0 0
        %4922 = vmatpush1.bf16.msra.mxu0 0
        %4923 = vmatprep.subr.bf16.mxu0 0
        %4924 = vmatpush1.bf16.msra.mxu0 0
        %4925 = vmatprep.subr.bf16.mxu0 0
        %4926 = vmatpush1.bf16.msra.mxu0 0
        %4927 = vmatprep.subr.bf16.mxu0 0
        %4928 = vmatpush1.bf16.msra.mxu0 0
        %4929 = vmatprep.subr.bf16.mxu0 0
        %4930 = vmatpush1.bf16.msra.mxu0 0
        %4931 = vmatprep.subr.bf16.mxu0 0
        %4932 = vmatpush1.bf16.msra.mxu0 0
        %4933 = vmatprep.subr.bf16.mxu0 0
        %4934 = vmatpush1.bf16.msra.mxu0 0
        %4935 = vmatprep.subr.bf16.mxu0 0
        %4936 = vmatpush1.bf16.msra.mxu0 0
        %4937 = vmatprep.subr.bf16.mxu0 0
        %4938 = vmatpush1.bf16.msra.mxu0 0
        %4939 = vmatprep.subr.bf16.mxu0 0
        %4940 = vmatpush1.bf16.msra.mxu0 0
        %4941 = vmatprep.subr.bf16.mxu0 0
        %4942 = vmatpush1.bf16.msra.mxu0 0
        %4943 = vmatprep.mubr.bf16.mxu0 0
        %4944 = vmatmul.mubr.bf16.gmra.mrb[0].mxu0 %v2153
        %v4945 = vpop.f32.mrb[0].mxu0
        %v4946 = vadd.f32 %v4866, %v4945
        %v4947 = vpop.f32.mrb[0].mxu0
        %v4948 = vpop.f32.mrb[0].mxu0
        %v4949 = vadd.f32 %v4869, %v4948
        %v4950 = vpop.f32.mrb[0].mxu0
        %4951 = vmatprep.mubr.bf16.mxu0 0
        %4952 = vmatmul.mubr.bf16.gmra.mrb[0].mxu0 %v4900
        %v4953 = vpop.f32.mrb[0].mxu0
        %v4954 = vadd.f32 %v4874, %v4953
        %v4955 = vpop.f32.mrb[0].mxu0
        %v4956 = vpop.f32.mrb[0].mxu0
        %v4957 = vadd.f32 %v4877, %v4956
        %v4958 = vpop.f32.mrb[0].mxu0
        %4959 = vmatprep.mubr.bf16.mxu0 0
        %4960 = vmatmul.mubr.bf16.gmra.mrb[0].mxu0 %v4903
        %v4961 = vpop.f32.mrb[0].mxu0
        %v4962 = vadd.f32 %v4882, %v4961
        %v4963 = vpop.f32.mrb[0].mxu0
        %v4964 = vpop.f32.mrb[0].mxu0
        %v4965 = vadd.f32 %v4885, %v4964
        %v4966 = vpop.f32.mrb[0].mxu0
        %4967 = vmatprep.mubr.bf16.mxu0 0
        %4968 = vmatmul.mubr.bf16.gmra.mrb[0].mxu0 %v4906
        %v4969 = vpop.f32.mrb[0].mxu0
        %v4970 = vadd.f32 %v4890, %v4969
        %v4971 = vpop.f32.mrb[0].mxu0
        %v4972 = vpop.f32.mrb[0].mxu0
        %v4973 = vadd.f32 %v4893, %v4972
        %v4974 = vpop.f32.mrb[0].mxu0
        %4975 = vdwg.mxu0
        %v4976 = vpack.c.bf16 %v4793, %v4793
        %s4977 = scalar_lea.vmem %s15, 8
        %v4978 = vld [vmem:[%s4977] sm:$0xf]
        %v4980 = vunpack.c.l.b16 %v4976
        %v4981 = vpack.c.b16 %v4980, %v4815
        %v4983 = vsel %vm1149, %v4981, 0
        %v4986 = vsel %vm1162, %v4978, 0
        %4988 = vmatprep.subr.bf16.mxu0 0
        %4989 = vmatpush1.bf16.msra.mxu0 %v4986
        %4990 = vmatprep.subr.bf16.mxu0 0
        %4991 = vmatpush1.bf16.msra.mxu0 0
        %4992 = vmatprep.subr.bf16.mxu0 0
        %4993 = vmatpush1.bf16.msra.mxu0 0
        %4994 = vmatprep.subr.bf16.mxu0 0
        %4995 = vmatpush1.bf16.msra.mxu0 0
        %4996 = vmatprep.subr.bf16.mxu0 0
        %4997 = vmatpush1.bf16.msra.mxu0 0
        %4998 = vmatprep.subr.bf16.mxu0 0
        %4999 = vmatpush1.bf16.msra.mxu0 0
        %5000 = vmatprep.subr.bf16.mxu0 0
        %5001 = vmatpush1.bf16.msra.mxu0 0
        %5002 = vmatprep.subr.bf16.mxu0 0
        %5003 = vmatpush1.bf16.msra.mxu0 0
        %5004 = vmatprep.subr.bf16.mxu0 0
        %5005 = vmatpush1.bf16.msra.mxu0 0
        %5006 = vmatprep.subr.bf16.mxu0 0
        %5007 = vmatpush1.bf16.msra.mxu0 0
        %5008 = vmatprep.subr.bf16.mxu0 0
        %5009 = vmatpush1.bf16.msra.mxu0 0
        %5010 = vmatprep.subr.bf16.mxu0 0
        %5011 = vmatpush1.bf16.msra.mxu0 0
        %5012 = vmatprep.subr.bf16.mxu0 0
        %5013 = vmatpush1.bf16.msra.mxu0 0
        %5014 = vmatprep.subr.bf16.mxu0 0
        %5015 = vmatpush1.bf16.msra.mxu0 0
        %5016 = vmatprep.subr.bf16.mxu0 0
        %5017 = vmatpush1.bf16.msra.mxu0 0
        %5018 = vmatprep.subr.bf16.mxu0 0
        %5019 = vmatpush1.bf16.msra.mxu0 0
        %5020 = vmatprep.mubr.bf16.mxu0 0
        %5021 = vmatmul.mubr.bf16.gmra.mrb[0].mxu0 %v4900
        %v5022 = vpop.f32.mrb[0].mxu0
        %v5023 = vadd.f32 0.0, %v5022
        %v5024 = vpop.f32.mrb[0].mxu0
        %v5025 = vpop.f32.mrb[0].mxu0
        %v5026 = vadd.f32 0.0, %v5025
        %v5027 = vpop.f32.mrb[0].mxu0
        %5028 = vmatprep.mubr.bf16.mxu0 0
        %5029 = vmatmul.mubr.bf16.gmra.mrb[0].mxu0 %v4903
        %v5030 = vpop.f32.mrb[0].mxu0
        %v5031 = vadd.f32 0.0, %v5030
        %v5032 = vpop.f32.mrb[0].mxu0
        %v5033 = vpop.f32.mrb[0].mxu0
        %v5034 = vadd.f32 0.0, %v5033
        %v5035 = vpop.f32.mrb[0].mxu0
        %5036 = vmatprep.mubr.bf16.mxu0 0
        %5037 = vmatmul.mubr.bf16.gmra.mrb[0].mxu0 %v4906
        %v5038 = vpop.f32.mrb[0].mxu0
        %v5039 = vadd.f32 0.0, %v5038
        %v5040 = vpop.f32.mrb[0].mxu0
        %v5041 = vpop.f32.mrb[0].mxu0
        %v5042 = vadd.f32 0.0, %v5041
        %v5043 = vpop.f32.mrb[0].mxu0
        %5044 = vmatprep.mubr.bf16.mxu0 0
        %5045 = vmatmul.mubr.bf16.gmra.mrb[0].mxu0 %v4983
        %v5046 = vpop.f32.mrb[0].mxu0
        %v5047 = vadd.f32 0.0, %v5046
        %v5048 = vpop.f32.mrb[0].mxu0
        %v5049 = vpop.f32.mrb[0].mxu0
        %v5050 = vadd.f32 0.0, %v5049
        %v5051 = vpop.f32.mrb[0].mxu0
        %5052 = vdwg.mxu0
        %v5053 = vadd.f32 %v4946, %v5023
        %v5054 = vadd.f32 %v4949, %v5026
        %v5055 = vadd.f32 %v4954, %v5031
        %v5056 = vadd.f32 %v4957, %v5034
        %v5057 = vadd.f32 %v4962, %v5039
        %v5058 = vadd.f32 %v4965, %v5042
        %v5059 = vadd.f32 %v4970, %v5047
        %v5060 = vadd.f32 %v4973, %v5050
        %v5061 = vpack.c.bf16 %v4794, %v4794
        %s5062 = scalar_lea.vmem %s15, 12
        %v5063 = vld [vmem:[%s5062] sm:$0xf]
        %v5065 = vunpack.c.l.b16 %v5061
        %v5066 = vpack.c.b16 %v5065, %v4980
        %v5068 = vsel %vm1149, %v5066, 0
        %v5071 = vsel %vm1162, %v5063, 0
        %5073 = vmatprep.subr.bf16.mxu0 0
        %5074 = vmatpush1.bf16.msra.mxu0 %v5071
        %5075 = vmatprep.subr.bf16.mxu0 0
        %5076 = vmatpush1.bf16.msra.mxu0 0
        %5077 = vmatprep.subr.bf16.mxu0 0
        %5078 = vmatpush1.bf16.msra.mxu0 0
        %5079 = vmatprep.subr.bf16.mxu0 0
        %5080 = vmatpush1.bf16.msra.mxu0 0
        %5081 = vmatprep.subr.bf16.mxu0 0
        %5082 = vmatpush1.bf16.msra.mxu0 0
        %5083 = vmatprep.subr.bf16.mxu0 0
        %5084 = vmatpush1.bf16.msra.mxu0 0
        %5085 = vmatprep.subr.bf16.mxu0 0
        %5086 = vmatpush1.bf16.msra.mxu0 0
        %5087 = vmatprep.subr.bf16.mxu0 0
        %5088 = vmatpush1.bf16.msra.mxu0 0
        %5089 = vmatprep.subr.bf16.mxu0 0
        %5090 = vmatpush1.bf16.msra.mxu0 0
        %5091 = vmatprep.subr.bf16.mxu0 0
        %5092 = vmatpush1.bf16.msra.mxu0 0
        %5093 = vmatprep.subr.bf16.mxu0 0
        %5094 = vmatpush1.bf16.msra.mxu0 0
        %5095 = vmatprep.subr.bf16.mxu0 0
        %5096 = vmatpush1.bf16.msra.mxu0 0
        %5097 = vmatprep.subr.bf16.mxu0 0
        %5098 = vmatpush1.bf16.msra.mxu0 0
        %5099 = vmatprep.subr.bf16.mxu0 0
        %5100 = vmatpush1.bf16.msra.mxu0 0
        %5101 = vmatprep.subr.bf16.mxu0 0
        %5102 = vmatpush1.bf16.msra.mxu0 0
        %5103 = vmatprep.subr.bf16.mxu0 0
        %5104 = vmatpush1.bf16.msra.mxu0 0
        %5105 = vmatprep.mubr.bf16.mxu0 0
        %5106 = vmatmul.mubr.bf16.gmra.mrb[0].mxu0 %v4820
        %v5107 = vpop.f32.mrb[0].mxu0
        %v5108 = vadd.f32 0.0, %v5107
        %v5109 = vpop.f32.mrb[0].mxu0
        %v5110 = vpop.f32.mrb[0].mxu0
        %v5111 = vadd.f32 0.0, %v5110
        %v5112 = vpop.f32.mrb[0].mxu0
        %5113 = vmatprep.mubr.bf16.mxu0 0
        %5114 = vmatmul.mubr.bf16.gmra.mrb[0].mxu0 %v4823
        %v5115 = vpop.f32.mrb[0].mxu0
        %v5116 = vadd.f32 0.0, %v5115
        %v5117 = vpop.f32.mrb[0].mxu0
        %v5118 = vpop.f32.mrb[0].mxu0
        %v5119 = vadd.f32 0.0, %v5118
        %v5120 = vpop.f32.mrb[0].mxu0
        %5121 = vmatprep.mubr.bf16.mxu0 0
        %5122 = vmatmul.mubr.bf16.gmra.mrb[0].mxu0 %v4826
        %v5123 = vpop.f32.mrb[0].mxu0
        %v5124 = vadd.f32 0.0, %v5123
        %v5125 = vpop.f32.mrb[0].mxu0
        %v5126 = vpop.f32.mrb[0].mxu0
        %v5127 = vadd.f32 0.0, %v5126
        %v5128 = vpop.f32.mrb[0].mxu0
        %5129 = vmatprep.mubr.bf16.mxu0 0
        %5130 = vmatmul.mubr.bf16.gmra.mrb[0].mxu0 %v5068
        %v5131 = vpop.f32.mrb[0].mxu0
        %v5132 = vadd.f32 0.0, %v5131
        %v5133 = vpop.f32.mrb[0].mxu0
        %v5134 = vpop.f32.mrb[0].mxu0
        %v5135 = vadd.f32 0.0, %v5134
        %v5136 = vpop.f32.mrb[0].mxu0
        %5137 = vdwg.mxu0
        %v5138 = vadd.f32 %v5053, %v5108
        %v5139 = vadd.f32 %v5054, %v5111
        %v5140 = vadd.f32 %v5055, %v5116
        %v5141 = vadd.f32 %v5056, %v5119
        %v5142 = vadd.f32 %v5057, %v5124
        %v5143 = vadd.f32 %v5058, %v5127
        %v5144 = vadd.f32 %v5059, %v5132
        %v5145 = vadd.f32 %v5060, %v5135
        %s5146 = scalar_lea.vmem %s15, 16
        %v5147 = vld [vmem:[%s5146] sm:$0xf]
        %v5148 = vpack.c.b16 %v2136, %v5065
        %v5150 = vsel %vm1149, %v5148, 0
        %v5153 = vsel %vm1162, %v5147, 0
        %5155 = vmatprep.subr.bf16.mxu0 0
        %5156 = vmatpush1.bf16.msra.mxu0 %v5153
        %5157 = vmatprep.subr.bf16.mxu0 0
        %5158 = vmatpush1.bf16.msra.mxu0 0
        %5159 = vmatprep.subr.bf16.mxu0 0
        %5160 = vmatpush1.bf16.msra.mxu0 0
        %5161 = vmatprep.subr.bf16.mxu0 0
        %5162 = vmatpush1.bf16.msra.mxu0 0
        %5163 = vmatprep.subr.bf16.mxu0 0
        %5164 = vmatpush1.bf16.msra.mxu0 0
        %5165 = vmatprep.subr.bf16.mxu0 0
        %5166 = vmatpush1.bf16.msra.mxu0 0
        %5167 = vmatprep.subr.bf16.mxu0 0
        %5168 = vmatpush1.bf16.msra.mxu0 0
        %5169 = vmatprep.subr.bf16.mxu0 0
        %5170 = vmatpush1.bf16.msra.mxu0 0
        %5171 = vmatprep.subr.bf16.mxu0 0
        %5172 = vmatpush1.bf16.msra.mxu0 0
        %5173 = vmatprep.subr.bf16.mxu0 0
        %5174 = vmatpush1.bf16.msra.mxu0 0
        %5175 = vmatprep.subr.bf16.mxu0 0
        %5176 = vmatpush1.bf16.msra.mxu0 0
        %5177 = vmatprep.subr.bf16.mxu0 0
        %5178 = vmatpush1.bf16.msra.mxu0 0
        %5179 = vmatprep.subr.bf16.mxu0 0
        %5180 = vmatpush1.bf16.msra.mxu0 0
        %5181 = vmatprep.subr.bf16.mxu0 0
        %5182 = vmatpush1.bf16.msra.mxu0 0
        %5183 = vmatprep.subr.bf16.mxu0 0
        %5184 = vmatpush1.bf16.msra.mxu0 0
        %5185 = vmatprep.subr.bf16.mxu0 0
        %5186 = vmatpush1.bf16.msra.mxu0 0
        %5187 = vmatprep.mubr.bf16.mxu0 0
        %5188 = vmatmul.mubr.bf16.gmra.mrb[0].mxu0 %v4903
        %v5189 = vpop.f32.mrb[0].mxu0
        %v5190 = vadd.f32 0.0, %v5189
        %v5191 = vpop.f32.mrb[0].mxu0
        %v5192 = vpop.f32.mrb[0].mxu0
        %v5193 = vadd.f32 0.0, %v5192
        %v5194 = vpop.f32.mrb[0].mxu0
        %5195 = vmatprep.mubr.bf16.mxu0 0
        %5196 = vmatmul.mubr.bf16.gmra.mrb[0].mxu0 %v4906
        %v5197 = vpop.f32.mrb[0].mxu0
        %v5198 = vadd.f32 0.0, %v5197
        %v5199 = vpop.f32.mrb[0].mxu0
        %v5200 = vpop.f32.mrb[0].mxu0
        %v5201 = vadd.f32 0.0, %v5200
        %v5202 = vpop.f32.mrb[0].mxu0
        %5203 = vmatprep.mubr.bf16.mxu0 0
        %5204 = vmatmul.mubr.bf16.gmra.mrb[0].mxu0 %v4983
        %v5205 = vpop.f32.mrb[0].mxu0
        %v5206 = vadd.f32 0.0, %v5205
        %v5207 = vpop.f32.mrb[0].mxu0
        %v5208 = vpop.f32.mrb[0].mxu0
        %v5209 = vadd.f32 0.0, %v5208
        %v5210 = vpop.f32.mrb[0].mxu0
        %5211 = vmatprep.mubr.bf16.mxu0 0
        %5212 = vmatmul.mubr.bf16.gmra.mrb[0].mxu0 %v5150
        %v5213 = vpop.f32.mrb[0].mxu0
        %v5214 = vadd.f32 0.0, %v5213
        %v5215 = vpop.f32.mrb[0].mxu0
        %v5216 = vpop.f32.mrb[0].mxu0
        %v5217 = vadd.f32 0.0, %v5216
        %v5218 = vpop.f32.mrb[0].mxu0
        %5219 = vdwg.mxu0
        %v5220 = vadd.f32 %v5138, %v5190
        %v5221 = vadd.f32 %v5139, %v5193
        %v5222 = vadd.f32 %v5140, %v5198
        %v5223 = vadd.f32 %v5141, %v5201
        %v5224 = vadd.f32 %v5142, %v5206
        %v5225 = vadd.f32 %v5143, %v5209
        %v5226 = vadd.f32 %v5144, %v5214
        %v5227 = vadd.f32 %v5145, %v5217
        %s5228 = scalar_lea.vmem %s15, 20
        %v5229 = vld [vmem:[%s5228] sm:$0xf]
        %v5231 = vsel %vm1162, %v5229, 0
        %5233 = vmatprep.subr.bf16.mxu0 0
        %5234 = vmatpush1.bf16.msra.mxu0 %v5231
        %5235 = vmatprep.subr.bf16.mxu0 0
        %5236 = vmatpush1.bf16.msra.mxu0 0
        %5237 = vmatprep.subr.bf16.mxu0 0
        %5238 = vmatpush1.bf16.msra.mxu0 0
        %5239 = vmatprep.subr.bf16.mxu0 0
        %5240 = vmatpush1.bf16.msra.mxu0 0
        %5241 = vmatprep.subr.bf16.mxu0 0
        %5242 = vmatpush1.bf16.msra.mxu0 0
        %5243 = vmatprep.subr.bf16.mxu0 0
        %5244 = vmatpush1.bf16.msra.mxu0 0
        %5245 = vmatprep.subr.bf16.mxu0 0
        %5246 = vmatpush1.bf16.msra.mxu0 0
        %5247 = vmatprep.subr.bf16.mxu0 0
        %5248 = vmatpush1.bf16.msra.mxu0 0
        %5249 = vmatprep.subr.bf16.mxu0 0
        %5250 = vmatpush1.bf16.msra.mxu0 0
        %5251 = vmatprep.subr.bf16.mxu0 0
        %5252 = vmatpush1.bf16.msra.mxu0 0
        %5253 = vmatprep.subr.bf16.mxu0 0
        %5254 = vmatpush1.bf16.msra.mxu0 0
        %5255 = vmatprep.subr.bf16.mxu0 0
        %5256 = vmatpush1.bf16.msra.mxu0 0
        %5257 = vmatprep.subr.bf16.mxu0 0
        %5258 = vmatpush1.bf16.msra.mxu0 0
        %5259 = vmatprep.subr.bf16.mxu0 0
        %5260 = vmatpush1.bf16.msra.mxu0 0
        %5261 = vmatprep.subr.bf16.mxu0 0
        %5262 = vmatpush1.bf16.msra.mxu0 0
        %5263 = vmatprep.subr.bf16.mxu0 0
        %5264 = vmatpush1.bf16.msra.mxu0 0
        %5265 = vmatprep.mubr.bf16.mxu0 0
        %5266 = vmatmul.mubr.bf16.gmra.mrb[0].mxu0 %v4823
        %v5267 = vpop.f32.mrb[0].mxu0
        %v5268 = vadd.f32 0.0, %v5267
        %v5269 = vpop.f32.mrb[0].mxu0
        %v5270 = vpop.f32.mrb[0].mxu0
        %v5271 = vadd.f32 0.0, %v5270
        %v5272 = vpop.f32.mrb[0].mxu0
        %5273 = vmatprep.mubr.bf16.mxu0 0
        %5274 = vmatmul.mubr.bf16.gmra.mrb[0].mxu0 %v4826
        %v5275 = vpop.f32.mrb[0].mxu0
        %v5276 = vadd.f32 0.0, %v5275
        %v5277 = vpop.f32.mrb[0].mxu0
        %v5278 = vpop.f32.mrb[0].mxu0
        %v5279 = vadd.f32 0.0, %v5278
        %v5280 = vpop.f32.mrb[0].mxu0
        %5281 = vmatprep.mubr.bf16.mxu0 0
        %5282 = vmatmul.mubr.bf16.gmra.mrb[0].mxu0 %v5068
        %v5283 = vpop.f32.mrb[0].mxu0
        %v5284 = vadd.f32 0.0, %v5283
        %v5285 = vpop.f32.mrb[0].mxu0
        %v5286 = vpop.f32.mrb[0].mxu0
        %v5287 = vadd.f32 0.0, %v5286
        %v5288 = vpop.f32.mrb[0].mxu0
        %5289 = vmatprep.mubr.bf16.mxu0 0
        %5290 = vmatmul.mubr.bf16.gmra.mrb[0].mxu0 %v2153
        %v5291 = vpop.f32.mrb[0].mxu0
        %v5292 = vadd.f32 0.0, %v5291
        %v5293 = vpop.f32.mrb[0].mxu0
        %v5294 = vpop.f32.mrb[0].mxu0
        %v5295 = vadd.f32 0.0, %v5294
        %v5296 = vpop.f32.mrb[0].mxu0
        %5297 = vdwg.mxu0
        %v5298 = vadd.f32 %v5220, %v5268
        %v5299 = vadd.f32 %v5221, %v5271
        %v5300 = vadd.f32 %v5222, %v5276
        %v5301 = vadd.f32 %v5223, %v5279
        %v5302 = vadd.f32 %v5224, %v5284
        %v5303 = vadd.f32 %v5225, %v5287
        %v5304 = vadd.f32 %v5226, %v5292
        %v5305 = vadd.f32 %v5227, %v5295
        %s5306 = scalar_lea.vmem %s15, 24
        %v5307 = vld [vmem:[%s5306] sm:$0xf]
        %v5309 = vsel %vm1162, %v5307, 0
        %5311 = vmatprep.subr.bf16.mxu0 0
        %5312 = vmatpush1.bf16.msra.mxu0 %v5309
        %5313 = vmatprep.subr.bf16.mxu0 0
        %5314 = vmatpush1.bf16.msra.mxu0 0
        %5315 = vmatprep.subr.bf16.mxu0 0
        %5316 = vmatpush1.bf16.msra.mxu0 0
        %5317 = vmatprep.subr.bf16.mxu0 0
        %5318 = vmatpush1.bf16.msra.mxu0 0
        %5319 = vmatprep.subr.bf16.mxu0 0
        %5320 = vmatpush1.bf16.msra.mxu0 0
        %5321 = vmatprep.subr.bf16.mxu0 0
        %5322 = vmatpush1.bf16.msra.mxu0 0
        %5323 = vmatprep.subr.bf16.mxu0 0
        %5324 = vmatpush1.bf16.msra.mxu0 0
        %5325 = vmatprep.subr.bf16.mxu0 0
        %5326 = vmatpush1.bf16.msra.mxu0 0
        %5327 = vmatprep.subr.bf16.mxu0 0
        %5328 = vmatpush1.bf16.msra.mxu0 0
        %5329 = vmatprep.subr.bf16.mxu0 0
        %5330 = vmatpush1.bf16.msra.mxu0 0
        %5331 = vmatprep.subr.bf16.mxu0 0
        %5332 = vmatpush1.bf16.msra.mxu0 0
        %5333 = vmatprep.subr.bf16.mxu0 0
        %5334 = vmatpush1.bf16.msra.mxu0 0
        %5335 = vmatprep.subr.bf16.mxu0 0
        %5336 = vmatpush1.bf16.msra.mxu0 0
        %5337 = vmatprep.subr.bf16.mxu0 0
        %5338 = vmatpush1.bf16.msra.mxu0 0
        %5339 = vmatprep.subr.bf16.mxu0 0
        %5340 = vmatpush1.bf16.msra.mxu0 0
        %5341 = vmatprep.subr.bf16.mxu0 0
        %5342 = vmatpush1.bf16.msra.mxu0 0
        %5343 = vmatprep.mubr.bf16.mxu0 0
        %5344 = vmatmul.mubr.bf16.gmra.mrb[0].mxu0 %v4906
        %v5345 = vpop.f32.mrb[0].mxu0
        %v5346 = vadd.f32 0.0, %v5345
        %v5347 = vpop.f32.mrb[0].mxu0
        %v5348 = vpop.f32.mrb[0].mxu0
        %v5349 = vadd.f32 0.0, %v5348
        %v5350 = vpop.f32.mrb[0].mxu0
        %5351 = vmatprep.mubr.bf16.mxu0 0
        %5352 = vmatmul.mubr.bf16.gmra.mrb[0].mxu0 %v4983
        %v5353 = vpop.f32.mrb[0].mxu0
        %v5354 = vadd.f32 0.0, %v5353
        %v5355 = vpop.f32.mrb[0].mxu0
        %v5356 = vpop.f32.mrb[0].mxu0
        %v5357 = vadd.f32 0.0, %v5356
        %v5358 = vpop.f32.mrb[0].mxu0
        %5359 = vmatprep.mubr.bf16.mxu0 0
        %5360 = vmatmul.mubr.bf16.gmra.mrb[0].mxu0 %v5150
        %v5361 = vpop.f32.mrb[0].mxu0
        %v5362 = vadd.f32 0.0, %v5361
        %v5363 = vpop.f32.mrb[0].mxu0
        %v5364 = vpop.f32.mrb[0].mxu0
        %v5365 = vadd.f32 0.0, %v5364
        %v5366 = vpop.f32.mrb[0].mxu0
        %5367 = vmatprep.mubr.bf16.mxu0 0
        %5368 = vmatmul.mubr.bf16.gmra.mrb[0].mxu0 %v2153
        %v5369 = vpop.f32.mrb[0].mxu0
        %v5370 = vadd.f32 0.0, %v5369
        %v5371 = vpop.f32.mrb[0].mxu0
        %v5372 = vpop.f32.mrb[0].mxu0
        %v5373 = vadd.f32 0.0, %v5372
        %v5374 = vpop.f32.mrb[0].mxu0
        %5375 = vdwg.mxu0
        %v5376 = vadd.f32 %v5298, %v5346
        %v5377 = vadd.f32 %v5299, %v5349
        %v5378 = vadd.f32 %v5300, %v5354
        %v5379 = vadd.f32 %v5301, %v5357
        %v5380 = vadd.f32 %v5302, %v5362
        %v5381 = vadd.f32 %v5303, %v5365
        %v5382 = vadd.f32 %v5304, %v5370
        %v5383 = vadd.f32 %v5305, %v5373
        %v5384 = vld [vmem:[%s16] sm:$0x1]
        %v5386 = vlaneseq
        %v5387 = vshrl.u32 %v5386, 7
        %v5388 = vsub.s32 0, %v5387
        %v5389 = vrot.slane %v5384, %v5388
        %v5391 = vadd.f32 %v5376, %v5389
        %v5392 = vadd.f32 %v5377, %v5389
        %v5393 = vadd.f32 %v5378, %v5389
        %v5394 = vadd.f32 %v5379, %v5389
        %v5395 = vadd.f32 %v5380, %v5389
        %v5396 = vadd.f32 %v5381, %v5389
        %v5397 = vadd.f32 %v5382, %v5389
        %v5398 = vadd.f32 %v5383, %v5389
        %v5399 = vmax.f32 %v5391, 0.0
        %v5400 = vmax.f32 %v5392, 0.0
        %v5401 = vmax.f32 %v5393, 0.0
        %v5402 = vmax.f32 %v5394, 0.0
        %v5403 = vmax.f32 %v5395, 0.0
        %v5404 = vmax.f32 %v5396, 0.0
        %v5405 = vmax.f32 %v5397, 0.0
        %v5406 = vmax.f32 %v5398, 0.0
        %v5415 = vrot.slane %v5399, 5
        %v5416 = vrot.slane %v5400, 5
        %v5417 = vrot.slane %v5401, 5
        %v5418 = vrot.slane %v5402, 5
        %v5419 = vrot.slane %v5403, 5
        %v5420 = vrot.slane %v5404, 5
        %v5421 = vrot.slane %v5405, 5
        %v5422 = vrot.slane %v5406, 5
        %v5431 = vsel %vm946, 0.0, %v5415
        %v5432 = vsel %vm946, 0.0, %v5416
        %v5433 = vsel %vm946, 0.0, %v5417
        %v5434 = vsel %vm946, 0.0, %v5418
        %v5435 = vsel %vm946, 0.0, %v5419
        %v5436 = vsel %vm946, 0.0, %v5420
        %v5437 = vsel %vm946, 0.0, %v5421
        %v5438 = vsel %vm946, 0.0, %v5422
        %v5439 = vsel %vm946, %v5415, 0.0
        %v5440 = vsel %vm946, %v5416, 0.0
        %v5441 = vsel %vm946, %v5417, 0.0
        %v5442 = vsel %vm946, %v5418, 0.0
        %v5443 = vsel %vm946, %v5419, 0.0
        %v5444 = vsel %vm946, %v5420, 0.0
        %v5445 = vsel %vm946, %v5421, 0.0
        %v5446 = vsel %vm946, %v5422, 0.0
        %v5447 = vpack.c.bf16 %v5431, %v5431
        %v5448 = vpack.c.bf16 %v5432, %v5432
        %v5449 = vpack.c.bf16 %v5433, %v5433
        %v5450 = vpack.c.bf16 %v5434, %v5434
        %v5451 = vpack.c.bf16 %v5435, %v5435
        %v5452 = vpack.c.bf16 %v5436, %v5436
        %v5453 = vpack.c.bf16 %v5437, %v5437
        %v5454 = vpack.c.bf16 %v5438, %v5438
        %v5455 = vld [vmem:[%s17] sm:$0xff]
        %v5456 = vpack.c.bf16 %v5439, %v5431
        %v5457 = vpack.c.bf16 %v5440, %v5432
        %v5458 = vpack.c.bf16 %v5441, %v5433
        %v5459 = vpack.c.bf16 %v5442, %v5434
        %v5460 = vpack.c.bf16 %v5443, %v5435
        %v5461 = vpack.c.bf16 %v5444, %v5436
        %v5462 = vpack.c.bf16 %v5445, %v5437
        %v5463 = vpack.c.bf16 %v5446, %v5438
        %v5472 = vunpack.c.l.b16 %v5456
        %v5473 = vunpack.c.h.b16 %v5456
        %v5474 = vunpack.c.l.b16 %v5457
        %v5475 = vunpack.c.h.b16 %v5457
        %v5476 = vunpack.c.l.b16 %v5458
        %v5477 = vunpack.c.h.b16 %v5458
        %v5478 = vunpack.c.l.b16 %v5459
        %v5479 = vunpack.c.h.b16 %v5459
        %v5480 = vunpack.c.l.b16 %v5460
        %v5481 = vunpack.c.h.b16 %v5460
        %v5482 = vunpack.c.l.b16 %v5461
        %v5483 = vunpack.c.h.b16 %v5461
        %v5484 = vunpack.c.l.b16 %v5462
        %v5485 = vunpack.c.h.b16 %v5462
        %v5486 = vunpack.c.l.b16 %v5463
        %v5487 = vunpack.c.h.b16 %v5463
        %v5488 = vpack.c.b16 %v5472, %v5472
        %v5489 = vpack.c.b16 %v5473, %v5473
        %v5490 = vpack.c.b16 %v5474, %v5474
        %v5491 = vpack.c.b16 %v5475, %v5475
        %v5492 = vpack.c.b16 %v5476, %v5476
        %v5493 = vpack.c.b16 %v5477, %v5477
        %v5494 = vpack.c.b16 %v5478, %v5478
        %v5495 = vpack.c.b16 %v5479, %v5479
        %v5496 = vpack.c.b16 %v5480, %v5480
        %v5497 = vpack.c.b16 %v5481, %v5481
        %v5498 = vpack.c.b16 %v5482, %v5482
        %v5499 = vpack.c.b16 %v5483, %v5483
        %v5500 = vpack.c.b16 %v5484, %v5484
        %v5501 = vpack.c.b16 %v5485, %v5485
        %v5502 = vpack.c.b16 %v5486, %v5486
        %v5503 = vpack.c.b16 %v5487, %v5487
        %v5505 = vshrl.u32 %v5488, 16
        %v5507 = vrot.slane %v5505, 4
        %v5508 = vshll.u32 %v5488, 16
        %v5510 = vrot.slane %v5508, 5
        %v5511 = vor.u32 %v5507, %v5510
        %v5512 = vrot.slane %v5511, 4
        %v5514 = vshll.u32 %v5489, 16
        %v5516 = vrot.slane %v5514, 5
        %v5517 = vsel %vm1022, %v5512, %v5516
        %v5519 = vshrl.u32 %v5490, 16
        %v5521 = vrot.slane %v5519, 4
        %v5522 = vshll.u32 %v5490, 16
        %v5524 = vrot.slane %v5522, 5
        %v5525 = vor.u32 %v5521, %v5524
        %v5526 = vrot.slane %v5525, 4
        %v5528 = vshll.u32 %v5491, 16
        %v5530 = vrot.slane %v5528, 5
        %v5531 = vsel %vm1022, %v5526, %v5530
        %v5533 = vshrl.u32 %v5492, 16
        %v5535 = vrot.slane %v5533, 4
        %v5536 = vshll.u32 %v5492, 16
        %v5538 = vrot.slane %v5536, 5
        %v5539 = vor.u32 %v5535, %v5538
        %v5540 = vrot.slane %v5539, 4
        %v5542 = vshll.u32 %v5493, 16
        %v5544 = vrot.slane %v5542, 5
        %v5545 = vsel %vm1022, %v5540, %v5544
        %v5547 = vshrl.u32 %v5494, 16
        %v5549 = vrot.slane %v5547, 4
        %v5550 = vshll.u32 %v5494, 16
        %v5552 = vrot.slane %v5550, 5
        %v5553 = vor.u32 %v5549, %v5552
        %v5554 = vrot.slane %v5553, 4
        %v5556 = vshll.u32 %v5495, 16
        %v5558 = vrot.slane %v5556, 5
        %v5559 = vsel %vm1022, %v5554, %v5558
        %v5561 = vshrl.u32 %v5496, 16
        %v5563 = vrot.slane %v5561, 4
        %v5564 = vshll.u32 %v5496, 16
        %v5566 = vrot.slane %v5564, 5
        %v5567 = vor.u32 %v5563, %v5566
        %v5568 = vrot.slane %v5567, 4
        %v5570 = vshll.u32 %v5497, 16
        %v5572 = vrot.slane %v5570, 5
        %v5573 = vsel %vm1022, %v5568, %v5572
        %v5575 = vshrl.u32 %v5498, 16
        %v5577 = vrot.slane %v5575, 4
        %v5578 = vshll.u32 %v5498, 16
        %v5580 = vrot.slane %v5578, 5
        %v5581 = vor.u32 %v5577, %v5580
        %v5582 = vrot.slane %v5581, 4
        %v5584 = vshll.u32 %v5499, 16
        %v5586 = vrot.slane %v5584, 5
        %v5587 = vsel %vm1022, %v5582, %v5586
        %v5589 = vshrl.u32 %v5500, 16
        %v5591 = vrot.slane %v5589, 4
        %v5592 = vshll.u32 %v5500, 16
        %v5594 = vrot.slane %v5592, 5
        %v5595 = vor.u32 %v5591, %v5594
        %v5596 = vrot.slane %v5595, 4
        %v5598 = vshll.u32 %v5501, 16
        %v5600 = vrot.slane %v5598, 5
        %v5601 = vsel %vm1022, %v5596, %v5600
        %v5603 = vshrl.u32 %v5502, 16
        %v5605 = vrot.slane %v5603, 4
        %v5606 = vshll.u32 %v5502, 16
        %v5608 = vrot.slane %v5606, 5
        %v5609 = vor.u32 %v5605, %v5608
        %v5610 = vrot.slane %v5609, 4
        %v5612 = vshll.u32 %v5503, 16
        %v5614 = vrot.slane %v5612, 5
        %v5615 = vsel %vm1022, %v5610, %v5614
        %s5616 = scalar_lea.vmem %s17, 8
        %v5617 = vld [vmem:[%s5616] sm:$0xff]
        %v5618 = vunpack.c.l.b16 %v5517
        %v5619 = vunpack.c.l.b16 %v5531
        %v5620 = vunpack.c.l.b16 %v5545
        %v5621 = vunpack.c.l.b16 %v5559
        %v5622 = vunpack.c.l.b16 %v5573
        %v5623 = vunpack.c.l.b16 %v5587
        %v5624 = vunpack.c.l.b16 %v5601
        %v5625 = vunpack.c.l.b16 %v5615
        %v5626 = vpack.c.b16 %v5619, %v5618
        %v5627 = vpack.c.b16 %v5621, %v5620
        %v5628 = vpack.c.b16 %v5623, %v5622
        %v5629 = vpack.c.b16 %v5625, %v5624
        %v5631 = vunpack.c.l.b16 %v5617
        %v5632 = vunpack.c.h.b16 %v5617
        %v5633 = vpack.c.b16 %v5631, %v5631
        %v5634 = vpack.c.b16 %v5632, %v5632
        %v5636 = vsel %vm1149, %v5626, 0
        %v5639 = vsel %vm1149, %v5627, 0
        %v5642 = vsel %vm1149, %v5628, 0
        %v5645 = vsel %vm1149, %v5629, 0
        %v5648 = vsel %vm1162, %v5633, 0
        %v5651 = vsel %vm1162, %v5634, 0
        %5653 = vmatprep.subr.bf16.mxu0 %v5651
        %5654 = vmatpush1.bf16.msra.mxu0 %v5648
        %5655 = vmatprep.subr.bf16.mxu0 0
        %5656 = vmatpush1.bf16.msra.mxu0 0
        %5657 = vmatprep.subr.bf16.mxu0 0
        %5658 = vmatpush1.bf16.msra.mxu0 0
        %5659 = vmatprep.subr.bf16.mxu0 0
        %5660 = vmatpush1.bf16.msra.mxu0 0
        %5661 = vmatprep.subr.bf16.mxu0 0
        %5662 = vmatpush1.bf16.msra.mxu0 0
        %5663 = vmatprep.subr.bf16.mxu0 0
        %5664 = vmatpush1.bf16.msra.mxu0 0
        %5665 = vmatprep.subr.bf16.mxu0 0
        %5666 = vmatpush1.bf16.msra.mxu0 0
        %5667 = vmatprep.subr.bf16.mxu0 0
        %5668 = vmatpush1.bf16.msra.mxu0 0
        %5669 = vmatprep.subr.bf16.mxu0 0
        %5670 = vmatpush1.bf16.msra.mxu0 0
        %5671 = vmatprep.subr.bf16.mxu0 0
        %5672 = vmatpush1.bf16.msra.mxu0 0
        %5673 = vmatprep.subr.bf16.mxu0 0
        %5674 = vmatpush1.bf16.msra.mxu0 0
        %5675 = vmatprep.subr.bf16.mxu0 0
        %5676 = vmatpush1.bf16.msra.mxu0 0
        %5677 = vmatprep.subr.bf16.mxu0 0
        %5678 = vmatpush1.bf16.msra.mxu0 0
        %5679 = vmatprep.subr.bf16.mxu0 0
        %5680 = vmatpush1.bf16.msra.mxu0 0
        %5681 = vmatprep.subr.bf16.mxu0 0
        %5682 = vmatpush1.bf16.msra.mxu0 0
        %5683 = vmatprep.subr.bf16.mxu0 0
        %5684 = vmatpush1.bf16.msra.mxu0 0
        %5685 = vmatprep.mubr.bf16.mxu0 0
        %5686 = vmatmul.mubr.bf16.gmra.mrb[0].mxu0 %v5636
        %v5687 = vpop.f32.mrb[0].mxu0
        %v5688 = vadd.f32 0.0, %v5687
        %v5689 = vpop.f32.mrb[0].mxu0
        %v5690 = vadd.f32 0.0, %v5689
        %v5691 = vpop.f32.mrb[0].mxu0
        %v5692 = vadd.f32 0.0, %v5691
        %v5693 = vpop.f32.mrb[0].mxu0
        %v5694 = vadd.f32 0.0, %v5693
        %5695 = vmatprep.mubr.bf16.mxu0 0
        %5696 = vmatmul.mubr.bf16.gmra.mrb[0].mxu0 %v5639
        %v5697 = vpop.f32.mrb[0].mxu0
        %v5698 = vadd.f32 0.0, %v5697
        %v5699 = vpop.f32.mrb[0].mxu0
        %v5700 = vadd.f32 0.0, %v5699
        %v5701 = vpop.f32.mrb[0].mxu0
        %v5702 = vadd.f32 0.0, %v5701
        %v5703 = vpop.f32.mrb[0].mxu0
        %v5704 = vadd.f32 0.0, %v5703
        %5705 = vmatprep.mubr.bf16.mxu0 0
        %5706 = vmatmul.mubr.bf16.gmra.mrb[0].mxu0 %v5642
        %v5707 = vpop.f32.mrb[0].mxu0
        %v5708 = vadd.f32 0.0, %v5707
        %v5709 = vpop.f32.mrb[0].mxu0
        %v5710 = vadd.f32 0.0, %v5709
        %v5711 = vpop.f32.mrb[0].mxu0
        %v5712 = vadd.f32 0.0, %v5711
        %v5713 = vpop.f32.mrb[0].mxu0
        %v5714 = vadd.f32 0.0, %v5713
        %5715 = vmatprep.mubr.bf16.mxu0 0
        %5716 = vmatmul.mubr.bf16.gmra.mrb[0].mxu0 %v5645
        %v5717 = vpop.f32.mrb[0].mxu0
        %v5718 = vadd.f32 0.0, %v5717
        %v5719 = vpop.f32.mrb[0].mxu0
        %v5720 = vadd.f32 0.0, %v5719
        %v5721 = vpop.f32.mrb[0].mxu0
        %v5722 = vadd.f32 0.0, %v5721
        %v5723 = vpop.f32.mrb[0].mxu0
        %v5724 = vadd.f32 0.0, %v5723
        %5725 = vdwg.mxu0
        %v5734 = vunpack.c.l.b16 %v5447
        %v5735 = vunpack.c.l.b16 %v5448
        %v5736 = vunpack.c.l.b16 %v5449
        %v5737 = vunpack.c.l.b16 %v5450
        %v5738 = vunpack.c.l.b16 %v5451
        %v5739 = vunpack.c.l.b16 %v5452
        %v5740 = vunpack.c.l.b16 %v5453
        %v5741 = vunpack.c.l.b16 %v5454
        %v5742 = vpack.c.b16 %v5735, %v5734
        %v5743 = vpack.c.b16 %v5737, %v5736
        %v5744 = vpack.c.b16 %v5739, %v5738
        %v5745 = vpack.c.b16 %v5741, %v5740
        %v5747 = vunpack.c.l.b16 %v5455
        %v5748 = vunpack.c.h.b16 %v5455
        %v5749 = vpack.c.b16 %v5747, %v5747
        %v5750 = vpack.c.b16 %v5748, %v5748
        %v5752 = vsel %vm1149, %v5742, 0
        %v5755 = vsel %vm1149, %v5743, 0
        %v5758 = vsel %vm1149, %v5744, 0
        %v5761 = vsel %vm1149, %v5745, 0
        %v5764 = vsel %vm1162, %v5749, 0
        %v5767 = vsel %vm1162, %v5750, 0
        %5769 = vmatprep.subr.bf16.mxu0 %v5767
        %5770 = vmatpush1.bf16.msra.mxu0 %v5764
        %5771 = vmatprep.subr.bf16.mxu0 0
        %5772 = vmatpush1.bf16.msra.mxu0 0
        %5773 = vmatprep.subr.bf16.mxu0 0
        %5774 = vmatpush1.bf16.msra.mxu0 0
        %5775 = vmatprep.subr.bf16.mxu0 0
        %5776 = vmatpush1.bf16.msra.mxu0 0
        %5777 = vmatprep.subr.bf16.mxu0 0
        %5778 = vmatpush1.bf16.msra.mxu0 0
        %5779 = vmatprep.subr.bf16.mxu0 0
        %5780 = vmatpush1.bf16.msra.mxu0 0
        %5781 = vmatprep.subr.bf16.mxu0 0
        %5782 = vmatpush1.bf16.msra.mxu0 0
        %5783 = vmatprep.subr.bf16.mxu0 0
        %5784 = vmatpush1.bf16.msra.mxu0 0
        %5785 = vmatprep.subr.bf16.mxu0 0
        %5786 = vmatpush1.bf16.msra.mxu0 0
        %5787 = vmatprep.subr.bf16.mxu0 0
        %5788 = vmatpush1.bf16.msra.mxu0 0
        %5789 = vmatprep.subr.bf16.mxu0 0
        %5790 = vmatpush1.bf16.msra.mxu0 0
        %5791 = vmatprep.subr.bf16.mxu0 0
        %5792 = vmatpush1.bf16.msra.mxu0 0
        %5793 = vmatprep.subr.bf16.mxu0 0
        %5794 = vmatpush1.bf16.msra.mxu0 0
        %5795 = vmatprep.subr.bf16.mxu0 0
        %5796 = vmatpush1.bf16.msra.mxu0 0
        %5797 = vmatprep.subr.bf16.mxu0 0
        %5798 = vmatpush1.bf16.msra.mxu0 0
        %5799 = vmatprep.subr.bf16.mxu0 0
        %5800 = vmatpush1.bf16.msra.mxu0 0
        %5801 = vmatprep.mubr.bf16.mxu0 0
        %5802 = vmatmul.mubr.bf16.gmra.mrb[0].mxu0 %v5752
        %v5803 = vpop.f32.mrb[0].mxu0
        %v5804 = vadd.f32 %v5688, %v5803
        %v5805 = vpop.f32.mrb[0].mxu0
        %v5806 = vadd.f32 %v5690, %v5805
        %v5807 = vpop.f32.mrb[0].mxu0
        %v5808 = vadd.f32 %v5692, %v5807
        %v5809 = vpop.f32.mrb[0].mxu0
        %v5810 = vadd.f32 %v5694, %v5809
        %5811 = vmatprep.mubr.bf16.mxu0 0
        %5812 = vmatmul.mubr.bf16.gmra.mrb[0].mxu0 %v5755
        %v5813 = vpop.f32.mrb[0].mxu0
        %v5814 = vadd.f32 %v5698, %v5813
        %v5815 = vpop.f32.mrb[0].mxu0
        %v5816 = vadd.f32 %v5700, %v5815
        %v5817 = vpop.f32.mrb[0].mxu0
        %v5818 = vadd.f32 %v5702, %v5817
        %v5819 = vpop.f32.mrb[0].mxu0
        %v5820 = vadd.f32 %v5704, %v5819
        %5821 = vmatprep.mubr.bf16.mxu0 0
        %5822 = vmatmul.mubr.bf16.gmra.mrb[0].mxu0 %v5758
        %v5823 = vpop.f32.mrb[0].mxu0
        %v5824 = vadd.f32 %v5708, %v5823
        %v5825 = vpop.f32.mrb[0].mxu0
        %v5826 = vadd.f32 %v5710, %v5825
        %v5827 = vpop.f32.mrb[0].mxu0
        %v5828 = vadd.f32 %v5712, %v5827
        %v5829 = vpop.f32.mrb[0].mxu0
        %v5830 = vadd.f32 %v5714, %v5829
        %5831 = vmatprep.mubr.bf16.mxu0 0
        %5832 = vmatmul.mubr.bf16.gmra.mrb[0].mxu0 %v5761
        %v5833 = vpop.f32.mrb[0].mxu0
        %v5834 = vadd.f32 %v5718, %v5833
        %v5835 = vpop.f32.mrb[0].mxu0
        %v5836 = vadd.f32 %v5720, %v5835
        %v5837 = vpop.f32.mrb[0].mxu0
        %v5838 = vadd.f32 %v5722, %v5837
        %v5839 = vpop.f32.mrb[0].mxu0
        %v5840 = vadd.f32 %v5724, %v5839
        %5841 = vdwg.mxu0
        %v5842 = vrot.slane %v5488, 5
        %v5843 = vrot.slane %v5842, 4
        %v5844 = vrot.slane %v5489, 5
        %v5845 = vsel %vm1333, %v5843, %v5844
        %v5846 = vrot.slane %v5490, 5
        %v5847 = vrot.slane %v5846, 4
        %v5848 = vrot.slane %v5491, 5
        %v5849 = vsel %vm1333, %v5847, %v5848
        %v5850 = vrot.slane %v5492, 5
        %v5851 = vrot.slane %v5850, 4
        %v5852 = vrot.slane %v5493, 5
        %v5853 = vsel %vm1333, %v5851, %v5852
        %v5854 = vrot.slane %v5494, 5
        %v5855 = vrot.slane %v5854, 4
        %v5856 = vrot.slane %v5495, 5
        %v5857 = vsel %vm1333, %v5855, %v5856
        %v5858 = vrot.slane %v5496, 5
        %v5859 = vrot.slane %v5858, 4
        %v5860 = vrot.slane %v5497, 5
        %v5861 = vsel %vm1333, %v5859, %v5860
        %v5862 = vrot.slane %v5498, 5
        %v5863 = vrot.slane %v5862, 4
        %v5864 = vrot.slane %v5499, 5
        %v5865 = vsel %vm1333, %v5863, %v5864
        %v5866 = vrot.slane %v5500, 5
        %v5867 = vrot.slane %v5866, 4
        %v5868 = vrot.slane %v5501, 5
        %v5869 = vsel %vm1333, %v5867, %v5868
        %v5870 = vrot.slane %v5502, 5
        %v5871 = vrot.slane %v5870, 4
        %v5872 = vrot.slane %v5503, 5
        %v5873 = vsel %vm1333, %v5871, %v5872
        %s5874 = scalar_lea.vmem %s17, 16
        %v5875 = vld [vmem:[%s5874] sm:$0xff]
        %v5876 = vunpack.c.l.b16 %v5845
        %v5877 = vunpack.c.l.b16 %v5849
        %v5878 = vunpack.c.l.b16 %v5853
        %v5879 = vunpack.c.l.b16 %v5857
        %v5880 = vunpack.c.l.b16 %v5861
        %v5881 = vunpack.c.l.b16 %v5865
        %v5882 = vunpack.c.l.b16 %v5869
        %v5883 = vunpack.c.l.b16 %v5873
        %v5884 = vpack.c.b16 %v5877, %v5876
        %v5885 = vpack.c.b16 %v5879, %v5878
        %v5886 = vpack.c.b16 %v5881, %v5880
        %v5887 = vpack.c.b16 %v5883, %v5882
        %v5889 = vunpack.c.l.b16 %v5875
        %v5890 = vunpack.c.h.b16 %v5875
        %v5891 = vpack.c.b16 %v5889, %v5889
        %v5892 = vpack.c.b16 %v5890, %v5890
        %v5894 = vsel %vm1149, %v5884, 0
        %v5897 = vsel %vm1149, %v5885, 0
        %v5900 = vsel %vm1149, %v5886, 0
        %v5903 = vsel %vm1149, %v5887, 0
        %v5906 = vsel %vm1162, %v5891, 0
        %v5909 = vsel %vm1162, %v5892, 0
        %5911 = vmatprep.subr.bf16.mxu0 %v5909
        %5912 = vmatpush1.bf16.msra.mxu0 %v5906
        %5913 = vmatprep.subr.bf16.mxu0 0
        %5914 = vmatpush1.bf16.msra.mxu0 0
        %5915 = vmatprep.subr.bf16.mxu0 0
        %5916 = vmatpush1.bf16.msra.mxu0 0
        %5917 = vmatprep.subr.bf16.mxu0 0
        %5918 = vmatpush1.bf16.msra.mxu0 0
        %5919 = vmatprep.subr.bf16.mxu0 0
        %5920 = vmatpush1.bf16.msra.mxu0 0
        %5921 = vmatprep.subr.bf16.mxu0 0
        %5922 = vmatpush1.bf16.msra.mxu0 0
        %5923 = vmatprep.subr.bf16.mxu0 0
        %5924 = vmatpush1.bf16.msra.mxu0 0
        %5925 = vmatprep.subr.bf16.mxu0 0
        %5926 = vmatpush1.bf16.msra.mxu0 0
        %5927 = vmatprep.subr.bf16.mxu0 0
        %5928 = vmatpush1.bf16.msra.mxu0 0
        %5929 = vmatprep.subr.bf16.mxu0 0
        %5930 = vmatpush1.bf16.msra.mxu0 0
        %5931 = vmatprep.subr.bf16.mxu0 0
        %5932 = vmatpush1.bf16.msra.mxu0 0
        %5933 = vmatprep.subr.bf16.mxu0 0
        %5934 = vmatpush1.bf16.msra.mxu0 0
        %5935 = vmatprep.subr.bf16.mxu0 0
        %5936 = vmatpush1.bf16.msra.mxu0 0
        %5937 = vmatprep.subr.bf16.mxu0 0
        %5938 = vmatpush1.bf16.msra.mxu0 0
        %5939 = vmatprep.subr.bf16.mxu0 0
        %5940 = vmatpush1.bf16.msra.mxu0 0
        %5941 = vmatprep.subr.bf16.mxu0 0
        %5942 = vmatpush1.bf16.msra.mxu0 0
        %5943 = vmatprep.mubr.bf16.mxu0 0
        %5944 = vmatmul.mubr.bf16.gmra.mrb[0].mxu0 %v5894
        %v5945 = vpop.f32.mrb[0].mxu0
        %v5946 = vadd.f32 0.0, %v5945
        %v5947 = vpop.f32.mrb[0].mxu0
        %v5948 = vadd.f32 0.0, %v5947
        %v5949 = vpop.f32.mrb[0].mxu0
        %v5950 = vadd.f32 0.0, %v5949
        %v5951 = vpop.f32.mrb[0].mxu0
        %v5952 = vadd.f32 0.0, %v5951
        %5953 = vmatprep.mubr.bf16.mxu0 0
        %5954 = vmatmul.mubr.bf16.gmra.mrb[0].mxu0 %v5897
        %v5955 = vpop.f32.mrb[0].mxu0
        %v5956 = vadd.f32 0.0, %v5955
        %v5957 = vpop.f32.mrb[0].mxu0
        %v5958 = vadd.f32 0.0, %v5957
        %v5959 = vpop.f32.mrb[0].mxu0
        %v5960 = vadd.f32 0.0, %v5959
        %v5961 = vpop.f32.mrb[0].mxu0
        %v5962 = vadd.f32 0.0, %v5961
        %5963 = vmatprep.mubr.bf16.mxu0 0
        %5964 = vmatmul.mubr.bf16.gmra.mrb[0].mxu0 %v5900
        %v5965 = vpop.f32.mrb[0].mxu0
        %v5966 = vadd.f32 0.0, %v5965
        %v5967 = vpop.f32.mrb[0].mxu0
        %v5968 = vadd.f32 0.0, %v5967
        %v5969 = vpop.f32.mrb[0].mxu0
        %v5970 = vadd.f32 0.0, %v5969
        %v5971 = vpop.f32.mrb[0].mxu0
        %v5972 = vadd.f32 0.0, %v5971
        %5973 = vmatprep.mubr.bf16.mxu0 0
        %5974 = vmatmul.mubr.bf16.gmra.mrb[0].mxu0 %v5903
        %v5975 = vpop.f32.mrb[0].mxu0
        %v5976 = vadd.f32 0.0, %v5975
        %v5977 = vpop.f32.mrb[0].mxu0
        %v5978 = vadd.f32 0.0, %v5977
        %v5979 = vpop.f32.mrb[0].mxu0
        %v5980 = vadd.f32 0.0, %v5979
        %v5981 = vpop.f32.mrb[0].mxu0
        %v5982 = vadd.f32 0.0, %v5981
        %5983 = vdwg.mxu0
        %v5984 = vadd.f32 %v5804, %v5946
        %v5985 = vadd.f32 %v5806, %v5948
        %v5986 = vadd.f32 %v5808, %v5950
        %v5987 = vadd.f32 %v5810, %v5952
        %v5988 = vadd.f32 %v5814, %v5956
        %v5989 = vadd.f32 %v5816, %v5958
        %v5990 = vadd.f32 %v5818, %v5960
        %v5991 = vadd.f32 %v5820, %v5962
        %v5992 = vadd.f32 %v5824, %v5966
        %v5993 = vadd.f32 %v5826, %v5968
        %v5994 = vadd.f32 %v5828, %v5970
        %v5995 = vadd.f32 %v5830, %v5972
        %v5996 = vadd.f32 %v5834, %v5976
        %v5997 = vadd.f32 %v5836, %v5978
        %v5998 = vadd.f32 %v5838, %v5980
        %v5999 = vadd.f32 %v5840, %v5982
        %v6000 = vrot.slane %v5505, 5
        %v6001 = vrot.slane %v5508, 6
        %v6002 = vor.u32 %v6000, %v6001
        %v6003 = vrot.slane %v6002, 4
        %v6004 = vshrl.u32 %v5489, 16
        %v6006 = vrot.slane %v6004, 5
        %v6007 = vrot.slane %v5514, 6
        %v6008 = vor.u32 %v6006, %v6007
        %v6009 = vsel %vm1470, %v6003, %v6008
        %v6010 = vrot.slane %v5519, 5
        %v6011 = vrot.slane %v5522, 6
        %v6012 = vor.u32 %v6010, %v6011
        %v6013 = vrot.slane %v6012, 4
        %v6014 = vshrl.u32 %v5491, 16
        %v6016 = vrot.slane %v6014, 5
        %v6017 = vrot.slane %v5528, 6
        %v6018 = vor.u32 %v6016, %v6017
        %v6019 = vsel %vm1470, %v6013, %v6018
        %v6020 = vrot.slane %v5533, 5
        %v6021 = vrot.slane %v5536, 6
        %v6022 = vor.u32 %v6020, %v6021
        %v6023 = vrot.slane %v6022, 4
        %v6024 = vshrl.u32 %v5493, 16
        %v6026 = vrot.slane %v6024, 5
        %v6027 = vrot.slane %v5542, 6
        %v6028 = vor.u32 %v6026, %v6027
        %v6029 = vsel %vm1470, %v6023, %v6028
        %v6030 = vrot.slane %v5547, 5
        %v6031 = vrot.slane %v5550, 6
        %v6032 = vor.u32 %v6030, %v6031
        %v6033 = vrot.slane %v6032, 4
        %v6034 = vshrl.u32 %v5495, 16
        %v6036 = vrot.slane %v6034, 5
        %v6037 = vrot.slane %v5556, 6
        %v6038 = vor.u32 %v6036, %v6037
        %v6039 = vsel %vm1470, %v6033, %v6038
        %v6040 = vrot.slane %v5561, 5
        %v6041 = vrot.slane %v5564, 6
        %v6042 = vor.u32 %v6040, %v6041
        %v6043 = vrot.slane %v6042, 4
        %v6044 = vshrl.u32 %v5497, 16
        %v6046 = vrot.slane %v6044, 5
        %v6047 = vrot.slane %v5570, 6
        %v6048 = vor.u32 %v6046, %v6047
        %v6049 = vsel %vm1470, %v6043, %v6048
        %v6050 = vrot.slane %v5575, 5
        %v6051 = vrot.slane %v5578, 6
        %v6052 = vor.u32 %v6050, %v6051
        %v6053 = vrot.slane %v6052, 4
        %v6054 = vshrl.u32 %v5499, 16
        %v6056 = vrot.slane %v6054, 5
        %v6057 = vrot.slane %v5584, 6
        %v6058 = vor.u32 %v6056, %v6057
        %v6059 = vsel %vm1470, %v6053, %v6058
        %v6060 = vrot.slane %v5589, 5
        %v6061 = vrot.slane %v5592, 6
        %v6062 = vor.u32 %v6060, %v6061
        %v6063 = vrot.slane %v6062, 4
        %v6064 = vshrl.u32 %v5501, 16
        %v6066 = vrot.slane %v6064, 5
        %v6067 = vrot.slane %v5598, 6
        %v6068 = vor.u32 %v6066, %v6067
        %v6069 = vsel %vm1470, %v6063, %v6068
        %v6070 = vrot.slane %v5603, 5
        %v6071 = vrot.slane %v5606, 6
        %v6072 = vor.u32 %v6070, %v6071
        %v6073 = vrot.slane %v6072, 4
        %v6074 = vshrl.u32 %v5503, 16
        %v6076 = vrot.slane %v6074, 5
        %v6077 = vrot.slane %v5612, 6
        %v6078 = vor.u32 %v6076, %v6077
        %v6079 = vsel %vm1470, %v6073, %v6078
        %s6080 = scalar_lea.vmem %s17, 24
        %v6081 = vld [vmem:[%s6080] sm:$0xff]
        %v6082 = vunpack.c.l.b16 %v6009
        %v6083 = vunpack.c.l.b16 %v6019
        %v6084 = vunpack.c.l.b16 %v6029
        %v6085 = vunpack.c.l.b16 %v6039
        %v6086 = vunpack.c.l.b16 %v6049
        %v6087 = vunpack.c.l.b16 %v6059
        %v6088 = vunpack.c.l.b16 %v6069
        %v6089 = vunpack.c.l.b16 %v6079
        %v6090 = vpack.c.b16 %v6083, %v6082
        %v6091 = vpack.c.b16 %v6085, %v6084
        %v6092 = vpack.c.b16 %v6087, %v6086
        %v6093 = vpack.c.b16 %v6089, %v6088
        %v6095 = vunpack.c.l.b16 %v6081
        %v6096 = vunpack.c.h.b16 %v6081
        %v6097 = vpack.c.b16 %v6095, %v6095
        %v6098 = vpack.c.b16 %v6096, %v6096
        %v6100 = vsel %vm1149, %v6090, 0
        %v6103 = vsel %vm1149, %v6091, 0
        %v6106 = vsel %vm1149, %v6092, 0
        %v6109 = vsel %vm1149, %v6093, 0
        %v6112 = vsel %vm1162, %v6097, 0
        %v6115 = vsel %vm1162, %v6098, 0
        %6117 = vmatprep.subr.bf16.mxu0 %v6115
        %6118 = vmatpush1.bf16.msra.mxu0 %v6112
        %6119 = vmatprep.subr.bf16.mxu0 0
        %6120 = vmatpush1.bf16.msra.mxu0 0
        %6121 = vmatprep.subr.bf16.mxu0 0
        %6122 = vmatpush1.bf16.msra.mxu0 0
        %6123 = vmatprep.subr.bf16.mxu0 0
        %6124 = vmatpush1.bf16.msra.mxu0 0
        %6125 = vmatprep.subr.bf16.mxu0 0
        %6126 = vmatpush1.bf16.msra.mxu0 0
        %6127 = vmatprep.subr.bf16.mxu0 0
        %6128 = vmatpush1.bf16.msra.mxu0 0
        %6129 = vmatprep.subr.bf16.mxu0 0
        %6130 = vmatpush1.bf16.msra.mxu0 0
        %6131 = vmatprep.subr.bf16.mxu0 0
        %6132 = vmatpush1.bf16.msra.mxu0 0
        %6133 = vmatprep.subr.bf16.mxu0 0
        %6134 = vmatpush1.bf16.msra.mxu0 0
        %6135 = vmatprep.subr.bf16.mxu0 0
        %6136 = vmatpush1.bf16.msra.mxu0 0
        %6137 = vmatprep.subr.bf16.mxu0 0
        %6138 = vmatpush1.bf16.msra.mxu0 0
        %6139 = vmatprep.subr.bf16.mxu0 0
        %6140 = vmatpush1.bf16.msra.mxu0 0
        %6141 = vmatprep.subr.bf16.mxu0 0
        %6142 = vmatpush1.bf16.msra.mxu0 0
        %6143 = vmatprep.subr.bf16.mxu0 0
        %6144 = vmatpush1.bf16.msra.mxu0 0
        %6145 = vmatprep.subr.bf16.mxu0 0
        %6146 = vmatpush1.bf16.msra.mxu0 0
        %6147 = vmatprep.subr.bf16.mxu0 0
        %6148 = vmatpush1.bf16.msra.mxu0 0
        %6149 = vmatprep.mubr.bf16.mxu0 0
        %6150 = vmatmul.mubr.bf16.gmra.mrb[0].mxu0 %v6100
        %v6151 = vpop.f32.mrb[0].mxu0
        %v6152 = vadd.f32 0.0, %v6151
        %v6153 = vpop.f32.mrb[0].mxu0
        %v6154 = vadd.f32 0.0, %v6153
        %v6155 = vpop.f32.mrb[0].mxu0
        %v6156 = vadd.f32 0.0, %v6155
        %v6157 = vpop.f32.mrb[0].mxu0
        %v6158 = vadd.f32 0.0, %v6157
        %6159 = vmatprep.mubr.bf16.mxu0 0
        %6160 = vmatmul.mubr.bf16.gmra.mrb[0].mxu0 %v6103
        %v6161 = vpop.f32.mrb[0].mxu0
        %v6162 = vadd.f32 0.0, %v6161
        %v6163 = vpop.f32.mrb[0].mxu0
        %v6164 = vadd.f32 0.0, %v6163
        %v6165 = vpop.f32.mrb[0].mxu0
        %v6166 = vadd.f32 0.0, %v6165
        %v6167 = vpop.f32.mrb[0].mxu0
        %v6168 = vadd.f32 0.0, %v6167
        %6169 = vmatprep.mubr.bf16.mxu0 0
        %6170 = vmatmul.mubr.bf16.gmra.mrb[0].mxu0 %v6106
        %v6171 = vpop.f32.mrb[0].mxu0
        %v6172 = vadd.f32 0.0, %v6171
        %v6173 = vpop.f32.mrb[0].mxu0
        %v6174 = vadd.f32 0.0, %v6173
        %v6175 = vpop.f32.mrb[0].mxu0
        %v6176 = vadd.f32 0.0, %v6175
        %v6177 = vpop.f32.mrb[0].mxu0
        %v6178 = vadd.f32 0.0, %v6177
        %6179 = vmatprep.mubr.bf16.mxu0 0
        %6180 = vmatmul.mubr.bf16.gmra.mrb[0].mxu0 %v6109
        %v6181 = vpop.f32.mrb[0].mxu0
        %v6182 = vadd.f32 0.0, %v6181
        %v6183 = vpop.f32.mrb[0].mxu0
        %v6184 = vadd.f32 0.0, %v6183
        %v6185 = vpop.f32.mrb[0].mxu0
        %v6186 = vadd.f32 0.0, %v6185
        %v6187 = vpop.f32.mrb[0].mxu0
        %v6188 = vadd.f32 0.0, %v6187
        %6189 = vdwg.mxu0
        %v6190 = vadd.f32 %v5984, %v6152
        %v6191 = vadd.f32 %v5985, %v6154
        %v6192 = vadd.f32 %v5986, %v6156
        %v6193 = vadd.f32 %v5987, %v6158
        %v6194 = vadd.f32 %v5988, %v6162
        %v6195 = vadd.f32 %v5989, %v6164
        %v6196 = vadd.f32 %v5990, %v6166
        %v6197 = vadd.f32 %v5991, %v6168
        %v6198 = vadd.f32 %v5992, %v6172
        %v6199 = vadd.f32 %v5993, %v6174
        %v6200 = vadd.f32 %v5994, %v6176
        %v6201 = vadd.f32 %v5995, %v6178
        %v6202 = vadd.f32 %v5996, %v6182
        %v6203 = vadd.f32 %v5997, %v6184
        %v6204 = vadd.f32 %v5998, %v6186
        %v6205 = vadd.f32 %v5999, %v6188
        %v6206 = vrot.slane %v5488, 6
        %v6207 = vrot.slane %v6206, 4
        %v6208 = vrot.slane %v5489, 6
        %v6209 = vsel %vm1655, %v6207, %v6208
        %v6210 = vrot.slane %v5490, 6
        %v6211 = vrot.slane %v6210, 4
        %v6212 = vrot.slane %v5491, 6
        %v6213 = vsel %vm1655, %v6211, %v6212
        %v6214 = vrot.slane %v5492, 6
        %v6215 = vrot.slane %v6214, 4
        %v6216 = vrot.slane %v5493, 6
        %v6217 = vsel %vm1655, %v6215, %v6216
        %v6218 = vrot.slane %v5494, 6
        %v6219 = vrot.slane %v6218, 4
        %v6220 = vrot.slane %v5495, 6
        %v6221 = vsel %vm1655, %v6219, %v6220
        %v6222 = vrot.slane %v5496, 6
        %v6223 = vrot.slane %v6222, 4
        %v6224 = vrot.slane %v5497, 6
        %v6225 = vsel %vm1655, %v6223, %v6224
        %v6226 = vrot.slane %v5498, 6
        %v6227 = vrot.slane %v6226, 4
        %v6228 = vrot.slane %v5499, 6
        %v6229 = vsel %vm1655, %v6227, %v6228
        %v6230 = vrot.slane %v5500, 6
        %v6231 = vrot.slane %v6230, 4
        %v6232 = vrot.slane %v5501, 6
        %v6233 = vsel %vm1655, %v6231, %v6232
        %v6234 = vrot.slane %v5502, 6
        %v6235 = vrot.slane %v6234, 4
        %v6236 = vrot.slane %v5503, 6
        %v6237 = vsel %vm1655, %v6235, %v6236
        %s6238 = scalar_lea.vmem %s17, 32
        %v6239 = vld [vmem:[%s6238] sm:$0xff]
        %v6240 = vunpack.c.l.b16 %v6209
        %v6241 = vunpack.c.l.b16 %v6213
        %v6242 = vunpack.c.l.b16 %v6217
        %v6243 = vunpack.c.l.b16 %v6221
        %v6244 = vunpack.c.l.b16 %v6225
        %v6245 = vunpack.c.l.b16 %v6229
        %v6246 = vunpack.c.l.b16 %v6233
        %v6247 = vunpack.c.l.b16 %v6237
        %v6248 = vpack.c.b16 %v6241, %v6240
        %v6249 = vpack.c.b16 %v6243, %v6242
        %v6250 = vpack.c.b16 %v6245, %v6244
        %v6251 = vpack.c.b16 %v6247, %v6246
        %v6253 = vunpack.c.l.b16 %v6239
        %v6254 = vunpack.c.h.b16 %v6239
        %v6255 = vpack.c.b16 %v6253, %v6253
        %v6256 = vpack.c.b16 %v6254, %v6254
        %v6258 = vsel %vm1149, %v6248, 0
        %v6261 = vsel %vm1149, %v6249, 0
        %v6264 = vsel %vm1149, %v6250, 0
        %v6267 = vsel %vm1149, %v6251, 0
        %v6270 = vsel %vm1162, %v6255, 0
        %v6273 = vsel %vm1162, %v6256, 0
        %6275 = vmatprep.subr.bf16.mxu0 %v6273
        %6276 = vmatpush1.bf16.msra.mxu0 %v6270
        %6277 = vmatprep.subr.bf16.mxu0 0
        %6278 = vmatpush1.bf16.msra.mxu0 0
        %6279 = vmatprep.subr.bf16.mxu0 0
        %6280 = vmatpush1.bf16.msra.mxu0 0
        %6281 = vmatprep.subr.bf16.mxu0 0
        %6282 = vmatpush1.bf16.msra.mxu0 0
        %6283 = vmatprep.subr.bf16.mxu0 0
        %6284 = vmatpush1.bf16.msra.mxu0 0
        %6285 = vmatprep.subr.bf16.mxu0 0
        %6286 = vmatpush1.bf16.msra.mxu0 0
        %6287 = vmatprep.subr.bf16.mxu0 0
        %6288 = vmatpush1.bf16.msra.mxu0 0
        %6289 = vmatprep.subr.bf16.mxu0 0
        %6290 = vmatpush1.bf16.msra.mxu0 0
        %6291 = vmatprep.subr.bf16.mxu0 0
        %6292 = vmatpush1.bf16.msra.mxu0 0
        %6293 = vmatprep.subr.bf16.mxu0 0
        %6294 = vmatpush1.bf16.msra.mxu0 0
        %6295 = vmatprep.subr.bf16.mxu0 0
        %6296 = vmatpush1.bf16.msra.mxu0 0
        %6297 = vmatprep.subr.bf16.mxu0 0
        %6298 = vmatpush1.bf16.msra.mxu0 0
        %6299 = vmatprep.subr.bf16.mxu0 0
        %6300 = vmatpush1.bf16.msra.mxu0 0
        %6301 = vmatprep.subr.bf16.mxu0 0
        %6302 = vmatpush1.bf16.msra.mxu0 0
        %6303 = vmatprep.subr.bf16.mxu0 0
        %6304 = vmatpush1.bf16.msra.mxu0 0
        %6305 = vmatprep.subr.bf16.mxu0 0
        %6306 = vmatpush1.bf16.msra.mxu0 0
        %6307 = vmatprep.mubr.bf16.mxu0 0
        %6308 = vmatmul.mubr.bf16.gmra.mrb[0].mxu0 %v6258
        %v6309 = vpop.f32.mrb[0].mxu0
        %v6310 = vadd.f32 0.0, %v6309
        %v6311 = vpop.f32.mrb[0].mxu0
        %v6312 = vadd.f32 0.0, %v6311
        %v6313 = vpop.f32.mrb[0].mxu0
        %v6314 = vadd.f32 0.0, %v6313
        %v6315 = vpop.f32.mrb[0].mxu0
        %v6316 = vadd.f32 0.0, %v6315
        %6317 = vmatprep.mubr.bf16.mxu0 0
        %6318 = vmatmul.mubr.bf16.gmra.mrb[0].mxu0 %v6261
        %v6319 = vpop.f32.mrb[0].mxu0
        %v6320 = vadd.f32 0.0, %v6319
        %v6321 = vpop.f32.mrb[0].mxu0
        %v6322 = vadd.f32 0.0, %v6321
        %v6323 = vpop.f32.mrb[0].mxu0
        %v6324 = vadd.f32 0.0, %v6323
        %v6325 = vpop.f32.mrb[0].mxu0
        %v6326 = vadd.f32 0.0, %v6325
        %6327 = vmatprep.mubr.bf16.mxu0 0
        %6328 = vmatmul.mubr.bf16.gmra.mrb[0].mxu0 %v6264
        %v6329 = vpop.f32.mrb[0].mxu0
        %v6330 = vadd.f32 0.0, %v6329
        %v6331 = vpop.f32.mrb[0].mxu0
        %v6332 = vadd.f32 0.0, %v6331
        %v6333 = vpop.f32.mrb[0].mxu0
        %v6334 = vadd.f32 0.0, %v6333
        %v6335 = vpop.f32.mrb[0].mxu0
        %v6336 = vadd.f32 0.0, %v6335
        %6337 = vmatprep.mubr.bf16.mxu0 0
        %6338 = vmatmul.mubr.bf16.gmra.mrb[0].mxu0 %v6267
        %v6339 = vpop.f32.mrb[0].mxu0
        %v6340 = vadd.f32 0.0, %v6339
        %v6341 = vpop.f32.mrb[0].mxu0
        %v6342 = vadd.f32 0.0, %v6341
        %v6343 = vpop.f32.mrb[0].mxu0
        %v6344 = vadd.f32 0.0, %v6343
        %v6345 = vpop.f32.mrb[0].mxu0
        %v6346 = vadd.f32 0.0, %v6345
        %6347 = vdwg.mxu0
        %v6348 = vadd.f32 %v6190, %v6310
        %v6349 = vadd.f32 %v6191, %v6312
        %v6350 = vadd.f32 %v6192, %v6314
        %v6351 = vadd.f32 %v6193, %v6316
        %v6352 = vadd.f32 %v6194, %v6320
        %v6353 = vadd.f32 %v6195, %v6322
        %v6354 = vadd.f32 %v6196, %v6324
        %v6355 = vadd.f32 %v6197, %v6326
        %v6356 = vadd.f32 %v6198, %v6330
        %v6357 = vadd.f32 %v6199, %v6332
        %v6358 = vadd.f32 %v6200, %v6334
        %v6359 = vadd.f32 %v6201, %v6336
        %v6360 = vadd.f32 %v6202, %v6340
        %v6361 = vadd.f32 %v6203, %v6342
        %v6362 = vadd.f32 %v6204, %v6344
        %v6363 = vadd.f32 %v6205, %v6346
        %v6364 = vrot.slane %v5505, 6
        %v6365 = vrot.slane %v5508, 7
        %v6366 = vor.u32 %v6364, %v6365
        %v6367 = vrot.slane %v6366, 4
        %v6368 = vrot.slane %v6004, 6
        %v6369 = vrot.slane %v5514, 7
        %v6370 = vor.u32 %v6368, %v6369
        %v6371 = vsel %vm1792, %v6367, %v6370
        %v6372 = vrot.slane %v5519, 6
        %v6373 = vrot.slane %v5522, 7
        %v6374 = vor.u32 %v6372, %v6373
        %v6375 = vrot.slane %v6374, 4
        %v6376 = vrot.slane %v6014, 6
        %v6377 = vrot.slane %v5528, 7
        %v6378 = vor.u32 %v6376, %v6377
        %v6379 = vsel %vm1792, %v6375, %v6378
        %v6380 = vrot.slane %v5533, 6
        %v6381 = vrot.slane %v5536, 7
        %v6382 = vor.u32 %v6380, %v6381
        %v6383 = vrot.slane %v6382, 4
        %v6384 = vrot.slane %v6024, 6
        %v6385 = vrot.slane %v5542, 7
        %v6386 = vor.u32 %v6384, %v6385
        %v6387 = vsel %vm1792, %v6383, %v6386
        %v6388 = vrot.slane %v5547, 6
        %v6389 = vrot.slane %v5550, 7
        %v6390 = vor.u32 %v6388, %v6389
        %v6391 = vrot.slane %v6390, 4
        %v6392 = vrot.slane %v6034, 6
        %v6393 = vrot.slane %v5556, 7
        %v6394 = vor.u32 %v6392, %v6393
        %v6395 = vsel %vm1792, %v6391, %v6394
        %v6396 = vrot.slane %v5561, 6
        %v6397 = vrot.slane %v5564, 7
        %v6398 = vor.u32 %v6396, %v6397
        %v6399 = vrot.slane %v6398, 4
        %v6400 = vrot.slane %v6044, 6
        %v6401 = vrot.slane %v5570, 7
        %v6402 = vor.u32 %v6400, %v6401
        %v6403 = vsel %vm1792, %v6399, %v6402
        %v6404 = vrot.slane %v5575, 6
        %v6405 = vrot.slane %v5578, 7
        %v6406 = vor.u32 %v6404, %v6405
        %v6407 = vrot.slane %v6406, 4
        %v6408 = vrot.slane %v6054, 6
        %v6409 = vrot.slane %v5584, 7
        %v6410 = vor.u32 %v6408, %v6409
        %v6411 = vsel %vm1792, %v6407, %v6410
        %v6412 = vrot.slane %v5589, 6
        %v6413 = vrot.slane %v5592, 7
        %v6414 = vor.u32 %v6412, %v6413
        %v6415 = vrot.slane %v6414, 4
        %v6416 = vrot.slane %v6064, 6
        %v6417 = vrot.slane %v5598, 7
        %v6418 = vor.u32 %v6416, %v6417
        %v6419 = vsel %vm1792, %v6415, %v6418
        %v6420 = vrot.slane %v5603, 6
        %v6421 = vrot.slane %v5606, 7
        %v6422 = vor.u32 %v6420, %v6421
        %v6423 = vrot.slane %v6422, 4
        %v6424 = vrot.slane %v6074, 6
        %v6425 = vrot.slane %v5612, 7
        %v6426 = vor.u32 %v6424, %v6425
        %v6427 = vsel %vm1792, %v6423, %v6426
        %s6428 = scalar_lea.vmem %s17, 40
        %v6429 = vld [vmem:[%s6428] sm:$0xff]
        %v6430 = vunpack.c.l.b16 %v6371
        %v6431 = vunpack.c.l.b16 %v6379
        %v6432 = vunpack.c.l.b16 %v6387
        %v6433 = vunpack.c.l.b16 %v6395
        %v6434 = vunpack.c.l.b16 %v6403
        %v6435 = vunpack.c.l.b16 %v6411
        %v6436 = vunpack.c.l.b16 %v6419
        %v6437 = vunpack.c.l.b16 %v6427
        %v6438 = vpack.c.b16 %v6431, %v6430
        %v6439 = vpack.c.b16 %v6433, %v6432
        %v6440 = vpack.c.b16 %v6435, %v6434
        %v6441 = vpack.c.b16 %v6437, %v6436
        %v6443 = vunpack.c.l.b16 %v6429
        %v6444 = vunpack.c.h.b16 %v6429
        %v6445 = vpack.c.b16 %v6443, %v6443
        %v6446 = vpack.c.b16 %v6444, %v6444
        %v6448 = vsel %vm1149, %v6438, 0
        %v6451 = vsel %vm1149, %v6439, 0
        %v6454 = vsel %vm1149, %v6440, 0
        %v6457 = vsel %vm1149, %v6441, 0
        %v6460 = vsel %vm1162, %v6445, 0
        %v6463 = vsel %vm1162, %v6446, 0
        %6465 = vmatprep.subr.bf16.mxu0 %v6463
        %6466 = vmatpush1.bf16.msra.mxu0 %v6460
        %6467 = vmatprep.subr.bf16.mxu0 0
        %6468 = vmatpush1.bf16.msra.mxu0 0
        %6469 = vmatprep.subr.bf16.mxu0 0
        %6470 = vmatpush1.bf16.msra.mxu0 0
        %6471 = vmatprep.subr.bf16.mxu0 0
        %6472 = vmatpush1.bf16.msra.mxu0 0
        %6473 = vmatprep.subr.bf16.mxu0 0
        %6474 = vmatpush1.bf16.msra.mxu0 0
        %6475 = vmatprep.subr.bf16.mxu0 0
        %6476 = vmatpush1.bf16.msra.mxu0 0
        %6477 = vmatprep.subr.bf16.mxu0 0
        %6478 = vmatpush1.bf16.msra.mxu0 0
        %6479 = vmatprep.subr.bf16.mxu0 0
        %6480 = vmatpush1.bf16.msra.mxu0 0
        %6481 = vmatprep.subr.bf16.mxu0 0
        %6482 = vmatpush1.bf16.msra.mxu0 0
        %6483 = vmatprep.subr.bf16.mxu0 0
        %6484 = vmatpush1.bf16.msra.mxu0 0
        %6485 = vmatprep.subr.bf16.mxu0 0
        %6486 = vmatpush1.bf16.msra.mxu0 0
        %6487 = vmatprep.subr.bf16.mxu0 0
        %6488 = vmatpush1.bf16.msra.mxu0 0
        %6489 = vmatprep.subr.bf16.mxu0 0
        %6490 = vmatpush1.bf16.msra.mxu0 0
        %6491 = vmatprep.subr.bf16.mxu0 0
        %6492 = vmatpush1.bf16.msra.mxu0 0
        %6493 = vmatprep.subr.bf16.mxu0 0
        %6494 = vmatpush1.bf16.msra.mxu0 0
        %6495 = vmatprep.subr.bf16.mxu0 0
        %6496 = vmatpush1.bf16.msra.mxu0 0
        %6497 = vmatprep.mubr.bf16.mxu0 0
        %6498 = vmatmul.mubr.bf16.gmra.mrb[0].mxu0 %v6448
        %v6499 = vpop.f32.mrb[0].mxu0
        %v6500 = vadd.f32 0.0, %v6499
        %v6501 = vpop.f32.mrb[0].mxu0
        %v6502 = vadd.f32 0.0, %v6501
        %v6503 = vpop.f32.mrb[0].mxu0
        %v6504 = vadd.f32 0.0, %v6503
        %v6505 = vpop.f32.mrb[0].mxu0
        %v6506 = vadd.f32 0.0, %v6505
        %6507 = vmatprep.mubr.bf16.mxu0 0
        %6508 = vmatmul.mubr.bf16.gmra.mrb[0].mxu0 %v6451
        %v6509 = vpop.f32.mrb[0].mxu0
        %v6510 = vadd.f32 0.0, %v6509
        %v6511 = vpop.f32.mrb[0].mxu0
        %v6512 = vadd.f32 0.0, %v6511
        %v6513 = vpop.f32.mrb[0].mxu0
        %v6514 = vadd.f32 0.0, %v6513
        %v6515 = vpop.f32.mrb[0].mxu0
        %v6516 = vadd.f32 0.0, %v6515
        %6517 = vmatprep.mubr.bf16.mxu0 0
        %6518 = vmatmul.mubr.bf16.gmra.mrb[0].mxu0 %v6454
        %v6519 = vpop.f32.mrb[0].mxu0
        %v6520 = vadd.f32 0.0, %v6519
        %v6521 = vpop.f32.mrb[0].mxu0
        %v6522 = vadd.f32 0.0, %v6521
        %v6523 = vpop.f32.mrb[0].mxu0
        %v6524 = vadd.f32 0.0, %v6523
        %v6525 = vpop.f32.mrb[0].mxu0
        %v6526 = vadd.f32 0.0, %v6525
        %6527 = vmatprep.mubr.bf16.mxu0 0
        %6528 = vmatmul.mubr.bf16.gmra.mrb[0].mxu0 %v6457
        %v6529 = vpop.f32.mrb[0].mxu0
        %v6530 = vadd.f32 0.0, %v6529
        %v6531 = vpop.f32.mrb[0].mxu0
        %v6532 = vadd.f32 0.0, %v6531
        %v6533 = vpop.f32.mrb[0].mxu0
        %v6534 = vadd.f32 0.0, %v6533
        %v6535 = vpop.f32.mrb[0].mxu0
        %v6536 = vadd.f32 0.0, %v6535
        %6537 = vdwg.mxu0
        %v6538 = vadd.f32 %v6348, %v6500
        %v6539 = vadd.f32 %v6349, %v6502
        %v6540 = vadd.f32 %v6350, %v6504
        %v6541 = vadd.f32 %v6351, %v6506
        %v6542 = vadd.f32 %v6352, %v6510
        %v6543 = vadd.f32 %v6353, %v6512
        %v6544 = vadd.f32 %v6354, %v6514
        %v6545 = vadd.f32 %v6355, %v6516
        %v6546 = vadd.f32 %v6356, %v6520
        %v6547 = vadd.f32 %v6357, %v6522
        %v6548 = vadd.f32 %v6358, %v6524
        %v6549 = vadd.f32 %v6359, %v6526
        %v6550 = vadd.f32 %v6360, %v6530
        %v6551 = vadd.f32 %v6361, %v6532
        %v6552 = vadd.f32 %v6362, %v6534
        %v6553 = vadd.f32 %v6363, %v6536
        %v6554 = vrot.slane %v5488, 7
        %v6555 = vrot.slane %v6554, 4
        %v6556 = vrot.slane %v5489, 7
        %v6557 = vsel %vm1961, %v6555, %v6556
        %v6558 = vrot.slane %v5490, 7
        %v6559 = vrot.slane %v6558, 4
        %v6560 = vrot.slane %v5491, 7
        %v6561 = vsel %vm1961, %v6559, %v6560
        %v6562 = vrot.slane %v5492, 7
        %v6563 = vrot.slane %v6562, 4
        %v6564 = vrot.slane %v5493, 7
        %v6565 = vsel %vm1961, %v6563, %v6564
        %v6566 = vrot.slane %v5494, 7
        %v6567 = vrot.slane %v6566, 4
        %v6568 = vrot.slane %v5495, 7
        %v6569 = vsel %vm1961, %v6567, %v6568
        %v6570 = vrot.slane %v5496, 7
        %v6571 = vrot.slane %v6570, 4
        %v6572 = vrot.slane %v5497, 7
        %v6573 = vsel %vm1961, %v6571, %v6572
        %v6574 = vrot.slane %v5498, 7
        %v6575 = vrot.slane %v6574, 4
        %v6576 = vrot.slane %v5499, 7
        %v6577 = vsel %vm1961, %v6575, %v6576
        %v6578 = vrot.slane %v5500, 7
        %v6579 = vrot.slane %v6578, 4
        %v6580 = vrot.slane %v5501, 7
        %v6581 = vsel %vm1961, %v6579, %v6580
        %v6582 = vrot.slane %v5502, 7
        %v6583 = vrot.slane %v6582, 4
        %v6584 = vrot.slane %v5503, 7
        %v6585 = vsel %vm1961, %v6583, %v6584
        %s6586 = scalar_lea.vmem %s17, 48
        %v6587 = vld [vmem:[%s6586] sm:$0xff]
        %v6588 = vunpack.c.l.b16 %v6557
        %v6589 = vunpack.c.l.b16 %v6561
        %v6590 = vunpack.c.l.b16 %v6565
        %v6591 = vunpack.c.l.b16 %v6569
        %v6592 = vunpack.c.l.b16 %v6573
        %v6593 = vunpack.c.l.b16 %v6577
        %v6594 = vunpack.c.l.b16 %v6581
        %v6595 = vunpack.c.l.b16 %v6585
        %v6596 = vpack.c.b16 %v6589, %v6588
        %v6597 = vpack.c.b16 %v6591, %v6590
        %v6598 = vpack.c.b16 %v6593, %v6592
        %v6599 = vpack.c.b16 %v6595, %v6594
        %v6601 = vunpack.c.l.b16 %v6587
        %v6602 = vunpack.c.h.b16 %v6587
        %v6603 = vpack.c.b16 %v6601, %v6601
        %v6604 = vpack.c.b16 %v6602, %v6602
        %v6606 = vsel %vm1149, %v6596, 0
        %v6609 = vsel %vm1149, %v6597, 0
        %v6612 = vsel %vm1149, %v6598, 0
        %v6615 = vsel %vm1149, %v6599, 0
        %v6618 = vsel %vm1162, %v6603, 0
        %v6621 = vsel %vm1162, %v6604, 0
        %6623 = vmatprep.subr.bf16.mxu0 %v6621
        %6624 = vmatpush1.bf16.msra.mxu0 %v6618
        %6625 = vmatprep.subr.bf16.mxu0 0
        %6626 = vmatpush1.bf16.msra.mxu0 0
        %6627 = vmatprep.subr.bf16.mxu0 0
        %6628 = vmatpush1.bf16.msra.mxu0 0
        %6629 = vmatprep.subr.bf16.mxu0 0
        %6630 = vmatpush1.bf16.msra.mxu0 0
        %6631 = vmatprep.subr.bf16.mxu0 0
        %6632 = vmatpush1.bf16.msra.mxu0 0
        %6633 = vmatprep.subr.bf16.mxu0 0
        %6634 = vmatpush1.bf16.msra.mxu0 0
        %6635 = vmatprep.subr.bf16.mxu0 0
        %6636 = vmatpush1.bf16.msra.mxu0 0
        %6637 = vmatprep.subr.bf16.mxu0 0
        %6638 = vmatpush1.bf16.msra.mxu0 0
        %6639 = vmatprep.subr.bf16.mxu0 0
        %6640 = vmatpush1.bf16.msra.mxu0 0
        %6641 = vmatprep.subr.bf16.mxu0 0
        %6642 = vmatpush1.bf16.msra.mxu0 0
        %6643 = vmatprep.subr.bf16.mxu0 0
        %6644 = vmatpush1.bf16.msra.mxu0 0
        %6645 = vmatprep.subr.bf16.mxu0 0
        %6646 = vmatpush1.bf16.msra.mxu0 0
        %6647 = vmatprep.subr.bf16.mxu0 0
        %6648 = vmatpush1.bf16.msra.mxu0 0
        %6649 = vmatprep.subr.bf16.mxu0 0
        %6650 = vmatpush1.bf16.msra.mxu0 0
        %6651 = vmatprep.subr.bf16.mxu0 0
        %6652 = vmatpush1.bf16.msra.mxu0 0
        %6653 = vmatprep.subr.bf16.mxu0 0
        %6654 = vmatpush1.bf16.msra.mxu0 0
        %6655 = vmatprep.mubr.bf16.mxu0 0
        %6656 = vmatmul.mubr.bf16.gmra.mrb[0].mxu0 %v6606
        %v6657 = vpop.f32.mrb[0].mxu0
        %v6658 = vadd.f32 0.0, %v6657
        %v6659 = vpop.f32.mrb[0].mxu0
        %v6660 = vadd.f32 0.0, %v6659
        %v6661 = vpop.f32.mrb[0].mxu0
        %v6662 = vadd.f32 0.0, %v6661
        %v6663 = vpop.f32.mrb[0].mxu0
        %v6664 = vadd.f32 0.0, %v6663
        %6665 = vmatprep.mubr.bf16.mxu0 0
        %6666 = vmatmul.mubr.bf16.gmra.mrb[0].mxu0 %v6609
        %v6667 = vpop.f32.mrb[0].mxu0
        %v6668 = vadd.f32 0.0, %v6667
        %v6669 = vpop.f32.mrb[0].mxu0
        %v6670 = vadd.f32 0.0, %v6669
        %v6671 = vpop.f32.mrb[0].mxu0
        %v6672 = vadd.f32 0.0, %v6671
        %v6673 = vpop.f32.mrb[0].mxu0
        %v6674 = vadd.f32 0.0, %v6673
        %6675 = vmatprep.mubr.bf16.mxu0 0
        %6676 = vmatmul.mubr.bf16.gmra.mrb[0].mxu0 %v6612
        %v6677 = vpop.f32.mrb[0].mxu0
        %v6678 = vadd.f32 0.0, %v6677
        %v6679 = vpop.f32.mrb[0].mxu0
        %v6680 = vadd.f32 0.0, %v6679
        %v6681 = vpop.f32.mrb[0].mxu0
        %v6682 = vadd.f32 0.0, %v6681
        %v6683 = vpop.f32.mrb[0].mxu0
        %v6684 = vadd.f32 0.0, %v6683
        %6685 = vmatprep.mubr.bf16.mxu0 0
        %6686 = vmatmul.mubr.bf16.gmra.mrb[0].mxu0 %v6615
        %v6687 = vpop.f32.mrb[0].mxu0
        %v6688 = vadd.f32 0.0, %v6687
        %v6689 = vpop.f32.mrb[0].mxu0
        %v6690 = vadd.f32 0.0, %v6689
        %v6691 = vpop.f32.mrb[0].mxu0
        %v6692 = vadd.f32 0.0, %v6691
        %v6693 = vpop.f32.mrb[0].mxu0
        %v6694 = vadd.f32 0.0, %v6693
        %6695 = vdwg.mxu0
        %v6696 = vadd.f32 %v6538, %v6658
        %v6697 = vadd.f32 %v6539, %v6660
        %v6698 = vadd.f32 %v6540, %v6662
        %v6699 = vadd.f32 %v6541, %v6664
        %v6700 = vadd.f32 %v6542, %v6668
        %v6701 = vadd.f32 %v6543, %v6670
        %v6702 = vadd.f32 %v6544, %v6672
        %v6703 = vadd.f32 %v6545, %v6674
        %v6704 = vadd.f32 %v6546, %v6678
        %v6705 = vadd.f32 %v6547, %v6680
        %v6706 = vadd.f32 %v6548, %v6682
        %v6707 = vadd.f32 %v6549, %v6684
        %v6708 = vadd.f32 %v6550, %v6688
        %v6709 = vadd.f32 %v6551, %v6690
        %v6710 = vadd.f32 %v6552, %v6692
        %v6711 = vadd.f32 %v6553, %v6694
        %v6712 = vld [vmem:[%s18] sm:$0x3]
        %v6714 = vlaneseq
        %v6715 = vshrl.u32 %v6714, 7
        %v6716 = vsub.s32 0, %v6715
        %v6717 = vrot.slane %v6712, %v6716
        %v6718 = vlaneseq
        %v6719 = vshrl.u32 %v6718, 7
        %v6720 = vsub.s32 1, %v6719
        %v6721 = vrot.slane %v6712, %v6720
        %v6724 = vadd.f32 %v6696, %v6717
        %v6725 = vadd.f32 %v6697, %v6721
        %v6726 = vadd.f32 %v6698, %v6717
        %v6727 = vadd.f32 %v6699, %v6721
        %v6728 = vadd.f32 %v6700, %v6717
        %v6729 = vadd.f32 %v6701, %v6721
        %v6730 = vadd.f32 %v6702, %v6717
        %v6731 = vadd.f32 %v6703, %v6721
        %v6732 = vadd.f32 %v6704, %v6717
        %v6733 = vadd.f32 %v6705, %v6721
        %v6734 = vadd.f32 %v6706, %v6717
        %v6735 = vadd.f32 %v6707, %v6721
        %v6736 = vadd.f32 %v6708, %v6717
        %v6737 = vadd.f32 %v6709, %v6721
        %v6738 = vadd.f32 %v6710, %v6717
        %v6739 = vadd.f32 %v6711, %v6721
        %v6740 = vmax.f32 %v6724, 0.0
        %v6741 = vmax.f32 %v6725, 0.0
        %v6742 = vmax.f32 %v6726, 0.0
        %v6743 = vmax.f32 %v6727, 0.0
        %v6744 = vmax.f32 %v6728, 0.0
        %v6745 = vmax.f32 %v6729, 0.0
        %v6746 = vmax.f32 %v6730, 0.0
        %v6747 = vmax.f32 %v6731, 0.0
        %v6748 = vmax.f32 %v6732, 0.0
        %v6749 = vmax.f32 %v6733, 0.0
        %v6750 = vmax.f32 %v6734, 0.0
        %v6751 = vmax.f32 %v6735, 0.0
        %v6752 = vmax.f32 %v6736, 0.0
        %v6753 = vmax.f32 %v6737, 0.0
        %v6754 = vmax.f32 %v6738, 0.0
        %v6755 = vmax.f32 %v6739, 0.0
        %v6756 = vunpack.c.l.bf16 %v656
        %v6757 = vunpack.c.l.bf16 %v657
        %v6758 = vunpack.c.l.bf16 %v658
        %v6759 = vunpack.c.l.bf16 %v659
        %v6760 = vunpack.c.l.bf16 %v660
        %v6761 = vunpack.c.l.bf16 %v661
        %v6762 = vunpack.c.l.bf16 %v662
        %v6763 = vunpack.c.l.bf16 %v663
        %v6764 = vadd.f32 %v6756, 0.0
        %v6765 = vadd.f32 %v6756, %v6757
        %v6766 = vadd.f32 %v6757, %v6758
        %v6767 = vadd.f32 %v6758, %v6759
        %v6768 = vadd.f32 %v6759, %v6760
        %v6769 = vadd.f32 %v6760, %v6761
        %v6770 = vadd.f32 %v6761, %v6762
        %v6771 = vadd.f32 %v6762, %v6763
        %v6772 = vadd.f32 %v6764, %v6757
        %v6773 = vadd.f32 %v6765, %v6758
        %v6774 = vadd.f32 %v6766, %v6759
        %v6775 = vadd.f32 %v6767, %v6760
        %v6776 = vadd.f32 %v6768, %v6761
        %v6777 = vadd.f32 %v6769, %v6762
        %v6778 = vadd.f32 %v6770, %v6763
        %v6779 = vadd.f32 %v6771, 0.0
        %v6788 = vrot.slane %v6772, 7
        %v6789 = vrot.slane %v6773, 7
        %v6790 = vrot.slane %v6774, 7
        %v6791 = vrot.slane %v6775, 7
        %v6792 = vrot.slane %v6776, 7
        %v6793 = vrot.slane %v6777, 7
        %v6794 = vrot.slane %v6778, 7
        %v6795 = vrot.slane %v6779, 7
        %vm6804 = vcmask 1040384
        %v6805 = vsel %vm6804, 0.0, %v6788
        %v6806 = vsel %vm6804, 0.0, %v6789
        %v6807 = vsel %vm6804, 0.0, %v6790
        %v6808 = vsel %vm6804, 0.0, %v6791
        %v6809 = vsel %vm6804, 0.0, %v6792
        %v6810 = vsel %vm6804, 0.0, %v6793
        %v6811 = vsel %vm6804, 0.0, %v6794
        %v6812 = vsel %vm6804, 0.0, %v6795
        %v6813 = vsel %vm6804, %v6788, 0.0
        %v6814 = vsel %vm6804, %v6789, 0.0
        %v6815 = vsel %vm6804, %v6790, 0.0
        %v6816 = vsel %vm6804, %v6791, 0.0
        %v6817 = vsel %vm6804, %v6792, 0.0
        %v6818 = vsel %vm6804, %v6793, 0.0
        %v6819 = vsel %vm6804, %v6794, 0.0
        %v6820 = vsel %vm6804, %v6795, 0.0
        %vm6837 = vcmask 1046528
        %v6838 = vrot.slane %v6805, 1
        %v6839 = vrot.slane %v6813, 1
        %v6840 = vsel %vm6837, %v6838, %v6839
        %v6841 = vrot.slane %v6806, 1
        %v6842 = vrot.slane %v6814, 1
        %v6843 = vsel %vm6837, %v6841, %v6842
        %v6844 = vrot.slane %v6807, 1
        %v6845 = vrot.slane %v6815, 1
        %v6846 = vsel %vm6837, %v6844, %v6845
        %v6847 = vrot.slane %v6808, 1
        %v6848 = vrot.slane %v6816, 1
        %v6849 = vsel %vm6837, %v6847, %v6848
        %v6850 = vrot.slane %v6809, 1
        %v6851 = vrot.slane %v6817, 1
        %v6852 = vsel %vm6837, %v6850, %v6851
        %v6853 = vrot.slane %v6810, 1
        %v6854 = vrot.slane %v6818, 1
        %v6855 = vsel %vm6837, %v6853, %v6854
        %v6856 = vrot.slane %v6811, 1
        %v6857 = vrot.slane %v6819, 1
        %v6858 = vsel %vm6837, %v6856, %v6857
        %v6859 = vrot.slane %v6812, 1
        %v6860 = vrot.slane %v6820, 1
        %v6861 = vsel %vm6837, %v6859, %v6860
        %v6870 = vadd.f32 %v6805, %v6840
        %v6871 = vadd.f32 %v6806, %v6843
        %v6872 = vadd.f32 %v6807, %v6846
        %v6873 = vadd.f32 %v6808, %v6849
        %v6874 = vadd.f32 %v6809, %v6852
        %v6875 = vadd.f32 %v6810, %v6855
        %v6876 = vadd.f32 %v6811, %v6858
        %v6877 = vadd.f32 %v6812, %v6861
        %vm6878 = vcmask 1045504
        %v6879 = vrot.slane %v6805, 2
        %v6880 = vrot.slane %v6813, 2
        %v6881 = vsel %vm6878, %v6879, %v6880
        %v6882 = vrot.slane %v6806, 2
        %v6883 = vrot.slane %v6814, 2
        %v6884 = vsel %vm6878, %v6882, %v6883
        %v6885 = vrot.slane %v6807, 2
        %v6886 = vrot.slane %v6815, 2
        %v6887 = vsel %vm6878, %v6885, %v6886
        %v6888 = vrot.slane %v6808, 2
        %v6889 = vrot.slane %v6816, 2
        %v6890 = vsel %vm6878, %v6888, %v6889
        %v6891 = vrot.slane %v6809, 2
        %v6892 = vrot.slane %v6817, 2
        %v6893 = vsel %vm6878, %v6891, %v6892
        %v6894 = vrot.slane %v6810, 2
        %v6895 = vrot.slane %v6818, 2
        %v6896 = vsel %vm6878, %v6894, %v6895
        %v6897 = vrot.slane %v6811, 2
        %v6898 = vrot.slane %v6819, 2
        %v6899 = vsel %vm6878, %v6897, %v6898
        %v6900 = vrot.slane %v6812, 2
        %v6901 = vrot.slane %v6820, 2
        %v6902 = vsel %vm6878, %v6900, %v6901
        %v6911 = vadd.f32 %v6870, %v6881
        %v6912 = vadd.f32 %v6871, %v6884
        %v6913 = vadd.f32 %v6872, %v6887
        %v6914 = vadd.f32 %v6873, %v6890
        %v6915 = vadd.f32 %v6874, %v6893
        %v6916 = vadd.f32 %v6875, %v6896
        %v6917 = vadd.f32 %v6876, %v6899
        %v6918 = vadd.f32 %v6877, %v6902
        %v6919 = vmul.f32 %v6911, 0.11111111
        %v6920 = vmul.f32 %v6912, 0.11111111
        %v6921 = vmul.f32 %v6913, 0.11111111
        %v6922 = vmul.f32 %v6914, 0.11111111
        %v6923 = vmul.f32 %v6915, 0.11111111
        %v6924 = vmul.f32 %v6916, 0.11111111
        %v6925 = vmul.f32 %v6917, 0.11111111
        %v6926 = vmul.f32 %v6918, 0.11111111
        %v6927 = vpack.c.bf16 %v6920, %v6919
        %v6928 = vpack.c.bf16 %v6922, %v6921
        %v6929 = vpack.c.bf16 %v6924, %v6923
        %v6930 = vpack.c.bf16 %v6926, %v6925
        %v6931 = vld [vmem:[%s19] sm:$0xff]
        %v6932 = vld [vmem:[%s19 + $0x8] sm:$0xff]
        %v6935 = vunpack.c.l.b16 %v6931
        %v6936 = vunpack.c.h.b16 %v6931
        %v6937 = vunpack.c.l.b16 %v6932
        %v6938 = vunpack.c.h.b16 %v6932
        %v6939 = vpack.c.b16 %v6937, %v6935
        %v6940 = vpack.c.b16 %v6938, %v6936
        %v6944 = vsel %vm696, %v6927, 0
        %v6947 = vsel %vm696, %v6928, 0
        %v6950 = vsel %vm696, %v6929, 0
        %v6953 = vsel %vm696, %v6930, 0
        %6955 = vmatprep.subr.bf16.mxu0 %v6940
        %6956 = vmatpush1.bf16.msra.mxu0 %v6939
        %6957 = vmatprep.subr.bf16.mxu0 0
        %6958 = vmatpush1.bf16.msra.mxu0 0
        %6959 = vmatprep.subr.bf16.mxu0 0
        %6960 = vmatpush1.bf16.msra.mxu0 0
        %6961 = vmatprep.subr.bf16.mxu0 0
        %6962 = vmatpush1.bf16.msra.mxu0 0
        %6963 = vmatprep.subr.bf16.mxu0 0
        %6964 = vmatpush1.bf16.msra.mxu0 0
        %6965 = vmatprep.subr.bf16.mxu0 0
        %6966 = vmatpush1.bf16.msra.mxu0 0
        %6967 = vmatprep.subr.bf16.mxu0 0
        %6968 = vmatpush1.bf16.msra.mxu0 0
        %6969 = vmatprep.subr.bf16.mxu0 0
        %6970 = vmatpush1.bf16.msra.mxu0 0
        %6971 = vmatprep.subr.bf16.mxu0 0
        %6972 = vmatpush1.bf16.msra.mxu0 0
        %6973 = vmatprep.subr.bf16.mxu0 0
        %6974 = vmatpush1.bf16.msra.mxu0 0
        %6975 = vmatprep.subr.bf16.mxu0 0
        %6976 = vmatpush1.bf16.msra.mxu0 0
        %6977 = vmatprep.subr.bf16.mxu0 0
        %6978 = vmatpush1.bf16.msra.mxu0 0
        %6979 = vmatprep.subr.bf16.mxu0 0
        %6980 = vmatpush1.bf16.msra.mxu0 0
        %6981 = vmatprep.subr.bf16.mxu0 0
        %6982 = vmatpush1.bf16.msra.mxu0 0
        %6983 = vmatprep.subr.bf16.mxu0 0
        %6984 = vmatpush1.bf16.msra.mxu0 0
        %6985 = vmatprep.subr.bf16.mxu0 0
        %6986 = vmatpush1.bf16.msra.mxu0 0
        %6987 = vmatprep.mubr.bf16.mxu0 0
        %6988 = vmatmul.mubr.bf16.gmra.mrb[0].mxu0 %v6944
        %v6989 = vpop.f32.mrb[0].mxu0
        %v6990 = vadd.f32 0.0, %v6989
        %v6991 = vpop.f32.mrb[0].mxu0
        %v6992 = vadd.f32 0.0, %v6991
        %v6993 = vpop.f32.mrb[0].mxu0
        %v6994 = vadd.f32 0.0, %v6993
        %v6995 = vpop.f32.mrb[0].mxu0
        %v6996 = vadd.f32 0.0, %v6995
        %6997 = vmatprep.mubr.bf16.mxu0 0
        %6998 = vmatmul.mubr.bf16.gmra.mrb[0].mxu0 %v6947
        %v6999 = vpop.f32.mrb[0].mxu0
        %v7000 = vadd.f32 0.0, %v6999
        %v7001 = vpop.f32.mrb[0].mxu0
        %v7002 = vadd.f32 0.0, %v7001
        %v7003 = vpop.f32.mrb[0].mxu0
        %v7004 = vadd.f32 0.0, %v7003
        %v7005 = vpop.f32.mrb[0].mxu0
        %v7006 = vadd.f32 0.0, %v7005
        %7007 = vmatprep.mubr.bf16.mxu0 0
        %7008 = vmatmul.mubr.bf16.gmra.mrb[0].mxu0 %v6950
        %v7009 = vpop.f32.mrb[0].mxu0
        %v7010 = vadd.f32 0.0, %v7009
        %v7011 = vpop.f32.mrb[0].mxu0
        %v7012 = vadd.f32 0.0, %v7011
        %v7013 = vpop.f32.mrb[0].mxu0
        %v7014 = vadd.f32 0.0, %v7013
        %v7015 = vpop.f32.mrb[0].mxu0
        %v7016 = vadd.f32 0.0, %v7015
        %7017 = vmatprep.mubr.bf16.mxu0 0
        %7018 = vmatmul.mubr.bf16.gmra.mrb[0].mxu0 %v6953
        %v7019 = vpop.f32.mrb[0].mxu0
        %v7020 = vadd.f32 0.0, %v7019
        %v7021 = vpop.f32.mrb[0].mxu0
        %v7022 = vadd.f32 0.0, %v7021
        %v7023 = vpop.f32.mrb[0].mxu0
        %v7024 = vadd.f32 0.0, %v7023
        %v7025 = vpop.f32.mrb[0].mxu0
        %v7026 = vadd.f32 0.0, %v7025
        %7027 = vdwg.mxu0
        %v7028 = vld [vmem:[%s20] sm:$0x3]
        %v7030 = vlaneseq
        %v7031 = vshrl.u32 %v7030, 7
        %v7032 = vsub.s32 0, %v7031
        %v7033 = vrot.slane %v7028, %v7032
        %v7034 = vlaneseq
        %v7035 = vshrl.u32 %v7034, 7
        %v7036 = vsub.s32 1, %v7035
        %v7037 = vrot.slane %v7028, %v7036
        %v7040 = vadd.f32 %v6990, %v7033
        %v7041 = vadd.f32 %v6992, %v7037
        %v7042 = vadd.f32 %v6994, %v7033
        %v7043 = vadd.f32 %v6996, %v7037
        %v7044 = vadd.f32 %v7000, %v7033
        %v7045 = vadd.f32 %v7002, %v7037
        %v7046 = vadd.f32 %v7004, %v7033
        %v7047 = vadd.f32 %v7006, %v7037
        %v7048 = vadd.f32 %v7010, %v7033
        %v7049 = vadd.f32 %v7012, %v7037
        %v7050 = vadd.f32 %v7014, %v7033
        %v7051 = vadd.f32 %v7016, %v7037
        %v7052 = vadd.f32 %v7020, %v7033
        %v7053 = vadd.f32 %v7022, %v7037
        %v7054 = vadd.f32 %v7024, %v7033
        %v7055 = vadd.f32 %v7026, %v7037
        %v7056 = vmax.f32 %v7040, 0.0
        %v7057 = vmax.f32 %v7041, 0.0
        %v7058 = vmax.f32 %v7042, 0.0
        %v7059 = vmax.f32 %v7043, 0.0
        %v7060 = vmax.f32 %v7044, 0.0
        %v7061 = vmax.f32 %v7045, 0.0
        %v7062 = vmax.f32 %v7046, 0.0
        %v7063 = vmax.f32 %v7047, 0.0
        %v7064 = vmax.f32 %v7048, 0.0
        %v7065 = vmax.f32 %v7049, 0.0
        %v7066 = vmax.f32 %v7050, 0.0
        %v7067 = vmax.f32 %v7051, 0.0
        %v7068 = vmax.f32 %v7052, 0.0
        %v7069 = vmax.f32 %v7053, 0.0
        %v7070 = vmax.f32 %v7054, 0.0
        %v7071 = vmax.f32 %v7055, 0.0
        %7088 = vrot.lane.b32.xlu0 %v2895, 64
        %v7089 = vpop.permute.xlu0 %7088
        %7090 = vrot.lane.b32.xlu0 %v2896, 64
        %v7091 = vpop.permute.xlu0 %7090
        %7092 = vrot.lane.b32.xlu0 %v2897, 64
        %v7093 = vpop.permute.xlu0 %7092
        %7094 = vrot.lane.b32.xlu0 %v2898, 64
        %v7095 = vpop.permute.xlu0 %7094
        %7096 = vrot.lane.b32.xlu0 %v2899, 64
        %v7097 = vpop.permute.xlu0 %7096
        %7098 = vrot.lane.b32.xlu0 %v2900, 64
        %v7099 = vpop.permute.xlu0 %7098
        %7100 = vrot.lane.b32.xlu0 %v2901, 64
        %v7101 = vpop.permute.xlu0 %7100
        %7102 = vrot.lane.b32.xlu0 %v2902, 64
        %v7103 = vpop.permute.xlu0 %7102
        %7104 = vrot.lane.b32.xlu0 %v2903, 64
        %v7105 = vpop.permute.xlu0 %7104
        %7106 = vrot.lane.b32.xlu0 %v2904, 64
        %v7107 = vpop.permute.xlu0 %7106
        %7108 = vrot.lane.b32.xlu0 %v2905, 64
        %v7109 = vpop.permute.xlu0 %7108
        %7110 = vrot.lane.b32.xlu0 %v2906, 64
        %v7111 = vpop.permute.xlu0 %7110
        %7112 = vrot.lane.b32.xlu0 %v2907, 64
        %v7113 = vpop.permute.xlu0 %7112
        %7114 = vrot.lane.b32.xlu0 %v2908, 64
        %v7115 = vpop.permute.xlu0 %7114
        %7116 = vrot.lane.b32.xlu0 %v2909, 64
        %v7117 = vpop.permute.xlu0 %7116
        %7118 = vrot.lane.b32.xlu0 %v2910, 64
        %v7119 = vpop.permute.xlu0 %7118
        %vm7120 = vcmask 523264
        %v7121 = vsel %vm7120, %v7089, %v7091
        %v7122 = vsel %vm7120, %v7093, %v7095
        %v7123 = vsel %vm7120, %v7097, %v7099
        %v7124 = vsel %vm7120, %v7101, %v7103
        %v7125 = vsel %vm7120, %v7105, %v7107
        %v7126 = vsel %vm7120, %v7109, %v7111
        %v7127 = vsel %vm7120, %v7113, %v7115
        %v7128 = vsel %vm7120, %v7117, %v7119
        %7161 = vrot.lane.b32.xlu0 %v7056, 64
        %v7162 = vpop.permute.xlu0 %7161
        %7163 = vrot.lane.b32.xlu0 %v7057, 64
        %v7164 = vpop.permute.xlu0 %7163
        %7165 = vrot.lane.b32.xlu0 %v7058, 64
        %v7166 = vpop.permute.xlu0 %7165
        %7167 = vrot.lane.b32.xlu0 %v7059, 64
        %v7168 = vpop.permute.xlu0 %7167
        %7169 = vrot.lane.b32.xlu0 %v7060, 64
        %v7170 = vpop.permute.xlu0 %7169
        %7171 = vrot.lane.b32.xlu0 %v7061, 64
        %v7172 = vpop.permute.xlu0 %7171
        %7173 = vrot.lane.b32.xlu0 %v7062, 64
        %v7174 = vpop.permute.xlu0 %7173
        %7175 = vrot.lane.b32.xlu0 %v7063, 64
        %v7176 = vpop.permute.xlu0 %7175
        %7177 = vrot.lane.b32.xlu0 %v7064, 64
        %v7178 = vpop.permute.xlu0 %7177
        %7179 = vrot.lane.b32.xlu0 %v7065, 64
        %v7180 = vpop.permute.xlu0 %7179
        %7181 = vrot.lane.b32.xlu0 %v7066, 64
        %v7182 = vpop.permute.xlu0 %7181
        %7183 = vrot.lane.b32.xlu0 %v7067, 64
        %v7184 = vpop.permute.xlu0 %7183
        %7185 = vrot.lane.b32.xlu0 %v7068, 64
        %v7186 = vpop.permute.xlu0 %7185
        %7187 = vrot.lane.b32.xlu0 %v7069, 64
        %v7188 = vpop.permute.xlu0 %7187
        %7189 = vrot.lane.b32.xlu0 %v7070, 64
        %v7190 = vpop.permute.xlu0 %7189
        %7191 = vrot.lane.b32.xlu0 %v7071, 64
        %v7192 = vpop.permute.xlu0 %7191
        %v7193 = vsel %vm7120, %v7162, %v7164
        %v7194 = vsel %vm7120, %v7166, %v7168
        %v7195 = vsel %vm7120, %v7170, %v7172
        %v7196 = vsel %vm7120, %v7174, %v7176
        %v7197 = vsel %vm7120, %v7178, %v7180
        %v7198 = vsel %vm7120, %v7182, %v7184
        %v7199 = vsel %vm7120, %v7186, %v7188
        %v7200 = vsel %vm7120, %v7190, %v7192
        %v7217 = vsel %vm7120, %v811, %v7089
        %v7218 = vsel %vm7120, %v813, %v7093
        %v7219 = vsel %vm7120, %v815, %v7097
        %v7220 = vsel %vm7120, %v817, %v7101
        %v7221 = vsel %vm7120, %v819, %v7105
        %v7222 = vsel %vm7120, %v821, %v7109
        %v7223 = vsel %vm7120, %v823, %v7113
        %v7224 = vsel %vm7120, %v825, %v7117
        %v7225 = vsel %vm7120, %v6741, %v7162
        %v7226 = vsel %vm7120, %v6743, %v7166
        %v7227 = vsel %vm7120, %v6745, %v7170
        %v7228 = vsel %vm7120, %v6747, %v7174
        %v7229 = vsel %vm7120, %v6749, %v7178
        %v7230 = vsel %vm7120, %v6751, %v7182
        %v7231 = vsel %vm7120, %v6753, %v7186
        %v7232 = vsel %vm7120, %v6755, %v7190
        %7233 = vst [vmem:[%s649] sm:$0xff] %v810
        %7234 = vst [vmem:[%s649 + $0x8] sm:$0xff] %v7217
        %7235 = vst [vmem:[%s649 + $0x10] sm:$0xff] %v7121
        %7236 = vst [vmem:[%s649 + $0x18] sm:$0xff] %v6740
        %7237 = vst [vmem:[%s649 + $0x20] sm:$0xff] %v7225
        %7238 = vst [vmem:[%s649 + $0x28] sm:$0xff] %v7193
        %7239 = vst [vmem:[%s649 + $0x30] sm:$0xff] %v812
        %7240 = vst [vmem:[%s649 + $0x38] sm:$0xff] %v7218
        %7241 = vst [vmem:[%s649 + $0x40] sm:$0xff] %v7122
        %7242 = vst [vmem:[%s649 + $0x48] sm:$0xff] %v6742
        %7243 = vst [vmem:[%s649 + $0x50] sm:$0xff] %v7226
        %7244 = vst [vmem:[%s649 + $0x58] sm:$0xff] %v7194
        %7245 = vst [vmem:[%s649 + $0x60] sm:$0xff] %v814
        %7246 = vst [vmem:[%s649 + $0x68] sm:$0xff] %v7219
        %7247 = vst [vmem:[%s649 + $0x70] sm:$0xff] %v7123
        %7248 = vst [vmem:[%s649 + $0x78] sm:$0xff] %v6744
        %7249 = vst [vmem:[%s649 + $0x80] sm:$0xff] %v7227
        %7250 = vst [vmem:[%s649 + $0x88] sm:$0xff] %v7195
        %7251 = vst [vmem:[%s649 + $0x90] sm:$0xff] %v816
        %7252 = vst [vmem:[%s649 + $0x98] sm:$0xff] %v7220
        %7253 = vst [vmem:[%s649 + $0xa0] sm:$0xff] %v7124
        %7254 = vst [vmem:[%s649 + $0xa8] sm:$0xff] %v6746
        %7255 = vst [vmem:[%s649 + $0xb0] sm:$0xff] %v7228
        %7256 = vst [vmem:[%s649 + $0xb8] sm:$0xff] %v7196
        %7257 = vst [vmem:[%s649 + $0xc0] sm:$0xff] %v818
        %7258 = vst [vmem:[%s649 + $0xc8] sm:$0xff] %v7221
        %7259 = vst [vmem:[%s649 + $0xd0] sm:$0xff] %v7125
        %7260 = vst [vmem:[%s649 + $0xd8] sm:$0xff] %v6748
        %7261 = vst [vmem:[%s649 + $0xe0] sm:$0xff] %v7229
        %7262 = vst [vmem:[%s649 + $0xe8] sm:$0xff] %v7197
        %7263 = vst [vmem:[%s649 + $0xf0] sm:$0xff] %v820
        %7264 = vst [vmem:[%s649 + $0xf8] sm:$0xff] %v7222
        %7265 = vst [vmem:[%s649 + $0x100] sm:$0xff] %v7126
        %7266 = vst [vmem:[%s649 + $0x108] sm:$0xff] %v6750
        %7267 = vst [vmem:[%s649 + $0x110] sm:$0xff] %v7230
        %7268 = vst [vmem:[%s649 + $0x118] sm:$0xff] %v7198
        %7269 = vst [vmem:[%s649 + $0x120] sm:$0xff] %v822
        %7270 = vst [vmem:[%s649 + $0x128] sm:$0xff] %v7223
        %7271 = vst [vmem:[%s649 + $0x130] sm:$0xff] %v7127
        %7272 = vst [vmem:[%s649 + $0x138] sm:$0xff] %v6752
        %7273 = vst [vmem:[%s649 + $0x140] sm:$0xff] %v7231
        %7274 = vst [vmem:[%s649 + $0x148] sm:$0xff] %v7199
        %7275 = vst [vmem:[%s649 + $0x150] sm:$0xff] %v824
        %7276 = vst [vmem:[%s649 + $0x158] sm:$0xff] %v7224
        %7277 = vst [vmem:[%s649 + $0x160] sm:$0xff] %v7128
        %7278 = vst [vmem:[%s649 + $0x168] sm:$0xff] %v6754
        %7279 = vst [vmem:[%s649 + $0x170] sm:$0xff] %v7232
        %7280 = vst [vmem:[%s649 + $0x178] sm:$0xff] %v7200
        %s7281 = sand.u32 %s489, 1
        %s7282 = scalar_lea.sflag [#allocation3], %s7281
        %s7283 = sand.u32 %s489, 1
        %s7284 = smul.addr %s7283, 384
        %s7285 = scalar_lea.vmem [#allocation2], %s7284
        // Predicated region
        $region105: #{inception_c_forward.1} parent=103 // pred_check
          %p7286 = pneg %p499
        $region106: #{inception_c_forward.1} parent=103 // pred_check_branch
          %7288 = sbr.rel (%p7286) target = $region108
        $region107: #{inception_c_forward.1} parent=103 // pred_region
          %s7290 = ssub.s32 6144, 6144
          %7291 = vsyncadd %s7282, %s7290
          %s7292 = smul.addr %s35, 48
          %s7293 = smul.addr %s7292, 128
          %s7294 = scalar_lea.hbm %s21, %s7293
          %s7295 = sshll.u32 %s7285, 4
          %s7296 = int_to_ptr.vmem [resolvable:$true] %s7295
          %7301 = dma.vmem_to_hbm [thread:$0]  %s7296, 6144, %s7294, %s7282, 768, 768, 48
        $region108: #{inception_c_forward.1} parent=103 // pred_fallthru
          _
      $region104: #{inception_c_forward.1} parent=5 // pred_fallthru
        _
      %p7302 = scmp.le.s32.totalorder 2, %s30
      // Predicated region
      $region109: #{inception_c_forward.1} parent=5 // pred_check
        %p7303 = pneg %p7302
      $region110: #{inception_c_forward.1} parent=5 // pred_check_branch
        %7305 = sbr.rel (%p7303) target = $region112
      $region111: #{inception_c_forward.1} parent=5 // pred_region
        %s7306 = ssub.s32 %s30, 2
        // Predicated region
        $region113: #{inception_c_forward.1} parent=111 // pred_check
          %p7307 = pneg %p505
        $region114: #{inception_c_forward.1} parent=111 // pred_check_branch
          %7309 = sbr.rel (%p7307) target = $region116
        $region115: #{inception_c_forward.1} parent=111 // pred_region
          %s7310 = sand.u32 %s490, 1
          %s7311 = scalar_lea.sflag [#allocation3], %s7310
          %s7312 = sand.u32 %s490, 1
          %s7313 = smul.addr %s7312, 384
          %s7314 = scalar_lea.vmem [#allocation2], %s7313
          %7315 = dma.done %s7311, 6144
        $region116: #{inception_c_forward.1} parent=111 // pred_fallthru
          _
      $region112: #{inception_c_forward.1} parent=5 // pred_fallthru
        _
    $region6: #{inception_c_forward.1} parent=1 // loop_footer
      %s34 = sadd.s32 1, %s30
    $region7: #{inception_c_forward.1} parent=1 // loop_footer_branch
      %29 = sbr.rel target = $region3
    $region8: #{inception_c_forward.1} parent=1 // loop_exit
      _
    %7316 = vsyncpa [#allocation3], 1
    %s7317 = scalar_lea.sflag [#allocation3], 1
    %7318 = vsyncpa %s7317, 1

</llo_original>
